<compile_context>
chip_gen: v7x
topology: tpu7x:2x2x1
jax: 0.10.0
libtpu: 0.0.40
codegen_flags: <defaults>
</compile_context>

<pallas_src>
import jax
import jax.numpy as jnp
from jax import lax
from jax.experimental import pallas as pl
from jax.experimental.pallas import tpu as pltpu


def _up_fused_kernel(x_ref, w1_ref, shift_ref, w2_ref, out_ref,
                     xpad_ref, midpad_ref, patch_ref):
    """One batch element: 3x3 conv -> BN shift -> ReLU -> 3x3 conv.

    Each conv = 9 shifted lane-slice writes into an im2col VMEM staging
    buffer + a single (H*W, 9*C1) @ (9*C1, Cout) MXU matmul (bf16 in, f32 acc).
    """
    _, H, W, C1 = x_ref.shape
    C4 = w2_ref.shape[1]
    cdt = xpad_ref.dtype                       # bf16 compute dtype (MXU input)

    # ---- zero ONLY the 1-px halo border of the padded scratches.  The
    # interior is fully overwritten every iteration, so zeroing the whole
    # plane would just burn the store slot.  Done per-iteration (not under
    # program_id==0) so it stays correct when the batch axis is sharded
    # across TensorCores ("parallel" semantics on v7x). ----
    zrow = jnp.zeros((1, W + 2, C1), cdt)
    zcol = jnp.zeros((H + 2, 1, C1), cdt)
    for pref in (xpad_ref, midpad_ref):
        pref[0:1, :, :] = zrow
        pref[H + 1:H + 2, :, :] = zrow
        pref[:, 0:1, :] = zcol
        pref[:, W + 1:W + 2, :] = zcol

    # ---- stage the unpadded input into the padded VMEM scratch (halo handled
    # here instead of a wrapper-side jnp.pad / extra HBM array). ----
    xpad_ref[1:H + 1, 1:W + 1, :] = x_ref[0]

    # ---- conv1: im2col (9 shifted writes) + one MXU matmul ----
    for k in range(9):
        dy, dx = divmod(k, 3)
        patch_ref[:, :, k * C1:(k + 1) * C1] = xpad_ref[dy:dy + H, dx:dx + W, :]
    acc1 = jnp.dot(patch_ref[...].reshape(H * W, 9 * C1), w1_ref[...],
                   preferred_element_type=jnp.float32)          # (H*W, C1) f32

    # BN scale is folded into w1 in the wrapper; only shift + ReLU remain.
    mid = jnp.maximum(acc1 + shift_ref[...], 0.0)
    midpad_ref[1:H + 1, 1:W + 1, :] = mid.reshape(H, W, C1).astype(cdt)

    # ---- conv2 (out_ch*4 channels): same im2col trick, reusing patch_ref ----
    for k in range(9):
        dy, dx = divmod(k, 3)
        patch_ref[:, :, k * C1:(k + 1) * C1] = midpad_ref[dy:dy + H, dx:dx + W, :]
    acc2 = jnp.dot(patch_ref[...].reshape(H * W, 9 * C1), w2_ref[...],
                   preferred_element_type=jnp.float32)          # (H*W, C4) f32

    # ---- lane-dense output: the out block is (1, H, W*C4) with W*C4 = 256
    # lanes, so the HBM writeback DMA is dense/unmasked.  Assemble it with W
    # static lane-slice stores (avoids a lane-merging in-register reshape). ----
    acc2 = acc2.reshape(H, W, C4)
    for w in range(W):
        out_ref[0, :, w * C4:(w + 1) * C4] = acc2[:, w, :].astype(out_ref.dtype)


def up_forward(x_nchw, w1_oihw, gamma, beta, run_mean, run_var, w2_oihw,
               eps=1e-5):
    """Pallas implementation of Up.forward.  x_nchw: (N, in_ch, H, W) float32."""
    N, C1, H, W = x_nchw.shape
    C4 = w2_oihw.shape[0]            # out_ch * 4
    out_ch = C4 // 4

    # NCHW -> NHWC, bf16 MXU inputs (accumulation stays f32 in-kernel).
    x = jnp.transpose(x_nchw, (0, 2, 3, 1)).astype(jnp.bfloat16)

    # Fold BatchNorm (inference: running stats) into conv1's output channels;
    # only the shift is applied in-kernel.
    inv_std = gamma / jnp.sqrt(run_var + eps)
    w1k = jnp.transpose(w1_oihw, (2, 3, 1, 0)).reshape(9 * C1, C1)
    w1k = (w1k * inv_std[None, :]).astype(jnp.bfloat16)          # scale folded
    shift = (beta - run_mean * inv_std).reshape(1, C1).astype(jnp.float32)
    w2k = jnp.transpose(w2_oihw, (2, 3, 1, 0)).reshape(9 * C1, C4)
    w2k = w2k.astype(jnp.bfloat16)

    y = pl.pallas_call(
        _up_fused_kernel,
        out_shape=jax.ShapeDtypeStruct((N, H, W * C4), jnp.float32),
        grid_spec=pltpu.PrefetchScalarGridSpec(
            num_scalar_prefetch=0,
            grid=(N,),
            in_specs=[
                pl.BlockSpec((1, H, W, C1), lambda n: (n, 0, 0, 0)),
                pl.BlockSpec((9 * C1, C1), lambda n: (0, 0)),
                pl.BlockSpec((1, C1), lambda n: (0, 0)),
                pl.BlockSpec((9 * C1, C4), lambda n: (0, 0)),
            ],
            out_specs=pl.BlockSpec((1, H, W * C4), lambda n: (n, 0, 0)),
            scratch_shapes=[
                pltpu.VMEM((H + 2, W + 2, C1), jnp.bfloat16),   # padded input
                pltpu.VMEM((H + 2, W + 2, C1), jnp.bfloat16),   # padded conv1 out
                pltpu.VMEM((H, W, 9 * C1), jnp.bfloat16),       # im2col patches
            ],
        ),
        compiler_params=pltpu.CompilerParams(
            # batch elements are independent -> shard across v7x's 2 TCs
            dimension_semantics=("parallel",)),
    )(x, w1k, shift, w2k)

    # Un-flatten (W, C4), PixelShuffle(2) and back to NCHW (pure layout glue):
    # PyTorch: out[n, c, 2h+i, 2w+j] = conv2_out[n, c*4 + i*2 + j, h, w]
    y = y.reshape(N, H, W, out_ch, 2, 2)
    y = jnp.transpose(y, (0, 1, 4, 2, 5, 3))
    y = y.reshape(N, 2 * H, 2 * W, out_ch)
    return jnp.transpose(y, (0, 3, 1, 2))               # back to NCHW


def up_reference(x, w1, gamma, beta, mean, var, w2, eps=1e-5):
    """Pure-JAX NCHW reference mirroring the PyTorch module (BN eval mode)."""
    dn = ('NCHW', 'OIHW', 'NCHW')
    y = lax.conv_general_dilated(x, w1, (1, 1), ((1, 1), (1, 1)),
                                 dimension_numbers=dn)
    y = (y - mean[None, :, None, None]) * (
        gamma[None, :, None, None] / jnp.sqrt(var[None, :, None, None] + eps)
    ) + beta[None, :, None, None]
    y = jnp.maximum(y, 0.0)
    y = lax.conv_general_dilated(y, w2, (1, 1), ((1, 1), (1, 1)),
                                 dimension_numbers=dn)
    N, C4, H, W = y.shape
    C = C4 // 4
    y = y.reshape(N, C, 2, 2, H, W)           # PixelShuffle(2), NCHW
    y = jnp.transpose(y, (0, 1, 4, 2, 5, 3))
    return y.reshape(N, C, 2 * H, 2 * W)


if __name__ == "__main__":
    key = jax.random.PRNGKey(0)
    ks = jax.random.split(key, 7)

    N, in_ch, out_ch, H, W = 2, 8, 4, 16, 16

    x = jax.random.normal(ks[0], (N, in_ch, H, W), jnp.float32)
    # deterministic synthetic parameters (shapes from Up.__init__)
    w1 = 0.1 * jax.random.normal(ks[1], (in_ch, in_ch, 3, 3), jnp.float32)
    w2 = 0.1 * jax.random.normal(ks[2], (out_ch * 4, in_ch, 3, 3), jnp.float32)
    gamma = 1.0 + 0.1 * jax.random.normal(ks[3], (in_ch,), jnp.float32)
    beta = 0.1 * jax.random.normal(ks[4], (in_ch,), jnp.float32)
    run_mean = 0.1 * jax.random.normal(ks[5], (in_ch,), jnp.float32)
    run_var = 1.0 + 0.1 * jnp.abs(jax.random.normal(ks[6], (in_ch,), jnp.float32))

    out = up_forward(x, w1, gamma, beta, run_mean, run_var, w2)
    out = jax.block_until_ready(out)

    ref = up_reference(x, w1, gamma, beta, run_mean, run_var, w2)

    assert out.shape == (N, out_ch, 2 * H, 2 * W), out.shape
    # bf16 MXU inputs -> looser tolerance than the pure-f32 version
    err = float(jnp.max(jnp.abs(out - ref)))
    assert jnp.allclose(out, ref, atol=5e-2, rtol=5e-2), err
    print("KERNEL_OK")
</pallas_src>

<mosaic_0001>
module attributes {stable_mosaic.version = 11 : i64} {
  func.func @_up_fused_kernel(%arg0: i32, %arg1: memref<1x16x16x8xbf16, #tpu.memory_space<vmem>>, %arg2: memref<72x8xbf16, #tpu.memory_space<vmem>>, %arg3: memref<1x8xf32, #tpu.memory_space<vmem>>, %arg4: memref<72x16xbf16, #tpu.memory_space<vmem>>, %arg5: memref<1x16x256xf32, #tpu.memory_space<vmem>>, %arg6: memref<18x18x8xbf16, #tpu.memory_space<vmem>>, %arg7: memref<18x18x8xbf16, #tpu.memory_space<vmem>>, %arg8: memref<16x16x72xbf16, #tpu.memory_space<vmem>>) attributes {dimension_semantics = [#tpu.dimension_semantics<parallel>], iteration_bounds = array<i64: 2>, scalar_prefetch = 0 : i64, scratch_operands = 3 : i64, tpu.core_type = #tpu.core_type<tc>, window_params = [{transform_indices = @transform_0, window_bounds = array<i64: 1, 16, 16, 8>}, {pipeline_mode = #tpu.pipeline_mode<synchronous>, transform_indices = @transform_1, window_bounds = array<i64: 72, 8>}, {pipeline_mode = #tpu.pipeline_mode<synchronous>, transform_indices = @transform_2, window_bounds = array<i64: 1, 8>}, {pipeline_mode = #tpu.pipeline_mode<synchronous>, transform_indices = @transform_3, window_bounds = array<i64: 72, 16>}, {transform_indices = @transform_4, window_bounds = array<i64: 1, 16, 256>}]} {
    %cst = arith.constant 0.000000e+00 : bf16
    %0 = vector.broadcast %cst : bf16 to vector<1x18x8xbf16>
    %cst_0 = arith.constant 0.000000e+00 : bf16
    %1 = vector.broadcast %cst_0 : bf16 to vector<18x1x8xbf16>
    %c0 = arith.constant 0 : index
    %c0_1 = arith.constant 0 : index
    %c0_2 = arith.constant 0 : index
    %2 = vector.load %arg6[%c0, %c0_1, %c0_2] : memref<18x18x8xbf16, #tpu.memory_space<vmem>>, vector<1x18x8xbf16>
    tpu.vector_store %arg6[%c0, %c0_1, %c0_2], %0 {strides = array<i32>} : memref<18x18x8xbf16, #tpu.memory_space<vmem>>, vector<1x18x8xbf16>,
    %c17 = arith.constant 17 : index
    %c0_3 = arith.constant 0 : index
    %c0_4 = arith.constant 0 : index
    %3 = vector.load %arg6[%c17, %c0_3, %c0_4] : memref<18x18x8xbf16, #tpu.memory_space<vmem>>, vector<1x18x8xbf16>
    tpu.vector_store %arg6[%c17, %c0_3, %c0_4], %0 {strides = array<i32>} : memref<18x18x8xbf16, #tpu.memory_space<vmem>>, vector<1x18x8xbf16>,
    %c0_5 = arith.constant 0 : index
    %c0_6 = arith.constant 0 : index
    %c0_7 = arith.constant 0 : index
    %4 = vector.load %arg6[%c0_5, %c0_6, %c0_7] : memref<18x18x8xbf16, #tpu.memory_space<vmem>>, vector<18x1x8xbf16>
    tpu.vector_store %arg6[%c0_5, %c0_6, %c0_7], %1 {strides = array<i32>} : memref<18x18x8xbf16, #tpu.memory_space<vmem>>, vector<18x1x8xbf16>,
    %c0_8 = arith.constant 0 : index
    %c17_9 = arith.constant 17 : index
    %c0_10 = arith.constant 0 : index
    %5 = vector.load %arg6[%c0_8, %c17_9, %c0_10] : memref<18x18x8xbf16, #tpu.memory_space<vmem>>, vector<18x1x8xbf16>
    tpu.vector_store %arg6[%c0_8, %c17_9, %c0_10], %1 {strides = array<i32>} : memref<18x18x8xbf16, #tpu.memory_space<vmem>>, vector<18x1x8xbf16>,
    %c0_11 = arith.constant 0 : index
    %c0_12 = arith.constant 0 : index
    %c0_13 = arith.constant 0 : index
    %6 = vector.load %arg7[%c0_11, %c0_12, %c0_13] : memref<18x18x8xbf16, #tpu.memory_space<vmem>>, vector<1x18x8xbf16>
    tpu.vector_store %arg7[%c0_11, %c0_12, %c0_13], %0 {strides = array<i32>} : memref<18x18x8xbf16, #tpu.memory_space<vmem>>, vector<1x18x8xbf16>,
    %c17_14 = arith.constant 17 : index
    %c0_15 = arith.constant 0 : index
    %c0_16 = arith.constant 0 : index
    %7 = vector.load %arg7[%c17_14, %c0_15, %c0_16] : memref<18x18x8xbf16, #tpu.memory_space<vmem>>, vector<1x18x8xbf16>
    tpu.vector_store %arg7[%c17_14, %c0_15, %c0_16], %0 {strides = array<i32>} : memref<18x18x8xbf16, #tpu.memory_space<vmem>>, vector<1x18x8xbf16>,
    %c0_17 = arith.constant 0 : index
    %c0_18 = arith.constant 0 : index
    %c0_19 = arith.constant 0 : index
    %8 = vector.load %arg7[%c0_17, %c0_18, %c0_19] : memref<18x18x8xbf16, #tpu.memory_space<vmem>>, vector<18x1x8xbf16>
    tpu.vector_store %arg7[%c0_17, %c0_18, %c0_19], %1 {strides = array<i32>} : memref<18x18x8xbf16, #tpu.memory_space<vmem>>, vector<18x1x8xbf16>,
    %c0_20 = arith.constant 0 : index
    %c17_21 = arith.constant 17 : index
    %c0_22 = arith.constant 0 : index
    %9 = vector.load %arg7[%c0_20, %c17_21, %c0_22] : memref<18x18x8xbf16, #tpu.memory_space<vmem>>, vector<18x1x8xbf16>
    tpu.vector_store %arg7[%c0_20, %c17_21, %c0_22], %1 {strides = array<i32>} : memref<18x18x8xbf16, #tpu.memory_space<vmem>>, vector<18x1x8xbf16>,
    %c0_23 = arith.constant 0 : index
    %c0_24 = arith.constant 0 : index
    %c0_25 = arith.constant 0 : index
    %c0_26 = arith.constant 0 : index
    %10 = vector.load %arg1[%c0_23, %c0_24, %c0_25, %c0_26] : memref<1x16x16x8xbf16, #tpu.memory_space<vmem>>, vector<1x16x16x8xbf16>
    %11 = vector.shape_cast %10 : vector<1x16x16x8xbf16> to vector<16x16x8xbf16>
    %c1 = arith.constant 1 : index
    %c1_27 = arith.constant 1 : index
    %c0_28 = arith.constant 0 : index
    %12 = vector.load %arg6[%c1, %c1_27, %c0_28] : memref<18x18x8xbf16, #tpu.memory_space<vmem>>, vector<16x16x8xbf16>
    tpu.vector_store %arg6[%c1, %c1_27, %c0_28], %11 {strides = array<i32>} : memref<18x18x8xbf16, #tpu.memory_space<vmem>>, vector<16x16x8xbf16>,
    %c0_29 = arith.constant 0 : index
    %c0_30 = arith.constant 0 : index
    %c0_31 = arith.constant 0 : index
    %13 = vector.load %arg6[%c0_29, %c0_30, %c0_31] : memref<18x18x8xbf16, #tpu.memory_space<vmem>>, vector<16x16x8xbf16>
    %c0_32 = arith.constant 0 : index
    %c0_33 = arith.constant 0 : index
    %c0_34 = arith.constant 0 : index
    %14 = vector.load %arg8[%c0_32, %c0_33, %c0_34] : memref<16x16x72xbf16, #tpu.memory_space<vmem>>, vector<16x16x8xbf16>
    tpu.vector_store %arg8[%c0_32, %c0_33, %c0_34], %13 {strides = array<i32>} : memref<16x16x72xbf16, #tpu.memory_space<vmem>>, vector<16x16x8xbf16>,
    %c0_35 = arith.constant 0 : index
    %c1_36 = arith.constant 1 : index
    %c0_37 = arith.constant 0 : index
    %15 = vector.load %arg6[%c0_35, %c1_36, %c0_37] : memref<18x18x8xbf16, #tpu.memory_space<vmem>>, vector<16x16x8xbf16>
    %c0_38 = arith.constant 0 : index
    %c0_39 = arith.constant 0 : index
    %c8 = arith.constant 8 : index
    %16 = vector.load %arg8[%c0_38, %c0_39, %c8] : memref<16x16x72xbf16, #tpu.memory_space<vmem>>, vector<16x16x8xbf16>
    tpu.vector_store %arg8[%c0_38, %c0_39, %c8], %15 {strides = array<i32>} : memref<16x16x72xbf16, #tpu.memory_space<vmem>>, vector<16x16x8xbf16>,
    %c0_40 = arith.constant 0 : index
    %c2 = arith.constant 2 : index
    %c0_41 = arith.constant 0 : index
    %17 = vector.load %arg6[%c0_40, %c2, %c0_41] : memref<18x18x8xbf16, #tpu.memory_space<vmem>>, vector<16x16x8xbf16>
    %c0_42 = arith.constant 0 : index
    %c0_43 = arith.constant 0 : index
    %c16 = arith.constant 16 : index
    %18 = vector.load %arg8[%c0_42, %c0_43, %c16] : memref<16x16x72xbf16, #tpu.memory_space<vmem>>, vector<16x16x8xbf16>
    tpu.vector_store %arg8[%c0_42, %c0_43, %c16], %17 {strides = array<i32>} : memref<16x16x72xbf16, #tpu.memory_space<vmem>>, vector<16x16x8xbf16>,
    %c1_44 = arith.constant 1 : index
    %c0_45 = arith.constant 0 : index
    %c0_46 = arith.constant 0 : index
    %19 = vector.load %arg6[%c1_44, %c0_45, %c0_46] : memref<18x18x8xbf16, #tpu.memory_space<vmem>>, vector<16x16x8xbf16>
    %c0_47 = arith.constant 0 : index
    %c0_48 = arith.constant 0 : index
    %c24 = arith.constant 24 : index
    %20 = vector.load %arg8[%c0_47, %c0_48, %c24] : memref<16x16x72xbf16, #tpu.memory_space<vmem>>, vector<16x16x8xbf16>
    tpu.vector_store %arg8[%c0_47, %c0_48, %c24], %19 {strides = array<i32>} : memref<16x16x72xbf16, #tpu.memory_space<vmem>>, vector<16x16x8xbf16>,
    %c1_49 = arith.constant 1 : index
    %c1_50 = arith.constant 1 : index
    %c0_51 = arith.constant 0 : index
    %21 = vector.load %arg6[%c1_49, %c1_50, %c0_51] : memref<18x18x8xbf16, #tpu.memory_space<vmem>>, vector<16x16x8xbf16>
    %c0_52 = arith.constant 0 : index
    %c0_53 = arith.constant 0 : index
    %c32 = arith.constant 32 : index
    %22 = vector.load %arg8[%c0_52, %c0_53, %c32] : memref<16x16x72xbf16, #tpu.memory_space<vmem>>, vector<16x16x8xbf16>
    tpu.vector_store %arg8[%c0_52, %c0_53, %c32], %21 {strides = array<i32>} : memref<16x16x72xbf16, #tpu.memory_space<vmem>>, vector<16x16x8xbf16>,
    %c1_54 = arith.constant 1 : index
    %c2_55 = arith.constant 2 : index
    %c0_56 = arith.constant 0 : index
    %23 = vector.load %arg6[%c1_54, %c2_55, %c0_56] : memref<18x18x8xbf16, #tpu.memory_space<vmem>>, vector<16x16x8xbf16>
    %c0_57 = arith.constant 0 : index
    %c0_58 = arith.constant 0 : index
    %c40 = arith.constant 40 : index
    %24 = vector.load %arg8[%c0_57, %c0_58, %c40] : memref<16x16x72xbf16, #tpu.memory_space<vmem>>, vector<16x16x8xbf16>
    tpu.vector_store %arg8[%c0_57, %c0_58, %c40], %23 {strides = array<i32>} : memref<16x16x72xbf16, #tpu.memory_space<vmem>>, vector<16x16x8xbf16>,
    %c2_59 = arith.constant 2 : index
    %c0_60 = arith.constant 0 : index
    %c0_61 = arith.constant 0 : index
    %25 = vector.load %arg6[%c2_59, %c0_60, %c0_61] : memref<18x18x8xbf16, #tpu.memory_space<vmem>>, vector<16x16x8xbf16>
    %c0_62 = arith.constant 0 : index
    %c0_63 = arith.constant 0 : index
    %c48 = arith.constant 48 : index
    %26 = vector.load %arg8[%c0_62, %c0_63, %c48] : memref<16x16x72xbf16, #tpu.memory_space<vmem>>, vector<16x16x8xbf16>
    tpu.vector_store %arg8[%c0_62, %c0_63, %c48], %25 {strides = array<i32>} : memref<16x16x72xbf16, #tpu.memory_space<vmem>>, vector<16x16x8xbf16>,
    %c2_64 = arith.constant 2 : index
    %c1_65 = arith.constant 1 : index
    %c0_66 = arith.constant 0 : index
    %27 = vector.load %arg6[%c2_64, %c1_65, %c0_66] : memref<18x18x8xbf16, #tpu.memory_space<vmem>>, vector<16x16x8xbf16>
    %c0_67 = arith.constant 0 : index
    %c0_68 = arith.constant 0 : index
    %c56 = arith.constant 56 : index
    %28 = vector.load %arg8[%c0_67, %c0_68, %c56] : memref<16x16x72xbf16, #tpu.memory_space<vmem>>, vector<16x16x8xbf16>
    tpu.vector_store %arg8[%c0_67, %c0_68, %c56], %27 {strides = array<i32>} : memref<16x16x72xbf16, #tpu.memory_space<vmem>>, vector<16x16x8xbf16>,
    %c2_69 = arith.constant 2 : index
    %c2_70 = arith.constant 2 : index
    %c0_71 = arith.constant 0 : index
    %29 = vector.load %arg6[%c2_69, %c2_70, %c0_71] : memref<18x18x8xbf16, #tpu.memory_space<vmem>>, vector<16x16x8xbf16>
    %c0_72 = arith.constant 0 : index
    %c0_73 = arith.constant 0 : index
    %c64 = arith.constant 64 : index
    %30 = vector.load %arg8[%c0_72, %c0_73, %c64] : memref<16x16x72xbf16, #tpu.memory_space<vmem>>, vector<16x16x8xbf16>
    tpu.vector_store %arg8[%c0_72, %c0_73, %c64], %29 {strides = array<i32>} : memref<16x16x72xbf16, #tpu.memory_space<vmem>>, vector<16x16x8xbf16>,
    %c0_74 = arith.constant 0 : index
    %c0_75 = arith.constant 0 : index
    %c0_76 = arith.constant 0 : index
    %31 = vector.load %arg8[%c0_74, %c0_75, %c0_76] : memref<16x16x72xbf16, #tpu.memory_space<vmem>>, vector<16x16x72xbf16>
    %32 = vector.shape_cast %31 : vector<16x16x72xbf16> to vector<256x72xbf16>
    %c0_77 = arith.constant 0 : index
    %c0_78 = arith.constant 0 : index
    %33 = vector.load %arg2[%c0_77, %c0_78] : memref<72x8xbf16, #tpu.memory_space<vmem>>, vector<72x8xbf16>
    %cst_79 = arith.constant dense<0.000000e+00> : vector<256x8xf32>
    %34 = tpu.matmul %32, %33, %cst_79 {dimension_numbers = #tpu.dot_dimension_numbers<[1], [0], [0], [1], [0, 0, 1, 1], [], []>} : vector<256x72xbf16>, vector<72x8xbf16>, vector<256x8xf32> -> vector<256x8xf32>
    %c0_80 = arith.constant 0 : index
    %c0_81 = arith.constant 0 : index
    %35 = vector.load %arg3[%c0_80, %c0_81] : memref<1x8xf32, #tpu.memory_space<vmem>>, vector<1x8xf32>
    %36 = vector.broadcast %35 : vector<1x8xf32> to vector<256x8xf32>
    %37 = arith.addf %34, %36 : vector<256x8xf32>
    %cst_82 = arith.constant 0.000000e+00 : f32
    %38 = vector.broadcast %cst_82 : f32 to vector<256x8xf32>
    %39 = arith.maximumf %37, %38 : vector<256x8xf32>
    %40 = vector.shape_cast %39 : vector<256x8xf32> to vector<16x16x8xf32>
    %41 = arith.truncf %40 : vector<16x16x8xf32> to vector<16x16x8xbf16>
    %c1_83 = arith.constant 1 : index
    %c1_84 = arith.constant 1 : index
    %c0_85 = arith.constant 0 : index
    %42 = vector.load %arg7[%c1_83, %c1_84, %c0_85] : memref<18x18x8xbf16, #tpu.memory_space<vmem>>, vector<16x16x8xbf16>
    tpu.vector_store %arg7[%c1_83, %c1_84, %c0_85], %41 {strides = array<i32>} : memref<18x18x8xbf16, #tpu.memory_space<vmem>>, vector<16x16x8xbf16>,
    %c0_86 = arith.constant 0 : index
    %c0_87 = arith.constant 0 : index
    %c0_88 = arith.constant 0 : index
    %43 = vector.load %arg7[%c0_86, %c0_87, %c0_88] : memref<18x18x8xbf16, #tpu.memory_space<vmem>>, vector<16x16x8xbf16>
    %c0_89 = arith.constant 0 : index
    %c0_90 = arith.constant 0 : index
    %c0_91 = arith.constant 0 : index
    %44 = vector.load %arg8[%c0_89, %c0_90, %c0_91] : memref<16x16x72xbf16, #tpu.memory_space<vmem>>, vector<16x16x8xbf16>
    tpu.vector_store %arg8[%c0_89, %c0_90, %c0_91], %43 {strides = array<i32>} : memref<16x16x72xbf16, #tpu.memory_space<vmem>>, vector<16x16x8xbf16>,
    %c0_92 = arith.constant 0 : index
    %c1_93 = arith.constant 1 : index
    %c0_94 = arith.constant 0 : index
    %45 = vector.load %arg7[%c0_92, %c1_93, %c0_94] : memref<18x18x8xbf16, #tpu.memory_space<vmem>>, vector<16x16x8xbf16>
    %c0_95 = arith.constant 0 : index
    %c0_96 = arith.constant 0 : index
    %c8_97 = arith.constant 8 : index
    %46 = vector.load %arg8[%c0_95, %c0_96, %c8_97] : memref<16x16x72xbf16, #tpu.memory_space<vmem>>, vector<16x16x8xbf16>
    tpu.vector_store %arg8[%c0_95, %c0_96, %c8_97], %45 {strides = array<i32>} : memref<16x16x72xbf16, #tpu.memory_space<vmem>>, vector<16x16x8xbf16>,
    %c0_98 = arith.constant 0 : index
    %c2_99 = arith.constant 2 : index
    %c0_100 = arith.constant 0 : index
    %47 = vector.load %arg7[%c0_98, %c2_99, %c0_100] : memref<18x18x8xbf16, #tpu.memory_space<vmem>>, vector<16x16x8xbf16>
    %c0_101 = arith.constant 0 : index
    %c0_102 = arith.constant 0 : index
    %c16_103 = arith.constant 16 : index
    %48 = vector.load %arg8[%c0_101, %c0_102, %c16_103] : memref<16x16x72xbf16, #tpu.memory_space<vmem>>, vector<16x16x8xbf16>
    tpu.vector_store %arg8[%c0_101, %c0_102, %c16_103], %47 {strides = array<i32>} : memref<16x16x72xbf16, #tpu.memory_space<vmem>>, vector<16x16x8xbf16>,
    %c1_104 = arith.constant 1 : index
    %c0_105 = arith.constant 0 : index
    %c0_106 = arith.constant 0 : index
    %49 = vector.load %arg7[%c1_104, %c0_105, %c0_106] : memref<18x18x8xbf16, #tpu.memory_space<vmem>>, vector<16x16x8xbf16>
    %c0_107 = arith.constant 0 : index
    %c0_108 = arith.constant 0 : index
    %c24_109 = arith.constant 24 : index
    %50 = vector.load %arg8[%c0_107, %c0_108, %c24_109] : memref<16x16x72xbf16, #tpu.memory_space<vmem>>, vector<16x16x8xbf16>
    tpu.vector_store %arg8[%c0_107, %c0_108, %c24_109], %49 {strides = array<i32>} : memref<16x16x72xbf16, #tpu.memory_space<vmem>>, vector<16x16x8xbf16>,
    %c1_110 = arith.constant 1 : index
    %c1_111 = arith.constant 1 : index
    %c0_112 = arith.constant 0 : index
    %51 = vector.load %arg7[%c1_110, %c1_111, %c0_112] : memref<18x18x8xbf16, #tpu.memory_space<vmem>>, vector<16x16x8xbf16>
    %c0_113 = arith.constant 0 : index
    %c0_114 = arith.constant 0 : index
    %c32_115 = arith.constant 32 : index
    %52 = vector.load %arg8[%c0_113, %c0_114, %c32_115] : memref<16x16x72xbf16, #tpu.memory_space<vmem>>, vector<16x16x8xbf16>
    tpu.vector_store %arg8[%c0_113, %c0_114, %c32_115], %51 {strides = array<i32>} : memref<16x16x72xbf16, #tpu.memory_space<vmem>>, vector<16x16x8xbf16>,
    %c1_116 = arith.constant 1 : index
    %c2_117 = arith.constant 2 : index
    %c0_118 = arith.constant 0 : index
    %53 = vector.load %arg7[%c1_116, %c2_117, %c0_118] : memref<18x18x8xbf16, #tpu.memory_space<vmem>>, vector<16x16x8xbf16>
    %c0_119 = arith.constant 0 : index
    %c0_120 = arith.constant 0 : index
    %c40_121 = arith.constant 40 : index
    %54 = vector.load %arg8[%c0_119, %c0_120, %c40_121] : memref<16x16x72xbf16, #tpu.memory_space<vmem>>, vector<16x16x8xbf16>
    tpu.vector_store %arg8[%c0_119, %c0_120, %c40_121], %53 {strides = array<i32>} : memref<16x16x72xbf16, #tpu.memory_space<vmem>>, vector<16x16x8xbf16>,
    %c2_122 = arith.constant 2 : index
    %c0_123 = arith.constant 0 : index
    %c0_124 = arith.constant 0 : index
    %55 = vector.load %arg7[%c2_122, %c0_123, %c0_124] : memref<18x18x8xbf16, #tpu.memory_space<vmem>>, vector<16x16x8xbf16>
    %c0_125 = arith.constant 0 : index
    %c0_126 = arith.constant 0 : index
    %c48_127 = arith.constant 48 : index
    %56 = vector.load %arg8[%c0_125, %c0_126, %c48_127] : memref<16x16x72xbf16, #tpu.memory_space<vmem>>, vector<16x16x8xbf16>
    tpu.vector_store %arg8[%c0_125, %c0_126, %c48_127], %55 {strides = array<i32>} : memref<16x16x72xbf16, #tpu.memory_space<vmem>>, vector<16x16x8xbf16>,
    %c2_128 = arith.constant 2 : index
    %c1_129 = arith.constant 1 : index
    %c0_130 = arith.constant 0 : index
    %57 = vector.load %arg7[%c2_128, %c1_129, %c0_130] : memref<18x18x8xbf16, #tpu.memory_space<vmem>>, vector<16x16x8xbf16>
    %c0_131 = arith.constant 0 : index
    %c0_132 = arith.constant 0 : index
    %c56_133 = arith.constant 56 : index
    %58 = vector.load %arg8[%c0_131, %c0_132, %c56_133] : memref<16x16x72xbf16, #tpu.memory_space<vmem>>, vector<16x16x8xbf16>
    tpu.vector_store %arg8[%c0_131, %c0_132, %c56_133], %57 {strides = array<i32>} : memref<16x16x72xbf16, #tpu.memory_space<vmem>>, vector<16x16x8xbf16>,
    %c2_134 = arith.constant 2 : index
    %c2_135 = arith.constant 2 : index
    %c0_136 = arith.constant 0 : index
    %59 = vector.load %arg7[%c2_134, %c2_135, %c0_136] : memref<18x18x8xbf16, #tpu.memory_space<vmem>>, vector<16x16x8xbf16>
    %c0_137 = arith.constant 0 : index
    %c0_138 = arith.constant 0 : index
    %c64_139 = arith.constant 64 : index
    %60 = vector.load %arg8[%c0_137, %c0_138, %c64_139] : memref<16x16x72xbf16, #tpu.memory_space<vmem>>, vector<16x16x8xbf16>
    tpu.vector_store %arg8[%c0_137, %c0_138, %c64_139], %59 {strides = array<i32>} : memref<16x16x72xbf16, #tpu.memory_space<vmem>>, vector<16x16x8xbf16>,
    %c0_140 = arith.constant 0 : index
    %c0_141 = arith.constant 0 : index
    %c0_142 = arith.constant 0 : index
    %61 = vector.load %arg8[%c0_140, %c0_141, %c0_142] : memref<16x16x72xbf16, #tpu.memory_space<vmem>>, vector<16x16x72xbf16>
    %62 = vector.shape_cast %61 : vector<16x16x72xbf16> to vector<256x72xbf16>
    %c0_143 = arith.constant 0 : index
    %c0_144 = arith.constant 0 : index
    %63 = vector.load %arg4[%c0_143, %c0_144] : memref<72x16xbf16, #tpu.memory_space<vmem>>, vector<72x16xbf16>
    %cst_145 = arith.constant dense<0.000000e+00> : vector<256x16xf32>
    %64 = tpu.matmul %62, %63, %cst_145 {dimension_numbers = #tpu.dot_dimension_numbers<[1], [0], [0], [1], [0, 0, 1, 1], [], []>} : vector<256x72xbf16>, vector<72x16xbf16>, vector<256x16xf32> -> vector<256x16xf32>
    %65 = vector.shape_cast %64 : vector<256x16xf32> to vector<16x16x16xf32>
    %66 = vector.extract_strided_slice %65 {offsets = [0, 0, 0], sizes = [16, 1, 16], strides = [1, 1, 1]} : vector<16x16x16xf32> to vector<16x1x16xf32>
    %67 = vector.shape_cast %66 : vector<16x1x16xf32> to vector<16x16xf32>
    %c0_146 = arith.constant 0 : index
    %c0_147 = arith.constant 0 : index
    %c0_148 = arith.constant 0 : index
    %68 = vector.load %arg5[%c0_146, %c0_147, %c0_148] : memref<1x16x256xf32, #tpu.memory_space<vmem>>, vector<1x16x16xf32>
    %69 = vector.shape_cast %68 : vector<1x16x16xf32> to vector<16x16xf32>
    %70 = vector.shape_cast %67 : vector<16x16xf32> to vector<1x16x16xf32>
    tpu.vector_store %arg5[%c0_146, %c0_147, %c0_148], %70 {strides = array<i32>} : memref<1x16x256xf32, #tpu.memory_space<vmem>>, vector<1x16x16xf32>,
    %71 = vector.extract_strided_slice %65 {offsets = [0, 1, 0], sizes = [16, 1, 16], strides = [1, 1, 1]} : vector<16x16x16xf32> to vector<16x1x16xf32>
    %72 = vector.shape_cast %71 : vector<16x1x16xf32> to vector<16x16xf32>
    %c0_149 = arith.constant 0 : index
    %c0_150 = arith.constant 0 : index
    %c16_151 = arith.constant 16 : index
    %73 = vector.load %arg5[%c0_149, %c0_150, %c16_151] : memref<1x16x256xf32, #tpu.memory_space<vmem>>, vector<1x16x16xf32>
    %74 = vector.shape_cast %73 : vector<1x16x16xf32> to vector<16x16xf32>
    %75 = vector.shape_cast %72 : vector<16x16xf32> to vector<1x16x16xf32>
    tpu.vector_store %arg5[%c0_149, %c0_150, %c16_151], %75 {strides = array<i32>} : memref<1x16x256xf32, #tpu.memory_space<vmem>>, vector<1x16x16xf32>,
    %76 = vector.extract_strided_slice %65 {offsets = [0, 2, 0], sizes = [16, 1, 16], strides = [1, 1, 1]} : vector<16x16x16xf32> to vector<16x1x16xf32>
    %77 = vector.shape_cast %76 : vector<16x1x16xf32> to vector<16x16xf32>
    %c0_152 = arith.constant 0 : index
    %c0_153 = arith.constant 0 : index
    %c32_154 = arith.constant 32 : index
    %78 = vector.load %arg5[%c0_152, %c0_153, %c32_154] : memref<1x16x256xf32, #tpu.memory_space<vmem>>, vector<1x16x16xf32>
    %79 = vector.shape_cast %78 : vector<1x16x16xf32> to vector<16x16xf32>
    %80 = vector.shape_cast %77 : vector<16x16xf32> to vector<1x16x16xf32>
    tpu.vector_store %arg5[%c0_152, %c0_153, %c32_154], %80 {strides = array<i32>} : memref<1x16x256xf32, #tpu.memory_space<vmem>>, vector<1x16x16xf32>,
    %81 = vector.extract_strided_slice %65 {offsets = [0, 3, 0], sizes = [16, 1, 16], strides = [1, 1, 1]} : vector<16x16x16xf32> to vector<16x1x16xf32>
    %82 = vector.shape_cast %81 : vector<16x1x16xf32> to vector<16x16xf32>
    %c0_155 = arith.constant 0 : index
    %c0_156 = arith.constant 0 : index
    %c48_157 = arith.constant 48 : index
    %83 = vector.load %arg5[%c0_155, %c0_156, %c48_157] : memref<1x16x256xf32, #tpu.memory_space<vmem>>, vector<1x16x16xf32>
    %84 = vector.shape_cast %83 : vector<1x16x16xf32> to vector<16x16xf32>
    %85 = vector.shape_cast %82 : vector<16x16xf32> to vector<1x16x16xf32>
    tpu.vector_store %arg5[%c0_155, %c0_156, %c48_157], %85 {strides = array<i32>} : memref<1x16x256xf32, #tpu.memory_space<vmem>>, vector<1x16x16xf32>,
    %86 = vector.extract_strided_slice %65 {offsets = [0, 4, 0], sizes = [16, 1, 16], strides = [1, 1, 1]} : vector<16x16x16xf32> to vector<16x1x16xf32>
    %87 = vector.shape_cast %86 : vector<16x1x16xf32> to vector<16x16xf32>
    %c0_158 = arith.constant 0 : index
    %c0_159 = arith.constant 0 : index
    %c64_160 = arith.constant 64 : index
    %88 = vector.load %arg5[%c0_158, %c0_159, %c64_160] : memref<1x16x256xf32, #tpu.memory_space<vmem>>, vector<1x16x16xf32>
    %89 = vector.shape_cast %88 : vector<1x16x16xf32> to vector<16x16xf32>
    %90 = vector.shape_cast %87 : vector<16x16xf32> to vector<1x16x16xf32>
    tpu.vector_store %arg5[%c0_158, %c0_159, %c64_160], %90 {strides = array<i32>} : memref<1x16x256xf32, #tpu.memory_space<vmem>>, vector<1x16x16xf32>,
    %91 = vector.extract_strided_slice %65 {offsets = [0, 5, 0], sizes = [16, 1, 16], strides = [1, 1, 1]} : vector<16x16x16xf32> to vector<16x1x16xf32>
    %92 = vector.shape_cast %91 : vector<16x1x16xf32> to vector<16x16xf32>
    %c0_161 = arith.constant 0 : index
    %c0_162 = arith.constant 0 : index
    %c80 = arith.constant 80 : index
    %93 = vector.load %arg5[%c0_161, %c0_162, %c80] : memref<1x16x256xf32, #tpu.memory_space<vmem>>, vector<1x16x16xf32>
    %94 = vector.shape_cast %93 : vector<1x16x16xf32> to vector<16x16xf32>
    %95 = vector.shape_cast %92 : vector<16x16xf32> to vector<1x16x16xf32>
    tpu.vector_store %arg5[%c0_161, %c0_162, %c80], %95 {strides = array<i32>} : memref<1x16x256xf32, #tpu.memory_space<vmem>>, vector<1x16x16xf32>,
    %96 = vector.extract_strided_slice %65 {offsets = [0, 6, 0], sizes = [16, 1, 16], strides = [1, 1, 1]} : vector<16x16x16xf32> to vector<16x1x16xf32>
    %97 = vector.shape_cast %96 : vector<16x1x16xf32> to vector<16x16xf32>
    %c0_163 = arith.constant 0 : index
    %c0_164 = arith.constant 0 : index
    %c96 = arith.constant 96 : index
    %98 = vector.load %arg5[%c0_163, %c0_164, %c96] : memref<1x16x256xf32, #tpu.memory_space<vmem>>, vector<1x16x16xf32>
    %99 = vector.shape_cast %98 : vector<1x16x16xf32> to vector<16x16xf32>
    %100 = vector.shape_cast %97 : vector<16x16xf32> to vector<1x16x16xf32>
    tpu.vector_store %arg5[%c0_163, %c0_164, %c96], %100 {strides = array<i32>} : memref<1x16x256xf32, #tpu.memory_space<vmem>>, vector<1x16x16xf32>,
    %101 = vector.extract_strided_slice %65 {offsets = [0, 7, 0], sizes = [16, 1, 16], strides = [1, 1, 1]} : vector<16x16x16xf32> to vector<16x1x16xf32>
    %102 = vector.shape_cast %101 : vector<16x1x16xf32> to vector<16x16xf32>
    %c0_165 = arith.constant 0 : index
    %c0_166 = arith.constant 0 : index
    %c112 = arith.constant 112 : index
    %103 = vector.load %arg5[%c0_165, %c0_166, %c112] : memref<1x16x256xf32, #tpu.memory_space<vmem>>, vector<1x16x16xf32>
    %104 = vector.shape_cast %103 : vector<1x16x16xf32> to vector<16x16xf32>
    %105 = vector.shape_cast %102 : vector<16x16xf32> to vector<1x16x16xf32>
    tpu.vector_store %arg5[%c0_165, %c0_166, %c112], %105 {strides = array<i32>} : memref<1x16x256xf32, #tpu.memory_space<vmem>>, vector<1x16x16xf32>,
    %106 = vector.extract_strided_slice %65 {offsets = [0, 8, 0], sizes = [16, 1, 16], strides = [1, 1, 1]} : vector<16x16x16xf32> to vector<16x1x16xf32>
    %107 = vector.shape_cast %106 : vector<16x1x16xf32> to vector<16x16xf32>
    %c0_167 = arith.constant 0 : index
    %c0_168 = arith.constant 0 : index
    %c128 = arith.constant 128 : index
    %108 = vector.load %arg5[%c0_167, %c0_168, %c128] : memref<1x16x256xf32, #tpu.memory_space<vmem>>, vector<1x16x16xf32>
    %109 = vector.shape_cast %108 : vector<1x16x16xf32> to vector<16x16xf32>
    %110 = vector.shape_cast %107 : vector<16x16xf32> to vector<1x16x16xf32>
    tpu.vector_store %arg5[%c0_167, %c0_168, %c128], %110 {strides = array<i32>} : memref<1x16x256xf32, #tpu.memory_space<vmem>>, vector<1x16x16xf32>,
    %111 = vector.extract_strided_slice %65 {offsets = [0, 9, 0], sizes = [16, 1, 16], strides = [1, 1, 1]} : vector<16x16x16xf32> to vector<16x1x16xf32>
    %112 = vector.shape_cast %111 : vector<16x1x16xf32> to vector<16x16xf32>
    %c0_169 = arith.constant 0 : index
    %c0_170 = arith.constant 0 : index
    %c144 = arith.constant 144 : index
    %113 = vector.load %arg5[%c0_169, %c0_170, %c144] : memref<1x16x256xf32, #tpu.memory_space<vmem>>, vector<1x16x16xf32>
    %114 = vector.shape_cast %113 : vector<1x16x16xf32> to vector<16x16xf32>
    %115 = vector.shape_cast %112 : vector<16x16xf32> to vector<1x16x16xf32>
    tpu.vector_store %arg5[%c0_169, %c0_170, %c144], %115 {strides = array<i32>} : memref<1x16x256xf32, #tpu.memory_space<vmem>>, vector<1x16x16xf32>,
    %116 = vector.extract_strided_slice %65 {offsets = [0, 10, 0], sizes = [16, 1, 16], strides = [1, 1, 1]} : vector<16x16x16xf32> to vector<16x1x16xf32>
    %117 = vector.shape_cast %116 : vector<16x1x16xf32> to vector<16x16xf32>
    %c0_171 = arith.constant 0 : index
    %c0_172 = arith.constant 0 : index
    %c160 = arith.constant 160 : index
    %118 = vector.load %arg5[%c0_171, %c0_172, %c160] : memref<1x16x256xf32, #tpu.memory_space<vmem>>, vector<1x16x16xf32>
    %119 = vector.shape_cast %118 : vector<1x16x16xf32> to vector<16x16xf32>
    %120 = vector.shape_cast %117 : vector<16x16xf32> to vector<1x16x16xf32>
    tpu.vector_store %arg5[%c0_171, %c0_172, %c160], %120 {strides = array<i32>} : memref<1x16x256xf32, #tpu.memory_space<vmem>>, vector<1x16x16xf32>,
    %121 = vector.extract_strided_slice %65 {offsets = [0, 11, 0], sizes = [16, 1, 16], strides = [1, 1, 1]} : vector<16x16x16xf32> to vector<16x1x16xf32>
    %122 = vector.shape_cast %121 : vector<16x1x16xf32> to vector<16x16xf32>
    %c0_173 = arith.constant 0 : index
    %c0_174 = arith.constant 0 : index
    %c176 = arith.constant 176 : index
    %123 = vector.load %arg5[%c0_173, %c0_174, %c176] : memref<1x16x256xf32, #tpu.memory_space<vmem>>, vector<1x16x16xf32>
    %124 = vector.shape_cast %123 : vector<1x16x16xf32> to vector<16x16xf32>
    %125 = vector.shape_cast %122 : vector<16x16xf32> to vector<1x16x16xf32>
    tpu.vector_store %arg5[%c0_173, %c0_174, %c176], %125 {strides = array<i32>} : memref<1x16x256xf32, #tpu.memory_space<vmem>>, vector<1x16x16xf32>,
    %126 = vector.extract_strided_slice %65 {offsets = [0, 12, 0], sizes = [16, 1, 16], strides = [1, 1, 1]} : vector<16x16x16xf32> to vector<16x1x16xf32>
    %127 = vector.shape_cast %126 : vector<16x1x16xf32> to vector<16x16xf32>
    %c0_175 = arith.constant 0 : index
    %c0_176 = arith.constant 0 : index
    %c192 = arith.constant 192 : index
    %128 = vector.load %arg5[%c0_175, %c0_176, %c192] : memref<1x16x256xf32, #tpu.memory_space<vmem>>, vector<1x16x16xf32>
    %129 = vector.shape_cast %128 : vector<1x16x16xf32> to vector<16x16xf32>
    %130 = vector.shape_cast %127 : vector<16x16xf32> to vector<1x16x16xf32>
    tpu.vector_store %arg5[%c0_175, %c0_176, %c192], %130 {strides = array<i32>} : memref<1x16x256xf32, #tpu.memory_space<vmem>>, vector<1x16x16xf32>,
    %131 = vector.extract_strided_slice %65 {offsets = [0, 13, 0], sizes = [16, 1, 16], strides = [1, 1, 1]} : vector<16x16x16xf32> to vector<16x1x16xf32>
    %132 = vector.shape_cast %131 : vector<16x1x16xf32> to vector<16x16xf32>
    %c0_177 = arith.constant 0 : index
    %c0_178 = arith.constant 0 : index
    %c208 = arith.constant 208 : index
    %133 = vector.load %arg5[%c0_177, %c0_178, %c208] : memref<1x16x256xf32, #tpu.memory_space<vmem>>, vector<1x16x16xf32>
    %134 = vector.shape_cast %133 : vector<1x16x16xf32> to vector<16x16xf32>
    %135 = vector.shape_cast %132 : vector<16x16xf32> to vector<1x16x16xf32>
    tpu.vector_store %arg5[%c0_177, %c0_178, %c208], %135 {strides = array<i32>} : memref<1x16x256xf32, #tpu.memory_space<vmem>>, vector<1x16x16xf32>,
    %136 = vector.extract_strided_slice %65 {offsets = [0, 14, 0], sizes = [16, 1, 16], strides = [1, 1, 1]} : vector<16x16x16xf32> to vector<16x1x16xf32>
    %137 = vector.shape_cast %136 : vector<16x1x16xf32> to vector<16x16xf32>
    %c0_179 = arith.constant 0 : index
    %c0_180 = arith.constant 0 : index
    %c224 = arith.constant 224 : index
    %138 = vector.load %arg5[%c0_179, %c0_180, %c224] : memref<1x16x256xf32, #tpu.memory_space<vmem>>, vector<1x16x16xf32>
    %139 = vector.shape_cast %138 : vector<1x16x16xf32> to vector<16x16xf32>
    %140 = vector.shape_cast %137 : vector<16x16xf32> to vector<1x16x16xf32>
    tpu.vector_store %arg5[%c0_179, %c0_180, %c224], %140 {strides = array<i32>} : memref<1x16x256xf32, #tpu.memory_space<vmem>>, vector<1x16x16xf32>,
    %141 = vector.extract_strided_slice %65 {offsets = [0, 15, 0], sizes = [16, 1, 16], strides = [1, 1, 1]} : vector<16x16x16xf32> to vector<16x1x16xf32>
    %142 = vector.shape_cast %141 : vector<16x1x16xf32> to vector<16x16xf32>
    %c0_181 = arith.constant 0 : index
    %c0_182 = arith.constant 0 : index
    %c240 = arith.constant 240 : index
    %143 = vector.load %arg5[%c0_181, %c0_182, %c240] : memref<1x16x256xf32, #tpu.memory_space<vmem>>, vector<1x16x16xf32>
    %144 = vector.shape_cast %143 : vector<1x16x16xf32> to vector<16x16xf32>
    %145 = vector.shape_cast %142 : vector<16x16xf32> to vector<1x16x16xf32>
    tpu.vector_store %arg5[%c0_181, %c0_182, %c240], %145 {strides = array<i32>} : memref<1x16x256xf32, #tpu.memory_space<vmem>>, vector<1x16x16xf32>,
    return
  }
  func.func @transform_0(%arg0: i32) -> (i32, i32, i32, i32) {
    %c0_i32 = arith.constant 0 : i32
    %c0_i32_0 = arith.constant 0 : i32
    %c0_i32_1 = arith.constant 0 : i32
    %c0_i32_2 = arith.constant 0 : i32
    return %arg0, %c0_i32, %c0_i32_0, %c0_i32_1 : i32, i32, i32, i32
  }
  func.func @transform_1(%arg0: i32) -> (i32, i32) {
    %c0_i32 = arith.constant 0 : i32
    %c0_i32_0 = arith.constant 0 : i32
    %c0_i32_1 = arith.constant 0 : i32
    return %c0_i32, %c0_i32_0 : i32, i32
  }
  func.func @transform_2(%arg0: i32) -> (i32, i32) {
    %c0_i32 = arith.constant 0 : i32
    %c0_i32_0 = arith.constant 0 : i32
    %c0_i32_1 = arith.constant 0 : i32
    return %c0_i32, %c0_i32_0 : i32, i32
  }
  func.func @transform_3(%arg0: i32) -> (i32, i32) {
    %c0_i32 = arith.constant 0 : i32
    %c0_i32_0 = arith.constant 0 : i32
    %c0_i32_1 = arith.constant 0 : i32
    return %c0_i32, %c0_i32_0 : i32, i32
  }
  func.func @transform_4(%arg0: i32) -> (i32, i32, i32) {
    %c0_i32 = arith.constant 0 : i32
    %c0_i32_0 = arith.constant 0 : i32
    %c0_i32_1 = arith.constant 0 : i32
    return %arg0, %c0_i32, %c0_i32_0 : i32, i32, i32
  }
}

</mosaic_0001>

<llo_original>
// kernel: tpu_custom_call.1
$region0: #{tpu_custom_call.1}
  #allocation0 [shape = 'u32[]', space=smem, size = 0x4, offset = 0x4, fixed_abs, tag = 'smem constant byte address 0x4 - core index']
  #allocation1 [shape = 'u32[144,128]{1,0:T(1,128)}', space=vmem, size = 0x12000, scoped, tag = 'internal scratch']
  #allocation2 [shape = 'bf16[18,18,8]{2,1,0:T(8,128)(2,1)}', space=vmem, size = 0x1b000, scoped, tag = 'scratch operand']
  #allocation3 [shape = 'bf16[18,18,8]{2,1,0:T(8,128)(2,1)}', space=vmem, size = 0x1b000, scoped, tag = 'scratch operand']
  #allocation4 [shape = 'bf16[16,16,72]{2,1,0:T(16,128)(2,1)}', space=vmem, size = 0x10000, scoped, tag = 'scratch operand']
  %s0 = inlined_call_operand.vmem [shape: bf16[2,16,16,8], index: 0, kind: input, shape index: {}]
  %s1 = inlined_call_operand.vmem [shape: bf16[72,8], index: 1, kind: input, shape index: {}]
  %s2 = inlined_call_operand.vmem [shape: f32[1,8], index: 2, kind: input, shape index: {}]
  %s3 = inlined_call_operand.vmem [shape: bf16[72,16], index: 3, kind: input, shape index: {}]
  %s4 = inlined_call_operand.hbm [shape: f32[2,16,256], index: 4, kind: output, shape index: {}]
  %s5 = sld [smem:[#allocation0]]
  $region49: #{tpu_custom_call.1} parent=0
    _
  %s7 = ssub.s32 1, %s5
  %s8 = scalar_select 0, %s7, %s5
  $region1: #{tpu_custom_call.1} parent=0
    #allocation5 [shape = 'u8[32768]{0}', space=vmem, size = 0x8000, scoped, tag = 'output window, operand 0']
    #allocation6 [shape = 's32[2]{0}', space=sflag, size = 0x8, scoped, tag = 'scoped memory for tpu_custom_call.1']
    %9 = vsyncpa [#allocation6], 0
    %s10 = scalar_lea.sflag [#allocation6], 1
    %11 = vsyncpa %s10, 0
    loop: start=0, step=1, limit=4
    $region2: #{tpu_custom_call.1} parent=1 // loop_pre_header
      _
    $region3: #{tpu_custom_call.1} parent=1 // loop_header
      %s13 = sphi 0, %s17
      %p14 = scmp.ge.s32.totalorder %s13, 4
      %s23 = sphi 0, %s25
      %s26 = sphi 0, %s23
      %s27 = sphi 0, %s26
      %s43 = sphi 0, %s27
      %s47 = sphi 0, %s47
      %s49 = sphi 0, %s47
      %s50 = sphi 0, %s49
      %s64 = sphi 0, %s50
      %s68 = sphi 0, %s68
      %s70 = sphi 0, %s68
      %s71 = sphi 0, %s70
      %s85 = sphi 0, %s71
      %s89 = sphi 0, %s89
      %s91 = sphi 0, %s89
      %s92 = sphi 0, %s91
      %s106 = sphi 0, %s92
      %s112 = sphi 0, %s114
      %s115 = sphi 0, %s112
      %s116 = sphi 0, %s115
      %s132 = sphi 0, %s116
    $region4: #{tpu_custom_call.1} parent=1 // loop_header_branch
      %16 = sbr.rel (%p14) target = $region8
    $region5: #{tpu_custom_call.1} parent=1 // loop_body
      %s18 = ssub.s32 %s13, 1
      %s19 = ssub.s32 %s13, 2
      %s20 = sadd.s32 %s13, 1
      %s21 = ssub.s32 %s13, %s20
      %p22 = scmp.eq.s32.totalorder %s21, 0
      %s24 = sadd.s32 %s23, 1
      %s25 = scalar_select %p22, %s23, %s24
      %p28 = pneg %p22
      %p29 = scmp.eq.s32.totalorder %s13, 1
      %p30 = por %p28, %p29
      %p31 = scmp.ne.s32.totalorder %s23, %s26
      %p32 = scmp.eq.s32.totalorder %s13, 0
      %p33 = por %p31, %p32
      %p34 = scmp.ne.s32.totalorder %s23, %s26
      %p35 = scmp.eq.s32.totalorder %s18, 1
      %p36 = por %p34, %p35
      %p37 = scmp.ne.s32.totalorder %s26, %s27
      %p38 = scmp.eq.s32.totalorder %s18, 0
      %p39 = por %p37, %p38
      %p40 = scmp.ne.s32.totalorder %s26, %s27
      %p41 = scmp.eq.s32.totalorder %s19, 1
      %p42 = por %p40, %p41
      %p44 = scmp.ne.s32.totalorder %s27, %s43
      %p45 = scmp.eq.s32.totalorder %s19, 0
      %p46 = por %p44, %p45
      %s48 = sadd.s32 %s47, 1
      %p51 = scmp.eq.s32.totalorder %s13, 1
      %p52 = scmp.ne.s32.totalorder %s47, %s49
      %p53 = scmp.eq.s32.totalorder %s13, 0
      %p54 = por %p52, %p53
      %p55 = scmp.ne.s32.totalorder %s47, %s49
      %p56 = scmp.eq.s32.totalorder %s18, 1
      %p57 = por %p55, %p56
      %p58 = scmp.ne.s32.totalorder %s49, %s50
      %p59 = scmp.eq.s32.totalorder %s18, 0
      %p60 = por %p58, %p59
      %p61 = scmp.ne.s32.totalorder %s49, %s50
      %p62 = scmp.eq.s32.totalorder %s19, 1
      %p63 = por %p61, %p62
      %p65 = scmp.ne.s32.totalorder %s50, %s64
      %p66 = scmp.eq.s32.totalorder %s19, 0
      %p67 = por %p65, %p66
      %s69 = sadd.s32 %s68, 1
      %p72 = scmp.eq.s32.totalorder %s13, 1
      %p73 = scmp.ne.s32.totalorder %s68, %s70
      %p74 = scmp.eq.s32.totalorder %s13, 0
      %p75 = por %p73, %p74
      %p76 = scmp.ne.s32.totalorder %s68, %s70
      %p77 = scmp.eq.s32.totalorder %s18, 1
      %p78 = por %p76, %p77
      %p79 = scmp.ne.s32.totalorder %s70, %s71
      %p80 = scmp.eq.s32.totalorder %s18, 0
      %p81 = por %p79, %p80
      %p82 = scmp.ne.s32.totalorder %s70, %s71
      %p83 = scmp.eq.s32.totalorder %s19, 1
      %p84 = por %p82, %p83
      %p86 = scmp.ne.s32.totalorder %s71, %s85
      %p87 = scmp.eq.s32.totalorder %s19, 0
      %p88 = por %p86, %p87
      %s90 = sadd.s32 %s89, 1
      %p93 = scmp.eq.s32.totalorder %s13, 1
      %p94 = scmp.ne.s32.totalorder %s89, %s91
      %p95 = scmp.eq.s32.totalorder %s13, 0
      %p96 = por %p94, %p95
      %p97 = scmp.ne.s32.totalorder %s89, %s91
      %p98 = scmp.eq.s32.totalorder %s18, 1
      %p99 = por %p97, %p98
      %p100 = scmp.ne.s32.totalorder %s91, %s92
      %p101 = scmp.eq.s32.totalorder %s18, 0
      %p102 = por %p100, %p101
      %p103 = scmp.ne.s32.totalorder %s91, %s92
      %p104 = scmp.eq.s32.totalorder %s19, 1
      %p105 = por %p103, %p104
      %p107 = scmp.ne.s32.totalorder %s92, %s106
      %p108 = scmp.eq.s32.totalorder %s19, 0
      %p109 = por %p107, %p108
      %s110 = ssub.s32 %s13, %s20
      %p111 = scmp.eq.s32.totalorder %s110, 0
      %s113 = sadd.s32 %s112, 1
      %s114 = scalar_select %p111, %s112, %s113
      %p117 = pneg %p111
      %p118 = scmp.eq.s32.totalorder %s13, 1
      %p119 = por %p117, %p118
      %p120 = scmp.ne.s32.totalorder %s112, %s115
      %p121 = scmp.eq.s32.totalorder %s13, 0
      %p122 = por %p120, %p121
      %p123 = scmp.ne.s32.totalorder %s112, %s115
      %p124 = scmp.eq.s32.totalorder %s18, 1
      %p125 = por %p123, %p124
      %p126 = scmp.ne.s32.totalorder %s115, %s116
      %p127 = scmp.eq.s32.totalorder %s18, 0
      %p128 = por %p126, %p127
      %p129 = scmp.ne.s32.totalorder %s115, %s116
      %p130 = scmp.eq.s32.totalorder %s19, 1
      %p131 = por %p129, %p130
      %p133 = scmp.ne.s32.totalorder %s116, %s132
      %p134 = scmp.eq.s32.totalorder %s19, 0
      %p135 = por %p133, %p134
      %p136 = scmp.le.s32.totalorder 1, %s13
      %p137 = scmp.lt.s32.totalorder %s13, 3
      %p138 = pnand %p136, %p137
      %p139 = pneg %p138
      // Predicated region
      $region9: #{tpu_custom_call.1} parent=5 // pred_check
        _
      $region10: #{tpu_custom_call.1} parent=5 // pred_check_branch
        %141 = sbr.rel (%p138) target = $region12
      $region11: #{tpu_custom_call.1} parent=5 // pred_region
        %s142 = ssub.s32 %s13, 1
        // Predicated region
        $region13: #{tpu_custom_call.1} parent=11 // pred_check
          %p143 = pneg %p60
        $region14: #{tpu_custom_call.1} parent=11 // pred_check_branch
          %145 = sbr.rel (%p143) target = $region16
        $region15: #{tpu_custom_call.1} parent=11 // pred_region
          _
        $region16: #{tpu_custom_call.1} parent=11 // pred_fallthru
          _
        // Predicated region
        $region17: #{tpu_custom_call.1} parent=11 // pred_check
          %p146 = pneg %p81
        $region18: #{tpu_custom_call.1} parent=11 // pred_check_branch
          %148 = sbr.rel (%p146) target = $region20
        $region19: #{tpu_custom_call.1} parent=11 // pred_region
          _
        $region20: #{tpu_custom_call.1} parent=11 // pred_fallthru
          _
        // Predicated region
        $region21: #{tpu_custom_call.1} parent=11 // pred_check
          %p149 = pneg %p102
        $region22: #{tpu_custom_call.1} parent=11 // pred_check_branch
          %151 = sbr.rel (%p149) target = $region24
        $region23: #{tpu_custom_call.1} parent=11 // pred_region
          _
        $region24: #{tpu_custom_call.1} parent=11 // pred_fallthru
          _
      $region12: #{tpu_custom_call.1} parent=5 // pred_fallthru
        _
      %p152 = scmp.lt.s32.totalorder %s13, 2
      // Predicated region
      $region25: #{tpu_custom_call.1} parent=5 // pred_check
        %p153 = pneg %p152
      $region26: #{tpu_custom_call.1} parent=5 // pred_check_branch
        %155 = sbr.rel (%p153) target = $region28
      $region27: #{tpu_custom_call.1} parent=5 // pred_region
        // Predicated region
        $region29: #{tpu_custom_call.1} parent=27 // pred_check
          %p156 = pneg %p33
        $region30: #{tpu_custom_call.1} parent=27 // pred_check_branch
          %158 = sbr.rel (%p156) target = $region32
        $region31: #{tpu_custom_call.1} parent=27 // pred_region
          %p159 = scmp.lt.s32.totalorder %s13, 1
          %s160 = scalar_select %p159, %s13, 1
          %s161 = smul.addr %s160, 32
          %s162 = smul.addr %s161, 4
          %s163 = scalar_lea.vmem %s0, %s162
        $region32: #{tpu_custom_call.1} parent=27 // pred_fallthru
          _
      $region28: #{tpu_custom_call.1} parent=5 // pred_fallthru
        _
      %p164 = scmp.le.s32.totalorder 1, %s13
      %p165 = scmp.lt.s32.totalorder %s13, 3
      %p166 = pnand %p164, %p165
      %p167 = pneg %p166
      // Predicated region
      $region33: #{tpu_custom_call.1} parent=5 // pred_check
        _
      $region34: #{tpu_custom_call.1} parent=5 // pred_check_branch
        %169 = sbr.rel (%p166) target = $region36
      $region35: #{tpu_custom_call.1} parent=5 // pred_region
        %s170 = ssub.s32 %s13, 1
        %p171 = scmp.lt.s32.totalorder %s18, 1
        %s172 = scalar_select %p171, %s18, 1
        %s173 = smul.addr %s172, 32
        %s174 = smul.addr %s173, 4
        %s175 = scalar_lea.vmem %s0, %s174
        %p176 = pneg %p39
        %p177 = pneg %p36
        %p178 = pneg %p60
        %p179 = pneg %p57
        %p180 = pneg %p81
        %p181 = pneg %p78
        %p182 = pneg %p102
        %p183 = pneg %p99
        %p184 = pneg %p128
        %p185 = pneg %p125
        %s186 = sand.u32 %s115, 1
        %s187 = scalar_lea.sflag [#allocation6], %s186
        %s188 = sand.u32 %s115, 1
        %s189 = smul.addr %s188, 32
        %s190 = scalar_lea.vmem [#allocation5], %s189
        %p191 = scmp.lt.s32.totalorder %s18, 1
        %s192 = scalar_select %p191, %s18, 1
        %s193 = smul.addr %s192, 32
        %s194 = smul.addr %s193, 4
        %s195 = scalar_lea.vmem %s0, %s194
        %vm197 = vcmask 60416
        %198 = vst.msk [vmem:[#allocation2] sm:$0xf] %vm197, 0
        %199 = vst.msk [vmem:[#allocation2 + $0x4] sm:$0xf] %vm197, 0
        %vm200 = vcmask 57344
        %201 = vst.msk [vmem:[#allocation2 + $0x8] sm:$0x1] %vm200, 0
        %s202 = scalar_lea.vmem [#allocation2], 204
        %203 = vst.msk [vmem:[%s202] sm:$0xf] %vm197, 0
        %204 = vst.msk [vmem:[%s202 + $0x4] sm:$0xf] %vm197, 0
        %205 = vst.msk [vmem:[%s202 + $0x8] sm:$0x1] %vm200, 0
        %vm206 = vcmask 57344
        %vm207 = vsmask.f32 256
        %vm208 = vmand %vm206, %vm207
        %v209 = vld [vmem:[#allocation2] sm:$0x1]
        %v210 = vsel %vm208, 0, %v209
        %211 = vst [vmem:[#allocation2] sm:$0x1] %v210
        %v212 = vld [vmem:[#allocation2 + $0xc] sm:$0x1]
        %v213 = vsel %vm208, 0, %v212
        %214 = vst [vmem:[#allocation2 + $0xc] sm:$0x1] %v213
        %v215 = vld [vmem:[#allocation2 + $0x18] sm:$0x1]
        %v216 = vsel %vm208, 0, %v215
        %217 = vst [vmem:[#allocation2 + $0x18] sm:$0x1] %v216
        %v218 = vld [vmem:[#allocation2 + $0x24] sm:$0x1]
        %v219 = vsel %vm208, 0, %v218
        %220 = vst [vmem:[#allocation2 + $0x24] sm:$0x1] %v219
        %v221 = vld [vmem:[#allocation2 + $0x30] sm:$0x1]
        %v222 = vsel %vm208, 0, %v221
        %223 = vst [vmem:[#allocation2 + $0x30] sm:$0x1] %v222
        %v224 = vld [vmem:[#allocation2 + $0x3c] sm:$0x1]
        %v225 = vsel %vm208, 0, %v224
        %226 = vst [vmem:[#allocation2 + $0x3c] sm:$0x1] %v225
        %v227 = vld [vmem:[#allocation2 + $0x48] sm:$0x1]
        %v228 = vsel %vm208, 0, %v227
        %229 = vst [vmem:[#allocation2 + $0x48] sm:$0x1] %v228
        %v230 = vld [vmem:[#allocation2 + $0x54] sm:$0x1]
        %v231 = vsel %vm208, 0, %v230
        %232 = vst [vmem:[#allocation2 + $0x54] sm:$0x1] %v231
        %v233 = vld [vmem:[#allocation2 + $0x60] sm:$0x1]
        %v234 = vsel %vm208, 0, %v233
        %235 = vst [vmem:[#allocation2 + $0x60] sm:$0x1] %v234
        %v236 = vld [vmem:[#allocation2 + $0x6c] sm:$0x1]
        %v237 = vsel %vm208, 0, %v236
        %238 = vst [vmem:[#allocation2 + $0x6c] sm:$0x1] %v237
        %v239 = vld [vmem:[#allocation2 + $0x78] sm:$0x1]
        %v240 = vsel %vm208, 0, %v239
        %241 = vst [vmem:[#allocation2 + $0x78] sm:$0x1] %v240
        %v242 = vld [vmem:[#allocation2 + $0x84] sm:$0x1]
        %v243 = vsel %vm208, 0, %v242
        %244 = vst [vmem:[#allocation2 + $0x84] sm:$0x1] %v243
        %v245 = vld [vmem:[#allocation2 + $0x90] sm:$0x1]
        %v246 = vsel %vm208, 0, %v245
        %247 = vst [vmem:[#allocation2 + $0x90] sm:$0x1] %v246
        %v248 = vld [vmem:[#allocation2 + $0x9c] sm:$0x1]
        %v249 = vsel %vm208, 0, %v248
        %250 = vst [vmem:[#allocation2 + $0x9c] sm:$0x1] %v249
        %v251 = vld [vmem:[#allocation2 + $0xa8] sm:$0x1]
        %v252 = vsel %vm208, 0, %v251
        %253 = vst [vmem:[#allocation2 + $0xa8] sm:$0x1] %v252
        %v254 = vld [vmem:[#allocation2 + $0xb4] sm:$0x1]
        %v255 = vsel %vm208, 0, %v254
        %256 = vst [vmem:[#allocation2 + $0xb4] sm:$0x1] %v255
        %v257 = vld [vmem:[#allocation2 + $0xc0] sm:$0x1]
        %v258 = vsel %vm208, 0, %v257
        %259 = vst [vmem:[#allocation2 + $0xc0] sm:$0x1] %v258
        %v260 = vld [vmem:[#allocation2 + $0xcc] sm:$0x1]
        %v261 = vsel %vm208, 0, %v260
        %262 = vst [vmem:[#allocation2 + $0xcc] sm:$0x1] %v261
        %vm263 = vsmask.f32 7938
        %vm264 = vmand %vm206, %vm263
        %v265 = vld [vmem:[#allocation2 + $0x8] sm:$0x1]
        %v266 = vsel %vm264, 0, %v265
        %267 = vst [vmem:[#allocation2 + $0x8] sm:$0x1] %v266
        %v268 = vld [vmem:[#allocation2 + $0x14] sm:$0x1]
        %v269 = vsel %vm264, 0, %v268
        %270 = vst [vmem:[#allocation2 + $0x14] sm:$0x1] %v269
        %v271 = vld [vmem:[#allocation2 + $0x20] sm:$0x1]
        %v272 = vsel %vm264, 0, %v271
        %273 = vst [vmem:[#allocation2 + $0x20] sm:$0x1] %v272
        %v274 = vld [vmem:[#allocation2 + $0x2c] sm:$0x1]
        %v275 = vsel %vm264, 0, %v274
        %276 = vst [vmem:[#allocation2 + $0x2c] sm:$0x1] %v275
        %v277 = vld [vmem:[#allocation2 + $0x38] sm:$0x1]
        %v278 = vsel %vm264, 0, %v277
        %279 = vst [vmem:[#allocation2 + $0x38] sm:$0x1] %v278
        %v280 = vld [vmem:[#allocation2 + $0x44] sm:$0x1]
        %v281 = vsel %vm264, 0, %v280
        %282 = vst [vmem:[#allocation2 + $0x44] sm:$0x1] %v281
        %v283 = vld [vmem:[#allocation2 + $0x50] sm:$0x1]
        %v284 = vsel %vm264, 0, %v283
        %285 = vst [vmem:[#allocation2 + $0x50] sm:$0x1] %v284
        %v286 = vld [vmem:[#allocation2 + $0x5c] sm:$0x1]
        %v287 = vsel %vm264, 0, %v286
        %288 = vst [vmem:[#allocation2 + $0x5c] sm:$0x1] %v287
        %v289 = vld [vmem:[#allocation2 + $0x68] sm:$0x1]
        %v290 = vsel %vm264, 0, %v289
        %291 = vst [vmem:[#allocation2 + $0x68] sm:$0x1] %v290
        %v292 = vld [vmem:[#allocation2 + $0x74] sm:$0x1]
        %v293 = vsel %vm264, 0, %v292
        %294 = vst [vmem:[#allocation2 + $0x74] sm:$0x1] %v293
        %v295 = vld [vmem:[#allocation2 + $0x80] sm:$0x1]
        %v296 = vsel %vm264, 0, %v295
        %297 = vst [vmem:[#allocation2 + $0x80] sm:$0x1] %v296
        %v298 = vld [vmem:[#allocation2 + $0x8c] sm:$0x1]
        %v299 = vsel %vm264, 0, %v298
        %300 = vst [vmem:[#allocation2 + $0x8c] sm:$0x1] %v299
        %v301 = vld [vmem:[#allocation2 + $0x98] sm:$0x1]
        %v302 = vsel %vm264, 0, %v301
        %303 = vst [vmem:[#allocation2 + $0x98] sm:$0x1] %v302
        %v304 = vld [vmem:[#allocation2 + $0xa4] sm:$0x1]
        %v305 = vsel %vm264, 0, %v304
        %306 = vst [vmem:[#allocation2 + $0xa4] sm:$0x1] %v305
        %v307 = vld [vmem:[#allocation2 + $0xb0] sm:$0x1]
        %v308 = vsel %vm264, 0, %v307
        %309 = vst [vmem:[#allocation2 + $0xb0] sm:$0x1] %v308
        %v310 = vld [vmem:[#allocation2 + $0xbc] sm:$0x1]
        %v311 = vsel %vm264, 0, %v310
        %312 = vst [vmem:[#allocation2 + $0xbc] sm:$0x1] %v311
        %v313 = vld [vmem:[#allocation2 + $0xc8] sm:$0x1]
        %v314 = vsel %vm264, 0, %v313
        %315 = vst [vmem:[#allocation2 + $0xc8] sm:$0x1] %v314
        %v316 = vld [vmem:[#allocation2 + $0xd4] sm:$0x1]
        %v317 = vsel %vm264, 0, %v316
        %318 = vst [vmem:[#allocation2 + $0xd4] sm:$0x1] %v317
        %319 = vst.msk [vmem:[#allocation3] sm:$0xf] %vm197, 0
        %320 = vst.msk [vmem:[#allocation3 + $0x4] sm:$0xf] %vm197, 0
        %321 = vst.msk [vmem:[#allocation3 + $0x8] sm:$0x1] %vm200, 0
        %s322 = scalar_lea.vmem [#allocation3], 204
        %323 = vst.msk [vmem:[%s322] sm:$0xf] %vm197, 0
        %324 = vst.msk [vmem:[%s322 + $0x4] sm:$0xf] %vm197, 0
        %325 = vst.msk [vmem:[%s322 + $0x8] sm:$0x1] %vm200, 0
        %v326 = vld [vmem:[#allocation3] sm:$0x1]
        %v327 = vsel %vm208, 0, %v326
        %328 = vst [vmem:[#allocation3] sm:$0x1] %v327
        %v329 = vld [vmem:[#allocation3 + $0xc] sm:$0x1]
        %v330 = vsel %vm208, 0, %v329
        %331 = vst [vmem:[#allocation3 + $0xc] sm:$0x1] %v330
        %v332 = vld [vmem:[#allocation3 + $0x18] sm:$0x1]
        %v333 = vsel %vm208, 0, %v332
        %334 = vst [vmem:[#allocation3 + $0x18] sm:$0x1] %v333
        %v335 = vld [vmem:[#allocation3 + $0x24] sm:$0x1]
        %v336 = vsel %vm208, 0, %v335
        %337 = vst [vmem:[#allocation3 + $0x24] sm:$0x1] %v336
        %v338 = vld [vmem:[#allocation3 + $0x30] sm:$0x1]
        %v339 = vsel %vm208, 0, %v338
        %340 = vst [vmem:[#allocation3 + $0x30] sm:$0x1] %v339
        %v341 = vld [vmem:[#allocation3 + $0x3c] sm:$0x1]
        %v342 = vsel %vm208, 0, %v341
        %343 = vst [vmem:[#allocation3 + $0x3c] sm:$0x1] %v342
        %v344 = vld [vmem:[#allocation3 + $0x48] sm:$0x1]
        %v345 = vsel %vm208, 0, %v344
        %346 = vst [vmem:[#allocation3 + $0x48] sm:$0x1] %v345
        %v347 = vld [vmem:[#allocation3 + $0x54] sm:$0x1]
        %v348 = vsel %vm208, 0, %v347
        %349 = vst [vmem:[#allocation3 + $0x54] sm:$0x1] %v348
        %v350 = vld [vmem:[#allocation3 + $0x60] sm:$0x1]
        %v351 = vsel %vm208, 0, %v350
        %352 = vst [vmem:[#allocation3 + $0x60] sm:$0x1] %v351
        %v353 = vld [vmem:[#allocation3 + $0x6c] sm:$0x1]
        %v354 = vsel %vm208, 0, %v353
        %355 = vst [vmem:[#allocation3 + $0x6c] sm:$0x1] %v354
        %v356 = vld [vmem:[#allocation3 + $0x78] sm:$0x1]
        %v357 = vsel %vm208, 0, %v356
        %358 = vst [vmem:[#allocation3 + $0x78] sm:$0x1] %v357
        %v359 = vld [vmem:[#allocation3 + $0x84] sm:$0x1]
        %v360 = vsel %vm208, 0, %v359
        %361 = vst [vmem:[#allocation3 + $0x84] sm:$0x1] %v360
        %v362 = vld [vmem:[#allocation3 + $0x90] sm:$0x1]
        %v363 = vsel %vm208, 0, %v362
        %364 = vst [vmem:[#allocation3 + $0x90] sm:$0x1] %v363
        %v365 = vld [vmem:[#allocation3 + $0x9c] sm:$0x1]
        %v366 = vsel %vm208, 0, %v365
        %367 = vst [vmem:[#allocation3 + $0x9c] sm:$0x1] %v366
        %v368 = vld [vmem:[#allocation3 + $0xa8] sm:$0x1]
        %v369 = vsel %vm208, 0, %v368
        %370 = vst [vmem:[#allocation3 + $0xa8] sm:$0x1] %v369
        %v371 = vld [vmem:[#allocation3 + $0xb4] sm:$0x1]
        %v372 = vsel %vm208, 0, %v371
        %373 = vst [vmem:[#allocation3 + $0xb4] sm:$0x1] %v372
        %v374 = vld [vmem:[#allocation3 + $0xc0] sm:$0x1]
        %v375 = vsel %vm208, 0, %v374
        %376 = vst [vmem:[#allocation3 + $0xc0] sm:$0x1] %v375
        %v377 = vld [vmem:[#allocation3 + $0xcc] sm:$0x1]
        %v378 = vsel %vm208, 0, %v377
        %379 = vst [vmem:[#allocation3 + $0xcc] sm:$0x1] %v378
        %v380 = vld [vmem:[#allocation3 + $0x8] sm:$0x1]
        %v381 = vsel %vm264, 0, %v380
        %382 = vst [vmem:[#allocation3 + $0x8] sm:$0x1] %v381
        %v383 = vld [vmem:[#allocation3 + $0x14] sm:$0x1]
        %v384 = vsel %vm264, 0, %v383
        %385 = vst [vmem:[#allocation3 + $0x14] sm:$0x1] %v384
        %v386 = vld [vmem:[#allocation3 + $0x20] sm:$0x1]
        %v387 = vsel %vm264, 0, %v386
        %388 = vst [vmem:[#allocation3 + $0x20] sm:$0x1] %v387
        %v389 = vld [vmem:[#allocation3 + $0x2c] sm:$0x1]
        %v390 = vsel %vm264, 0, %v389
        %391 = vst [vmem:[#allocation3 + $0x2c] sm:$0x1] %v390
        %v392 = vld [vmem:[#allocation3 + $0x38] sm:$0x1]
        %v393 = vsel %vm264, 0, %v392
        %394 = vst [vmem:[#allocation3 + $0x38] sm:$0x1] %v393
        %v395 = vld [vmem:[#allocation3 + $0x44] sm:$0x1]
        %v396 = vsel %vm264, 0, %v395
        %397 = vst [vmem:[#allocation3 + $0x44] sm:$0x1] %v396
        %v398 = vld [vmem:[#allocation3 + $0x50] sm:$0x1]
        %v399 = vsel %vm264, 0, %v398
        %400 = vst [vmem:[#allocation3 + $0x50] sm:$0x1] %v399
        %v401 = vld [vmem:[#allocation3 + $0x5c] sm:$0x1]
        %v402 = vsel %vm264, 0, %v401
        %403 = vst [vmem:[#allocation3 + $0x5c] sm:$0x1] %v402
        %v404 = vld [vmem:[#allocation3 + $0x68] sm:$0x1]
        %v405 = vsel %vm264, 0, %v404
        %406 = vst [vmem:[#allocation3 + $0x68] sm:$0x1] %v405
        %v407 = vld [vmem:[#allocation3 + $0x74] sm:$0x1]
        %v408 = vsel %vm264, 0, %v407
        %409 = vst [vmem:[#allocation3 + $0x74] sm:$0x1] %v408
        %v410 = vld [vmem:[#allocation3 + $0x80] sm:$0x1]
        %v411 = vsel %vm264, 0, %v410
        %412 = vst [vmem:[#allocation3 + $0x80] sm:$0x1] %v411
        %v413 = vld [vmem:[#allocation3 + $0x8c] sm:$0x1]
        %v414 = vsel %vm264, 0, %v413
        %415 = vst [vmem:[#allocation3 + $0x8c] sm:$0x1] %v414
        %v416 = vld [vmem:[#allocation3 + $0x98] sm:$0x1]
        %v417 = vsel %vm264, 0, %v416
        %418 = vst [vmem:[#allocation3 + $0x98] sm:$0x1] %v417
        %v419 = vld [vmem:[#allocation3 + $0xa4] sm:$0x1]
        %v420 = vsel %vm264, 0, %v419
        %421 = vst [vmem:[#allocation3 + $0xa4] sm:$0x1] %v420
        %v422 = vld [vmem:[#allocation3 + $0xb0] sm:$0x1]
        %v423 = vsel %vm264, 0, %v422
        %424 = vst [vmem:[#allocation3 + $0xb0] sm:$0x1] %v423
        %v425 = vld [vmem:[#allocation3 + $0xbc] sm:$0x1]
        %v426 = vsel %vm264, 0, %v425
        %427 = vst [vmem:[#allocation3 + $0xbc] sm:$0x1] %v426
        %v428 = vld [vmem:[#allocation3 + $0xc8] sm:$0x1]
        %v429 = vsel %vm264, 0, %v428
        %430 = vst [vmem:[#allocation3 + $0xc8] sm:$0x1] %v429
        %v431 = vld [vmem:[#allocation3 + $0xd4] sm:$0x1]
        %v432 = vsel %vm264, 0, %v431
        %433 = vst [vmem:[#allocation3 + $0xd4] sm:$0x1] %v432
        %v434 = vld [vmem:[%s195] sm:$0xf]
        %v435 = vld [vmem:[%s195 + $0x4] sm:$0xf]
        %v436 = vld [vmem:[%s195 + $0x8] sm:$0xf]
        %v437 = vld [vmem:[%s195 + $0xc] sm:$0xf]
        %v438 = vld [vmem:[%s195 + $0x10] sm:$0xf]
        %v439 = vld [vmem:[%s195 + $0x14] sm:$0xf]
        %v440 = vld [vmem:[%s195 + $0x18] sm:$0xf]
        %v441 = vld [vmem:[%s195 + $0x1c] sm:$0xf]
        %v442 = vld [vmem:[%s195 + $0x20] sm:$0xf]
        %v443 = vld [vmem:[%s195 + $0x24] sm:$0xf]
        %v444 = vld [vmem:[%s195 + $0x28] sm:$0xf]
        %v445 = vld [vmem:[%s195 + $0x2c] sm:$0xf]
        %v446 = vld [vmem:[%s195 + $0x30] sm:$0xf]
        %v447 = vld [vmem:[%s195 + $0x34] sm:$0xf]
        %v448 = vld [vmem:[%s195 + $0x38] sm:$0xf]
        %v449 = vld [vmem:[%s195 + $0x3c] sm:$0xf]
        %v450 = vld [vmem:[%s195 + $0x40] sm:$0xf]
        %v451 = vld [vmem:[%s195 + $0x44] sm:$0xf]
        %v452 = vld [vmem:[%s195 + $0x48] sm:$0xf]
        %v453 = vld [vmem:[%s195 + $0x4c] sm:$0xf]
        %v454 = vld [vmem:[%s195 + $0x50] sm:$0xf]
        %v455 = vld [vmem:[%s195 + $0x54] sm:$0xf]
        %v456 = vld [vmem:[%s195 + $0x58] sm:$0xf]
        %v457 = vld [vmem:[%s195 + $0x5c] sm:$0xf]
        %v458 = vld [vmem:[%s195 + $0x60] sm:$0xf]
        %v459 = vld [vmem:[%s195 + $0x64] sm:$0xf]
        %v460 = vld [vmem:[%s195 + $0x68] sm:$0xf]
        %v461 = vld [vmem:[%s195 + $0x6c] sm:$0xf]
        %v462 = vld [vmem:[%s195 + $0x70] sm:$0xf]
        %v463 = vld [vmem:[%s195 + $0x74] sm:$0xf]
        %v464 = vld [vmem:[%s195 + $0x78] sm:$0xf]
        %v465 = vld [vmem:[%s195 + $0x7c] sm:$0xf]
        %vm466 = vsmask.f32 4368
        %vm467 = vmor %vm207, %vm466
        %v469 = vshrl.u32 %v434, 16
        %v471 = vrot.slane %v469, 7
        %v472 = vshll.u32 %v434, 16
        %v474 = vor.u32 %v471, %v472
        %v475 = vrot.slane %v471, 4
        %v477 = vshrl.u32 %v435, 16
        %v479 = vrot.slane %v477, 7
        %v480 = vshll.u32 %v435, 16
        %v482 = vor.u32 %v479, %v480
        %v483 = vsel %vm467, %v475, %v482
        %v484 = vrot.slane %v479, 4
        %v486 = vshrl.u32 %v436, 16
        %v488 = vrot.slane %v486, 7
        %v489 = vshll.u32 %v436, 16
        %v491 = vor.u32 %v488, %v489
        %v492 = vrot.slane %v488, 4
        %v494 = vshrl.u32 %v437, 16
        %v496 = vrot.slane %v494, 7
        %v497 = vshll.u32 %v437, 16
        %v499 = vor.u32 %v496, %v497
        %v500 = vsel %vm467, %v492, %v499
        %v501 = vrot.slane %v496, 4
        %v503 = vshrl.u32 %v438, 16
        %v505 = vrot.slane %v503, 7
        %v506 = vshll.u32 %v438, 16
        %v508 = vor.u32 %v505, %v506
        %v509 = vrot.slane %v505, 4
        %v511 = vshrl.u32 %v439, 16
        %v513 = vrot.slane %v511, 7
        %v514 = vshll.u32 %v439, 16
        %v516 = vor.u32 %v513, %v514
        %v517 = vsel %vm467, %v509, %v516
        %v518 = vrot.slane %v513, 4
        %v520 = vshrl.u32 %v440, 16
        %v522 = vrot.slane %v520, 7
        %v523 = vshll.u32 %v440, 16
        %v525 = vor.u32 %v522, %v523
        %v526 = vrot.slane %v522, 4
        %v528 = vshrl.u32 %v441, 16
        %v530 = vrot.slane %v528, 7
        %v531 = vshll.u32 %v441, 16
        %v533 = vor.u32 %v530, %v531
        %v534 = vsel %vm467, %v526, %v533
        %v535 = vrot.slane %v530, 4
        %v537 = vshrl.u32 %v442, 16
        %v539 = vrot.slane %v537, 7
        %v540 = vshll.u32 %v442, 16
        %v542 = vor.u32 %v539, %v540
        %v543 = vrot.slane %v539, 4
        %v545 = vshrl.u32 %v443, 16
        %v547 = vrot.slane %v545, 7
        %v548 = vshll.u32 %v443, 16
        %v550 = vor.u32 %v547, %v548
        %v551 = vsel %vm467, %v543, %v550
        %v552 = vrot.slane %v547, 4
        %v554 = vshrl.u32 %v444, 16
        %v556 = vrot.slane %v554, 7
        %v557 = vshll.u32 %v444, 16
        %v559 = vor.u32 %v556, %v557
        %v560 = vrot.slane %v556, 4
        %v562 = vshrl.u32 %v445, 16
        %v564 = vrot.slane %v562, 7
        %v565 = vshll.u32 %v445, 16
        %v567 = vor.u32 %v564, %v565
        %v568 = vsel %vm467, %v560, %v567
        %v569 = vrot.slane %v564, 4
        %v571 = vshrl.u32 %v446, 16
        %v573 = vrot.slane %v571, 7
        %v574 = vshll.u32 %v446, 16
        %v576 = vor.u32 %v573, %v574
        %v577 = vrot.slane %v573, 4
        %v579 = vshrl.u32 %v447, 16
        %v581 = vrot.slane %v579, 7
        %v582 = vshll.u32 %v447, 16
        %v584 = vor.u32 %v581, %v582
        %v585 = vsel %vm467, %v577, %v584
        %v586 = vrot.slane %v581, 4
        %v588 = vshrl.u32 %v448, 16
        %v590 = vrot.slane %v588, 7
        %v591 = vshll.u32 %v448, 16
        %v593 = vor.u32 %v590, %v591
        %v594 = vrot.slane %v590, 4
        %v596 = vshrl.u32 %v449, 16
        %v598 = vrot.slane %v596, 7
        %v599 = vshll.u32 %v449, 16
        %v601 = vor.u32 %v598, %v599
        %v602 = vsel %vm467, %v594, %v601
        %v603 = vrot.slane %v598, 4
        %v605 = vshrl.u32 %v450, 16
        %v607 = vrot.slane %v605, 7
        %v608 = vshll.u32 %v450, 16
        %v610 = vor.u32 %v607, %v608
        %v611 = vrot.slane %v607, 4
        %v613 = vshrl.u32 %v451, 16
        %v615 = vrot.slane %v613, 7
        %v616 = vshll.u32 %v451, 16
        %v618 = vor.u32 %v615, %v616
        %v619 = vsel %vm467, %v611, %v618
        %v620 = vrot.slane %v615, 4
        %v622 = vshrl.u32 %v452, 16
        %v624 = vrot.slane %v622, 7
        %v625 = vshll.u32 %v452, 16
        %v627 = vor.u32 %v624, %v625
        %v628 = vrot.slane %v624, 4
        %v630 = vshrl.u32 %v453, 16
        %v632 = vrot.slane %v630, 7
        %v633 = vshll.u32 %v453, 16
        %v635 = vor.u32 %v632, %v633
        %v636 = vsel %vm467, %v628, %v635
        %v637 = vrot.slane %v632, 4
        %v639 = vshrl.u32 %v454, 16
        %v641 = vrot.slane %v639, 7
        %v642 = vshll.u32 %v454, 16
        %v644 = vor.u32 %v641, %v642
        %v645 = vrot.slane %v641, 4
        %v647 = vshrl.u32 %v455, 16
        %v649 = vrot.slane %v647, 7
        %v650 = vshll.u32 %v455, 16
        %v652 = vor.u32 %v649, %v650
        %v653 = vsel %vm467, %v645, %v652
        %v654 = vrot.slane %v649, 4
        %v656 = vshrl.u32 %v456, 16
        %v658 = vrot.slane %v656, 7
        %v659 = vshll.u32 %v456, 16
        %v661 = vor.u32 %v658, %v659
        %v662 = vrot.slane %v658, 4
        %v664 = vshrl.u32 %v457, 16
        %v666 = vrot.slane %v664, 7
        %v667 = vshll.u32 %v457, 16
        %v669 = vor.u32 %v666, %v667
        %v670 = vsel %vm467, %v662, %v669
        %v671 = vrot.slane %v666, 4
        %v673 = vshrl.u32 %v458, 16
        %v675 = vrot.slane %v673, 7
        %v676 = vshll.u32 %v458, 16
        %v678 = vor.u32 %v675, %v676
        %v679 = vrot.slane %v675, 4
        %v681 = vshrl.u32 %v459, 16
        %v683 = vrot.slane %v681, 7
        %v684 = vshll.u32 %v459, 16
        %v686 = vor.u32 %v683, %v684
        %v687 = vsel %vm467, %v679, %v686
        %v688 = vrot.slane %v683, 4
        %v690 = vshrl.u32 %v460, 16
        %v692 = vrot.slane %v690, 7
        %v693 = vshll.u32 %v460, 16
        %v695 = vor.u32 %v692, %v693
        %v696 = vrot.slane %v692, 4
        %v698 = vshrl.u32 %v461, 16
        %v700 = vrot.slane %v698, 7
        %v701 = vshll.u32 %v461, 16
        %v703 = vor.u32 %v700, %v701
        %v704 = vsel %vm467, %v696, %v703
        %v705 = vrot.slane %v700, 4
        %v707 = vshrl.u32 %v462, 16
        %v709 = vrot.slane %v707, 7
        %v710 = vshll.u32 %v462, 16
        %v712 = vor.u32 %v709, %v710
        %v713 = vrot.slane %v709, 4
        %v715 = vshrl.u32 %v463, 16
        %v717 = vrot.slane %v715, 7
        %v718 = vshll.u32 %v463, 16
        %v720 = vor.u32 %v717, %v718
        %v721 = vsel %vm467, %v713, %v720
        %v722 = vrot.slane %v717, 4
        %v724 = vshrl.u32 %v464, 16
        %v726 = vrot.slane %v724, 7
        %v727 = vshll.u32 %v464, 16
        %v729 = vor.u32 %v726, %v727
        %v730 = vrot.slane %v726, 4
        %v732 = vshrl.u32 %v465, 16
        %v734 = vrot.slane %v732, 7
        %v735 = vshll.u32 %v465, 16
        %v737 = vor.u32 %v734, %v735
        %v738 = vsel %vm467, %v730, %v737
        %v739 = vrot.slane %v734, 4
        %s788 = scalar_lea.vmem [#allocation2], 12
        %vm789 = vcmask 60416
        %vm790 = vmand %vm789, %vm263
        %v791 = vld [vmem:[%s788] sm:$0xf]
        %v792 = vsel %vm790, %v474, %v791
        %793 = vst [vmem:[%s788] sm:$0xf] %v792
        %794 = vst.msk [vmem:[%s788 + $0x4] sm:$0xf] %vm197, %v483
        %v795 = vld [vmem:[%s788 + $0x8] sm:$0x1]
        %v796 = vsel %vm208, %v484, %v795
        %797 = vst [vmem:[%s788 + $0x8] sm:$0x1] %v796
        %v798 = vld [vmem:[%s788 + $0xc] sm:$0xf]
        %v799 = vsel %vm790, %v491, %v798
        %800 = vst [vmem:[%s788 + $0xc] sm:$0xf] %v799
        %801 = vst.msk [vmem:[%s788 + $0x10] sm:$0xf] %vm197, %v500
        %v802 = vld [vmem:[%s788 + $0x14] sm:$0x1]
        %v803 = vsel %vm208, %v501, %v802
        %804 = vst [vmem:[%s788 + $0x14] sm:$0x1] %v803
        %v805 = vld [vmem:[%s788 + $0x18] sm:$0xf]
        %v806 = vsel %vm790, %v508, %v805
        %807 = vst [vmem:[%s788 + $0x18] sm:$0xf] %v806
        %808 = vst.msk [vmem:[%s788 + $0x1c] sm:$0xf] %vm197, %v517
        %v809 = vld [vmem:[%s788 + $0x20] sm:$0x1]
        %v810 = vsel %vm208, %v518, %v809
        %811 = vst [vmem:[%s788 + $0x20] sm:$0x1] %v810
        %v812 = vld [vmem:[%s788 + $0x24] sm:$0xf]
        %v813 = vsel %vm790, %v525, %v812
        %814 = vst [vmem:[%s788 + $0x24] sm:$0xf] %v813
        %815 = vst.msk [vmem:[%s788 + $0x28] sm:$0xf] %vm197, %v534
        %v816 = vld [vmem:[%s788 + $0x2c] sm:$0x1]
        %v817 = vsel %vm208, %v535, %v816
        %818 = vst [vmem:[%s788 + $0x2c] sm:$0x1] %v817
        %v819 = vld [vmem:[%s788 + $0x30] sm:$0xf]
        %v820 = vsel %vm790, %v542, %v819
        %821 = vst [vmem:[%s788 + $0x30] sm:$0xf] %v820
        %822 = vst.msk [vmem:[%s788 + $0x34] sm:$0xf] %vm197, %v551
        %v823 = vld [vmem:[%s788 + $0x38] sm:$0x1]
        %v824 = vsel %vm208, %v552, %v823
        %825 = vst [vmem:[%s788 + $0x38] sm:$0x1] %v824
        %v826 = vld [vmem:[%s788 + $0x3c] sm:$0xf]
        %v827 = vsel %vm790, %v559, %v826
        %828 = vst [vmem:[%s788 + $0x3c] sm:$0xf] %v827
        %829 = vst.msk [vmem:[%s788 + $0x40] sm:$0xf] %vm197, %v568
        %v830 = vld [vmem:[%s788 + $0x44] sm:$0x1]
        %v831 = vsel %vm208, %v569, %v830
        %832 = vst [vmem:[%s788 + $0x44] sm:$0x1] %v831
        %v833 = vld [vmem:[%s788 + $0x48] sm:$0xf]
        %v834 = vsel %vm790, %v576, %v833
        %835 = vst [vmem:[%s788 + $0x48] sm:$0xf] %v834
        %836 = vst.msk [vmem:[%s788 + $0x4c] sm:$0xf] %vm197, %v585
        %v837 = vld [vmem:[%s788 + $0x50] sm:$0x1]
        %v838 = vsel %vm208, %v586, %v837
        %839 = vst [vmem:[%s788 + $0x50] sm:$0x1] %v838
        %v840 = vld [vmem:[%s788 + $0x54] sm:$0xf]
        %v841 = vsel %vm790, %v593, %v840
        %842 = vst [vmem:[%s788 + $0x54] sm:$0xf] %v841
        %843 = vst.msk [vmem:[%s788 + $0x58] sm:$0xf] %vm197, %v602
        %v844 = vld [vmem:[%s788 + $0x5c] sm:$0x1]
        %v845 = vsel %vm208, %v603, %v844
        %846 = vst [vmem:[%s788 + $0x5c] sm:$0x1] %v845
        %v847 = vld [vmem:[%s788 + $0x60] sm:$0xf]
        %v848 = vsel %vm790, %v610, %v847
        %849 = vst [vmem:[%s788 + $0x60] sm:$0xf] %v848
        %850 = vst.msk [vmem:[%s788 + $0x64] sm:$0xf] %vm197, %v619
        %v851 = vld [vmem:[%s788 + $0x68] sm:$0x1]
        %v852 = vsel %vm208, %v620, %v851
        %853 = vst [vmem:[%s788 + $0x68] sm:$0x1] %v852
        %v854 = vld [vmem:[%s788 + $0x6c] sm:$0xf]
        %v855 = vsel %vm790, %v627, %v854
        %856 = vst [vmem:[%s788 + $0x6c] sm:$0xf] %v855
        %857 = vst.msk [vmem:[%s788 + $0x70] sm:$0xf] %vm197, %v636
        %v858 = vld [vmem:[%s788 + $0x74] sm:$0x1]
        %v859 = vsel %vm208, %v637, %v858
        %860 = vst [vmem:[%s788 + $0x74] sm:$0x1] %v859
        %v861 = vld [vmem:[%s788 + $0x78] sm:$0xf]
        %v862 = vsel %vm790, %v644, %v861
        %863 = vst [vmem:[%s788 + $0x78] sm:$0xf] %v862
        %864 = vst.msk [vmem:[%s788 + $0x7c] sm:$0xf] %vm197, %v653
        %v865 = vld [vmem:[%s788 + $0x80] sm:$0x1]
        %v866 = vsel %vm208, %v654, %v865
        %867 = vst [vmem:[%s788 + $0x80] sm:$0x1] %v866
        %v868 = vld [vmem:[%s788 + $0x84] sm:$0xf]
        %v869 = vsel %vm790, %v661, %v868
        %870 = vst [vmem:[%s788 + $0x84] sm:$0xf] %v869
        %871 = vst.msk [vmem:[%s788 + $0x88] sm:$0xf] %vm197, %v670
        %v872 = vld [vmem:[%s788 + $0x8c] sm:$0x1]
        %v873 = vsel %vm208, %v671, %v872
        %874 = vst [vmem:[%s788 + $0x8c] sm:$0x1] %v873
        %v875 = vld [vmem:[%s788 + $0x90] sm:$0xf]
        %v876 = vsel %vm790, %v678, %v875
        %877 = vst [vmem:[%s788 + $0x90] sm:$0xf] %v876
        %878 = vst.msk [vmem:[%s788 + $0x94] sm:$0xf] %vm197, %v687
        %v879 = vld [vmem:[%s788 + $0x98] sm:$0x1]
        %v880 = vsel %vm208, %v688, %v879
        %881 = vst [vmem:[%s788 + $0x98] sm:$0x1] %v880
        %v882 = vld [vmem:[%s788 + $0x9c] sm:$0xf]
        %v883 = vsel %vm790, %v695, %v882
        %884 = vst [vmem:[%s788 + $0x9c] sm:$0xf] %v883
        %885 = vst.msk [vmem:[%s788 + $0xa0] sm:$0xf] %vm197, %v704
        %v886 = vld [vmem:[%s788 + $0xa4] sm:$0x1]
        %v887 = vsel %vm208, %v705, %v886
        %888 = vst [vmem:[%s788 + $0xa4] sm:$0x1] %v887
        %v889 = vld [vmem:[%s788 + $0xa8] sm:$0xf]
        %v890 = vsel %vm790, %v712, %v889
        %891 = vst [vmem:[%s788 + $0xa8] sm:$0xf] %v890
        %892 = vst.msk [vmem:[%s788 + $0xac] sm:$0xf] %vm197, %v721
        %v893 = vld [vmem:[%s788 + $0xb0] sm:$0x1]
        %v894 = vsel %vm208, %v722, %v893
        %895 = vst [vmem:[%s788 + $0xb0] sm:$0x1] %v894
        %v896 = vld [vmem:[%s788 + $0xb4] sm:$0xf]
        %v897 = vsel %vm790, %v729, %v896
        %898 = vst [vmem:[%s788 + $0xb4] sm:$0xf] %v897
        %899 = vst.msk [vmem:[%s788 + $0xb8] sm:$0xf] %vm197, %v738
        %v900 = vld [vmem:[%s788 + $0xbc] sm:$0x1]
        %v901 = vsel %vm208, %v739, %v900
        %902 = vst [vmem:[%s788 + $0xbc] sm:$0x1] %v901
        %v903 = vld [vmem:[#allocation2] sm:$0xf]
        %v904 = vld [vmem:[#allocation2 + $0x4] sm:$0xf]
        %v905 = vld [vmem:[#allocation2 + $0xc] sm:$0xf]
        %v906 = vld [vmem:[#allocation2 + $0x10] sm:$0xf]
        %v907 = vld [vmem:[#allocation2 + $0x18] sm:$0xf]
        %v908 = vld [vmem:[#allocation2 + $0x1c] sm:$0xf]
        %v909 = vld [vmem:[#allocation2 + $0x24] sm:$0xf]
        %v910 = vld [vmem:[#allocation2 + $0x28] sm:$0xf]
        %v911 = vld [vmem:[#allocation2 + $0x30] sm:$0xf]
        %v912 = vld [vmem:[#allocation2 + $0x34] sm:$0xf]
        %v913 = vld [vmem:[#allocation2 + $0x3c] sm:$0xf]
        %v914 = vld [vmem:[#allocation2 + $0x40] sm:$0xf]
        %v915 = vld [vmem:[#allocation2 + $0x48] sm:$0xf]
        %v916 = vld [vmem:[#allocation2 + $0x4c] sm:$0xf]
        %v917 = vld [vmem:[#allocation2 + $0x54] sm:$0xf]
        %v918 = vld [vmem:[#allocation2 + $0x58] sm:$0xf]
        %v919 = vld [vmem:[#allocation2 + $0x60] sm:$0xf]
        %v920 = vld [vmem:[#allocation2 + $0x64] sm:$0xf]
        %v921 = vld [vmem:[#allocation2 + $0x6c] sm:$0xf]
        %v922 = vld [vmem:[#allocation2 + $0x70] sm:$0xf]
        %v923 = vld [vmem:[#allocation2 + $0x78] sm:$0xf]
        %v924 = vld [vmem:[#allocation2 + $0x7c] sm:$0xf]
        %v925 = vld [vmem:[#allocation2 + $0x84] sm:$0xf]
        %v926 = vld [vmem:[#allocation2 + $0x88] sm:$0xf]
        %v927 = vld [vmem:[#allocation2 + $0x90] sm:$0xf]
        %v928 = vld [vmem:[#allocation2 + $0x94] sm:$0xf]
        %v929 = vld [vmem:[#allocation2 + $0x9c] sm:$0xf]
        %v930 = vld [vmem:[#allocation2 + $0xa0] sm:$0xf]
        %v931 = vld [vmem:[#allocation2 + $0xa8] sm:$0xf]
        %v932 = vld [vmem:[#allocation2 + $0xac] sm:$0xf]
        %v933 = vld [vmem:[#allocation2 + $0xb4] sm:$0xf]
        %v934 = vld [vmem:[#allocation2 + $0xb8] sm:$0xf]
        %v967 = vunpack.c.l.b16 %v903
        %v968 = vunpack.c.l.b16 %v904
        %v969 = vunpack.c.l.b16 %v905
        %v970 = vunpack.c.l.b16 %v906
        %v971 = vunpack.c.l.b16 %v907
        %v972 = vunpack.c.l.b16 %v908
        %v973 = vunpack.c.l.b16 %v909
        %v974 = vunpack.c.l.b16 %v910
        %v975 = vunpack.c.l.b16 %v911
        %v976 = vunpack.c.l.b16 %v912
        %v977 = vunpack.c.l.b16 %v913
        %v978 = vunpack.c.l.b16 %v914
        %v979 = vunpack.c.l.b16 %v915
        %v980 = vunpack.c.l.b16 %v916
        %v981 = vunpack.c.l.b16 %v917
        %v982 = vunpack.c.l.b16 %v918
        %v983 = vunpack.c.l.b16 %v919
        %v984 = vunpack.c.l.b16 %v920
        %v985 = vunpack.c.l.b16 %v921
        %v986 = vunpack.c.l.b16 %v922
        %v987 = vunpack.c.l.b16 %v923
        %v988 = vunpack.c.l.b16 %v924
        %v989 = vunpack.c.l.b16 %v925
        %v990 = vunpack.c.l.b16 %v926
        %v991 = vunpack.c.l.b16 %v927
        %v992 = vunpack.c.l.b16 %v928
        %v993 = vunpack.c.l.b16 %v929
        %v994 = vunpack.c.l.b16 %v930
        %v995 = vunpack.c.l.b16 %v931
        %v996 = vunpack.c.l.b16 %v932
        %v997 = vunpack.c.l.b16 %v933
        %v998 = vunpack.c.l.b16 %v934
        %v999 = vpack.c.b16 %v968, %v967
        %v1000 = vpack.c.b16 %v970, %v969
        %v1001 = vpack.c.b16 %v972, %v971
        %v1002 = vpack.c.b16 %v974, %v973
        %v1003 = vpack.c.b16 %v976, %v975
        %v1004 = vpack.c.b16 %v978, %v977
        %v1005 = vpack.c.b16 %v980, %v979
        %v1006 = vpack.c.b16 %v982, %v981
        %v1007 = vpack.c.b16 %v984, %v983
        %v1008 = vpack.c.b16 %v986, %v985
        %v1009 = vpack.c.b16 %v988, %v987
        %v1010 = vpack.c.b16 %v990, %v989
        %v1011 = vpack.c.b16 %v992, %v991
        %v1012 = vpack.c.b16 %v994, %v993
        %v1013 = vpack.c.b16 %v996, %v995
        %v1014 = vpack.c.b16 %v998, %v997
        %vm1031 = vcmask 64512
        %1032 = vst.msk [vmem:[#allocation4] sm:$0xff] %vm1031, %v999
        %1033 = vst.msk [vmem:[#allocation4 + $0x8] sm:$0xff] %vm1031, %v1000
        %1034 = vst.msk [vmem:[#allocation4 + $0x10] sm:$0xff] %vm1031, %v1001
        %1035 = vst.msk [vmem:[#allocation4 + $0x18] sm:$0xff] %vm1031, %v1002
        %1036 = vst.msk [vmem:[#allocation4 + $0x20] sm:$0xff] %vm1031, %v1003
        %1037 = vst.msk [vmem:[#allocation4 + $0x28] sm:$0xff] %vm1031, %v1004
        %1038 = vst.msk [vmem:[#allocation4 + $0x30] sm:$0xff] %vm1031, %v1005
        %1039 = vst.msk [vmem:[#allocation4 + $0x38] sm:$0xff] %vm1031, %v1006
        %1040 = vst.msk [vmem:[#allocation4 + $0x40] sm:$0xff] %vm1031, %v1007
        %1041 = vst.msk [vmem:[#allocation4 + $0x48] sm:$0xff] %vm1031, %v1008
        %1042 = vst.msk [vmem:[#allocation4 + $0x50] sm:$0xff] %vm1031, %v1009
        %1043 = vst.msk [vmem:[#allocation4 + $0x58] sm:$0xff] %vm1031, %v1010
        %1044 = vst.msk [vmem:[#allocation4 + $0x60] sm:$0xff] %vm1031, %v1011
        %1045 = vst.msk [vmem:[#allocation4 + $0x68] sm:$0xff] %vm1031, %v1012
        %1046 = vst.msk [vmem:[#allocation4 + $0x70] sm:$0xff] %vm1031, %v1013
        %1047 = vst.msk [vmem:[#allocation4 + $0x78] sm:$0xff] %vm1031, %v1014
        %v1048 = vld [vmem:[#allocation2] sm:$0xf]
        %v1049 = vld [vmem:[#allocation2 + $0x4] sm:$0xf]
        %v1050 = vld [vmem:[#allocation2 + $0x8] sm:$0x1]
        %v1051 = vld [vmem:[#allocation2 + $0xc] sm:$0xf]
        %v1052 = vld [vmem:[#allocation2 + $0x10] sm:$0xf]
        %v1053 = vld [vmem:[#allocation2 + $0x14] sm:$0x1]
        %v1054 = vld [vmem:[#allocation2 + $0x18] sm:$0xf]
        %v1055 = vld [vmem:[#allocation2 + $0x1c] sm:$0xf]
        %v1056 = vld [vmem:[#allocation2 + $0x20] sm:$0x1]
        %v1057 = vld [vmem:[#allocation2 + $0x24] sm:$0xf]
        %v1058 = vld [vmem:[#allocation2 + $0x28] sm:$0xf]
        %v1059 = vld [vmem:[#allocation2 + $0x2c] sm:$0x1]
        %v1060 = vld [vmem:[#allocation2 + $0x30] sm:$0xf]
        %v1061 = vld [vmem:[#allocation2 + $0x34] sm:$0xf]
        %v1062 = vld [vmem:[#allocation2 + $0x38] sm:$0x1]
        %v1063 = vld [vmem:[#allocation2 + $0x3c] sm:$0xf]
        %v1064 = vld [vmem:[#allocation2 + $0x40] sm:$0xf]
        %v1065 = vld [vmem:[#allocation2 + $0x44] sm:$0x1]
        %v1066 = vld [vmem:[#allocation2 + $0x48] sm:$0xf]
        %v1067 = vld [vmem:[#allocation2 + $0x4c] sm:$0xf]
        %v1068 = vld [vmem:[#allocation2 + $0x50] sm:$0x1]
        %v1069 = vld [vmem:[#allocation2 + $0x54] sm:$0xf]
        %v1070 = vld [vmem:[#allocation2 + $0x58] sm:$0xf]
        %v1071 = vld [vmem:[#allocation2 + $0x5c] sm:$0x1]
        %v1072 = vld [vmem:[#allocation2 + $0x60] sm:$0xf]
        %v1073 = vld [vmem:[#allocation2 + $0x64] sm:$0xf]
        %v1074 = vld [vmem:[#allocation2 + $0x68] sm:$0x1]
        %v1075 = vld [vmem:[#allocation2 + $0x6c] sm:$0xf]
        %v1076 = vld [vmem:[#allocation2 + $0x70] sm:$0xf]
        %v1077 = vld [vmem:[#allocation2 + $0x74] sm:$0x1]
        %v1078 = vld [vmem:[#allocation2 + $0x78] sm:$0xf]
        %v1079 = vld [vmem:[#allocation2 + $0x7c] sm:$0xf]
        %v1080 = vld [vmem:[#allocation2 + $0x80] sm:$0x1]
        %v1081 = vld [vmem:[#allocation2 + $0x84] sm:$0xf]
        %v1082 = vld [vmem:[#allocation2 + $0x88] sm:$0xf]
        %v1083 = vld [vmem:[#allocation2 + $0x8c] sm:$0x1]
        %v1084 = vld [vmem:[#allocation2 + $0x90] sm:$0xf]
        %v1085 = vld [vmem:[#allocation2 + $0x94] sm:$0xf]
        %v1086 = vld [vmem:[#allocation2 + $0x98] sm:$0x1]
        %v1087 = vld [vmem:[#allocation2 + $0x9c] sm:$0xf]
        %v1088 = vld [vmem:[#allocation2 + $0xa0] sm:$0xf]
        %v1089 = vld [vmem:[#allocation2 + $0xa4] sm:$0x1]
        %v1090 = vld [vmem:[#allocation2 + $0xa8] sm:$0xf]
        %v1091 = vld [vmem:[#allocation2 + $0xac] sm:$0xf]
        %v1092 = vld [vmem:[#allocation2 + $0xb0] sm:$0x1]
        %v1093 = vld [vmem:[#allocation2 + $0xb4] sm:$0xf]
        %v1094 = vld [vmem:[#allocation2 + $0xb8] sm:$0xf]
        %v1095 = vld [vmem:[#allocation2 + $0xbc] sm:$0x1]
        %v1144 = vunpack.c.l.b16 %v1048
        %v1145 = vunpack.c.l.b16 %v1049
        %v1146 = vunpack.c.l.b16 %v1050
        %v1147 = vunpack.c.l.b16 %v1051
        %v1148 = vunpack.c.l.b16 %v1052
        %v1149 = vunpack.c.l.b16 %v1053
        %v1150 = vunpack.c.l.b16 %v1054
        %v1151 = vunpack.c.l.b16 %v1055
        %v1152 = vunpack.c.l.b16 %v1056
        %v1153 = vunpack.c.l.b16 %v1057
        %v1154 = vunpack.c.l.b16 %v1058
        %v1155 = vunpack.c.l.b16 %v1059
        %v1156 = vunpack.c.l.b16 %v1060
        %v1157 = vunpack.c.l.b16 %v1061
        %v1158 = vunpack.c.l.b16 %v1062
        %v1159 = vunpack.c.l.b16 %v1063
        %v1160 = vunpack.c.l.b16 %v1064
        %v1161 = vunpack.c.l.b16 %v1065
        %v1162 = vunpack.c.l.b16 %v1066
        %v1163 = vunpack.c.l.b16 %v1067
        %v1164 = vunpack.c.l.b16 %v1068
        %v1165 = vunpack.c.l.b16 %v1069
        %v1166 = vunpack.c.l.b16 %v1070
        %v1167 = vunpack.c.l.b16 %v1071
        %v1168 = vunpack.c.l.b16 %v1072
        %v1169 = vunpack.c.l.b16 %v1073
        %v1170 = vunpack.c.l.b16 %v1074
        %v1171 = vunpack.c.l.b16 %v1075
        %v1172 = vunpack.c.l.b16 %v1076
        %v1173 = vunpack.c.l.b16 %v1077
        %v1174 = vunpack.c.l.b16 %v1078
        %v1175 = vunpack.c.l.b16 %v1079
        %v1176 = vunpack.c.l.b16 %v1080
        %v1177 = vunpack.c.l.b16 %v1081
        %v1178 = vunpack.c.l.b16 %v1082
        %v1179 = vunpack.c.l.b16 %v1083
        %v1180 = vunpack.c.l.b16 %v1084
        %v1181 = vunpack.c.l.b16 %v1085
        %v1182 = vunpack.c.l.b16 %v1086
        %v1183 = vunpack.c.l.b16 %v1087
        %v1184 = vunpack.c.l.b16 %v1088
        %v1185 = vunpack.c.l.b16 %v1089
        %v1186 = vunpack.c.l.b16 %v1090
        %v1187 = vunpack.c.l.b16 %v1091
        %v1188 = vunpack.c.l.b16 %v1092
        %v1189 = vunpack.c.l.b16 %v1093
        %v1190 = vunpack.c.l.b16 %v1094
        %v1191 = vunpack.c.l.b16 %v1095
        %v1192 = vpack.c.b16 %v1145, %v1144
        %v1193 = vpack.c.b16 %v1146, %v1146
        %v1194 = vpack.c.b16 %v1148, %v1147
        %v1195 = vpack.c.b16 %v1149, %v1149
        %v1196 = vpack.c.b16 %v1151, %v1150
        %v1197 = vpack.c.b16 %v1152, %v1152
        %v1198 = vpack.c.b16 %v1154, %v1153
        %v1199 = vpack.c.b16 %v1155, %v1155
        %v1200 = vpack.c.b16 %v1157, %v1156
        %v1201 = vpack.c.b16 %v1158, %v1158
        %v1202 = vpack.c.b16 %v1160, %v1159
        %v1203 = vpack.c.b16 %v1161, %v1161
        %v1204 = vpack.c.b16 %v1163, %v1162
        %v1205 = vpack.c.b16 %v1164, %v1164
        %v1206 = vpack.c.b16 %v1166, %v1165
        %v1207 = vpack.c.b16 %v1167, %v1167
        %v1208 = vpack.c.b16 %v1169, %v1168
        %v1209 = vpack.c.b16 %v1170, %v1170
        %v1210 = vpack.c.b16 %v1172, %v1171
        %v1211 = vpack.c.b16 %v1173, %v1173
        %v1212 = vpack.c.b16 %v1175, %v1174
        %v1213 = vpack.c.b16 %v1176, %v1176
        %v1214 = vpack.c.b16 %v1178, %v1177
        %v1215 = vpack.c.b16 %v1179, %v1179
        %v1216 = vpack.c.b16 %v1181, %v1180
        %v1217 = vpack.c.b16 %v1182, %v1182
        %v1218 = vpack.c.b16 %v1184, %v1183
        %v1219 = vpack.c.b16 %v1185, %v1185
        %v1220 = vpack.c.b16 %v1187, %v1186
        %v1221 = vpack.c.b16 %v1188, %v1188
        %v1222 = vpack.c.b16 %v1190, %v1189
        %v1223 = vpack.c.b16 %v1191, %v1191
        %vm1224 = vsmask.f32 7424
        %v1226 = vshrl.u32 %v1192, 16
        %v1228 = vshll.u32 %v1192, 16
        %v1230 = vrot.slane %v1228, 1
        %v1231 = vor.u32 %v1226, %v1230
        %v1233 = vshll.u32 %v1193, 16
        %v1235 = vrot.slane %v1233, 1
        %v1236 = vsel %vm1224, %v1231, %v1235
        %v1238 = vshrl.u32 %v1194, 16
        %v1240 = vshll.u32 %v1194, 16
        %v1242 = vrot.slane %v1240, 1
        %v1243 = vor.u32 %v1238, %v1242
        %v1245 = vshll.u32 %v1195, 16
        %v1247 = vrot.slane %v1245, 1
        %v1248 = vsel %vm1224, %v1243, %v1247
        %v1250 = vshrl.u32 %v1196, 16
        %v1252 = vshll.u32 %v1196, 16
        %v1254 = vrot.slane %v1252, 1
        %v1255 = vor.u32 %v1250, %v1254
        %v1257 = vshll.u32 %v1197, 16
        %v1259 = vrot.slane %v1257, 1
        %v1260 = vsel %vm1224, %v1255, %v1259
        %v1262 = vshrl.u32 %v1198, 16
        %v1264 = vshll.u32 %v1198, 16
        %v1266 = vrot.slane %v1264, 1
        %v1267 = vor.u32 %v1262, %v1266
        %v1269 = vshll.u32 %v1199, 16
        %v1271 = vrot.slane %v1269, 1
        %v1272 = vsel %vm1224, %v1267, %v1271
        %v1274 = vshrl.u32 %v1200, 16
        %v1276 = vshll.u32 %v1200, 16
        %v1278 = vrot.slane %v1276, 1
        %v1279 = vor.u32 %v1274, %v1278
        %v1281 = vshll.u32 %v1201, 16
        %v1283 = vrot.slane %v1281, 1
        %v1284 = vsel %vm1224, %v1279, %v1283
        %v1286 = vshrl.u32 %v1202, 16
        %v1288 = vshll.u32 %v1202, 16
        %v1290 = vrot.slane %v1288, 1
        %v1291 = vor.u32 %v1286, %v1290
        %v1293 = vshll.u32 %v1203, 16
        %v1295 = vrot.slane %v1293, 1
        %v1296 = vsel %vm1224, %v1291, %v1295
        %v1298 = vshrl.u32 %v1204, 16
        %v1300 = vshll.u32 %v1204, 16
        %v1302 = vrot.slane %v1300, 1
        %v1303 = vor.u32 %v1298, %v1302
        %v1305 = vshll.u32 %v1205, 16
        %v1307 = vrot.slane %v1305, 1
        %v1308 = vsel %vm1224, %v1303, %v1307
        %v1310 = vshrl.u32 %v1206, 16
        %v1312 = vshll.u32 %v1206, 16
        %v1314 = vrot.slane %v1312, 1
        %v1315 = vor.u32 %v1310, %v1314
        %v1317 = vshll.u32 %v1207, 16
        %v1319 = vrot.slane %v1317, 1
        %v1320 = vsel %vm1224, %v1315, %v1319
        %v1322 = vshrl.u32 %v1208, 16
        %v1324 = vshll.u32 %v1208, 16
        %v1326 = vrot.slane %v1324, 1
        %v1327 = vor.u32 %v1322, %v1326
        %v1329 = vshll.u32 %v1209, 16
        %v1331 = vrot.slane %v1329, 1
        %v1332 = vsel %vm1224, %v1327, %v1331
        %v1334 = vshrl.u32 %v1210, 16
        %v1336 = vshll.u32 %v1210, 16
        %v1338 = vrot.slane %v1336, 1
        %v1339 = vor.u32 %v1334, %v1338
        %v1341 = vshll.u32 %v1211, 16
        %v1343 = vrot.slane %v1341, 1
        %v1344 = vsel %vm1224, %v1339, %v1343
        %v1346 = vshrl.u32 %v1212, 16
        %v1348 = vshll.u32 %v1212, 16
        %v1350 = vrot.slane %v1348, 1
        %v1351 = vor.u32 %v1346, %v1350
        %v1353 = vshll.u32 %v1213, 16
        %v1355 = vrot.slane %v1353, 1
        %v1356 = vsel %vm1224, %v1351, %v1355
        %v1358 = vshrl.u32 %v1214, 16
        %v1360 = vshll.u32 %v1214, 16
        %v1362 = vrot.slane %v1360, 1
        %v1363 = vor.u32 %v1358, %v1362
        %v1365 = vshll.u32 %v1215, 16
        %v1367 = vrot.slane %v1365, 1
        %v1368 = vsel %vm1224, %v1363, %v1367
        %v1370 = vshrl.u32 %v1216, 16
        %v1372 = vshll.u32 %v1216, 16
        %v1374 = vrot.slane %v1372, 1
        %v1375 = vor.u32 %v1370, %v1374
        %v1377 = vshll.u32 %v1217, 16
        %v1379 = vrot.slane %v1377, 1
        %v1380 = vsel %vm1224, %v1375, %v1379
        %v1382 = vshrl.u32 %v1218, 16
        %v1384 = vshll.u32 %v1218, 16
        %v1386 = vrot.slane %v1384, 1
        %v1387 = vor.u32 %v1382, %v1386
        %v1389 = vshll.u32 %v1219, 16
        %v1391 = vrot.slane %v1389, 1
        %v1392 = vsel %vm1224, %v1387, %v1391
        %v1394 = vshrl.u32 %v1220, 16
        %v1396 = vshll.u32 %v1220, 16
        %v1398 = vrot.slane %v1396, 1
        %v1399 = vor.u32 %v1394, %v1398
        %v1401 = vshll.u32 %v1221, 16
        %v1403 = vrot.slane %v1401, 1
        %v1404 = vsel %vm1224, %v1399, %v1403
        %v1406 = vshrl.u32 %v1222, 16
        %v1408 = vshll.u32 %v1222, 16
        %v1410 = vrot.slane %v1408, 1
        %v1411 = vor.u32 %v1406, %v1410
        %v1413 = vshll.u32 %v1223, 16
        %v1415 = vrot.slane %v1413, 1
        %v1416 = vsel %vm1224, %v1411, %v1415
        %1417 = vrot.lane.b32.xlu0 %v1236, 8
        %v1418 = vpop.permute.xlu0 %1417
        %1419 = vrot.lane.b32.xlu0 %v1248, 8
        %v1420 = vpop.permute.xlu0 %1419
        %1421 = vrot.lane.b32.xlu0 %v1260, 8
        %v1422 = vpop.permute.xlu0 %1421
        %1423 = vrot.lane.b32.xlu0 %v1272, 8
        %v1424 = vpop.permute.xlu0 %1423
        %1425 = vrot.lane.b32.xlu0 %v1284, 8
        %v1426 = vpop.permute.xlu0 %1425
        %1427 = vrot.lane.b32.xlu0 %v1296, 8
        %v1428 = vpop.permute.xlu0 %1427
        %1429 = vrot.lane.b32.xlu0 %v1308, 8
        %v1430 = vpop.permute.xlu0 %1429
        %1431 = vrot.lane.b32.xlu0 %v1320, 8
        %v1432 = vpop.permute.xlu0 %1431
        %1433 = vrot.lane.b32.xlu0 %v1332, 8
        %v1434 = vpop.permute.xlu0 %1433
        %1435 = vrot.lane.b32.xlu0 %v1344, 8
        %v1436 = vpop.permute.xlu0 %1435
        %1437 = vrot.lane.b32.xlu0 %v1356, 8
        %v1438 = vpop.permute.xlu0 %1437
        %1439 = vrot.lane.b32.xlu0 %v1368, 8
        %v1440 = vpop.permute.xlu0 %1439
        %1441 = vrot.lane.b32.xlu0 %v1380, 8
        %v1442 = vpop.permute.xlu0 %1441
        %1443 = vrot.lane.b32.xlu0 %v1392, 8
        %v1444 = vpop.permute.xlu0 %1443
        %1445 = vrot.lane.b32.xlu0 %v1404, 8
        %v1446 = vpop.permute.xlu0 %1445
        %1447 = vrot.lane.b32.xlu0 %v1416, 8
        %v1448 = vpop.permute.xlu0 %1447
        %vm1465 = vcmask 130112
        %1466 = vst.msk [vmem:[#allocation4] sm:$0xff] %vm1465, %v1418
        %1467 = vst.msk [vmem:[#allocation4 + $0x8] sm:$0xff] %vm1465, %v1420
        %1468 = vst.msk [vmem:[#allocation4 + $0x10] sm:$0xff] %vm1465, %v1422
        %1469 = vst.msk [vmem:[#allocation4 + $0x18] sm:$0xff] %vm1465, %v1424
        %1470 = vst.msk [vmem:[#allocation4 + $0x20] sm:$0xff] %vm1465, %v1426
        %1471 = vst.msk [vmem:[#allocation4 + $0x28] sm:$0xff] %vm1465, %v1428
        %1472 = vst.msk [vmem:[#allocation4 + $0x30] sm:$0xff] %vm1465, %v1430
        %1473 = vst.msk [vmem:[#allocation4 + $0x38] sm:$0xff] %vm1465, %v1432
        %1474 = vst.msk [vmem:[#allocation4 + $0x40] sm:$0xff] %vm1465, %v1434
        %1475 = vst.msk [vmem:[#allocation4 + $0x48] sm:$0xff] %vm1465, %v1436
        %1476 = vst.msk [vmem:[#allocation4 + $0x50] sm:$0xff] %vm1465, %v1438
        %1477 = vst.msk [vmem:[#allocation4 + $0x58] sm:$0xff] %vm1465, %v1440
        %1478 = vst.msk [vmem:[#allocation4 + $0x60] sm:$0xff] %vm1465, %v1442
        %1479 = vst.msk [vmem:[#allocation4 + $0x68] sm:$0xff] %vm1465, %v1444
        %1480 = vst.msk [vmem:[#allocation4 + $0x70] sm:$0xff] %vm1465, %v1446
        %1481 = vst.msk [vmem:[#allocation4 + $0x78] sm:$0xff] %vm1465, %v1448
        %v1482 = vld [vmem:[#allocation2] sm:$0xe]
        %v1483 = vld [vmem:[#allocation2 + $0x4] sm:$0xf]
        %v1484 = vld [vmem:[#allocation2 + $0x8] sm:$0x1]
        %v1485 = vld [vmem:[#allocation2 + $0xc] sm:$0xe]
        %v1486 = vld [vmem:[#allocation2 + $0x10] sm:$0xf]
        %v1487 = vld [vmem:[#allocation2 + $0x14] sm:$0x1]
        %v1488 = vld [vmem:[#allocation2 + $0x18] sm:$0xe]
        %v1489 = vld [vmem:[#allocation2 + $0x1c] sm:$0xf]
        %v1490 = vld [vmem:[#allocation2 + $0x20] sm:$0x1]
        %v1491 = vld [vmem:[#allocation2 + $0x24] sm:$0xe]
        %v1492 = vld [vmem:[#allocation2 + $0x28] sm:$0xf]
        %v1493 = vld [vmem:[#allocation2 + $0x2c] sm:$0x1]
        %v1494 = vld [vmem:[#allocation2 + $0x30] sm:$0xe]
        %v1495 = vld [vmem:[#allocation2 + $0x34] sm:$0xf]
        %v1496 = vld [vmem:[#allocation2 + $0x38] sm:$0x1]
        %v1497 = vld [vmem:[#allocation2 + $0x3c] sm:$0xe]
        %v1498 = vld [vmem:[#allocation2 + $0x40] sm:$0xf]
        %v1499 = vld [vmem:[#allocation2 + $0x44] sm:$0x1]
        %v1500 = vld [vmem:[#allocation2 + $0x48] sm:$0xe]
        %v1501 = vld [vmem:[#allocation2 + $0x4c] sm:$0xf]
        %v1502 = vld [vmem:[#allocation2 + $0x50] sm:$0x1]
        %v1503 = vld [vmem:[#allocation2 + $0x54] sm:$0xe]
        %v1504 = vld [vmem:[#allocation2 + $0x58] sm:$0xf]
        %v1505 = vld [vmem:[#allocation2 + $0x5c] sm:$0x1]
        %v1506 = vld [vmem:[#allocation2 + $0x60] sm:$0xe]
        %v1507 = vld [vmem:[#allocation2 + $0x64] sm:$0xf]
        %v1508 = vld [vmem:[#allocation2 + $0x68] sm:$0x1]
        %v1509 = vld [vmem:[#allocation2 + $0x6c] sm:$0xe]
        %v1510 = vld [vmem:[#allocation2 + $0x70] sm:$0xf]
        %v1511 = vld [vmem:[#allocation2 + $0x74] sm:$0x1]
        %v1512 = vld [vmem:[#allocation2 + $0x78] sm:$0xe]
        %v1513 = vld [vmem:[#allocation2 + $0x7c] sm:$0xf]
        %v1514 = vld [vmem:[#allocation2 + $0x80] sm:$0x1]
        %v1515 = vld [vmem:[#allocation2 + $0x84] sm:$0xe]
        %v1516 = vld [vmem:[#allocation2 + $0x88] sm:$0xf]
        %v1517 = vld [vmem:[#allocation2 + $0x8c] sm:$0x1]
        %v1518 = vld [vmem:[#allocation2 + $0x90] sm:$0xe]
        %v1519 = vld [vmem:[#allocation2 + $0x94] sm:$0xf]
        %v1520 = vld [vmem:[#allocation2 + $0x98] sm:$0x1]
        %v1521 = vld [vmem:[#allocation2 + $0x9c] sm:$0xe]
        %v1522 = vld [vmem:[#allocation2 + $0xa0] sm:$0xf]
        %v1523 = vld [vmem:[#allocation2 + $0xa4] sm:$0x1]
        %v1524 = vld [vmem:[#allocation2 + $0xa8] sm:$0xe]
        %v1525 = vld [vmem:[#allocation2 + $0xac] sm:$0xf]
        %v1526 = vld [vmem:[#allocation2 + $0xb0] sm:$0x1]
        %v1527 = vld [vmem:[#allocation2 + $0xb4] sm:$0xe]
        %v1528 = vld [vmem:[#allocation2 + $0xb8] sm:$0xf]
        %v1529 = vld [vmem:[#allocation2 + $0xbc] sm:$0x1]
        %v1578 = vunpack.c.l.b16 %v1482
        %v1579 = vunpack.c.l.b16 %v1483
        %v1580 = vunpack.c.l.b16 %v1484
        %v1581 = vunpack.c.l.b16 %v1485
        %v1582 = vunpack.c.l.b16 %v1486
        %v1583 = vunpack.c.l.b16 %v1487
        %v1584 = vunpack.c.l.b16 %v1488
        %v1585 = vunpack.c.l.b16 %v1489
        %v1586 = vunpack.c.l.b16 %v1490
        %v1587 = vunpack.c.l.b16 %v1491
        %v1588 = vunpack.c.l.b16 %v1492
        %v1589 = vunpack.c.l.b16 %v1493
        %v1590 = vunpack.c.l.b16 %v1494
        %v1591 = vunpack.c.l.b16 %v1495
        %v1592 = vunpack.c.l.b16 %v1496
        %v1593 = vunpack.c.l.b16 %v1497
        %v1594 = vunpack.c.l.b16 %v1498
        %v1595 = vunpack.c.l.b16 %v1499
        %v1596 = vunpack.c.l.b16 %v1500
        %v1597 = vunpack.c.l.b16 %v1501
        %v1598 = vunpack.c.l.b16 %v1502
        %v1599 = vunpack.c.l.b16 %v1503
        %v1600 = vunpack.c.l.b16 %v1504
        %v1601 = vunpack.c.l.b16 %v1505
        %v1602 = vunpack.c.l.b16 %v1506
        %v1603 = vunpack.c.l.b16 %v1507
        %v1604 = vunpack.c.l.b16 %v1508
        %v1605 = vunpack.c.l.b16 %v1509
        %v1606 = vunpack.c.l.b16 %v1510
        %v1607 = vunpack.c.l.b16 %v1511
        %v1608 = vunpack.c.l.b16 %v1512
        %v1609 = vunpack.c.l.b16 %v1513
        %v1610 = vunpack.c.l.b16 %v1514
        %v1611 = vunpack.c.l.b16 %v1515
        %v1612 = vunpack.c.l.b16 %v1516
        %v1613 = vunpack.c.l.b16 %v1517
        %v1614 = vunpack.c.l.b16 %v1518
        %v1615 = vunpack.c.l.b16 %v1519
        %v1616 = vunpack.c.l.b16 %v1520
        %v1617 = vunpack.c.l.b16 %v1521
        %v1618 = vunpack.c.l.b16 %v1522
        %v1619 = vunpack.c.l.b16 %v1523
        %v1620 = vunpack.c.l.b16 %v1524
        %v1621 = vunpack.c.l.b16 %v1525
        %v1622 = vunpack.c.l.b16 %v1526
        %v1623 = vunpack.c.l.b16 %v1527
        %v1624 = vunpack.c.l.b16 %v1528
        %v1625 = vunpack.c.l.b16 %v1529
        %v1626 = vpack.c.b16 %v1579, %v1578
        %v1627 = vpack.c.b16 %v1580, %v1580
        %v1628 = vpack.c.b16 %v1582, %v1581
        %v1629 = vpack.c.b16 %v1583, %v1583
        %v1630 = vpack.c.b16 %v1585, %v1584
        %v1631 = vpack.c.b16 %v1586, %v1586
        %v1632 = vpack.c.b16 %v1588, %v1587
        %v1633 = vpack.c.b16 %v1589, %v1589
        %v1634 = vpack.c.b16 %v1591, %v1590
        %v1635 = vpack.c.b16 %v1592, %v1592
        %v1636 = vpack.c.b16 %v1594, %v1593
        %v1637 = vpack.c.b16 %v1595, %v1595
        %v1638 = vpack.c.b16 %v1597, %v1596
        %v1639 = vpack.c.b16 %v1598, %v1598
        %v1640 = vpack.c.b16 %v1600, %v1599
        %v1641 = vpack.c.b16 %v1601, %v1601
        %v1642 = vpack.c.b16 %v1603, %v1602
        %v1643 = vpack.c.b16 %v1604, %v1604
        %v1644 = vpack.c.b16 %v1606, %v1605
        %v1645 = vpack.c.b16 %v1607, %v1607
        %v1646 = vpack.c.b16 %v1609, %v1608
        %v1647 = vpack.c.b16 %v1610, %v1610
        %v1648 = vpack.c.b16 %v1612, %v1611
        %v1649 = vpack.c.b16 %v1613, %v1613
        %v1650 = vpack.c.b16 %v1615, %v1614
        %v1651 = vpack.c.b16 %v1616, %v1616
        %v1652 = vpack.c.b16 %v1618, %v1617
        %v1653 = vpack.c.b16 %v1619, %v1619
        %v1654 = vpack.c.b16 %v1621, %v1620
        %v1655 = vpack.c.b16 %v1622, %v1622
        %v1656 = vpack.c.b16 %v1624, %v1623
        %v1657 = vpack.c.b16 %v1625, %v1625
        %vm1658 = vcmask 1046528
        %v1659 = vrot.slane %v1626, 1
        %v1660 = vrot.slane %v1627, 1
        %v1661 = vsel %vm1658, %v1659, %v1660
        %v1662 = vrot.slane %v1628, 1
        %v1663 = vrot.slane %v1629, 1
        %v1664 = vsel %vm1658, %v1662, %v1663
        %v1665 = vrot.slane %v1630, 1
        %v1666 = vrot.slane %v1631, 1
        %v1667 = vsel %vm1658, %v1665, %v1666
        %v1668 = vrot.slane %v1632, 1
        %v1669 = vrot.slane %v1633, 1
        %v1670 = vsel %vm1658, %v1668, %v1669
        %v1671 = vrot.slane %v1634, 1
        %v1672 = vrot.slane %v1635, 1
        %v1673 = vsel %vm1658, %v1671, %v1672
        %v1674 = vrot.slane %v1636, 1
        %v1675 = vrot.slane %v1637, 1
        %v1676 = vsel %vm1658, %v1674, %v1675
        %v1677 = vrot.slane %v1638, 1
        %v1678 = vrot.slane %v1639, 1
        %v1679 = vsel %vm1658, %v1677, %v1678
        %v1680 = vrot.slane %v1640, 1
        %v1681 = vrot.slane %v1641, 1
        %v1682 = vsel %vm1658, %v1680, %v1681
        %v1683 = vrot.slane %v1642, 1
        %v1684 = vrot.slane %v1643, 1
        %v1685 = vsel %vm1658, %v1683, %v1684
        %v1686 = vrot.slane %v1644, 1
        %v1687 = vrot.slane %v1645, 1
        %v1688 = vsel %vm1658, %v1686, %v1687
        %v1689 = vrot.slane %v1646, 1
        %v1690 = vrot.slane %v1647, 1
        %v1691 = vsel %vm1658, %v1689, %v1690
        %v1692 = vrot.slane %v1648, 1
        %v1693 = vrot.slane %v1649, 1
        %v1694 = vsel %vm1658, %v1692, %v1693
        %v1695 = vrot.slane %v1650, 1
        %v1696 = vrot.slane %v1651, 1
        %v1697 = vsel %vm1658, %v1695, %v1696
        %v1698 = vrot.slane %v1652, 1
        %v1699 = vrot.slane %v1653, 1
        %v1700 = vsel %vm1658, %v1698, %v1699
        %v1701 = vrot.slane %v1654, 1
        %v1702 = vrot.slane %v1655, 1
        %v1703 = vsel %vm1658, %v1701, %v1702
        %v1704 = vrot.slane %v1656, 1
        %v1705 = vrot.slane %v1657, 1
        %v1706 = vsel %vm1658, %v1704, %v1705
        %1707 = vrot.lane.b32.xlu0 %v1661, 16
        %v1708 = vpop.permute.xlu0 %1707
        %1709 = vrot.lane.b32.xlu0 %v1664, 16
        %v1710 = vpop.permute.xlu0 %1709
        %1711 = vrot.lane.b32.xlu0 %v1667, 16
        %v1712 = vpop.permute.xlu0 %1711
        %1713 = vrot.lane.b32.xlu0 %v1670, 16
        %v1714 = vpop.permute.xlu0 %1713
        %1715 = vrot.lane.b32.xlu0 %v1673, 16
        %v1716 = vpop.permute.xlu0 %1715
        %1717 = vrot.lane.b32.xlu0 %v1676, 16
        %v1718 = vpop.permute.xlu0 %1717
        %1719 = vrot.lane.b32.xlu0 %v1679, 16
        %v1720 = vpop.permute.xlu0 %1719
        %1721 = vrot.lane.b32.xlu0 %v1682, 16
        %v1722 = vpop.permute.xlu0 %1721
        %1723 = vrot.lane.b32.xlu0 %v1685, 16
        %v1724 = vpop.permute.xlu0 %1723
        %1725 = vrot.lane.b32.xlu0 %v1688, 16
        %v1726 = vpop.permute.xlu0 %1725
        %1727 = vrot.lane.b32.xlu0 %v1691, 16
        %v1728 = vpop.permute.xlu0 %1727
        %1729 = vrot.lane.b32.xlu0 %v1694, 16
        %v1730 = vpop.permute.xlu0 %1729
        %1731 = vrot.lane.b32.xlu0 %v1697, 16
        %v1732 = vpop.permute.xlu0 %1731
        %1733 = vrot.lane.b32.xlu0 %v1700, 16
        %v1734 = vpop.permute.xlu0 %1733
        %1735 = vrot.lane.b32.xlu0 %v1703, 16
        %v1736 = vpop.permute.xlu0 %1735
        %1737 = vrot.lane.b32.xlu0 %v1706, 16
        %v1738 = vpop.permute.xlu0 %1737
        %vm1755 = vcmask 195712
        %1756 = vst.msk [vmem:[#allocation4] sm:$0xff] %vm1755, %v1708
        %1757 = vst.msk [vmem:[#allocation4 + $0x8] sm:$0xff] %vm1755, %v1710
        %1758 = vst.msk [vmem:[#allocation4 + $0x10] sm:$0xff] %vm1755, %v1712
        %1759 = vst.msk [vmem:[#allocation4 + $0x18] sm:$0xff] %vm1755, %v1714
        %1760 = vst.msk [vmem:[#allocation4 + $0x20] sm:$0xff] %vm1755, %v1716
        %1761 = vst.msk [vmem:[#allocation4 + $0x28] sm:$0xff] %vm1755, %v1718
        %1762 = vst.msk [vmem:[#allocation4 + $0x30] sm:$0xff] %vm1755, %v1720
        %1763 = vst.msk [vmem:[#allocation4 + $0x38] sm:$0xff] %vm1755, %v1722
        %1764 = vst.msk [vmem:[#allocation4 + $0x40] sm:$0xff] %vm1755, %v1724
        %1765 = vst.msk [vmem:[#allocation4 + $0x48] sm:$0xff] %vm1755, %v1726
        %1766 = vst.msk [vmem:[#allocation4 + $0x50] sm:$0xff] %vm1755, %v1728
        %1767 = vst.msk [vmem:[#allocation4 + $0x58] sm:$0xff] %vm1755, %v1730
        %1768 = vst.msk [vmem:[#allocation4 + $0x60] sm:$0xff] %vm1755, %v1732
        %1769 = vst.msk [vmem:[#allocation4 + $0x68] sm:$0xff] %vm1755, %v1734
        %1770 = vst.msk [vmem:[#allocation4 + $0x70] sm:$0xff] %vm1755, %v1736
        %1771 = vst.msk [vmem:[#allocation4 + $0x78] sm:$0xff] %vm1755, %v1738
        %v1772 = vld [vmem:[%s788] sm:$0xf]
        %v1773 = vld [vmem:[%s788 + $0x4] sm:$0xf]
        %v1774 = vld [vmem:[%s788 + $0xc] sm:$0xf]
        %v1775 = vld [vmem:[%s788 + $0x10] sm:$0xf]
        %v1776 = vld [vmem:[%s788 + $0x18] sm:$0xf]
        %v1777 = vld [vmem:[%s788 + $0x1c] sm:$0xf]
        %v1778 = vld [vmem:[%s788 + $0x24] sm:$0xf]
        %v1779 = vld [vmem:[%s788 + $0x28] sm:$0xf]
        %v1780 = vld [vmem:[%s788 + $0x30] sm:$0xf]
        %v1781 = vld [vmem:[%s788 + $0x34] sm:$0xf]
        %v1782 = vld [vmem:[%s788 + $0x3c] sm:$0xf]
        %v1783 = vld [vmem:[%s788 + $0x40] sm:$0xf]
        %v1784 = vld [vmem:[%s788 + $0x48] sm:$0xf]
        %v1785 = vld [vmem:[%s788 + $0x4c] sm:$0xf]
        %v1786 = vld [vmem:[%s788 + $0x54] sm:$0xf]
        %v1787 = vld [vmem:[%s788 + $0x58] sm:$0xf]
        %v1788 = vld [vmem:[%s788 + $0x60] sm:$0xf]
        %v1789 = vld [vmem:[%s788 + $0x64] sm:$0xf]
        %v1790 = vld [vmem:[%s788 + $0x6c] sm:$0xf]
        %v1791 = vld [vmem:[%s788 + $0x70] sm:$0xf]
        %v1792 = vld [vmem:[%s788 + $0x78] sm:$0xf]
        %v1793 = vld [vmem:[%s788 + $0x7c] sm:$0xf]
        %v1794 = vld [vmem:[%s788 + $0x84] sm:$0xf]
        %v1795 = vld [vmem:[%s788 + $0x88] sm:$0xf]
        %v1796 = vld [vmem:[%s788 + $0x90] sm:$0xf]
        %v1797 = vld [vmem:[%s788 + $0x94] sm:$0xf]
        %v1798 = vld [vmem:[%s788 + $0x9c] sm:$0xf]
        %v1799 = vld [vmem:[%s788 + $0xa0] sm:$0xf]
        %v1800 = vld [vmem:[%s788 + $0xa8] sm:$0xf]
        %v1801 = vld [vmem:[%s788 + $0xac] sm:$0xf]
        %v1802 = vld [vmem:[%s788 + $0xb4] sm:$0xf]
        %v1803 = vld [vmem:[%s788 + $0xb8] sm:$0xf]
        %v1836 = vunpack.c.l.b16 %v1772
        %v1837 = vunpack.c.l.b16 %v1773
        %v1838 = vunpack.c.l.b16 %v1774
        %v1839 = vunpack.c.l.b16 %v1775
        %v1840 = vunpack.c.l.b16 %v1776
        %v1841 = vunpack.c.l.b16 %v1777
        %v1842 = vunpack.c.l.b16 %v1778
        %v1843 = vunpack.c.l.b16 %v1779
        %v1844 = vunpack.c.l.b16 %v1780
        %v1845 = vunpack.c.l.b16 %v1781
        %v1846 = vunpack.c.l.b16 %v1782
        %v1847 = vunpack.c.l.b16 %v1783
        %v1848 = vunpack.c.l.b16 %v1784
        %v1849 = vunpack.c.l.b16 %v1785
        %v1850 = vunpack.c.l.b16 %v1786
        %v1851 = vunpack.c.l.b16 %v1787
        %v1852 = vunpack.c.l.b16 %v1788
        %v1853 = vunpack.c.l.b16 %v1789
        %v1854 = vunpack.c.l.b16 %v1790
        %v1855 = vunpack.c.l.b16 %v1791
        %v1856 = vunpack.c.l.b16 %v1792
        %v1857 = vunpack.c.l.b16 %v1793
        %v1858 = vunpack.c.l.b16 %v1794
        %v1859 = vunpack.c.l.b16 %v1795
        %v1860 = vunpack.c.l.b16 %v1796
        %v1861 = vunpack.c.l.b16 %v1797
        %v1862 = vunpack.c.l.b16 %v1798
        %v1863 = vunpack.c.l.b16 %v1799
        %v1864 = vunpack.c.l.b16 %v1800
        %v1865 = vunpack.c.l.b16 %v1801
        %v1866 = vunpack.c.l.b16 %v1802
        %v1867 = vunpack.c.l.b16 %v1803
        %v1868 = vpack.c.b16 %v1837, %v1836
        %v1869 = vpack.c.b16 %v1839, %v1838
        %v1870 = vpack.c.b16 %v1841, %v1840
        %v1871 = vpack.c.b16 %v1843, %v1842
        %v1872 = vpack.c.b16 %v1845, %v1844
        %v1873 = vpack.c.b16 %v1847, %v1846
        %v1874 = vpack.c.b16 %v1849, %v1848
        %v1875 = vpack.c.b16 %v1851, %v1850
        %v1876 = vpack.c.b16 %v1853, %v1852
        %v1877 = vpack.c.b16 %v1855, %v1854
        %v1878 = vpack.c.b16 %v1857, %v1856
        %v1879 = vpack.c.b16 %v1859, %v1858
        %v1880 = vpack.c.b16 %v1861, %v1860
        %v1881 = vpack.c.b16 %v1863, %v1862
        %v1882 = vpack.c.b16 %v1865, %v1864
        %v1883 = vpack.c.b16 %v1867, %v1866
        %1884 = vrot.lane.b32.xlu0 %v1868, 24
        %v1885 = vpop.permute.xlu0 %1884
        %1886 = vrot.lane.b32.xlu0 %v1869, 24
        %v1887 = vpop.permute.xlu0 %1886
        %1888 = vrot.lane.b32.xlu0 %v1870, 24
        %v1889 = vpop.permute.xlu0 %1888
        %1890 = vrot.lane.b32.xlu0 %v1871, 24
        %v1891 = vpop.permute.xlu0 %1890
        %1892 = vrot.lane.b32.xlu0 %v1872, 24
        %v1893 = vpop.permute.xlu0 %1892
        %1894 = vrot.lane.b32.xlu0 %v1873, 24
        %v1895 = vpop.permute.xlu0 %1894
        %1896 = vrot.lane.b32.xlu0 %v1874, 24
        %v1897 = vpop.permute.xlu0 %1896
        %1898 = vrot.lane.b32.xlu0 %v1875, 24
        %v1899 = vpop.permute.xlu0 %1898
        %1900 = vrot.lane.b32.xlu0 %v1876, 24
        %v1901 = vpop.permute.xlu0 %1900
        %1902 = vrot.lane.b32.xlu0 %v1877, 24
        %v1903 = vpop.permute.xlu0 %1902
        %1904 = vrot.lane.b32.xlu0 %v1878, 24
        %v1905 = vpop.permute.xlu0 %1904
        %1906 = vrot.lane.b32.xlu0 %v1879, 24
        %v1907 = vpop.permute.xlu0 %1906
        %1908 = vrot.lane.b32.xlu0 %v1880, 24
        %v1909 = vpop.permute.xlu0 %1908
        %1910 = vrot.lane.b32.xlu0 %v1881, 24
        %v1911 = vpop.permute.xlu0 %1910
        %1912 = vrot.lane.b32.xlu0 %v1882, 24
        %v1913 = vpop.permute.xlu0 %1912
        %1914 = vrot.lane.b32.xlu0 %v1883, 24
        %v1915 = vpop.permute.xlu0 %1914
        %vm1932 = vcmask 261312
        %1933 = vst.msk [vmem:[#allocation4] sm:$0xff] %vm1932, %v1885
        %1934 = vst.msk [vmem:[#allocation4 + $0x8] sm:$0xff] %vm1932, %v1887
        %1935 = vst.msk [vmem:[#allocation4 + $0x10] sm:$0xff] %vm1932, %v1889
        %1936 = vst.msk [vmem:[#allocation4 + $0x18] sm:$0xff] %vm1932, %v1891
        %1937 = vst.msk [vmem:[#allocation4 + $0x20] sm:$0xff] %vm1932, %v1893
        %1938 = vst.msk [vmem:[#allocation4 + $0x28] sm:$0xff] %vm1932, %v1895
        %1939 = vst.msk [vmem:[#allocation4 + $0x30] sm:$0xff] %vm1932, %v1897
        %1940 = vst.msk [vmem:[#allocation4 + $0x38] sm:$0xff] %vm1932, %v1899
        %1941 = vst.msk [vmem:[#allocation4 + $0x40] sm:$0xff] %vm1932, %v1901
        %1942 = vst.msk [vmem:[#allocation4 + $0x48] sm:$0xff] %vm1932, %v1903
        %1943 = vst.msk [vmem:[#allocation4 + $0x50] sm:$0xff] %vm1932, %v1905
        %1944 = vst.msk [vmem:[#allocation4 + $0x58] sm:$0xff] %vm1932, %v1907
        %1945 = vst.msk [vmem:[#allocation4 + $0x60] sm:$0xff] %vm1932, %v1909
        %1946 = vst.msk [vmem:[#allocation4 + $0x68] sm:$0xff] %vm1932, %v1911
        %1947 = vst.msk [vmem:[#allocation4 + $0x70] sm:$0xff] %vm1932, %v1913
        %1948 = vst.msk [vmem:[#allocation4 + $0x78] sm:$0xff] %vm1932, %v1915
        %v1949 = vld [vmem:[%s788] sm:$0xf]
        %v1950 = vld [vmem:[%s788 + $0x4] sm:$0xf]
        %v1951 = vld [vmem:[%s788 + $0x8] sm:$0x1]
        %v1952 = vld [vmem:[%s788 + $0xc] sm:$0xf]
        %v1953 = vld [vmem:[%s788 + $0x10] sm:$0xf]
        %v1954 = vld [vmem:[%s788 + $0x14] sm:$0x1]
        %v1955 = vld [vmem:[%s788 + $0x18] sm:$0xf]
        %v1956 = vld [vmem:[%s788 + $0x1c] sm:$0xf]
        %v1957 = vld [vmem:[%s788 + $0x20] sm:$0x1]
        %v1958 = vld [vmem:[%s788 + $0x24] sm:$0xf]
        %v1959 = vld [vmem:[%s788 + $0x28] sm:$0xf]
        %v1960 = vld [vmem:[%s788 + $0x2c] sm:$0x1]
        %v1961 = vld [vmem:[%s788 + $0x30] sm:$0xf]
        %v1962 = vld [vmem:[%s788 + $0x34] sm:$0xf]
        %v1963 = vld [vmem:[%s788 + $0x38] sm:$0x1]
        %v1964 = vld [vmem:[%s788 + $0x3c] sm:$0xf]
        %v1965 = vld [vmem:[%s788 + $0x40] sm:$0xf]
        %v1966 = vld [vmem:[%s788 + $0x44] sm:$0x1]
        %v1967 = vld [vmem:[%s788 + $0x48] sm:$0xf]
        %v1968 = vld [vmem:[%s788 + $0x4c] sm:$0xf]
        %v1969 = vld [vmem:[%s788 + $0x50] sm:$0x1]
        %v1970 = vld [vmem:[%s788 + $0x54] sm:$0xf]
        %v1971 = vld [vmem:[%s788 + $0x58] sm:$0xf]
        %v1972 = vld [vmem:[%s788 + $0x5c] sm:$0x1]
        %v1973 = vld [vmem:[%s788 + $0x60] sm:$0xf]
        %v1974 = vld [vmem:[%s788 + $0x64] sm:$0xf]
        %v1975 = vld [vmem:[%s788 + $0x68] sm:$0x1]
        %v1976 = vld [vmem:[%s788 + $0x6c] sm:$0xf]
        %v1977 = vld [vmem:[%s788 + $0x70] sm:$0xf]
        %v1978 = vld [vmem:[%s788 + $0x74] sm:$0x1]
        %v1979 = vld [vmem:[%s788 + $0x78] sm:$0xf]
        %v1980 = vld [vmem:[%s788 + $0x7c] sm:$0xf]
        %v1981 = vld [vmem:[%s788 + $0x80] sm:$0x1]
        %v1982 = vld [vmem:[%s788 + $0x84] sm:$0xf]
        %v1983 = vld [vmem:[%s788 + $0x88] sm:$0xf]
        %v1984 = vld [vmem:[%s788 + $0x8c] sm:$0x1]
        %v1985 = vld [vmem:[%s788 + $0x90] sm:$0xf]
        %v1986 = vld [vmem:[%s788 + $0x94] sm:$0xf]
        %v1987 = vld [vmem:[%s788 + $0x98] sm:$0x1]
        %v1988 = vld [vmem:[%s788 + $0x9c] sm:$0xf]
        %v1989 = vld [vmem:[%s788 + $0xa0] sm:$0xf]
        %v1990 = vld [vmem:[%s788 + $0xa4] sm:$0x1]
        %v1991 = vld [vmem:[%s788 + $0xa8] sm:$0xf]
        %v1992 = vld [vmem:[%s788 + $0xac] sm:$0xf]
        %v1993 = vld [vmem:[%s788 + $0xb0] sm:$0x1]
        %v1994 = vld [vmem:[%s788 + $0xb4] sm:$0xf]
        %v1995 = vld [vmem:[%s788 + $0xb8] sm:$0xf]
        %v1996 = vld [vmem:[%s788 + $0xbc] sm:$0x1]
        %v2045 = vunpack.c.l.b16 %v1949
        %v2046 = vunpack.c.l.b16 %v1950
        %v2047 = vunpack.c.l.b16 %v1951
        %v2048 = vunpack.c.l.b16 %v1952
        %v2049 = vunpack.c.l.b16 %v1953
        %v2050 = vunpack.c.l.b16 %v1954
        %v2051 = vunpack.c.l.b16 %v1955
        %v2052 = vunpack.c.l.b16 %v1956
        %v2053 = vunpack.c.l.b16 %v1957
        %v2054 = vunpack.c.l.b16 %v1958
        %v2055 = vunpack.c.l.b16 %v1959
        %v2056 = vunpack.c.l.b16 %v1960
        %v2057 = vunpack.c.l.b16 %v1961
        %v2058 = vunpack.c.l.b16 %v1962
        %v2059 = vunpack.c.l.b16 %v1963
        %v2060 = vunpack.c.l.b16 %v1964
        %v2061 = vunpack.c.l.b16 %v1965
        %v2062 = vunpack.c.l.b16 %v1966
        %v2063 = vunpack.c.l.b16 %v1967
        %v2064 = vunpack.c.l.b16 %v1968
        %v2065 = vunpack.c.l.b16 %v1969
        %v2066 = vunpack.c.l.b16 %v1970
        %v2067 = vunpack.c.l.b16 %v1971
        %v2068 = vunpack.c.l.b16 %v1972
        %v2069 = vunpack.c.l.b16 %v1973
        %v2070 = vunpack.c.l.b16 %v1974
        %v2071 = vunpack.c.l.b16 %v1975
        %v2072 = vunpack.c.l.b16 %v1976
        %v2073 = vunpack.c.l.b16 %v1977
        %v2074 = vunpack.c.l.b16 %v1978
        %v2075 = vunpack.c.l.b16 %v1979
        %v2076 = vunpack.c.l.b16 %v1980
        %v2077 = vunpack.c.l.b16 %v1981
        %v2078 = vunpack.c.l.b16 %v1982
        %v2079 = vunpack.c.l.b16 %v1983
        %v2080 = vunpack.c.l.b16 %v1984
        %v2081 = vunpack.c.l.b16 %v1985
        %v2082 = vunpack.c.l.b16 %v1986
        %v2083 = vunpack.c.l.b16 %v1987
        %v2084 = vunpack.c.l.b16 %v1988
        %v2085 = vunpack.c.l.b16 %v1989
        %v2086 = vunpack.c.l.b16 %v1990
        %v2087 = vunpack.c.l.b16 %v1991
        %v2088 = vunpack.c.l.b16 %v1992
        %v2089 = vunpack.c.l.b16 %v1993
        %v2090 = vunpack.c.l.b16 %v1994
        %v2091 = vunpack.c.l.b16 %v1995
        %v2092 = vunpack.c.l.b16 %v1996
        %v2093 = vpack.c.b16 %v2046, %v2045
        %v2094 = vpack.c.b16 %v2047, %v2047
        %v2095 = vpack.c.b16 %v2049, %v2048
        %v2096 = vpack.c.b16 %v2050, %v2050
        %v2097 = vpack.c.b16 %v2052, %v2051
        %v2098 = vpack.c.b16 %v2053, %v2053
        %v2099 = vpack.c.b16 %v2055, %v2054
        %v2100 = vpack.c.b16 %v2056, %v2056
        %v2101 = vpack.c.b16 %v2058, %v2057
        %v2102 = vpack.c.b16 %v2059, %v2059
        %v2103 = vpack.c.b16 %v2061, %v2060
        %v2104 = vpack.c.b16 %v2062, %v2062
        %v2105 = vpack.c.b16 %v2064, %v2063
        %v2106 = vpack.c.b16 %v2065, %v2065
        %v2107 = vpack.c.b16 %v2067, %v2066
        %v2108 = vpack.c.b16 %v2068, %v2068
        %v2109 = vpack.c.b16 %v2070, %v2069
        %v2110 = vpack.c.b16 %v2071, %v2071
        %v2111 = vpack.c.b16 %v2073, %v2072
        %v2112 = vpack.c.b16 %v2074, %v2074
        %v2113 = vpack.c.b16 %v2076, %v2075
        %v2114 = vpack.c.b16 %v2077, %v2077
        %v2115 = vpack.c.b16 %v2079, %v2078
        %v2116 = vpack.c.b16 %v2080, %v2080
        %v2117 = vpack.c.b16 %v2082, %v2081
        %v2118 = vpack.c.b16 %v2083, %v2083
        %v2119 = vpack.c.b16 %v2085, %v2084
        %v2120 = vpack.c.b16 %v2086, %v2086
        %v2121 = vpack.c.b16 %v2088, %v2087
        %v2122 = vpack.c.b16 %v2089, %v2089
        %v2123 = vpack.c.b16 %v2091, %v2090
        %v2124 = vpack.c.b16 %v2092, %v2092
        %v2126 = vshrl.u32 %v2093, 16
        %v2128 = vshll.u32 %v2093, 16
        %v2130 = vrot.slane %v2128, 1
        %v2131 = vor.u32 %v2126, %v2130
        %v2133 = vshll.u32 %v2094, 16
        %v2135 = vrot.slane %v2133, 1
        %v2136 = vsel %vm1224, %v2131, %v2135
        %v2138 = vshrl.u32 %v2095, 16
        %v2140 = vshll.u32 %v2095, 16
        %v2142 = vrot.slane %v2140, 1
        %v2143 = vor.u32 %v2138, %v2142
        %v2145 = vshll.u32 %v2096, 16
        %v2147 = vrot.slane %v2145, 1
        %v2148 = vsel %vm1224, %v2143, %v2147
        %v2150 = vshrl.u32 %v2097, 16
        %v2152 = vshll.u32 %v2097, 16
        %v2154 = vrot.slane %v2152, 1
        %v2155 = vor.u32 %v2150, %v2154
        %v2157 = vshll.u32 %v2098, 16
        %v2159 = vrot.slane %v2157, 1
        %v2160 = vsel %vm1224, %v2155, %v2159
        %v2162 = vshrl.u32 %v2099, 16
        %v2164 = vshll.u32 %v2099, 16
        %v2166 = vrot.slane %v2164, 1
        %v2167 = vor.u32 %v2162, %v2166
        %v2169 = vshll.u32 %v2100, 16
        %v2171 = vrot.slane %v2169, 1
        %v2172 = vsel %vm1224, %v2167, %v2171
        %v2174 = vshrl.u32 %v2101, 16
        %v2176 = vshll.u32 %v2101, 16
        %v2178 = vrot.slane %v2176, 1
        %v2179 = vor.u32 %v2174, %v2178
        %v2181 = vshll.u32 %v2102, 16
        %v2183 = vrot.slane %v2181, 1
        %v2184 = vsel %vm1224, %v2179, %v2183
        %v2186 = vshrl.u32 %v2103, 16
        %v2188 = vshll.u32 %v2103, 16
        %v2190 = vrot.slane %v2188, 1
        %v2191 = vor.u32 %v2186, %v2190
        %v2193 = vshll.u32 %v2104, 16
        %v2195 = vrot.slane %v2193, 1
        %v2196 = vsel %vm1224, %v2191, %v2195
        %v2198 = vshrl.u32 %v2105, 16
        %v2200 = vshll.u32 %v2105, 16
        %v2202 = vrot.slane %v2200, 1
        %v2203 = vor.u32 %v2198, %v2202
        %v2205 = vshll.u32 %v2106, 16
        %v2207 = vrot.slane %v2205, 1
        %v2208 = vsel %vm1224, %v2203, %v2207
        %v2210 = vshrl.u32 %v2107, 16
        %v2212 = vshll.u32 %v2107, 16
        %v2214 = vrot.slane %v2212, 1
        %v2215 = vor.u32 %v2210, %v2214
        %v2217 = vshll.u32 %v2108, 16
        %v2219 = vrot.slane %v2217, 1
        %v2220 = vsel %vm1224, %v2215, %v2219
        %v2222 = vshrl.u32 %v2109, 16
        %v2224 = vshll.u32 %v2109, 16
        %v2226 = vrot.slane %v2224, 1
        %v2227 = vor.u32 %v2222, %v2226
        %v2229 = vshll.u32 %v2110, 16
        %v2231 = vrot.slane %v2229, 1
        %v2232 = vsel %vm1224, %v2227, %v2231
        %v2234 = vshrl.u32 %v2111, 16
        %v2236 = vshll.u32 %v2111, 16
        %v2238 = vrot.slane %v2236, 1
        %v2239 = vor.u32 %v2234, %v2238
        %v2241 = vshll.u32 %v2112, 16
        %v2243 = vrot.slane %v2241, 1
        %v2244 = vsel %vm1224, %v2239, %v2243
        %v2246 = vshrl.u32 %v2113, 16
        %v2248 = vshll.u32 %v2113, 16
        %v2250 = vrot.slane %v2248, 1
        %v2251 = vor.u32 %v2246, %v2250
        %v2253 = vshll.u32 %v2114, 16
        %v2255 = vrot.slane %v2253, 1
        %v2256 = vsel %vm1224, %v2251, %v2255
        %v2258 = vshrl.u32 %v2115, 16
        %v2260 = vshll.u32 %v2115, 16
        %v2262 = vrot.slane %v2260, 1
        %v2263 = vor.u32 %v2258, %v2262
        %v2265 = vshll.u32 %v2116, 16
        %v2267 = vrot.slane %v2265, 1
        %v2268 = vsel %vm1224, %v2263, %v2267
        %v2270 = vshrl.u32 %v2117, 16
        %v2272 = vshll.u32 %v2117, 16
        %v2274 = vrot.slane %v2272, 1
        %v2275 = vor.u32 %v2270, %v2274
        %v2277 = vshll.u32 %v2118, 16
        %v2279 = vrot.slane %v2277, 1
        %v2280 = vsel %vm1224, %v2275, %v2279
        %v2282 = vshrl.u32 %v2119, 16
        %v2284 = vshll.u32 %v2119, 16
        %v2286 = vrot.slane %v2284, 1
        %v2287 = vor.u32 %v2282, %v2286
        %v2289 = vshll.u32 %v2120, 16
        %v2291 = vrot.slane %v2289, 1
        %v2292 = vsel %vm1224, %v2287, %v2291
        %v2294 = vshrl.u32 %v2121, 16
        %v2296 = vshll.u32 %v2121, 16
        %v2298 = vrot.slane %v2296, 1
        %v2299 = vor.u32 %v2294, %v2298
        %v2301 = vshll.u32 %v2122, 16
        %v2303 = vrot.slane %v2301, 1
        %v2304 = vsel %vm1224, %v2299, %v2303
        %v2306 = vshrl.u32 %v2123, 16
        %v2308 = vshll.u32 %v2123, 16
        %v2310 = vrot.slane %v2308, 1
        %v2311 = vor.u32 %v2306, %v2310
        %v2313 = vshll.u32 %v2124, 16
        %v2315 = vrot.slane %v2313, 1
        %v2316 = vsel %vm1224, %v2311, %v2315
        %2317 = vrot.lane.b32.xlu0 %v2136, 32
        %v2318 = vpop.permute.xlu0 %2317
        %2319 = vrot.lane.b32.xlu0 %v2148, 32
        %v2320 = vpop.permute.xlu0 %2319
        %2321 = vrot.lane.b32.xlu0 %v2160, 32
        %v2322 = vpop.permute.xlu0 %2321
        %2323 = vrot.lane.b32.xlu0 %v2172, 32
        %v2324 = vpop.permute.xlu0 %2323
        %2325 = vrot.lane.b32.xlu0 %v2184, 32
        %v2326 = vpop.permute.xlu0 %2325
        %2327 = vrot.lane.b32.xlu0 %v2196, 32
        %v2328 = vpop.permute.xlu0 %2327
        %2329 = vrot.lane.b32.xlu0 %v2208, 32
        %v2330 = vpop.permute.xlu0 %2329
        %2331 = vrot.lane.b32.xlu0 %v2220, 32
        %v2332 = vpop.permute.xlu0 %2331
        %2333 = vrot.lane.b32.xlu0 %v2232, 32
        %v2334 = vpop.permute.xlu0 %2333
        %2335 = vrot.lane.b32.xlu0 %v2244, 32
        %v2336 = vpop.permute.xlu0 %2335
        %2337 = vrot.lane.b32.xlu0 %v2256, 32
        %v2338 = vpop.permute.xlu0 %2337
        %2339 = vrot.lane.b32.xlu0 %v2268, 32
        %v2340 = vpop.permute.xlu0 %2339
        %2341 = vrot.lane.b32.xlu0 %v2280, 32
        %v2342 = vpop.permute.xlu0 %2341
        %2343 = vrot.lane.b32.xlu0 %v2292, 32
        %v2344 = vpop.permute.xlu0 %2343
        %2345 = vrot.lane.b32.xlu0 %v2304, 32
        %v2346 = vpop.permute.xlu0 %2345
        %2347 = vrot.lane.b32.xlu0 %v2316, 32
        %v2348 = vpop.permute.xlu0 %2347
        %vm2365 = vcmask 326912
        %2366 = vst.msk [vmem:[#allocation4] sm:$0xff] %vm2365, %v2318
        %2367 = vst.msk [vmem:[#allocation4 + $0x8] sm:$0xff] %vm2365, %v2320
        %2368 = vst.msk [vmem:[#allocation4 + $0x10] sm:$0xff] %vm2365, %v2322
        %2369 = vst.msk [vmem:[#allocation4 + $0x18] sm:$0xff] %vm2365, %v2324
        %2370 = vst.msk [vmem:[#allocation4 + $0x20] sm:$0xff] %vm2365, %v2326
        %2371 = vst.msk [vmem:[#allocation4 + $0x28] sm:$0xff] %vm2365, %v2328
        %2372 = vst.msk [vmem:[#allocation4 + $0x30] sm:$0xff] %vm2365, %v2330
        %2373 = vst.msk [vmem:[#allocation4 + $0x38] sm:$0xff] %vm2365, %v2332
        %2374 = vst.msk [vmem:[#allocation4 + $0x40] sm:$0xff] %vm2365, %v2334
        %2375 = vst.msk [vmem:[#allocation4 + $0x48] sm:$0xff] %vm2365, %v2336
        %2376 = vst.msk [vmem:[#allocation4 + $0x50] sm:$0xff] %vm2365, %v2338
        %2377 = vst.msk [vmem:[#allocation4 + $0x58] sm:$0xff] %vm2365, %v2340
        %2378 = vst.msk [vmem:[#allocation4 + $0x60] sm:$0xff] %vm2365, %v2342
        %2379 = vst.msk [vmem:[#allocation4 + $0x68] sm:$0xff] %vm2365, %v2344
        %2380 = vst.msk [vmem:[#allocation4 + $0x70] sm:$0xff] %vm2365, %v2346
        %2381 = vst.msk [vmem:[#allocation4 + $0x78] sm:$0xff] %vm2365, %v2348
        %v2382 = vld [vmem:[%s788] sm:$0xe]
        %v2383 = vld [vmem:[%s788 + $0x4] sm:$0xf]
        %v2384 = vld [vmem:[%s788 + $0x8] sm:$0x1]
        %v2385 = vld [vmem:[%s788 + $0xc] sm:$0xe]
        %v2386 = vld [vmem:[%s788 + $0x10] sm:$0xf]
        %v2387 = vld [vmem:[%s788 + $0x14] sm:$0x1]
        %v2388 = vld [vmem:[%s788 + $0x18] sm:$0xe]
        %v2389 = vld [vmem:[%s788 + $0x1c] sm:$0xf]
        %v2390 = vld [vmem:[%s788 + $0x20] sm:$0x1]
        %v2391 = vld [vmem:[%s788 + $0x24] sm:$0xe]
        %v2392 = vld [vmem:[%s788 + $0x28] sm:$0xf]
        %v2393 = vld [vmem:[%s788 + $0x2c] sm:$0x1]
        %v2394 = vld [vmem:[%s788 + $0x30] sm:$0xe]
        %v2395 = vld [vmem:[%s788 + $0x34] sm:$0xf]
        %v2396 = vld [vmem:[%s788 + $0x38] sm:$0x1]
        %v2397 = vld [vmem:[%s788 + $0x3c] sm:$0xe]
        %v2398 = vld [vmem:[%s788 + $0x40] sm:$0xf]
        %v2399 = vld [vmem:[%s788 + $0x44] sm:$0x1]
        %v2400 = vld [vmem:[%s788 + $0x48] sm:$0xe]
        %v2401 = vld [vmem:[%s788 + $0x4c] sm:$0xf]
        %v2402 = vld [vmem:[%s788 + $0x50] sm:$0x1]
        %v2403 = vld [vmem:[%s788 + $0x54] sm:$0xe]
        %v2404 = vld [vmem:[%s788 + $0x58] sm:$0xf]
        %v2405 = vld [vmem:[%s788 + $0x5c] sm:$0x1]
        %v2406 = vld [vmem:[%s788 + $0x60] sm:$0xe]
        %v2407 = vld [vmem:[%s788 + $0x64] sm:$0xf]
        %v2408 = vld [vmem:[%s788 + $0x68] sm:$0x1]
        %v2409 = vld [vmem:[%s788 + $0x6c] sm:$0xe]
        %v2410 = vld [vmem:[%s788 + $0x70] sm:$0xf]
        %v2411 = vld [vmem:[%s788 + $0x74] sm:$0x1]
        %v2412 = vld [vmem:[%s788 + $0x78] sm:$0xe]
        %v2413 = vld [vmem:[%s788 + $0x7c] sm:$0xf]
        %v2414 = vld [vmem:[%s788 + $0x80] sm:$0x1]
        %v2415 = vld [vmem:[%s788 + $0x84] sm:$0xe]
        %v2416 = vld [vmem:[%s788 + $0x88] sm:$0xf]
        %v2417 = vld [vmem:[%s788 + $0x8c] sm:$0x1]
        %v2418 = vld [vmem:[%s788 + $0x90] sm:$0xe]
        %v2419 = vld [vmem:[%s788 + $0x94] sm:$0xf]
        %v2420 = vld [vmem:[%s788 + $0x98] sm:$0x1]
        %v2421 = vld [vmem:[%s788 + $0x9c] sm:$0xe]
        %v2422 = vld [vmem:[%s788 + $0xa0] sm:$0xf]
        %v2423 = vld [vmem:[%s788 + $0xa4] sm:$0x1]
        %v2424 = vld [vmem:[%s788 + $0xa8] sm:$0xe]
        %v2425 = vld [vmem:[%s788 + $0xac] sm:$0xf]
        %v2426 = vld [vmem:[%s788 + $0xb0] sm:$0x1]
        %v2427 = vld [vmem:[%s788 + $0xb4] sm:$0xe]
        %v2428 = vld [vmem:[%s788 + $0xb8] sm:$0xf]
        %v2429 = vld [vmem:[%s788 + $0xbc] sm:$0x1]
        %v2478 = vunpack.c.l.b16 %v2382
        %v2479 = vunpack.c.l.b16 %v2383
        %v2480 = vunpack.c.l.b16 %v2384
        %v2481 = vunpack.c.l.b16 %v2385
        %v2482 = vunpack.c.l.b16 %v2386
        %v2483 = vunpack.c.l.b16 %v2387
        %v2484 = vunpack.c.l.b16 %v2388
        %v2485 = vunpack.c.l.b16 %v2389
        %v2486 = vunpack.c.l.b16 %v2390
        %v2487 = vunpack.c.l.b16 %v2391
        %v2488 = vunpack.c.l.b16 %v2392
        %v2489 = vunpack.c.l.b16 %v2393
        %v2490 = vunpack.c.l.b16 %v2394
        %v2491 = vunpack.c.l.b16 %v2395
        %v2492 = vunpack.c.l.b16 %v2396
        %v2493 = vunpack.c.l.b16 %v2397
        %v2494 = vunpack.c.l.b16 %v2398
        %v2495 = vunpack.c.l.b16 %v2399
        %v2496 = vunpack.c.l.b16 %v2400
        %v2497 = vunpack.c.l.b16 %v2401
        %v2498 = vunpack.c.l.b16 %v2402
        %v2499 = vunpack.c.l.b16 %v2403
        %v2500 = vunpack.c.l.b16 %v2404
        %v2501 = vunpack.c.l.b16 %v2405
        %v2502 = vunpack.c.l.b16 %v2406
        %v2503 = vunpack.c.l.b16 %v2407
        %v2504 = vunpack.c.l.b16 %v2408
        %v2505 = vunpack.c.l.b16 %v2409
        %v2506 = vunpack.c.l.b16 %v2410
        %v2507 = vunpack.c.l.b16 %v2411
        %v2508 = vunpack.c.l.b16 %v2412
        %v2509 = vunpack.c.l.b16 %v2413
        %v2510 = vunpack.c.l.b16 %v2414
        %v2511 = vunpack.c.l.b16 %v2415
        %v2512 = vunpack.c.l.b16 %v2416
        %v2513 = vunpack.c.l.b16 %v2417
        %v2514 = vunpack.c.l.b16 %v2418
        %v2515 = vunpack.c.l.b16 %v2419
        %v2516 = vunpack.c.l.b16 %v2420
        %v2517 = vunpack.c.l.b16 %v2421
        %v2518 = vunpack.c.l.b16 %v2422
        %v2519 = vunpack.c.l.b16 %v2423
        %v2520 = vunpack.c.l.b16 %v2424
        %v2521 = vunpack.c.l.b16 %v2425
        %v2522 = vunpack.c.l.b16 %v2426
        %v2523 = vunpack.c.l.b16 %v2427
        %v2524 = vunpack.c.l.b16 %v2428
        %v2525 = vunpack.c.l.b16 %v2429
        %v2526 = vpack.c.b16 %v2479, %v2478
        %v2527 = vpack.c.b16 %v2480, %v2480
        %v2528 = vpack.c.b16 %v2482, %v2481
        %v2529 = vpack.c.b16 %v2483, %v2483
        %v2530 = vpack.c.b16 %v2485, %v2484
        %v2531 = vpack.c.b16 %v2486, %v2486
        %v2532 = vpack.c.b16 %v2488, %v2487
        %v2533 = vpack.c.b16 %v2489, %v2489
        %v2534 = vpack.c.b16 %v2491, %v2490
        %v2535 = vpack.c.b16 %v2492, %v2492
        %v2536 = vpack.c.b16 %v2494, %v2493
        %v2537 = vpack.c.b16 %v2495, %v2495
        %v2538 = vpack.c.b16 %v2497, %v2496
        %v2539 = vpack.c.b16 %v2498, %v2498
        %v2540 = vpack.c.b16 %v2500, %v2499
        %v2541 = vpack.c.b16 %v2501, %v2501
        %v2542 = vpack.c.b16 %v2503, %v2502
        %v2543 = vpack.c.b16 %v2504, %v2504
        %v2544 = vpack.c.b16 %v2506, %v2505
        %v2545 = vpack.c.b16 %v2507, %v2507
        %v2546 = vpack.c.b16 %v2509, %v2508
        %v2547 = vpack.c.b16 %v2510, %v2510
        %v2548 = vpack.c.b16 %v2512, %v2511
        %v2549 = vpack.c.b16 %v2513, %v2513
        %v2550 = vpack.c.b16 %v2515, %v2514
        %v2551 = vpack.c.b16 %v2516, %v2516
        %v2552 = vpack.c.b16 %v2518, %v2517
        %v2553 = vpack.c.b16 %v2519, %v2519
        %v2554 = vpack.c.b16 %v2521, %v2520
        %v2555 = vpack.c.b16 %v2522, %v2522
        %v2556 = vpack.c.b16 %v2524, %v2523
        %v2557 = vpack.c.b16 %v2525, %v2525
        %v2558 = vrot.slane %v2526, 1
        %v2559 = vrot.slane %v2527, 1
        %v2560 = vsel %vm1658, %v2558, %v2559
        %v2561 = vrot.slane %v2528, 1
        %v2562 = vrot.slane %v2529, 1
        %v2563 = vsel %vm1658, %v2561, %v2562
        %v2564 = vrot.slane %v2530, 1
        %v2565 = vrot.slane %v2531, 1
        %v2566 = vsel %vm1658, %v2564, %v2565
        %v2567 = vrot.slane %v2532, 1
        %v2568 = vrot.slane %v2533, 1
        %v2569 = vsel %vm1658, %v2567, %v2568
        %v2570 = vrot.slane %v2534, 1
        %v2571 = vrot.slane %v2535, 1
        %v2572 = vsel %vm1658, %v2570, %v2571
        %v2573 = vrot.slane %v2536, 1
        %v2574 = vrot.slane %v2537, 1
        %v2575 = vsel %vm1658, %v2573, %v2574
        %v2576 = vrot.slane %v2538, 1
        %v2577 = vrot.slane %v2539, 1
        %v2578 = vsel %vm1658, %v2576, %v2577
        %v2579 = vrot.slane %v2540, 1
        %v2580 = vrot.slane %v2541, 1
        %v2581 = vsel %vm1658, %v2579, %v2580
        %v2582 = vrot.slane %v2542, 1
        %v2583 = vrot.slane %v2543, 1
        %v2584 = vsel %vm1658, %v2582, %v2583
        %v2585 = vrot.slane %v2544, 1
        %v2586 = vrot.slane %v2545, 1
        %v2587 = vsel %vm1658, %v2585, %v2586
        %v2588 = vrot.slane %v2546, 1
        %v2589 = vrot.slane %v2547, 1
        %v2590 = vsel %vm1658, %v2588, %v2589
        %v2591 = vrot.slane %v2548, 1
        %v2592 = vrot.slane %v2549, 1
        %v2593 = vsel %vm1658, %v2591, %v2592
        %v2594 = vrot.slane %v2550, 1
        %v2595 = vrot.slane %v2551, 1
        %v2596 = vsel %vm1658, %v2594, %v2595
        %v2597 = vrot.slane %v2552, 1
        %v2598 = vrot.slane %v2553, 1
        %v2599 = vsel %vm1658, %v2597, %v2598
        %v2600 = vrot.slane %v2554, 1
        %v2601 = vrot.slane %v2555, 1
        %v2602 = vsel %vm1658, %v2600, %v2601
        %v2603 = vrot.slane %v2556, 1
        %v2604 = vrot.slane %v2557, 1
        %v2605 = vsel %vm1658, %v2603, %v2604
        %2606 = vrot.lane.b32.xlu0 %v2560, 40
        %v2607 = vpop.permute.xlu0 %2606
        %2608 = vrot.lane.b32.xlu0 %v2563, 40
        %v2609 = vpop.permute.xlu0 %2608
        %2610 = vrot.lane.b32.xlu0 %v2566, 40
        %v2611 = vpop.permute.xlu0 %2610
        %2612 = vrot.lane.b32.xlu0 %v2569, 40
        %v2613 = vpop.permute.xlu0 %2612
        %2614 = vrot.lane.b32.xlu0 %v2572, 40
        %v2615 = vpop.permute.xlu0 %2614
        %2616 = vrot.lane.b32.xlu0 %v2575, 40
        %v2617 = vpop.permute.xlu0 %2616
        %2618 = vrot.lane.b32.xlu0 %v2578, 40
        %v2619 = vpop.permute.xlu0 %2618
        %2620 = vrot.lane.b32.xlu0 %v2581, 40
        %v2621 = vpop.permute.xlu0 %2620
        %2622 = vrot.lane.b32.xlu0 %v2584, 40
        %v2623 = vpop.permute.xlu0 %2622
        %2624 = vrot.lane.b32.xlu0 %v2587, 40
        %v2625 = vpop.permute.xlu0 %2624
        %2626 = vrot.lane.b32.xlu0 %v2590, 40
        %v2627 = vpop.permute.xlu0 %2626
        %2628 = vrot.lane.b32.xlu0 %v2593, 40
        %v2629 = vpop.permute.xlu0 %2628
        %2630 = vrot.lane.b32.xlu0 %v2596, 40
        %v2631 = vpop.permute.xlu0 %2630
        %2632 = vrot.lane.b32.xlu0 %v2599, 40
        %v2633 = vpop.permute.xlu0 %2632
        %2634 = vrot.lane.b32.xlu0 %v2602, 40
        %v2635 = vpop.permute.xlu0 %2634
        %2636 = vrot.lane.b32.xlu0 %v2605, 40
        %v2637 = vpop.permute.xlu0 %2636
        %vm2654 = vcmask 392512
        %2655 = vst.msk [vmem:[#allocation4] sm:$0xff] %vm2654, %v2607
        %2656 = vst.msk [vmem:[#allocation4 + $0x8] sm:$0xff] %vm2654, %v2609
        %2657 = vst.msk [vmem:[#allocation4 + $0x10] sm:$0xff] %vm2654, %v2611
        %2658 = vst.msk [vmem:[#allocation4 + $0x18] sm:$0xff] %vm2654, %v2613
        %2659 = vst.msk [vmem:[#allocation4 + $0x20] sm:$0xff] %vm2654, %v2615
        %2660 = vst.msk [vmem:[#allocation4 + $0x28] sm:$0xff] %vm2654, %v2617
        %2661 = vst.msk [vmem:[#allocation4 + $0x30] sm:$0xff] %vm2654, %v2619
        %2662 = vst.msk [vmem:[#allocation4 + $0x38] sm:$0xff] %vm2654, %v2621
        %2663 = vst.msk [vmem:[#allocation4 + $0x40] sm:$0xff] %vm2654, %v2623
        %2664 = vst.msk [vmem:[#allocation4 + $0x48] sm:$0xff] %vm2654, %v2625
        %2665 = vst.msk [vmem:[#allocation4 + $0x50] sm:$0xff] %vm2654, %v2627
        %2666 = vst.msk [vmem:[#allocation4 + $0x58] sm:$0xff] %vm2654, %v2629
        %2667 = vst.msk [vmem:[#allocation4 + $0x60] sm:$0xff] %vm2654, %v2631
        %2668 = vst.msk [vmem:[#allocation4 + $0x68] sm:$0xff] %vm2654, %v2633
        %2669 = vst.msk [vmem:[#allocation4 + $0x70] sm:$0xff] %vm2654, %v2635
        %2670 = vst.msk [vmem:[#allocation4 + $0x78] sm:$0xff] %vm2654, %v2637
        %s2671 = scalar_lea.vmem [#allocation2], 24
        %v2672 = vld [vmem:[%s2671] sm:$0xf]
        %v2673 = vld [vmem:[%s2671 + $0x4] sm:$0xf]
        %v2674 = vld [vmem:[%s2671 + $0xc] sm:$0xf]
        %v2675 = vld [vmem:[%s2671 + $0x10] sm:$0xf]
        %v2676 = vld [vmem:[%s2671 + $0x18] sm:$0xf]
        %v2677 = vld [vmem:[%s2671 + $0x1c] sm:$0xf]
        %v2678 = vld [vmem:[%s2671 + $0x24] sm:$0xf]
        %v2679 = vld [vmem:[%s2671 + $0x28] sm:$0xf]
        %v2680 = vld [vmem:[%s2671 + $0x30] sm:$0xf]
        %v2681 = vld [vmem:[%s2671 + $0x34] sm:$0xf]
        %v2682 = vld [vmem:[%s2671 + $0x3c] sm:$0xf]
        %v2683 = vld [vmem:[%s2671 + $0x40] sm:$0xf]
        %v2684 = vld [vmem:[%s2671 + $0x48] sm:$0xf]
        %v2685 = vld [vmem:[%s2671 + $0x4c] sm:$0xf]
        %v2686 = vld [vmem:[%s2671 + $0x54] sm:$0xf]
        %v2687 = vld [vmem:[%s2671 + $0x58] sm:$0xf]
        %v2688 = vld [vmem:[%s2671 + $0x60] sm:$0xf]
        %v2689 = vld [vmem:[%s2671 + $0x64] sm:$0xf]
        %v2690 = vld [vmem:[%s2671 + $0x6c] sm:$0xf]
        %v2691 = vld [vmem:[%s2671 + $0x70] sm:$0xf]
        %v2692 = vld [vmem:[%s2671 + $0x78] sm:$0xf]
        %v2693 = vld [vmem:[%s2671 + $0x7c] sm:$0xf]
        %v2694 = vld [vmem:[%s2671 + $0x84] sm:$0xf]
        %v2695 = vld [vmem:[%s2671 + $0x88] sm:$0xf]
        %v2696 = vld [vmem:[%s2671 + $0x90] sm:$0xf]
        %v2697 = vld [vmem:[%s2671 + $0x94] sm:$0xf]
        %v2698 = vld [vmem:[%s2671 + $0x9c] sm:$0xf]
        %v2699 = vld [vmem:[%s2671 + $0xa0] sm:$0xf]
        %v2700 = vld [vmem:[%s2671 + $0xa8] sm:$0xf]
        %v2701 = vld [vmem:[%s2671 + $0xac] sm:$0xf]
        %v2702 = vld [vmem:[%s2671 + $0xb4] sm:$0xf]
        %v2703 = vld [vmem:[%s2671 + $0xb8] sm:$0xf]
        %v2736 = vunpack.c.l.b16 %v2672
        %v2737 = vunpack.c.l.b16 %v2673
        %v2738 = vunpack.c.l.b16 %v2674
        %v2739 = vunpack.c.l.b16 %v2675
        %v2740 = vunpack.c.l.b16 %v2676
        %v2741 = vunpack.c.l.b16 %v2677
        %v2742 = vunpack.c.l.b16 %v2678
        %v2743 = vunpack.c.l.b16 %v2679
        %v2744 = vunpack.c.l.b16 %v2680
        %v2745 = vunpack.c.l.b16 %v2681
        %v2746 = vunpack.c.l.b16 %v2682
        %v2747 = vunpack.c.l.b16 %v2683
        %v2748 = vunpack.c.l.b16 %v2684
        %v2749 = vunpack.c.l.b16 %v2685
        %v2750 = vunpack.c.l.b16 %v2686
        %v2751 = vunpack.c.l.b16 %v2687
        %v2752 = vunpack.c.l.b16 %v2688
        %v2753 = vunpack.c.l.b16 %v2689
        %v2754 = vunpack.c.l.b16 %v2690
        %v2755 = vunpack.c.l.b16 %v2691
        %v2756 = vunpack.c.l.b16 %v2692
        %v2757 = vunpack.c.l.b16 %v2693
        %v2758 = vunpack.c.l.b16 %v2694
        %v2759 = vunpack.c.l.b16 %v2695
        %v2760 = vunpack.c.l.b16 %v2696
        %v2761 = vunpack.c.l.b16 %v2697
        %v2762 = vunpack.c.l.b16 %v2698
        %v2763 = vunpack.c.l.b16 %v2699
        %v2764 = vunpack.c.l.b16 %v2700
        %v2765 = vunpack.c.l.b16 %v2701
        %v2766 = vunpack.c.l.b16 %v2702
        %v2767 = vunpack.c.l.b16 %v2703
        %v2768 = vpack.c.b16 %v2737, %v2736
        %v2769 = vpack.c.b16 %v2739, %v2738
        %v2770 = vpack.c.b16 %v2741, %v2740
        %v2771 = vpack.c.b16 %v2743, %v2742
        %v2772 = vpack.c.b16 %v2745, %v2744
        %v2773 = vpack.c.b16 %v2747, %v2746
        %v2774 = vpack.c.b16 %v2749, %v2748
        %v2775 = vpack.c.b16 %v2751, %v2750
        %v2776 = vpack.c.b16 %v2753, %v2752
        %v2777 = vpack.c.b16 %v2755, %v2754
        %v2778 = vpack.c.b16 %v2757, %v2756
        %v2779 = vpack.c.b16 %v2759, %v2758
        %v2780 = vpack.c.b16 %v2761, %v2760
        %v2781 = vpack.c.b16 %v2763, %v2762
        %v2782 = vpack.c.b16 %v2765, %v2764
        %v2783 = vpack.c.b16 %v2767, %v2766
        %2784 = vrot.lane.b32.xlu0 %v2768, 48
        %v2785 = vpop.permute.xlu0 %2784
        %2786 = vrot.lane.b32.xlu0 %v2769, 48
        %v2787 = vpop.permute.xlu0 %2786
        %2788 = vrot.lane.b32.xlu0 %v2770, 48
        %v2789 = vpop.permute.xlu0 %2788
        %2790 = vrot.lane.b32.xlu0 %v2771, 48
        %v2791 = vpop.permute.xlu0 %2790
        %2792 = vrot.lane.b32.xlu0 %v2772, 48
        %v2793 = vpop.permute.xlu0 %2792
        %2794 = vrot.lane.b32.xlu0 %v2773, 48
        %v2795 = vpop.permute.xlu0 %2794
        %2796 = vrot.lane.b32.xlu0 %v2774, 48
        %v2797 = vpop.permute.xlu0 %2796
        %2798 = vrot.lane.b32.xlu0 %v2775, 48
        %v2799 = vpop.permute.xlu0 %2798
        %2800 = vrot.lane.b32.xlu0 %v2776, 48
        %v2801 = vpop.permute.xlu0 %2800
        %2802 = vrot.lane.b32.xlu0 %v2777, 48
        %v2803 = vpop.permute.xlu0 %2802
        %2804 = vrot.lane.b32.xlu0 %v2778, 48
        %v2805 = vpop.permute.xlu0 %2804
        %2806 = vrot.lane.b32.xlu0 %v2779, 48
        %v2807 = vpop.permute.xlu0 %2806
        %2808 = vrot.lane.b32.xlu0 %v2780, 48
        %v2809 = vpop.permute.xlu0 %2808
        %2810 = vrot.lane.b32.xlu0 %v2781, 48
        %v2811 = vpop.permute.xlu0 %2810
        %2812 = vrot.lane.b32.xlu0 %v2782, 48
        %v2813 = vpop.permute.xlu0 %2812
        %2814 = vrot.lane.b32.xlu0 %v2783, 48
        %v2815 = vpop.permute.xlu0 %2814
        %vm2832 = vcmask 458112
        %2833 = vst.msk [vmem:[#allocation4] sm:$0xff] %vm2832, %v2785
        %2834 = vst.msk [vmem:[#allocation4 + $0x8] sm:$0xff] %vm2832, %v2787
        %2835 = vst.msk [vmem:[#allocation4 + $0x10] sm:$0xff] %vm2832, %v2789
        %2836 = vst.msk [vmem:[#allocation4 + $0x18] sm:$0xff] %vm2832, %v2791
        %2837 = vst.msk [vmem:[#allocation4 + $0x20] sm:$0xff] %vm2832, %v2793
        %2838 = vst.msk [vmem:[#allocation4 + $0x28] sm:$0xff] %vm2832, %v2795
        %2839 = vst.msk [vmem:[#allocation4 + $0x30] sm:$0xff] %vm2832, %v2797
        %2840 = vst.msk [vmem:[#allocation4 + $0x38] sm:$0xff] %vm2832, %v2799
        %2841 = vst.msk [vmem:[#allocation4 + $0x40] sm:$0xff] %vm2832, %v2801
        %2842 = vst.msk [vmem:[#allocation4 + $0x48] sm:$0xff] %vm2832, %v2803
        %2843 = vst.msk [vmem:[#allocation4 + $0x50] sm:$0xff] %vm2832, %v2805
        %2844 = vst.msk [vmem:[#allocation4 + $0x58] sm:$0xff] %vm2832, %v2807
        %2845 = vst.msk [vmem:[#allocation4 + $0x60] sm:$0xff] %vm2832, %v2809
        %2846 = vst.msk [vmem:[#allocation4 + $0x68] sm:$0xff] %vm2832, %v2811
        %2847 = vst.msk [vmem:[#allocation4 + $0x70] sm:$0xff] %vm2832, %v2813
        %2848 = vst.msk [vmem:[#allocation4 + $0x78] sm:$0xff] %vm2832, %v2815
        %v2849 = vld [vmem:[%s2671] sm:$0xf]
        %v2850 = vld [vmem:[%s2671 + $0x4] sm:$0xf]
        %v2851 = vld [vmem:[%s2671 + $0x8] sm:$0x1]
        %v2852 = vld [vmem:[%s2671 + $0xc] sm:$0xf]
        %v2853 = vld [vmem:[%s2671 + $0x10] sm:$0xf]
        %v2854 = vld [vmem:[%s2671 + $0x14] sm:$0x1]
        %v2855 = vld [vmem:[%s2671 + $0x18] sm:$0xf]
        %v2856 = vld [vmem:[%s2671 + $0x1c] sm:$0xf]
        %v2857 = vld [vmem:[%s2671 + $0x20] sm:$0x1]
        %v2858 = vld [vmem:[%s2671 + $0x24] sm:$0xf]
        %v2859 = vld [vmem:[%s2671 + $0x28] sm:$0xf]
        %v2860 = vld [vmem:[%s2671 + $0x2c] sm:$0x1]
        %v2861 = vld [vmem:[%s2671 + $0x30] sm:$0xf]
        %v2862 = vld [vmem:[%s2671 + $0x34] sm:$0xf]
        %v2863 = vld [vmem:[%s2671 + $0x38] sm:$0x1]
        %v2864 = vld [vmem:[%s2671 + $0x3c] sm:$0xf]
        %v2865 = vld [vmem:[%s2671 + $0x40] sm:$0xf]
        %v2866 = vld [vmem:[%s2671 + $0x44] sm:$0x1]
        %v2867 = vld [vmem:[%s2671 + $0x48] sm:$0xf]
        %v2868 = vld [vmem:[%s2671 + $0x4c] sm:$0xf]
        %v2869 = vld [vmem:[%s2671 + $0x50] sm:$0x1]
        %v2870 = vld [vmem:[%s2671 + $0x54] sm:$0xf]
        %v2871 = vld [vmem:[%s2671 + $0x58] sm:$0xf]
        %v2872 = vld [vmem:[%s2671 + $0x5c] sm:$0x1]
        %v2873 = vld [vmem:[%s2671 + $0x60] sm:$0xf]
        %v2874 = vld [vmem:[%s2671 + $0x64] sm:$0xf]
        %v2875 = vld [vmem:[%s2671 + $0x68] sm:$0x1]
        %v2876 = vld [vmem:[%s2671 + $0x6c] sm:$0xf]
        %v2877 = vld [vmem:[%s2671 + $0x70] sm:$0xf]
        %v2878 = vld [vmem:[%s2671 + $0x74] sm:$0x1]
        %v2879 = vld [vmem:[%s2671 + $0x78] sm:$0xf]
        %v2880 = vld [vmem:[%s2671 + $0x7c] sm:$0xf]
        %v2881 = vld [vmem:[%s2671 + $0x80] sm:$0x1]
        %v2882 = vld [vmem:[%s2671 + $0x84] sm:$0xf]
        %v2883 = vld [vmem:[%s2671 + $0x88] sm:$0xf]
        %v2884 = vld [vmem:[%s2671 + $0x8c] sm:$0x1]
        %v2885 = vld [vmem:[%s2671 + $0x90] sm:$0xf]
        %v2886 = vld [vmem:[%s2671 + $0x94] sm:$0xf]
        %v2887 = vld [vmem:[%s2671 + $0x98] sm:$0x1]
        %v2888 = vld [vmem:[%s2671 + $0x9c] sm:$0xf]
        %v2889 = vld [vmem:[%s2671 + $0xa0] sm:$0xf]
        %v2890 = vld [vmem:[%s2671 + $0xa4] sm:$0x1]
        %v2891 = vld [vmem:[%s2671 + $0xa8] sm:$0xf]
        %v2892 = vld [vmem:[%s2671 + $0xac] sm:$0xf]
        %v2893 = vld [vmem:[%s2671 + $0xb0] sm:$0x1]
        %v2894 = vld [vmem:[%s2671 + $0xb4] sm:$0xf]
        %v2895 = vld [vmem:[%s2671 + $0xb8] sm:$0xf]
        %v2896 = vld [vmem:[%s2671 + $0xbc] sm:$0x1]
        %v2945 = vunpack.c.l.b16 %v2849
        %v2946 = vunpack.c.l.b16 %v2850
        %v2947 = vunpack.c.l.b16 %v2851
        %v2948 = vunpack.c.l.b16 %v2852
        %v2949 = vunpack.c.l.b16 %v2853
        %v2950 = vunpack.c.l.b16 %v2854
        %v2951 = vunpack.c.l.b16 %v2855
        %v2952 = vunpack.c.l.b16 %v2856
        %v2953 = vunpack.c.l.b16 %v2857
        %v2954 = vunpack.c.l.b16 %v2858
        %v2955 = vunpack.c.l.b16 %v2859
        %v2956 = vunpack.c.l.b16 %v2860
        %v2957 = vunpack.c.l.b16 %v2861
        %v2958 = vunpack.c.l.b16 %v2862
        %v2959 = vunpack.c.l.b16 %v2863
        %v2960 = vunpack.c.l.b16 %v2864
        %v2961 = vunpack.c.l.b16 %v2865
        %v2962 = vunpack.c.l.b16 %v2866
        %v2963 = vunpack.c.l.b16 %v2867
        %v2964 = vunpack.c.l.b16 %v2868
        %v2965 = vunpack.c.l.b16 %v2869
        %v2966 = vunpack.c.l.b16 %v2870
        %v2967 = vunpack.c.l.b16 %v2871
        %v2968 = vunpack.c.l.b16 %v2872
        %v2969 = vunpack.c.l.b16 %v2873
        %v2970 = vunpack.c.l.b16 %v2874
        %v2971 = vunpack.c.l.b16 %v2875
        %v2972 = vunpack.c.l.b16 %v2876
        %v2973 = vunpack.c.l.b16 %v2877
        %v2974 = vunpack.c.l.b16 %v2878
        %v2975 = vunpack.c.l.b16 %v2879
        %v2976 = vunpack.c.l.b16 %v2880
        %v2977 = vunpack.c.l.b16 %v2881
        %v2978 = vunpack.c.l.b16 %v2882
        %v2979 = vunpack.c.l.b16 %v2883
        %v2980 = vunpack.c.l.b16 %v2884
        %v2981 = vunpack.c.l.b16 %v2885
        %v2982 = vunpack.c.l.b16 %v2886
        %v2983 = vunpack.c.l.b16 %v2887
        %v2984 = vunpack.c.l.b16 %v2888
        %v2985 = vunpack.c.l.b16 %v2889
        %v2986 = vunpack.c.l.b16 %v2890
        %v2987 = vunpack.c.l.b16 %v2891
        %v2988 = vunpack.c.l.b16 %v2892
        %v2989 = vunpack.c.l.b16 %v2893
        %v2990 = vunpack.c.l.b16 %v2894
        %v2991 = vunpack.c.l.b16 %v2895
        %v2992 = vunpack.c.l.b16 %v2896
        %v2993 = vpack.c.b16 %v2946, %v2945
        %v2994 = vpack.c.b16 %v2947, %v2947
        %v2995 = vpack.c.b16 %v2949, %v2948
        %v2996 = vpack.c.b16 %v2950, %v2950
        %v2997 = vpack.c.b16 %v2952, %v2951
        %v2998 = vpack.c.b16 %v2953, %v2953
        %v2999 = vpack.c.b16 %v2955, %v2954
        %v3000 = vpack.c.b16 %v2956, %v2956
        %v3001 = vpack.c.b16 %v2958, %v2957
        %v3002 = vpack.c.b16 %v2959, %v2959
        %v3003 = vpack.c.b16 %v2961, %v2960
        %v3004 = vpack.c.b16 %v2962, %v2962
        %v3005 = vpack.c.b16 %v2964, %v2963
        %v3006 = vpack.c.b16 %v2965, %v2965
        %v3007 = vpack.c.b16 %v2967, %v2966
        %v3008 = vpack.c.b16 %v2968, %v2968
        %v3009 = vpack.c.b16 %v2970, %v2969
        %v3010 = vpack.c.b16 %v2971, %v2971
        %v3011 = vpack.c.b16 %v2973, %v2972
        %v3012 = vpack.c.b16 %v2974, %v2974
        %v3013 = vpack.c.b16 %v2976, %v2975
        %v3014 = vpack.c.b16 %v2977, %v2977
        %v3015 = vpack.c.b16 %v2979, %v2978
        %v3016 = vpack.c.b16 %v2980, %v2980
        %v3017 = vpack.c.b16 %v2982, %v2981
        %v3018 = vpack.c.b16 %v2983, %v2983
        %v3019 = vpack.c.b16 %v2985, %v2984
        %v3020 = vpack.c.b16 %v2986, %v2986
        %v3021 = vpack.c.b16 %v2988, %v2987
        %v3022 = vpack.c.b16 %v2989, %v2989
        %v3023 = vpack.c.b16 %v2991, %v2990
        %v3024 = vpack.c.b16 %v2992, %v2992
        %v3026 = vshrl.u32 %v2993, 16
        %v3028 = vshll.u32 %v2993, 16
        %v3030 = vrot.slane %v3028, 1
        %v3031 = vor.u32 %v3026, %v3030
        %v3033 = vshll.u32 %v2994, 16
        %v3035 = vrot.slane %v3033, 1
        %v3036 = vsel %vm1224, %v3031, %v3035
        %v3038 = vshrl.u32 %v2995, 16
        %v3040 = vshll.u32 %v2995, 16
        %v3042 = vrot.slane %v3040, 1
        %v3043 = vor.u32 %v3038, %v3042
        %v3045 = vshll.u32 %v2996, 16
        %v3047 = vrot.slane %v3045, 1
        %v3048 = vsel %vm1224, %v3043, %v3047
        %v3050 = vshrl.u32 %v2997, 16
        %v3052 = vshll.u32 %v2997, 16
        %v3054 = vrot.slane %v3052, 1
        %v3055 = vor.u32 %v3050, %v3054
        %v3057 = vshll.u32 %v2998, 16
        %v3059 = vrot.slane %v3057, 1
        %v3060 = vsel %vm1224, %v3055, %v3059
        %v3062 = vshrl.u32 %v2999, 16
        %v3064 = vshll.u32 %v2999, 16
        %v3066 = vrot.slane %v3064, 1
        %v3067 = vor.u32 %v3062, %v3066
        %v3069 = vshll.u32 %v3000, 16
        %v3071 = vrot.slane %v3069, 1
        %v3072 = vsel %vm1224, %v3067, %v3071
        %v3074 = vshrl.u32 %v3001, 16
        %v3076 = vshll.u32 %v3001, 16
        %v3078 = vrot.slane %v3076, 1
        %v3079 = vor.u32 %v3074, %v3078
        %v3081 = vshll.u32 %v3002, 16
        %v3083 = vrot.slane %v3081, 1
        %v3084 = vsel %vm1224, %v3079, %v3083
        %v3086 = vshrl.u32 %v3003, 16
        %v3088 = vshll.u32 %v3003, 16
        %v3090 = vrot.slane %v3088, 1
        %v3091 = vor.u32 %v3086, %v3090
        %v3093 = vshll.u32 %v3004, 16
        %v3095 = vrot.slane %v3093, 1
        %v3096 = vsel %vm1224, %v3091, %v3095
        %v3098 = vshrl.u32 %v3005, 16
        %v3100 = vshll.u32 %v3005, 16
        %v3102 = vrot.slane %v3100, 1
        %v3103 = vor.u32 %v3098, %v3102
        %v3105 = vshll.u32 %v3006, 16
        %v3107 = vrot.slane %v3105, 1
        %v3108 = vsel %vm1224, %v3103, %v3107
        %v3110 = vshrl.u32 %v3007, 16
        %v3112 = vshll.u32 %v3007, 16
        %v3114 = vrot.slane %v3112, 1
        %v3115 = vor.u32 %v3110, %v3114
        %v3117 = vshll.u32 %v3008, 16
        %v3119 = vrot.slane %v3117, 1
        %v3120 = vsel %vm1224, %v3115, %v3119
        %v3122 = vshrl.u32 %v3009, 16
        %v3124 = vshll.u32 %v3009, 16
        %v3126 = vrot.slane %v3124, 1
        %v3127 = vor.u32 %v3122, %v3126
        %v3129 = vshll.u32 %v3010, 16
        %v3131 = vrot.slane %v3129, 1
        %v3132 = vsel %vm1224, %v3127, %v3131
        %v3134 = vshrl.u32 %v3011, 16
        %v3136 = vshll.u32 %v3011, 16
        %v3138 = vrot.slane %v3136, 1
        %v3139 = vor.u32 %v3134, %v3138
        %v3141 = vshll.u32 %v3012, 16
        %v3143 = vrot.slane %v3141, 1
        %v3144 = vsel %vm1224, %v3139, %v3143
        %v3146 = vshrl.u32 %v3013, 16
        %v3148 = vshll.u32 %v3013, 16
        %v3150 = vrot.slane %v3148, 1
        %v3151 = vor.u32 %v3146, %v3150
        %v3153 = vshll.u32 %v3014, 16
        %v3155 = vrot.slane %v3153, 1
        %v3156 = vsel %vm1224, %v3151, %v3155
        %v3158 = vshrl.u32 %v3015, 16
        %v3160 = vshll.u32 %v3015, 16
        %v3162 = vrot.slane %v3160, 1
        %v3163 = vor.u32 %v3158, %v3162
        %v3165 = vshll.u32 %v3016, 16
        %v3167 = vrot.slane %v3165, 1
        %v3168 = vsel %vm1224, %v3163, %v3167
        %v3170 = vshrl.u32 %v3017, 16
        %v3172 = vshll.u32 %v3017, 16
        %v3174 = vrot.slane %v3172, 1
        %v3175 = vor.u32 %v3170, %v3174
        %v3177 = vshll.u32 %v3018, 16
        %v3179 = vrot.slane %v3177, 1
        %v3180 = vsel %vm1224, %v3175, %v3179
        %v3182 = vshrl.u32 %v3019, 16
        %v3184 = vshll.u32 %v3019, 16
        %v3186 = vrot.slane %v3184, 1
        %v3187 = vor.u32 %v3182, %v3186
        %v3189 = vshll.u32 %v3020, 16
        %v3191 = vrot.slane %v3189, 1
        %v3192 = vsel %vm1224, %v3187, %v3191
        %v3194 = vshrl.u32 %v3021, 16
        %v3196 = vshll.u32 %v3021, 16
        %v3198 = vrot.slane %v3196, 1
        %v3199 = vor.u32 %v3194, %v3198
        %v3201 = vshll.u32 %v3022, 16
        %v3203 = vrot.slane %v3201, 1
        %v3204 = vsel %vm1224, %v3199, %v3203
        %v3206 = vshrl.u32 %v3023, 16
        %v3208 = vshll.u32 %v3023, 16
        %v3210 = vrot.slane %v3208, 1
        %v3211 = vor.u32 %v3206, %v3210
        %v3213 = vshll.u32 %v3024, 16
        %v3215 = vrot.slane %v3213, 1
        %v3216 = vsel %vm1224, %v3211, %v3215
        %3217 = vrot.lane.b32.xlu0 %v3036, 56
        %v3218 = vpop.permute.xlu0 %3217
        %3219 = vrot.lane.b32.xlu0 %v3048, 56
        %v3220 = vpop.permute.xlu0 %3219
        %3221 = vrot.lane.b32.xlu0 %v3060, 56
        %v3222 = vpop.permute.xlu0 %3221
        %3223 = vrot.lane.b32.xlu0 %v3072, 56
        %v3224 = vpop.permute.xlu0 %3223
        %3225 = vrot.lane.b32.xlu0 %v3084, 56
        %v3226 = vpop.permute.xlu0 %3225
        %3227 = vrot.lane.b32.xlu0 %v3096, 56
        %v3228 = vpop.permute.xlu0 %3227
        %3229 = vrot.lane.b32.xlu0 %v3108, 56
        %v3230 = vpop.permute.xlu0 %3229
        %3231 = vrot.lane.b32.xlu0 %v3120, 56
        %v3232 = vpop.permute.xlu0 %3231
        %3233 = vrot.lane.b32.xlu0 %v3132, 56
        %v3234 = vpop.permute.xlu0 %3233
        %3235 = vrot.lane.b32.xlu0 %v3144, 56
        %v3236 = vpop.permute.xlu0 %3235
        %3237 = vrot.lane.b32.xlu0 %v3156, 56
        %v3238 = vpop.permute.xlu0 %3237
        %3239 = vrot.lane.b32.xlu0 %v3168, 56
        %v3240 = vpop.permute.xlu0 %3239
        %3241 = vrot.lane.b32.xlu0 %v3180, 56
        %v3242 = vpop.permute.xlu0 %3241
        %3243 = vrot.lane.b32.xlu0 %v3192, 56
        %v3244 = vpop.permute.xlu0 %3243
        %3245 = vrot.lane.b32.xlu0 %v3204, 56
        %v3246 = vpop.permute.xlu0 %3245
        %3247 = vrot.lane.b32.xlu0 %v3216, 56
        %v3248 = vpop.permute.xlu0 %3247
        %vm3265 = vcmask 523712
        %3266 = vst.msk [vmem:[#allocation4] sm:$0xff] %vm3265, %v3218
        %3267 = vst.msk [vmem:[#allocation4 + $0x8] sm:$0xff] %vm3265, %v3220
        %3268 = vst.msk [vmem:[#allocation4 + $0x10] sm:$0xff] %vm3265, %v3222
        %3269 = vst.msk [vmem:[#allocation4 + $0x18] sm:$0xff] %vm3265, %v3224
        %3270 = vst.msk [vmem:[#allocation4 + $0x20] sm:$0xff] %vm3265, %v3226
        %3271 = vst.msk [vmem:[#allocation4 + $0x28] sm:$0xff] %vm3265, %v3228
        %3272 = vst.msk [vmem:[#allocation4 + $0x30] sm:$0xff] %vm3265, %v3230
        %3273 = vst.msk [vmem:[#allocation4 + $0x38] sm:$0xff] %vm3265, %v3232
        %3274 = vst.msk [vmem:[#allocation4 + $0x40] sm:$0xff] %vm3265, %v3234
        %3275 = vst.msk [vmem:[#allocation4 + $0x48] sm:$0xff] %vm3265, %v3236
        %3276 = vst.msk [vmem:[#allocation4 + $0x50] sm:$0xff] %vm3265, %v3238
        %3277 = vst.msk [vmem:[#allocation4 + $0x58] sm:$0xff] %vm3265, %v3240
        %3278 = vst.msk [vmem:[#allocation4 + $0x60] sm:$0xff] %vm3265, %v3242
        %3279 = vst.msk [vmem:[#allocation4 + $0x68] sm:$0xff] %vm3265, %v3244
        %3280 = vst.msk [vmem:[#allocation4 + $0x70] sm:$0xff] %vm3265, %v3246
        %3281 = vst.msk [vmem:[#allocation4 + $0x78] sm:$0xff] %vm3265, %v3248
        %v3282 = vld [vmem:[%s2671] sm:$0xe]
        %v3283 = vld [vmem:[%s2671 + $0x4] sm:$0xf]
        %v3284 = vld [vmem:[%s2671 + $0x8] sm:$0x1]
        %v3285 = vld [vmem:[%s2671 + $0xc] sm:$0xe]
        %v3286 = vld [vmem:[%s2671 + $0x10] sm:$0xf]
        %v3287 = vld [vmem:[%s2671 + $0x14] sm:$0x1]
        %v3288 = vld [vmem:[%s2671 + $0x18] sm:$0xe]
        %v3289 = vld [vmem:[%s2671 + $0x1c] sm:$0xf]
        %v3290 = vld [vmem:[%s2671 + $0x20] sm:$0x1]
        %v3291 = vld [vmem:[%s2671 + $0x24] sm:$0xe]
        %v3292 = vld [vmem:[%s2671 + $0x28] sm:$0xf]
        %v3293 = vld [vmem:[%s2671 + $0x2c] sm:$0x1]
        %v3294 = vld [vmem:[%s2671 + $0x30] sm:$0xe]
        %v3295 = vld [vmem:[%s2671 + $0x34] sm:$0xf]
        %v3296 = vld [vmem:[%s2671 + $0x38] sm:$0x1]
        %v3297 = vld [vmem:[%s2671 + $0x3c] sm:$0xe]
        %v3298 = vld [vmem:[%s2671 + $0x40] sm:$0xf]
        %v3299 = vld [vmem:[%s2671 + $0x44] sm:$0x1]
        %v3300 = vld [vmem:[%s2671 + $0x48] sm:$0xe]
        %v3301 = vld [vmem:[%s2671 + $0x4c] sm:$0xf]
        %v3302 = vld [vmem:[%s2671 + $0x50] sm:$0x1]
        %v3303 = vld [vmem:[%s2671 + $0x54] sm:$0xe]
        %v3304 = vld [vmem:[%s2671 + $0x58] sm:$0xf]
        %v3305 = vld [vmem:[%s2671 + $0x5c] sm:$0x1]
        %v3306 = vld [vmem:[%s2671 + $0x60] sm:$0xe]
        %v3307 = vld [vmem:[%s2671 + $0x64] sm:$0xf]
        %v3308 = vld [vmem:[%s2671 + $0x68] sm:$0x1]
        %v3309 = vld [vmem:[%s2671 + $0x6c] sm:$0xe]
        %v3310 = vld [vmem:[%s2671 + $0x70] sm:$0xf]
        %v3311 = vld [vmem:[%s2671 + $0x74] sm:$0x1]
        %v3312 = vld [vmem:[%s2671 + $0x78] sm:$0xe]
        %v3313 = vld [vmem:[%s2671 + $0x7c] sm:$0xf]
        %v3314 = vld [vmem:[%s2671 + $0x80] sm:$0x1]
        %v3315 = vld [vmem:[%s2671 + $0x84] sm:$0xe]
        %v3316 = vld [vmem:[%s2671 + $0x88] sm:$0xf]
        %v3317 = vld [vmem:[%s2671 + $0x8c] sm:$0x1]
        %v3318 = vld [vmem:[%s2671 + $0x90] sm:$0xe]
        %v3319 = vld [vmem:[%s2671 + $0x94] sm:$0xf]
        %v3320 = vld [vmem:[%s2671 + $0x98] sm:$0x1]
        %v3321 = vld [vmem:[%s2671 + $0x9c] sm:$0xe]
        %v3322 = vld [vmem:[%s2671 + $0xa0] sm:$0xf]
        %v3323 = vld [vmem:[%s2671 + $0xa4] sm:$0x1]
        %v3324 = vld [vmem:[%s2671 + $0xa8] sm:$0xe]
        %v3325 = vld [vmem:[%s2671 + $0xac] sm:$0xf]
        %v3326 = vld [vmem:[%s2671 + $0xb0] sm:$0x1]
        %v3327 = vld [vmem:[%s2671 + $0xb4] sm:$0xe]
        %v3328 = vld [vmem:[%s2671 + $0xb8] sm:$0xf]
        %v3329 = vld [vmem:[%s2671 + $0xbc] sm:$0x1]
        %v3378 = vunpack.c.l.b16 %v3282
        %v3379 = vunpack.c.l.b16 %v3283
        %v3380 = vunpack.c.l.b16 %v3284
        %v3381 = vunpack.c.l.b16 %v3285
        %v3382 = vunpack.c.l.b16 %v3286
        %v3383 = vunpack.c.l.b16 %v3287
        %v3384 = vunpack.c.l.b16 %v3288
        %v3385 = vunpack.c.l.b16 %v3289
        %v3386 = vunpack.c.l.b16 %v3290
        %v3387 = vunpack.c.l.b16 %v3291
        %v3388 = vunpack.c.l.b16 %v3292
        %v3389 = vunpack.c.l.b16 %v3293
        %v3390 = vunpack.c.l.b16 %v3294
        %v3391 = vunpack.c.l.b16 %v3295
        %v3392 = vunpack.c.l.b16 %v3296
        %v3393 = vunpack.c.l.b16 %v3297
        %v3394 = vunpack.c.l.b16 %v3298
        %v3395 = vunpack.c.l.b16 %v3299
        %v3396 = vunpack.c.l.b16 %v3300
        %v3397 = vunpack.c.l.b16 %v3301
        %v3398 = vunpack.c.l.b16 %v3302
        %v3399 = vunpack.c.l.b16 %v3303
        %v3400 = vunpack.c.l.b16 %v3304
        %v3401 = vunpack.c.l.b16 %v3305
        %v3402 = vunpack.c.l.b16 %v3306
        %v3403 = vunpack.c.l.b16 %v3307
        %v3404 = vunpack.c.l.b16 %v3308
        %v3405 = vunpack.c.l.b16 %v3309
        %v3406 = vunpack.c.l.b16 %v3310
        %v3407 = vunpack.c.l.b16 %v3311
        %v3408 = vunpack.c.l.b16 %v3312
        %v3409 = vunpack.c.l.b16 %v3313
        %v3410 = vunpack.c.l.b16 %v3314
        %v3411 = vunpack.c.l.b16 %v3315
        %v3412 = vunpack.c.l.b16 %v3316
        %v3413 = vunpack.c.l.b16 %v3317
        %v3414 = vunpack.c.l.b16 %v3318
        %v3415 = vunpack.c.l.b16 %v3319
        %v3416 = vunpack.c.l.b16 %v3320
        %v3417 = vunpack.c.l.b16 %v3321
        %v3418 = vunpack.c.l.b16 %v3322
        %v3419 = vunpack.c.l.b16 %v3323
        %v3420 = vunpack.c.l.b16 %v3324
        %v3421 = vunpack.c.l.b16 %v3325
        %v3422 = vunpack.c.l.b16 %v3326
        %v3423 = vunpack.c.l.b16 %v3327
        %v3424 = vunpack.c.l.b16 %v3328
        %v3425 = vunpack.c.l.b16 %v3329
        %v3426 = vpack.c.b16 %v3379, %v3378
        %v3427 = vpack.c.b16 %v3380, %v3380
        %v3428 = vpack.c.b16 %v3382, %v3381
        %v3429 = vpack.c.b16 %v3383, %v3383
        %v3430 = vpack.c.b16 %v3385, %v3384
        %v3431 = vpack.c.b16 %v3386, %v3386
        %v3432 = vpack.c.b16 %v3388, %v3387
        %v3433 = vpack.c.b16 %v3389, %v3389
        %v3434 = vpack.c.b16 %v3391, %v3390
        %v3435 = vpack.c.b16 %v3392, %v3392
        %v3436 = vpack.c.b16 %v3394, %v3393
        %v3437 = vpack.c.b16 %v3395, %v3395
        %v3438 = vpack.c.b16 %v3397, %v3396
        %v3439 = vpack.c.b16 %v3398, %v3398
        %v3440 = vpack.c.b16 %v3400, %v3399
        %v3441 = vpack.c.b16 %v3401, %v3401
        %v3442 = vpack.c.b16 %v3403, %v3402
        %v3443 = vpack.c.b16 %v3404, %v3404
        %v3444 = vpack.c.b16 %v3406, %v3405
        %v3445 = vpack.c.b16 %v3407, %v3407
        %v3446 = vpack.c.b16 %v3409, %v3408
        %v3447 = vpack.c.b16 %v3410, %v3410
        %v3448 = vpack.c.b16 %v3412, %v3411
        %v3449 = vpack.c.b16 %v3413, %v3413
        %v3450 = vpack.c.b16 %v3415, %v3414
        %v3451 = vpack.c.b16 %v3416, %v3416
        %v3452 = vpack.c.b16 %v3418, %v3417
        %v3453 = vpack.c.b16 %v3419, %v3419
        %v3454 = vpack.c.b16 %v3421, %v3420
        %v3455 = vpack.c.b16 %v3422, %v3422
        %v3456 = vpack.c.b16 %v3424, %v3423
        %v3457 = vpack.c.b16 %v3425, %v3425
        %v3458 = vrot.slane %v3426, 1
        %v3459 = vrot.slane %v3427, 1
        %v3460 = vsel %vm1658, %v3458, %v3459
        %v3461 = vrot.slane %v3428, 1
        %v3462 = vrot.slane %v3429, 1
        %v3463 = vsel %vm1658, %v3461, %v3462
        %v3464 = vrot.slane %v3430, 1
        %v3465 = vrot.slane %v3431, 1
        %v3466 = vsel %vm1658, %v3464, %v3465
        %v3467 = vrot.slane %v3432, 1
        %v3468 = vrot.slane %v3433, 1
        %v3469 = vsel %vm1658, %v3467, %v3468
        %v3470 = vrot.slane %v3434, 1
        %v3471 = vrot.slane %v3435, 1
        %v3472 = vsel %vm1658, %v3470, %v3471
        %v3473 = vrot.slane %v3436, 1
        %v3474 = vrot.slane %v3437, 1
        %v3475 = vsel %vm1658, %v3473, %v3474
        %v3476 = vrot.slane %v3438, 1
        %v3477 = vrot.slane %v3439, 1
        %v3478 = vsel %vm1658, %v3476, %v3477
        %v3479 = vrot.slane %v3440, 1
        %v3480 = vrot.slane %v3441, 1
        %v3481 = vsel %vm1658, %v3479, %v3480
        %v3482 = vrot.slane %v3442, 1
        %v3483 = vrot.slane %v3443, 1
        %v3484 = vsel %vm1658, %v3482, %v3483
        %v3485 = vrot.slane %v3444, 1
        %v3486 = vrot.slane %v3445, 1
        %v3487 = vsel %vm1658, %v3485, %v3486
        %v3488 = vrot.slane %v3446, 1
        %v3489 = vrot.slane %v3447, 1
        %v3490 = vsel %vm1658, %v3488, %v3489
        %v3491 = vrot.slane %v3448, 1
        %v3492 = vrot.slane %v3449, 1
        %v3493 = vsel %vm1658, %v3491, %v3492
        %v3494 = vrot.slane %v3450, 1
        %v3495 = vrot.slane %v3451, 1
        %v3496 = vsel %vm1658, %v3494, %v3495
        %v3497 = vrot.slane %v3452, 1
        %v3498 = vrot.slane %v3453, 1
        %v3499 = vsel %vm1658, %v3497, %v3498
        %v3500 = vrot.slane %v3454, 1
        %v3501 = vrot.slane %v3455, 1
        %v3502 = vsel %vm1658, %v3500, %v3501
        %v3503 = vrot.slane %v3456, 1
        %v3504 = vrot.slane %v3457, 1
        %v3505 = vsel %vm1658, %v3503, %v3504
        %3506 = vrot.lane.b32.xlu0 %v3460, 64
        %v3507 = vpop.permute.xlu0 %3506
        %3508 = vrot.lane.b32.xlu0 %v3463, 64
        %v3509 = vpop.permute.xlu0 %3508
        %3510 = vrot.lane.b32.xlu0 %v3466, 64
        %v3511 = vpop.permute.xlu0 %3510
        %3512 = vrot.lane.b32.xlu0 %v3469, 64
        %v3513 = vpop.permute.xlu0 %3512
        %3514 = vrot.lane.b32.xlu0 %v3472, 64
        %v3515 = vpop.permute.xlu0 %3514
        %3516 = vrot.lane.b32.xlu0 %v3475, 64
        %v3517 = vpop.permute.xlu0 %3516
        %3518 = vrot.lane.b32.xlu0 %v3478, 64
        %v3519 = vpop.permute.xlu0 %3518
        %3520 = vrot.lane.b32.xlu0 %v3481, 64
        %v3521 = vpop.permute.xlu0 %3520
        %3522 = vrot.lane.b32.xlu0 %v3484, 64
        %v3523 = vpop.permute.xlu0 %3522
        %3524 = vrot.lane.b32.xlu0 %v3487, 64
        %v3525 = vpop.permute.xlu0 %3524
        %3526 = vrot.lane.b32.xlu0 %v3490, 64
        %v3527 = vpop.permute.xlu0 %3526
        %3528 = vrot.lane.b32.xlu0 %v3493, 64
        %v3529 = vpop.permute.xlu0 %3528
        %3530 = vrot.lane.b32.xlu0 %v3496, 64
        %v3531 = vpop.permute.xlu0 %3530
        %3532 = vrot.lane.b32.xlu0 %v3499, 64
        %v3533 = vpop.permute.xlu0 %3532
        %3534 = vrot.lane.b32.xlu0 %v3502, 64
        %v3535 = vpop.permute.xlu0 %3534
        %3536 = vrot.lane.b32.xlu0 %v3505, 64
        %v3537 = vpop.permute.xlu0 %3536
        %vm3554 = vcmask 589312
        %3555 = vst.msk [vmem:[#allocation4] sm:$0xff] %vm3554, %v3507
        %3556 = vst.msk [vmem:[#allocation4 + $0x8] sm:$0xff] %vm3554, %v3509
        %3557 = vst.msk [vmem:[#allocation4 + $0x10] sm:$0xff] %vm3554, %v3511
        %3558 = vst.msk [vmem:[#allocation4 + $0x18] sm:$0xff] %vm3554, %v3513
        %3559 = vst.msk [vmem:[#allocation4 + $0x20] sm:$0xff] %vm3554, %v3515
        %3560 = vst.msk [vmem:[#allocation4 + $0x28] sm:$0xff] %vm3554, %v3517
        %3561 = vst.msk [vmem:[#allocation4 + $0x30] sm:$0xff] %vm3554, %v3519
        %3562 = vst.msk [vmem:[#allocation4 + $0x38] sm:$0xff] %vm3554, %v3521
        %3563 = vst.msk [vmem:[#allocation4 + $0x40] sm:$0xff] %vm3554, %v3523
        %3564 = vst.msk [vmem:[#allocation4 + $0x48] sm:$0xff] %vm3554, %v3525
        %3565 = vst.msk [vmem:[#allocation4 + $0x50] sm:$0xff] %vm3554, %v3527
        %3566 = vst.msk [vmem:[#allocation4 + $0x58] sm:$0xff] %vm3554, %v3529
        %3567 = vst.msk [vmem:[#allocation4 + $0x60] sm:$0xff] %vm3554, %v3531
        %3568 = vst.msk [vmem:[#allocation4 + $0x68] sm:$0xff] %vm3554, %v3533
        %3569 = vst.msk [vmem:[#allocation4 + $0x70] sm:$0xff] %vm3554, %v3535
        %3570 = vst.msk [vmem:[#allocation4 + $0x78] sm:$0xff] %vm3554, %v3537
        %v3571 = vld [vmem:[#allocation4] sm:$0xff]
        %v3572 = vld [vmem:[#allocation4 + $0x8] sm:$0xff]
        %v3573 = vld [vmem:[#allocation4 + $0x10] sm:$0xff]
        %v3574 = vld [vmem:[#allocation4 + $0x18] sm:$0xff]
        %v3575 = vld [vmem:[#allocation4 + $0x20] sm:$0xff]
        %v3576 = vld [vmem:[#allocation4 + $0x28] sm:$0xff]
        %v3577 = vld [vmem:[#allocation4 + $0x30] sm:$0xff]
        %v3578 = vld [vmem:[#allocation4 + $0x38] sm:$0xff]
        %v3579 = vld [vmem:[#allocation4 + $0x40] sm:$0xff]
        %v3580 = vld [vmem:[#allocation4 + $0x48] sm:$0xff]
        %v3581 = vld [vmem:[#allocation4 + $0x50] sm:$0xff]
        %v3582 = vld [vmem:[#allocation4 + $0x58] sm:$0xff]
        %v3583 = vld [vmem:[#allocation4 + $0x60] sm:$0xff]
        %v3584 = vld [vmem:[#allocation4 + $0x68] sm:$0xff]
        %v3585 = vld [vmem:[#allocation4 + $0x70] sm:$0xff]
        %v3586 = vld [vmem:[#allocation4 + $0x78] sm:$0xff]
        %v3587 = vld [vmem:[%s1] sm:$0xf]
        %v3588 = vld [vmem:[%s1 + $0x4] sm:$0xf]
        %v3589 = vld [vmem:[%s1 + $0x8] sm:$0xf]
        %v3590 = vld [vmem:[%s1 + $0xc] sm:$0xf]
        %v3591 = vld [vmem:[%s1 + $0x10] sm:$0xf]
        %v3592 = vld [vmem:[%s1 + $0x14] sm:$0xf]
        %v3593 = vld [vmem:[%s1 + $0x18] sm:$0xf]
        %v3594 = vld [vmem:[%s1 + $0x1c] sm:$0xf]
        %v3595 = vld [vmem:[%s1 + $0x20] sm:$0xf]
        %v3596 = vld [vmem:[%s2] sm:$0x1]
        %v3598 = vlaneseq
        %v3599 = vshrl.u32 %v3598, 7
        %v3600 = vsub.s32 0, %v3599
        %v3601 = vrot.slane %v3596, %v3600
        %v3612 = vunpack.c.l.b16 %v3587
        %v3613 = vunpack.c.l.b16 %v3588
        %v3614 = vunpack.c.l.b16 %v3589
        %v3615 = vunpack.c.l.b16 %v3590
        %v3616 = vunpack.c.l.b16 %v3591
        %v3617 = vunpack.c.l.b16 %v3592
        %v3618 = vunpack.c.l.b16 %v3593
        %v3619 = vunpack.c.l.b16 %v3594
        %v3620 = vunpack.c.l.b16 %v3595
        %v3621 = vpack.c.b16 %v3613, %v3612
        %v3622 = vpack.c.b16 %v3615, %v3614
        %v3623 = vpack.c.b16 %v3617, %v3616
        %v3624 = vpack.c.b16 %v3619, %v3618
        %v3625 = vpack.c.b16 %v3620, %v3620
        %vm3630 = vcmask 588800
        %v3632 = vsel %vm3630, %v3571, 0
        %v3635 = vsel %vm3630, %v3572, 0
        %v3638 = vsel %vm3630, %v3573, 0
        %v3641 = vsel %vm3630, %v3574, 0
        %v3644 = vsel %vm3630, %v3575, 0
        %v3647 = vsel %vm3630, %v3576, 0
        %v3650 = vsel %vm3630, %v3577, 0
        %v3653 = vsel %vm3630, %v3578, 0
        %v3656 = vsel %vm3630, %v3579, 0
        %v3659 = vsel %vm3630, %v3580, 0
        %v3662 = vsel %vm3630, %v3581, 0
        %v3665 = vsel %vm3630, %v3582, 0
        %v3668 = vsel %vm3630, %v3583, 0
        %v3671 = vsel %vm3630, %v3584, 0
        %v3674 = vsel %vm3630, %v3585, 0
        %v3677 = vsel %vm3630, %v3586, 0
        %vm3679 = vcmask 1043456
        %v3681 = vsel %vm3679, %v3625, 0
        %3683 = vmatprep.subr.bf16.mxu0 0
        %3684 = vmatpush1.bf16.msra.mxu0 %v3621
        %3685 = vmatprep.subr.bf16.mxu0 0
        %3686 = vmatpush1.bf16.msra.mxu0 %v3622
        %3687 = vmatprep.subr.bf16.mxu0 0
        %3688 = vmatpush1.bf16.msra.mxu0 %v3623
        %3689 = vmatprep.subr.bf16.mxu0 0
        %3690 = vmatpush1.bf16.msra.mxu0 %v3624
        %3691 = vmatprep.subr.bf16.mxu0 0
        %3692 = vmatpush1.bf16.msra.mxu0 %v3681
        %3693 = vmatprep.subr.bf16.mxu0 0
        %3694 = vmatpush1.bf16.msra.mxu0 0
        %3695 = vmatprep.subr.bf16.mxu0 0
        %3696 = vmatpush1.bf16.msra.mxu0 0
        %3697 = vmatprep.subr.bf16.mxu0 0
        %3698 = vmatpush1.bf16.msra.mxu0 0
        %3699 = vmatprep.subr.bf16.mxu0 0
        %3700 = vmatpush1.bf16.msra.mxu0 0
        %3701 = vmatprep.subr.bf16.mxu0 0
        %3702 = vmatpush1.bf16.msra.mxu0 0
        %3703 = vmatprep.subr.bf16.mxu0 0
        %3704 = vmatpush1.bf16.msra.mxu0 0
        %3705 = vmatprep.subr.bf16.mxu0 0
        %3706 = vmatpush1.bf16.msra.mxu0 0
        %3707 = vmatprep.subr.bf16.mxu0 0
        %3708 = vmatpush1.bf16.msra.mxu0 0
        %3709 = vmatprep.subr.bf16.mxu0 0
        %3710 = vmatpush1.bf16.msra.mxu0 0
        %3711 = vmatprep.subr.bf16.mxu0 0
        %3712 = vmatpush1.bf16.msra.mxu0 0
        %3713 = vmatprep.subr.bf16.mxu0 0
        %3714 = vmatpush1.bf16.msra.mxu0 0
        %3715 = vmatprep.mubr.bf16.mxu0 0
        %3716 = vmatmul.mubr.bf16.gmra.mrb[0].mxu0 %v3632
        %v3717 = vpop.f32.mrb[0].mxu0
        %v3718 = vadd.f32 %v3601, %v3717
        %v3719 = vpop.f32.mrb[0].mxu0
        %v3720 = vpop.f32.mrb[0].mxu0
        %v3721 = vadd.f32 %v3601, %v3720
        %v3722 = vpop.f32.mrb[0].mxu0
        %3723 = vmatprep.mubr.bf16.mxu0 0
        %3724 = vmatmul.mubr.bf16.gmra.mrb[0].mxu0 %v3635
        %v3725 = vpop.f32.mrb[0].mxu0
        %v3726 = vadd.f32 %v3601, %v3725
        %v3727 = vpop.f32.mrb[0].mxu0
        %v3728 = vpop.f32.mrb[0].mxu0
        %v3729 = vadd.f32 %v3601, %v3728
        %v3730 = vpop.f32.mrb[0].mxu0
        %3731 = vmatprep.mubr.bf16.mxu0 0
        %3732 = vmatmul.mubr.bf16.gmra.mrb[0].mxu0 %v3638
        %v3733 = vpop.f32.mrb[0].mxu0
        %v3734 = vadd.f32 %v3601, %v3733
        %v3735 = vpop.f32.mrb[0].mxu0
        %v3736 = vpop.f32.mrb[0].mxu0
        %v3737 = vadd.f32 %v3601, %v3736
        %v3738 = vpop.f32.mrb[0].mxu0
        %3739 = vmatprep.mubr.bf16.mxu0 0
        %3740 = vmatmul.mubr.bf16.gmra.mrb[0].mxu0 %v3641
        %v3741 = vpop.f32.mrb[0].mxu0
        %v3742 = vadd.f32 %v3601, %v3741
        %v3743 = vpop.f32.mrb[0].mxu0
        %v3744 = vpop.f32.mrb[0].mxu0
        %v3745 = vadd.f32 %v3601, %v3744
        %v3746 = vpop.f32.mrb[0].mxu0
        %3747 = vmatprep.mubr.bf16.mxu0 0
        %3748 = vmatmul.mubr.bf16.gmra.mrb[0].mxu0 %v3644
        %v3749 = vpop.f32.mrb[0].mxu0
        %v3750 = vadd.f32 %v3601, %v3749
        %v3751 = vpop.f32.mrb[0].mxu0
        %v3752 = vpop.f32.mrb[0].mxu0
        %v3753 = vadd.f32 %v3601, %v3752
        %v3754 = vpop.f32.mrb[0].mxu0
        %3755 = vmatprep.mubr.bf16.mxu0 0
        %3756 = vmatmul.mubr.bf16.gmra.mrb[0].mxu0 %v3647
        %v3757 = vpop.f32.mrb[0].mxu0
        %v3758 = vadd.f32 %v3601, %v3757
        %v3759 = vpop.f32.mrb[0].mxu0
        %v3760 = vpop.f32.mrb[0].mxu0
        %v3761 = vadd.f32 %v3601, %v3760
        %v3762 = vpop.f32.mrb[0].mxu0
        %3763 = vmatprep.mubr.bf16.mxu0 0
        %3764 = vmatmul.mubr.bf16.gmra.mrb[0].mxu0 %v3650
        %v3765 = vpop.f32.mrb[0].mxu0
        %v3766 = vadd.f32 %v3601, %v3765
        %v3767 = vpop.f32.mrb[0].mxu0
        %v3768 = vpop.f32.mrb[0].mxu0
        %v3769 = vadd.f32 %v3601, %v3768
        %v3770 = vpop.f32.mrb[0].mxu0
        %3771 = vmatprep.mubr.bf16.mxu0 0
        %3772 = vmatmul.mubr.bf16.gmra.mrb[0].mxu0 %v3653
        %v3773 = vpop.f32.mrb[0].mxu0
        %v3774 = vadd.f32 %v3601, %v3773
        %v3775 = vpop.f32.mrb[0].mxu0
        %v3776 = vpop.f32.mrb[0].mxu0
        %v3777 = vadd.f32 %v3601, %v3776
        %v3778 = vpop.f32.mrb[0].mxu0
        %3779 = vmatprep.mubr.bf16.mxu0 0
        %3780 = vmatmul.mubr.bf16.gmra.mrb[0].mxu0 %v3656
        %v3781 = vpop.f32.mrb[0].mxu0
        %v3782 = vadd.f32 %v3601, %v3781
        %v3783 = vpop.f32.mrb[0].mxu0
        %v3784 = vpop.f32.mrb[0].mxu0
        %v3785 = vadd.f32 %v3601, %v3784
        %v3786 = vpop.f32.mrb[0].mxu0
        %3787 = vmatprep.mubr.bf16.mxu0 0
        %3788 = vmatmul.mubr.bf16.gmra.mrb[0].mxu0 %v3659
        %v3789 = vpop.f32.mrb[0].mxu0
        %v3790 = vadd.f32 %v3601, %v3789
        %v3791 = vpop.f32.mrb[0].mxu0
        %v3792 = vpop.f32.mrb[0].mxu0
        %v3793 = vadd.f32 %v3601, %v3792
        %v3794 = vpop.f32.mrb[0].mxu0
        %3795 = vmatprep.mubr.bf16.mxu0 0
        %3796 = vmatmul.mubr.bf16.gmra.mrb[0].mxu0 %v3662
        %v3797 = vpop.f32.mrb[0].mxu0
        %v3798 = vadd.f32 %v3601, %v3797
        %v3799 = vpop.f32.mrb[0].mxu0
        %v3800 = vpop.f32.mrb[0].mxu0
        %v3801 = vadd.f32 %v3601, %v3800
        %v3802 = vpop.f32.mrb[0].mxu0
        %3803 = vmatprep.mubr.bf16.mxu0 0
        %3804 = vmatmul.mubr.bf16.gmra.mrb[0].mxu0 %v3665
        %v3805 = vpop.f32.mrb[0].mxu0
        %v3806 = vadd.f32 %v3601, %v3805
        %v3807 = vpop.f32.mrb[0].mxu0
        %v3808 = vpop.f32.mrb[0].mxu0
        %v3809 = vadd.f32 %v3601, %v3808
        %v3810 = vpop.f32.mrb[0].mxu0
        %3811 = vmatprep.mubr.bf16.mxu0 0
        %3812 = vmatmul.mubr.bf16.gmra.mrb[0].mxu0 %v3668
        %v3813 = vpop.f32.mrb[0].mxu0
        %v3814 = vadd.f32 %v3601, %v3813
        %v3815 = vpop.f32.mrb[0].mxu0
        %v3816 = vpop.f32.mrb[0].mxu0
        %v3817 = vadd.f32 %v3601, %v3816
        %v3818 = vpop.f32.mrb[0].mxu0
        %3819 = vmatprep.mubr.bf16.mxu0 0
        %3820 = vmatmul.mubr.bf16.gmra.mrb[0].mxu0 %v3671
        %v3821 = vpop.f32.mrb[0].mxu0
        %v3822 = vadd.f32 %v3601, %v3821
        %v3823 = vpop.f32.mrb[0].mxu0
        %v3824 = vpop.f32.mrb[0].mxu0
        %v3825 = vadd.f32 %v3601, %v3824
        %v3826 = vpop.f32.mrb[0].mxu0
        %3827 = vmatprep.mubr.bf16.mxu0 0
        %3828 = vmatmul.mubr.bf16.gmra.mrb[0].mxu0 %v3674
        %v3829 = vpop.f32.mrb[0].mxu0
        %v3830 = vadd.f32 %v3601, %v3829
        %v3831 = vpop.f32.mrb[0].mxu0
        %v3832 = vpop.f32.mrb[0].mxu0
        %v3833 = vadd.f32 %v3601, %v3832
        %v3834 = vpop.f32.mrb[0].mxu0
        %3835 = vmatprep.mubr.bf16.mxu0 0
        %3836 = vmatmul.mubr.bf16.gmra.mrb[0].mxu0 %v3677
        %v3837 = vpop.f32.mrb[0].mxu0
        %v3838 = vadd.f32 %v3601, %v3837
        %v3839 = vpop.f32.mrb[0].mxu0
        %v3840 = vpop.f32.mrb[0].mxu0
        %v3841 = vadd.f32 %v3601, %v3840
        %v3842 = vpop.f32.mrb[0].mxu0
        %3843 = vdwg.mxu0
        %v3844 = vmax.f32 %v3718, 0.0
        %v3845 = vmax.f32 %v3721, 0.0
        %v3846 = vmax.f32 %v3726, 0.0
        %v3847 = vmax.f32 %v3729, 0.0
        %v3848 = vmax.f32 %v3734, 0.0
        %v3849 = vmax.f32 %v3737, 0.0
        %v3850 = vmax.f32 %v3742, 0.0
        %v3851 = vmax.f32 %v3745, 0.0
        %v3852 = vmax.f32 %v3750, 0.0
        %v3853 = vmax.f32 %v3753, 0.0
        %v3854 = vmax.f32 %v3758, 0.0
        %v3855 = vmax.f32 %v3761, 0.0
        %v3856 = vmax.f32 %v3766, 0.0
        %v3857 = vmax.f32 %v3769, 0.0
        %v3858 = vmax.f32 %v3774, 0.0
        %v3859 = vmax.f32 %v3777, 0.0
        %v3860 = vmax.f32 %v3782, 0.0
        %v3861 = vmax.f32 %v3785, 0.0
        %v3862 = vmax.f32 %v3790, 0.0
        %v3863 = vmax.f32 %v3793, 0.0
        %v3864 = vmax.f32 %v3798, 0.0
        %v3865 = vmax.f32 %v3801, 0.0
        %v3866 = vmax.f32 %v3806, 0.0
        %v3867 = vmax.f32 %v3809, 0.0
        %v3868 = vmax.f32 %v3814, 0.0
        %v3869 = vmax.f32 %v3817, 0.0
        %v3870 = vmax.f32 %v3822, 0.0
        %v3871 = vmax.f32 %v3825, 0.0
        %v3872 = vmax.f32 %v3830, 0.0
        %v3873 = vmax.f32 %v3833, 0.0
        %v3874 = vmax.f32 %v3838, 0.0
        %v3875 = vmax.f32 %v3841, 0.0
        %v3876 = vpack.c.bf16 %v3845, %v3844
        %v3877 = vpack.c.bf16 %v3847, %v3846
        %v3878 = vpack.c.bf16 %v3849, %v3848
        %v3879 = vpack.c.bf16 %v3851, %v3850
        %v3880 = vpack.c.bf16 %v3853, %v3852
        %v3881 = vpack.c.bf16 %v3855, %v3854
        %v3882 = vpack.c.bf16 %v3857, %v3856
        %v3883 = vpack.c.bf16 %v3859, %v3858
        %v3884 = vpack.c.bf16 %v3861, %v3860
        %v3885 = vpack.c.bf16 %v3863, %v3862
        %v3886 = vpack.c.bf16 %v3865, %v3864
        %v3887 = vpack.c.bf16 %v3867, %v3866
        %v3888 = vpack.c.bf16 %v3869, %v3868
        %v3889 = vpack.c.bf16 %v3871, %v3870
        %v3890 = vpack.c.bf16 %v3873, %v3872
        %v3891 = vpack.c.bf16 %v3875, %v3874
        %v3908 = vunpack.c.l.b16 %v3876
        %v3909 = vunpack.c.h.b16 %v3876
        %v3910 = vunpack.c.l.b16 %v3877
        %v3911 = vunpack.c.h.b16 %v3877
        %v3912 = vunpack.c.l.b16 %v3878
        %v3913 = vunpack.c.h.b16 %v3878
        %v3914 = vunpack.c.l.b16 %v3879
        %v3915 = vunpack.c.h.b16 %v3879
        %v3916 = vunpack.c.l.b16 %v3880
        %v3917 = vunpack.c.h.b16 %v3880
        %v3918 = vunpack.c.l.b16 %v3881
        %v3919 = vunpack.c.h.b16 %v3881
        %v3920 = vunpack.c.l.b16 %v3882
        %v3921 = vunpack.c.h.b16 %v3882
        %v3922 = vunpack.c.l.b16 %v3883
        %v3923 = vunpack.c.h.b16 %v3883
        %v3924 = vunpack.c.l.b16 %v3884
        %v3925 = vunpack.c.h.b16 %v3884
        %v3926 = vunpack.c.l.b16 %v3885
        %v3927 = vunpack.c.h.b16 %v3885
        %v3928 = vunpack.c.l.b16 %v3886
        %v3929 = vunpack.c.h.b16 %v3886
        %v3930 = vunpack.c.l.b16 %v3887
        %v3931 = vunpack.c.h.b16 %v3887
        %v3932 = vunpack.c.l.b16 %v3888
        %v3933 = vunpack.c.h.b16 %v3888
        %v3934 = vunpack.c.l.b16 %v3889
        %v3935 = vunpack.c.h.b16 %v3889
        %v3936 = vunpack.c.l.b16 %v3890
        %v3937 = vunpack.c.h.b16 %v3890
        %v3938 = vunpack.c.l.b16 %v3891
        %v3939 = vunpack.c.h.b16 %v3891
        %v3940 = vpack.c.b16 %v3908, %v3908
        %v3941 = vpack.c.b16 %v3909, %v3909
        %v3942 = vpack.c.b16 %v3910, %v3910
        %v3943 = vpack.c.b16 %v3911, %v3911
        %v3944 = vpack.c.b16 %v3912, %v3912
        %v3945 = vpack.c.b16 %v3913, %v3913
        %v3946 = vpack.c.b16 %v3914, %v3914
        %v3947 = vpack.c.b16 %v3915, %v3915
        %v3948 = vpack.c.b16 %v3916, %v3916
        %v3949 = vpack.c.b16 %v3917, %v3917
        %v3950 = vpack.c.b16 %v3918, %v3918
        %v3951 = vpack.c.b16 %v3919, %v3919
        %v3952 = vpack.c.b16 %v3920, %v3920
        %v3953 = vpack.c.b16 %v3921, %v3921
        %v3954 = vpack.c.b16 %v3922, %v3922
        %v3955 = vpack.c.b16 %v3923, %v3923
        %v3956 = vpack.c.b16 %v3924, %v3924
        %v3957 = vpack.c.b16 %v3925, %v3925
        %v3958 = vpack.c.b16 %v3926, %v3926
        %v3959 = vpack.c.b16 %v3927, %v3927
        %v3960 = vpack.c.b16 %v3928, %v3928
        %v3961 = vpack.c.b16 %v3929, %v3929
        %v3962 = vpack.c.b16 %v3930, %v3930
        %v3963 = vpack.c.b16 %v3931, %v3931
        %v3964 = vpack.c.b16 %v3932, %v3932
        %v3965 = vpack.c.b16 %v3933, %v3933
        %v3966 = vpack.c.b16 %v3934, %v3934
        %v3967 = vpack.c.b16 %v3935, %v3935
        %v3968 = vpack.c.b16 %v3936, %v3936
        %v3969 = vpack.c.b16 %v3937, %v3937
        %v3970 = vpack.c.b16 %v3938, %v3938
        %v3971 = vpack.c.b16 %v3939, %v3939
        %v3973 = vshrl.u32 %v3940, 16
        %v3975 = vrot.slane %v3973, 7
        %v3976 = vshll.u32 %v3940, 16
        %v3978 = vor.u32 %v3975, %v3976
        %v3979 = vrot.slane %v3975, 4
        %v3981 = vshrl.u32 %v3941, 16
        %v3983 = vrot.slane %v3981, 7
        %v3984 = vshll.u32 %v3941, 16
        %v3986 = vor.u32 %v3983, %v3984
        %v3987 = vsel %vm467, %v3979, %v3986
        %v3988 = vrot.slane %v3983, 4
        %v3990 = vshrl.u32 %v3942, 16
        %v3992 = vrot.slane %v3990, 7
        %v3993 = vshll.u32 %v3942, 16
        %v3995 = vor.u32 %v3992, %v3993
        %v3996 = vrot.slane %v3992, 4
        %v3998 = vshrl.u32 %v3943, 16
        %v4000 = vrot.slane %v3998, 7
        %v4001 = vshll.u32 %v3943, 16
        %v4003 = vor.u32 %v4000, %v4001
        %v4004 = vsel %vm467, %v3996, %v4003
        %v4005 = vrot.slane %v4000, 4
        %v4007 = vshrl.u32 %v3944, 16
        %v4009 = vrot.slane %v4007, 7
        %v4010 = vshll.u32 %v3944, 16
        %v4012 = vor.u32 %v4009, %v4010
        %v4013 = vrot.slane %v4009, 4
        %v4015 = vshrl.u32 %v3945, 16
        %v4017 = vrot.slane %v4015, 7
        %v4018 = vshll.u32 %v3945, 16
        %v4020 = vor.u32 %v4017, %v4018
        %v4021 = vsel %vm467, %v4013, %v4020
        %v4022 = vrot.slane %v4017, 4
        %v4024 = vshrl.u32 %v3946, 16
        %v4026 = vrot.slane %v4024, 7
        %v4027 = vshll.u32 %v3946, 16
        %v4029 = vor.u32 %v4026, %v4027
        %v4030 = vrot.slane %v4026, 4
        %v4032 = vshrl.u32 %v3947, 16
        %v4034 = vrot.slane %v4032, 7
        %v4035 = vshll.u32 %v3947, 16
        %v4037 = vor.u32 %v4034, %v4035
        %v4038 = vsel %vm467, %v4030, %v4037
        %v4039 = vrot.slane %v4034, 4
        %v4041 = vshrl.u32 %v3948, 16
        %v4043 = vrot.slane %v4041, 7
        %v4044 = vshll.u32 %v3948, 16
        %v4046 = vor.u32 %v4043, %v4044
        %v4047 = vrot.slane %v4043, 4
        %v4049 = vshrl.u32 %v3949, 16
        %v4051 = vrot.slane %v4049, 7
        %v4052 = vshll.u32 %v3949, 16
        %v4054 = vor.u32 %v4051, %v4052
        %v4055 = vsel %vm467, %v4047, %v4054
        %v4056 = vrot.slane %v4051, 4
        %v4058 = vshrl.u32 %v3950, 16
        %v4060 = vrot.slane %v4058, 7
        %v4061 = vshll.u32 %v3950, 16
        %v4063 = vor.u32 %v4060, %v4061
        %v4064 = vrot.slane %v4060, 4
        %v4066 = vshrl.u32 %v3951, 16
        %v4068 = vrot.slane %v4066, 7
        %v4069 = vshll.u32 %v3951, 16
        %v4071 = vor.u32 %v4068, %v4069
        %v4072 = vsel %vm467, %v4064, %v4071
        %v4073 = vrot.slane %v4068, 4
        %v4075 = vshrl.u32 %v3952, 16
        %v4077 = vrot.slane %v4075, 7
        %v4078 = vshll.u32 %v3952, 16
        %v4080 = vor.u32 %v4077, %v4078
        %v4081 = vrot.slane %v4077, 4
        %v4083 = vshrl.u32 %v3953, 16
        %v4085 = vrot.slane %v4083, 7
        %v4086 = vshll.u32 %v3953, 16
        %v4088 = vor.u32 %v4085, %v4086
        %v4089 = vsel %vm467, %v4081, %v4088
        %v4090 = vrot.slane %v4085, 4
        %v4092 = vshrl.u32 %v3954, 16
        %v4094 = vrot.slane %v4092, 7
        %v4095 = vshll.u32 %v3954, 16
        %v4097 = vor.u32 %v4094, %v4095
        %v4098 = vrot.slane %v4094, 4
        %v4100 = vshrl.u32 %v3955, 16
        %v4102 = vrot.slane %v4100, 7
        %v4103 = vshll.u32 %v3955, 16
        %v4105 = vor.u32 %v4102, %v4103
        %v4106 = vsel %vm467, %v4098, %v4105
        %v4107 = vrot.slane %v4102, 4
        %v4109 = vshrl.u32 %v3956, 16
        %v4111 = vrot.slane %v4109, 7
        %v4112 = vshll.u32 %v3956, 16
        %v4114 = vor.u32 %v4111, %v4112
        %v4115 = vrot.slane %v4111, 4
        %v4117 = vshrl.u32 %v3957, 16
        %v4119 = vrot.slane %v4117, 7
        %v4120 = vshll.u32 %v3957, 16
        %v4122 = vor.u32 %v4119, %v4120
        %v4123 = vsel %vm467, %v4115, %v4122
        %v4124 = vrot.slane %v4119, 4
        %v4126 = vshrl.u32 %v3958, 16
        %v4128 = vrot.slane %v4126, 7
        %v4129 = vshll.u32 %v3958, 16
        %v4131 = vor.u32 %v4128, %v4129
        %v4132 = vrot.slane %v4128, 4
        %v4134 = vshrl.u32 %v3959, 16
        %v4136 = vrot.slane %v4134, 7
        %v4137 = vshll.u32 %v3959, 16
        %v4139 = vor.u32 %v4136, %v4137
        %v4140 = vsel %vm467, %v4132, %v4139
        %v4141 = vrot.slane %v4136, 4
        %v4143 = vshrl.u32 %v3960, 16
        %v4145 = vrot.slane %v4143, 7
        %v4146 = vshll.u32 %v3960, 16
        %v4148 = vor.u32 %v4145, %v4146
        %v4149 = vrot.slane %v4145, 4
        %v4151 = vshrl.u32 %v3961, 16
        %v4153 = vrot.slane %v4151, 7
        %v4154 = vshll.u32 %v3961, 16
        %v4156 = vor.u32 %v4153, %v4154
        %v4157 = vsel %vm467, %v4149, %v4156
        %v4158 = vrot.slane %v4153, 4
        %v4160 = vshrl.u32 %v3962, 16
        %v4162 = vrot.slane %v4160, 7
        %v4163 = vshll.u32 %v3962, 16
        %v4165 = vor.u32 %v4162, %v4163
        %v4166 = vrot.slane %v4162, 4
        %v4168 = vshrl.u32 %v3963, 16
        %v4170 = vrot.slane %v4168, 7
        %v4171 = vshll.u32 %v3963, 16
        %v4173 = vor.u32 %v4170, %v4171
        %v4174 = vsel %vm467, %v4166, %v4173
        %v4175 = vrot.slane %v4170, 4
        %v4177 = vshrl.u32 %v3964, 16
        %v4179 = vrot.slane %v4177, 7
        %v4180 = vshll.u32 %v3964, 16
        %v4182 = vor.u32 %v4179, %v4180
        %v4183 = vrot.slane %v4179, 4
        %v4185 = vshrl.u32 %v3965, 16
        %v4187 = vrot.slane %v4185, 7
        %v4188 = vshll.u32 %v3965, 16
        %v4190 = vor.u32 %v4187, %v4188
        %v4191 = vsel %vm467, %v4183, %v4190
        %v4192 = vrot.slane %v4187, 4
        %v4194 = vshrl.u32 %v3966, 16
        %v4196 = vrot.slane %v4194, 7
        %v4197 = vshll.u32 %v3966, 16
        %v4199 = vor.u32 %v4196, %v4197
        %v4200 = vrot.slane %v4196, 4
        %v4202 = vshrl.u32 %v3967, 16
        %v4204 = vrot.slane %v4202, 7
        %v4205 = vshll.u32 %v3967, 16
        %v4207 = vor.u32 %v4204, %v4205
        %v4208 = vsel %vm467, %v4200, %v4207
        %v4209 = vrot.slane %v4204, 4
        %v4211 = vshrl.u32 %v3968, 16
        %v4213 = vrot.slane %v4211, 7
        %v4214 = vshll.u32 %v3968, 16
        %v4216 = vor.u32 %v4213, %v4214
        %v4217 = vrot.slane %v4213, 4
        %v4219 = vshrl.u32 %v3969, 16
        %v4221 = vrot.slane %v4219, 7
        %v4222 = vshll.u32 %v3969, 16
        %v4224 = vor.u32 %v4221, %v4222
        %v4225 = vsel %vm467, %v4217, %v4224
        %v4226 = vrot.slane %v4221, 4
        %v4228 = vshrl.u32 %v3970, 16
        %v4230 = vrot.slane %v4228, 7
        %v4231 = vshll.u32 %v3970, 16
        %v4233 = vor.u32 %v4230, %v4231
        %v4234 = vrot.slane %v4230, 4
        %v4236 = vshrl.u32 %v3971, 16
        %v4238 = vrot.slane %v4236, 7
        %v4239 = vshll.u32 %v3971, 16
        %v4241 = vor.u32 %v4238, %v4239
        %v4242 = vsel %vm467, %v4234, %v4241
        %v4243 = vrot.slane %v4238, 4
        %s4292 = scalar_lea.vmem [#allocation3], 12
        %v4293 = vld [vmem:[%s4292] sm:$0xf]
        %v4294 = vsel %vm790, %v3978, %v4293
        %4295 = vst [vmem:[%s4292] sm:$0xf] %v4294
        %4296 = vst.msk [vmem:[%s4292 + $0x4] sm:$0xf] %vm197, %v3987
        %v4297 = vld [vmem:[%s4292 + $0x8] sm:$0x1]
        %v4298 = vsel %vm208, %v3988, %v4297
        %4299 = vst [vmem:[%s4292 + $0x8] sm:$0x1] %v4298
        %v4300 = vld [vmem:[%s4292 + $0xc] sm:$0xf]
        %v4301 = vsel %vm790, %v3995, %v4300
        %4302 = vst [vmem:[%s4292 + $0xc] sm:$0xf] %v4301
        %4303 = vst.msk [vmem:[%s4292 + $0x10] sm:$0xf] %vm197, %v4004
        %v4304 = vld [vmem:[%s4292 + $0x14] sm:$0x1]
        %v4305 = vsel %vm208, %v4005, %v4304
        %4306 = vst [vmem:[%s4292 + $0x14] sm:$0x1] %v4305
        %v4307 = vld [vmem:[%s4292 + $0x18] sm:$0xf]
        %v4308 = vsel %vm790, %v4012, %v4307
        %4309 = vst [vmem:[%s4292 + $0x18] sm:$0xf] %v4308
        %4310 = vst.msk [vmem:[%s4292 + $0x1c] sm:$0xf] %vm197, %v4021
        %v4311 = vld [vmem:[%s4292 + $0x20] sm:$0x1]
        %v4312 = vsel %vm208, %v4022, %v4311
        %4313 = vst [vmem:[%s4292 + $0x20] sm:$0x1] %v4312
        %v4314 = vld [vmem:[%s4292 + $0x24] sm:$0xf]
        %v4315 = vsel %vm790, %v4029, %v4314
        %4316 = vst [vmem:[%s4292 + $0x24] sm:$0xf] %v4315
        %4317 = vst.msk [vmem:[%s4292 + $0x28] sm:$0xf] %vm197, %v4038
        %v4318 = vld [vmem:[%s4292 + $0x2c] sm:$0x1]
        %v4319 = vsel %vm208, %v4039, %v4318
        %4320 = vst [vmem:[%s4292 + $0x2c] sm:$0x1] %v4319
        %v4321 = vld [vmem:[%s4292 + $0x30] sm:$0xf]
        %v4322 = vsel %vm790, %v4046, %v4321
        %4323 = vst [vmem:[%s4292 + $0x30] sm:$0xf] %v4322
        %4324 = vst.msk [vmem:[%s4292 + $0x34] sm:$0xf] %vm197, %v4055
        %v4325 = vld [vmem:[%s4292 + $0x38] sm:$0x1]
        %v4326 = vsel %vm208, %v4056, %v4325
        %4327 = vst [vmem:[%s4292 + $0x38] sm:$0x1] %v4326
        %v4328 = vld [vmem:[%s4292 + $0x3c] sm:$0xf]
        %v4329 = vsel %vm790, %v4063, %v4328
        %4330 = vst [vmem:[%s4292 + $0x3c] sm:$0xf] %v4329
        %4331 = vst.msk [vmem:[%s4292 + $0x40] sm:$0xf] %vm197, %v4072
        %v4332 = vld [vmem:[%s4292 + $0x44] sm:$0x1]
        %v4333 = vsel %vm208, %v4073, %v4332
        %4334 = vst [vmem:[%s4292 + $0x44] sm:$0x1] %v4333
        %v4335 = vld [vmem:[%s4292 + $0x48] sm:$0xf]
        %v4336 = vsel %vm790, %v4080, %v4335
        %4337 = vst [vmem:[%s4292 + $0x48] sm:$0xf] %v4336
        %4338 = vst.msk [vmem:[%s4292 + $0x4c] sm:$0xf] %vm197, %v4089
        %v4339 = vld [vmem:[%s4292 + $0x50] sm:$0x1]
        %v4340 = vsel %vm208, %v4090, %v4339
        %4341 = vst [vmem:[%s4292 + $0x50] sm:$0x1] %v4340
        %v4342 = vld [vmem:[%s4292 + $0x54] sm:$0xf]
        %v4343 = vsel %vm790, %v4097, %v4342
        %4344 = vst [vmem:[%s4292 + $0x54] sm:$0xf] %v4343
        %4345 = vst.msk [vmem:[%s4292 + $0x58] sm:$0xf] %vm197, %v4106
        %v4346 = vld [vmem:[%s4292 + $0x5c] sm:$0x1]
        %v4347 = vsel %vm208, %v4107, %v4346
        %4348 = vst [vmem:[%s4292 + $0x5c] sm:$0x1] %v4347
        %v4349 = vld [vmem:[%s4292 + $0x60] sm:$0xf]
        %v4350 = vsel %vm790, %v4114, %v4349
        %4351 = vst [vmem:[%s4292 + $0x60] sm:$0xf] %v4350
        %4352 = vst.msk [vmem:[%s4292 + $0x64] sm:$0xf] %vm197, %v4123
        %v4353 = vld [vmem:[%s4292 + $0x68] sm:$0x1]
        %v4354 = vsel %vm208, %v4124, %v4353
        %4355 = vst [vmem:[%s4292 + $0x68] sm:$0x1] %v4354
        %v4356 = vld [vmem:[%s4292 + $0x6c] sm:$0xf]
        %v4357 = vsel %vm790, %v4131, %v4356
        %4358 = vst [vmem:[%s4292 + $0x6c] sm:$0xf] %v4357
        %4359 = vst.msk [vmem:[%s4292 + $0x70] sm:$0xf] %vm197, %v4140
        %v4360 = vld [vmem:[%s4292 + $0x74] sm:$0x1]
        %v4361 = vsel %vm208, %v4141, %v4360
        %4362 = vst [vmem:[%s4292 + $0x74] sm:$0x1] %v4361
        %v4363 = vld [vmem:[%s4292 + $0x78] sm:$0xf]
        %v4364 = vsel %vm790, %v4148, %v4363
        %4365 = vst [vmem:[%s4292 + $0x78] sm:$0xf] %v4364
        %4366 = vst.msk [vmem:[%s4292 + $0x7c] sm:$0xf] %vm197, %v4157
        %v4367 = vld [vmem:[%s4292 + $0x80] sm:$0x1]
        %v4368 = vsel %vm208, %v4158, %v4367
        %4369 = vst [vmem:[%s4292 + $0x80] sm:$0x1] %v4368
        %v4370 = vld [vmem:[%s4292 + $0x84] sm:$0xf]
        %v4371 = vsel %vm790, %v4165, %v4370
        %4372 = vst [vmem:[%s4292 + $0x84] sm:$0xf] %v4371
        %4373 = vst.msk [vmem:[%s4292 + $0x88] sm:$0xf] %vm197, %v4174
        %v4374 = vld [vmem:[%s4292 + $0x8c] sm:$0x1]
        %v4375 = vsel %vm208, %v4175, %v4374
        %4376 = vst [vmem:[%s4292 + $0x8c] sm:$0x1] %v4375
        %v4377 = vld [vmem:[%s4292 + $0x90] sm:$0xf]
        %v4378 = vsel %vm790, %v4182, %v4377
        %4379 = vst [vmem:[%s4292 + $0x90] sm:$0xf] %v4378
        %4380 = vst.msk [vmem:[%s4292 + $0x94] sm:$0xf] %vm197, %v4191
        %v4381 = vld [vmem:[%s4292 + $0x98] sm:$0x1]
        %v4382 = vsel %vm208, %v4192, %v4381
        %4383 = vst [vmem:[%s4292 + $0x98] sm:$0x1] %v4382
        %v4384 = vld [vmem:[%s4292 + $0x9c] sm:$0xf]
        %v4385 = vsel %vm790, %v4199, %v4384
        %4386 = vst [vmem:[%s4292 + $0x9c] sm:$0xf] %v4385
        %4387 = vst.msk [vmem:[%s4292 + $0xa0] sm:$0xf] %vm197, %v4208
        %v4388 = vld [vmem:[%s4292 + $0xa4] sm:$0x1]
        %v4389 = vsel %vm208, %v4209, %v4388
        %4390 = vst [vmem:[%s4292 + $0xa4] sm:$0x1] %v4389
        %v4391 = vld [vmem:[%s4292 + $0xa8] sm:$0xf]
        %v4392 = vsel %vm790, %v4216, %v4391
        %4393 = vst [vmem:[%s4292 + $0xa8] sm:$0xf] %v4392
        %4394 = vst.msk [vmem:[%s4292 + $0xac] sm:$0xf] %vm197, %v4225
        %v4395 = vld [vmem:[%s4292 + $0xb0] sm:$0x1]
        %v4396 = vsel %vm208, %v4226, %v4395
        %4397 = vst [vmem:[%s4292 + $0xb0] sm:$0x1] %v4396
        %v4398 = vld [vmem:[%s4292 + $0xb4] sm:$0xf]
        %v4399 = vsel %vm790, %v4233, %v4398
        %4400 = vst [vmem:[%s4292 + $0xb4] sm:$0xf] %v4399
        %4401 = vst.msk [vmem:[%s4292 + $0xb8] sm:$0xf] %vm197, %v4242
        %v4402 = vld [vmem:[%s4292 + $0xbc] sm:$0x1]
        %v4403 = vsel %vm208, %v4243, %v4402
        %4404 = vst [vmem:[%s4292 + $0xbc] sm:$0x1] %v4403
        %v4405 = vld [vmem:[#allocation3] sm:$0xf]
        %v4406 = vld [vmem:[#allocation3 + $0x4] sm:$0xf]
        %v4407 = vld [vmem:[#allocation3 + $0xc] sm:$0xf]
        %v4408 = vld [vmem:[#allocation3 + $0x10] sm:$0xf]
        %v4409 = vld [vmem:[#allocation3 + $0x18] sm:$0xf]
        %v4410 = vld [vmem:[#allocation3 + $0x1c] sm:$0xf]
        %v4411 = vld [vmem:[#allocation3 + $0x24] sm:$0xf]
        %v4412 = vld [vmem:[#allocation3 + $0x28] sm:$0xf]
        %v4413 = vld [vmem:[#allocation3 + $0x30] sm:$0xf]
        %v4414 = vld [vmem:[#allocation3 + $0x34] sm:$0xf]
        %v4415 = vld [vmem:[#allocation3 + $0x3c] sm:$0xf]
        %v4416 = vld [vmem:[#allocation3 + $0x40] sm:$0xf]
        %v4417 = vld [vmem:[#allocation3 + $0x48] sm:$0xf]
        %v4418 = vld [vmem:[#allocation3 + $0x4c] sm:$0xf]
        %v4419 = vld [vmem:[#allocation3 + $0x54] sm:$0xf]
        %v4420 = vld [vmem:[#allocation3 + $0x58] sm:$0xf]
        %v4421 = vld [vmem:[#allocation3 + $0x60] sm:$0xf]
        %v4422 = vld [vmem:[#allocation3 + $0x64] sm:$0xf]
        %v4423 = vld [vmem:[#allocation3 + $0x6c] sm:$0xf]
        %v4424 = vld [vmem:[#allocation3 + $0x70] sm:$0xf]
        %v4425 = vld [vmem:[#allocation3 + $0x78] sm:$0xf]
        %v4426 = vld [vmem:[#allocation3 + $0x7c] sm:$0xf]
        %v4427 = vld [vmem:[#allocation3 + $0x84] sm:$0xf]
        %v4428 = vld [vmem:[#allocation3 + $0x88] sm:$0xf]
        %v4429 = vld [vmem:[#allocation3 + $0x90] sm:$0xf]
        %v4430 = vld [vmem:[#allocation3 + $0x94] sm:$0xf]
        %v4431 = vld [vmem:[#allocation3 + $0x9c] sm:$0xf]
        %v4432 = vld [vmem:[#allocation3 + $0xa0] sm:$0xf]
        %v4433 = vld [vmem:[#allocation3 + $0xa8] sm:$0xf]
        %v4434 = vld [vmem:[#allocation3 + $0xac] sm:$0xf]
        %v4435 = vld [vmem:[#allocation3 + $0xb4] sm:$0xf]
        %v4436 = vld [vmem:[#allocation3 + $0xb8] sm:$0xf]
        %v4469 = vunpack.c.l.b16 %v4405
        %v4470 = vunpack.c.l.b16 %v4406
        %v4471 = vunpack.c.l.b16 %v4407
        %v4472 = vunpack.c.l.b16 %v4408
        %v4473 = vunpack.c.l.b16 %v4409
        %v4474 = vunpack.c.l.b16 %v4410
        %v4475 = vunpack.c.l.b16 %v4411
        %v4476 = vunpack.c.l.b16 %v4412
        %v4477 = vunpack.c.l.b16 %v4413
        %v4478 = vunpack.c.l.b16 %v4414
        %v4479 = vunpack.c.l.b16 %v4415
        %v4480 = vunpack.c.l.b16 %v4416
        %v4481 = vunpack.c.l.b16 %v4417
        %v4482 = vunpack.c.l.b16 %v4418
        %v4483 = vunpack.c.l.b16 %v4419
        %v4484 = vunpack.c.l.b16 %v4420
        %v4485 = vunpack.c.l.b16 %v4421
        %v4486 = vunpack.c.l.b16 %v4422
        %v4487 = vunpack.c.l.b16 %v4423
        %v4488 = vunpack.c.l.b16 %v4424
        %v4489 = vunpack.c.l.b16 %v4425
        %v4490 = vunpack.c.l.b16 %v4426
        %v4491 = vunpack.c.l.b16 %v4427
        %v4492 = vunpack.c.l.b16 %v4428
        %v4493 = vunpack.c.l.b16 %v4429
        %v4494 = vunpack.c.l.b16 %v4430
        %v4495 = vunpack.c.l.b16 %v4431
        %v4496 = vunpack.c.l.b16 %v4432
        %v4497 = vunpack.c.l.b16 %v4433
        %v4498 = vunpack.c.l.b16 %v4434
        %v4499 = vunpack.c.l.b16 %v4435
        %v4500 = vunpack.c.l.b16 %v4436
        %v4501 = vpack.c.b16 %v4470, %v4469
        %v4502 = vpack.c.b16 %v4472, %v4471
        %v4503 = vpack.c.b16 %v4474, %v4473
        %v4504 = vpack.c.b16 %v4476, %v4475
        %v4505 = vpack.c.b16 %v4478, %v4477
        %v4506 = vpack.c.b16 %v4480, %v4479
        %v4507 = vpack.c.b16 %v4482, %v4481
        %v4508 = vpack.c.b16 %v4484, %v4483
        %v4509 = vpack.c.b16 %v4486, %v4485
        %v4510 = vpack.c.b16 %v4488, %v4487
        %v4511 = vpack.c.b16 %v4490, %v4489
        %v4512 = vpack.c.b16 %v4492, %v4491
        %v4513 = vpack.c.b16 %v4494, %v4493
        %v4514 = vpack.c.b16 %v4496, %v4495
        %v4515 = vpack.c.b16 %v4498, %v4497
        %v4516 = vpack.c.b16 %v4500, %v4499
        %4533 = vst.msk [vmem:[#allocation4] sm:$0xff] %vm1031, %v4501
        %4534 = vst.msk [vmem:[#allocation4 + $0x8] sm:$0xff] %vm1031, %v4502
        %4535 = vst.msk [vmem:[#allocation4 + $0x10] sm:$0xff] %vm1031, %v4503
        %4536 = vst.msk [vmem:[#allocation4 + $0x18] sm:$0xff] %vm1031, %v4504
        %4537 = vst.msk [vmem:[#allocation4 + $0x20] sm:$0xff] %vm1031, %v4505
        %4538 = vst.msk [vmem:[#allocation4 + $0x28] sm:$0xff] %vm1031, %v4506
        %4539 = vst.msk [vmem:[#allocation4 + $0x30] sm:$0xff] %vm1031, %v4507
        %4540 = vst.msk [vmem:[#allocation4 + $0x38] sm:$0xff] %vm1031, %v4508
        %4541 = vst.msk [vmem:[#allocation4 + $0x40] sm:$0xff] %vm1031, %v4509
        %4542 = vst.msk [vmem:[#allocation4 + $0x48] sm:$0xff] %vm1031, %v4510
        %4543 = vst.msk [vmem:[#allocation4 + $0x50] sm:$0xff] %vm1031, %v4511
        %4544 = vst.msk [vmem:[#allocation4 + $0x58] sm:$0xff] %vm1031, %v4512
        %4545 = vst.msk [vmem:[#allocation4 + $0x60] sm:$0xff] %vm1031, %v4513
        %4546 = vst.msk [vmem:[#allocation4 + $0x68] sm:$0xff] %vm1031, %v4514
        %4547 = vst.msk [vmem:[#allocation4 + $0x70] sm:$0xff] %vm1031, %v4515
        %4548 = vst.msk [vmem:[#allocation4 + $0x78] sm:$0xff] %vm1031, %v4516
        %v4549 = vld [vmem:[#allocation3] sm:$0xf]
        %v4550 = vld [vmem:[#allocation3 + $0x4] sm:$0xf]
        %v4551 = vld [vmem:[#allocation3 + $0x8] sm:$0x1]
        %v4552 = vld [vmem:[#allocation3 + $0xc] sm:$0xf]
        %v4553 = vld [vmem:[#allocation3 + $0x10] sm:$0xf]
        %v4554 = vld [vmem:[#allocation3 + $0x14] sm:$0x1]
        %v4555 = vld [vmem:[#allocation3 + $0x18] sm:$0xf]
        %v4556 = vld [vmem:[#allocation3 + $0x1c] sm:$0xf]
        %v4557 = vld [vmem:[#allocation3 + $0x20] sm:$0x1]
        %v4558 = vld [vmem:[#allocation3 + $0x24] sm:$0xf]
        %v4559 = vld [vmem:[#allocation3 + $0x28] sm:$0xf]
        %v4560 = vld [vmem:[#allocation3 + $0x2c] sm:$0x1]
        %v4561 = vld [vmem:[#allocation3 + $0x30] sm:$0xf]
        %v4562 = vld [vmem:[#allocation3 + $0x34] sm:$0xf]
        %v4563 = vld [vmem:[#allocation3 + $0x38] sm:$0x1]
        %v4564 = vld [vmem:[#allocation3 + $0x3c] sm:$0xf]
        %v4565 = vld [vmem:[#allocation3 + $0x40] sm:$0xf]
        %v4566 = vld [vmem:[#allocation3 + $0x44] sm:$0x1]
        %v4567 = vld [vmem:[#allocation3 + $0x48] sm:$0xf]
        %v4568 = vld [vmem:[#allocation3 + $0x4c] sm:$0xf]
        %v4569 = vld [vmem:[#allocation3 + $0x50] sm:$0x1]
        %v4570 = vld [vmem:[#allocation3 + $0x54] sm:$0xf]
        %v4571 = vld [vmem:[#allocation3 + $0x58] sm:$0xf]
        %v4572 = vld [vmem:[#allocation3 + $0x5c] sm:$0x1]
        %v4573 = vld [vmem:[#allocation3 + $0x60] sm:$0xf]
        %v4574 = vld [vmem:[#allocation3 + $0x64] sm:$0xf]
        %v4575 = vld [vmem:[#allocation3 + $0x68] sm:$0x1]
        %v4576 = vld [vmem:[#allocation3 + $0x6c] sm:$0xf]
        %v4577 = vld [vmem:[#allocation3 + $0x70] sm:$0xf]
        %v4578 = vld [vmem:[#allocation3 + $0x74] sm:$0x1]
        %v4579 = vld [vmem:[#allocation3 + $0x78] sm:$0xf]
        %v4580 = vld [vmem:[#allocation3 + $0x7c] sm:$0xf]
        %v4581 = vld [vmem:[#allocation3 + $0x80] sm:$0x1]
        %v4582 = vld [vmem:[#allocation3 + $0x84] sm:$0xf]
        %v4583 = vld [vmem:[#allocation3 + $0x88] sm:$0xf]
        %v4584 = vld [vmem:[#allocation3 + $0x8c] sm:$0x1]
        %v4585 = vld [vmem:[#allocation3 + $0x90] sm:$0xf]
        %v4586 = vld [vmem:[#allocation3 + $0x94] sm:$0xf]
        %v4587 = vld [vmem:[#allocation3 + $0x98] sm:$0x1]
        %v4588 = vld [vmem:[#allocation3 + $0x9c] sm:$0xf]
        %v4589 = vld [vmem:[#allocation3 + $0xa0] sm:$0xf]
        %v4590 = vld [vmem:[#allocation3 + $0xa4] sm:$0x1]
        %v4591 = vld [vmem:[#allocation3 + $0xa8] sm:$0xf]
        %v4592 = vld [vmem:[#allocation3 + $0xac] sm:$0xf]
        %v4593 = vld [vmem:[#allocation3 + $0xb0] sm:$0x1]
        %v4594 = vld [vmem:[#allocation3 + $0xb4] sm:$0xf]
        %v4595 = vld [vmem:[#allocation3 + $0xb8] sm:$0xf]
        %v4596 = vld [vmem:[#allocation3 + $0xbc] sm:$0x1]
        %v4645 = vunpack.c.l.b16 %v4549
        %v4646 = vunpack.c.l.b16 %v4550
        %v4647 = vunpack.c.l.b16 %v4551
        %v4648 = vunpack.c.l.b16 %v4552
        %v4649 = vunpack.c.l.b16 %v4553
        %v4650 = vunpack.c.l.b16 %v4554
        %v4651 = vunpack.c.l.b16 %v4555
        %v4652 = vunpack.c.l.b16 %v4556
        %v4653 = vunpack.c.l.b16 %v4557
        %v4654 = vunpack.c.l.b16 %v4558
        %v4655 = vunpack.c.l.b16 %v4559
        %v4656 = vunpack.c.l.b16 %v4560
        %v4657 = vunpack.c.l.b16 %v4561
        %v4658 = vunpack.c.l.b16 %v4562
        %v4659 = vunpack.c.l.b16 %v4563
        %v4660 = vunpack.c.l.b16 %v4564
        %v4661 = vunpack.c.l.b16 %v4565
        %v4662 = vunpack.c.l.b16 %v4566
        %v4663 = vunpack.c.l.b16 %v4567
        %v4664 = vunpack.c.l.b16 %v4568
        %v4665 = vunpack.c.l.b16 %v4569
        %v4666 = vunpack.c.l.b16 %v4570
        %v4667 = vunpack.c.l.b16 %v4571
        %v4668 = vunpack.c.l.b16 %v4572
        %v4669 = vunpack.c.l.b16 %v4573
        %v4670 = vunpack.c.l.b16 %v4574
        %v4671 = vunpack.c.l.b16 %v4575
        %v4672 = vunpack.c.l.b16 %v4576
        %v4673 = vunpack.c.l.b16 %v4577
        %v4674 = vunpack.c.l.b16 %v4578
        %v4675 = vunpack.c.l.b16 %v4579
        %v4676 = vunpack.c.l.b16 %v4580
        %v4677 = vunpack.c.l.b16 %v4581
        %v4678 = vunpack.c.l.b16 %v4582
        %v4679 = vunpack.c.l.b16 %v4583
        %v4680 = vunpack.c.l.b16 %v4584
        %v4681 = vunpack.c.l.b16 %v4585
        %v4682 = vunpack.c.l.b16 %v4586
        %v4683 = vunpack.c.l.b16 %v4587
        %v4684 = vunpack.c.l.b16 %v4588
        %v4685 = vunpack.c.l.b16 %v4589
        %v4686 = vunpack.c.l.b16 %v4590
        %v4687 = vunpack.c.l.b16 %v4591
        %v4688 = vunpack.c.l.b16 %v4592
        %v4689 = vunpack.c.l.b16 %v4593
        %v4690 = vunpack.c.l.b16 %v4594
        %v4691 = vunpack.c.l.b16 %v4595
        %v4692 = vunpack.c.l.b16 %v4596
        %v4693 = vpack.c.b16 %v4646, %v4645
        %v4694 = vpack.c.b16 %v4647, %v4647
        %v4695 = vpack.c.b16 %v4649, %v4648
        %v4696 = vpack.c.b16 %v4650, %v4650
        %v4697 = vpack.c.b16 %v4652, %v4651
        %v4698 = vpack.c.b16 %v4653, %v4653
        %v4699 = vpack.c.b16 %v4655, %v4654
        %v4700 = vpack.c.b16 %v4656, %v4656
        %v4701 = vpack.c.b16 %v4658, %v4657
        %v4702 = vpack.c.b16 %v4659, %v4659
        %v4703 = vpack.c.b16 %v4661, %v4660
        %v4704 = vpack.c.b16 %v4662, %v4662
        %v4705 = vpack.c.b16 %v4664, %v4663
        %v4706 = vpack.c.b16 %v4665, %v4665
        %v4707 = vpack.c.b16 %v4667, %v4666
        %v4708 = vpack.c.b16 %v4668, %v4668
        %v4709 = vpack.c.b16 %v4670, %v4669
        %v4710 = vpack.c.b16 %v4671, %v4671
        %v4711 = vpack.c.b16 %v4673, %v4672
        %v4712 = vpack.c.b16 %v4674, %v4674
        %v4713 = vpack.c.b16 %v4676, %v4675
        %v4714 = vpack.c.b16 %v4677, %v4677
        %v4715 = vpack.c.b16 %v4679, %v4678
        %v4716 = vpack.c.b16 %v4680, %v4680
        %v4717 = vpack.c.b16 %v4682, %v4681
        %v4718 = vpack.c.b16 %v4683, %v4683
        %v4719 = vpack.c.b16 %v4685, %v4684
        %v4720 = vpack.c.b16 %v4686, %v4686
        %v4721 = vpack.c.b16 %v4688, %v4687
        %v4722 = vpack.c.b16 %v4689, %v4689
        %v4723 = vpack.c.b16 %v4691, %v4690
        %v4724 = vpack.c.b16 %v4692, %v4692
        %v4726 = vshrl.u32 %v4693, 16
        %v4728 = vshll.u32 %v4693, 16
        %v4730 = vrot.slane %v4728, 1
        %v4731 = vor.u32 %v4726, %v4730
        %v4733 = vshll.u32 %v4694, 16
        %v4735 = vrot.slane %v4733, 1
        %v4736 = vsel %vm1224, %v4731, %v4735
        %v4738 = vshrl.u32 %v4695, 16
        %v4740 = vshll.u32 %v4695, 16
        %v4742 = vrot.slane %v4740, 1
        %v4743 = vor.u32 %v4738, %v4742
        %v4745 = vshll.u32 %v4696, 16
        %v4747 = vrot.slane %v4745, 1
        %v4748 = vsel %vm1224, %v4743, %v4747
        %v4750 = vshrl.u32 %v4697, 16
        %v4752 = vshll.u32 %v4697, 16
        %v4754 = vrot.slane %v4752, 1
        %v4755 = vor.u32 %v4750, %v4754
        %v4757 = vshll.u32 %v4698, 16
        %v4759 = vrot.slane %v4757, 1
        %v4760 = vsel %vm1224, %v4755, %v4759
        %v4762 = vshrl.u32 %v4699, 16
        %v4764 = vshll.u32 %v4699, 16
        %v4766 = vrot.slane %v4764, 1
        %v4767 = vor.u32 %v4762, %v4766
        %v4769 = vshll.u32 %v4700, 16
        %v4771 = vrot.slane %v4769, 1
        %v4772 = vsel %vm1224, %v4767, %v4771
        %v4774 = vshrl.u32 %v4701, 16
        %v4776 = vshll.u32 %v4701, 16
        %v4778 = vrot.slane %v4776, 1
        %v4779 = vor.u32 %v4774, %v4778
        %v4781 = vshll.u32 %v4702, 16
        %v4783 = vrot.slane %v4781, 1
        %v4784 = vsel %vm1224, %v4779, %v4783
        %v4786 = vshrl.u32 %v4703, 16
        %v4788 = vshll.u32 %v4703, 16
        %v4790 = vrot.slane %v4788, 1
        %v4791 = vor.u32 %v4786, %v4790
        %v4793 = vshll.u32 %v4704, 16
        %v4795 = vrot.slane %v4793, 1
        %v4796 = vsel %vm1224, %v4791, %v4795
        %v4798 = vshrl.u32 %v4705, 16
        %v4800 = vshll.u32 %v4705, 16
        %v4802 = vrot.slane %v4800, 1
        %v4803 = vor.u32 %v4798, %v4802
        %v4805 = vshll.u32 %v4706, 16
        %v4807 = vrot.slane %v4805, 1
        %v4808 = vsel %vm1224, %v4803, %v4807
        %v4810 = vshrl.u32 %v4707, 16
        %v4812 = vshll.u32 %v4707, 16
        %v4814 = vrot.slane %v4812, 1
        %v4815 = vor.u32 %v4810, %v4814
        %v4817 = vshll.u32 %v4708, 16
        %v4819 = vrot.slane %v4817, 1
        %v4820 = vsel %vm1224, %v4815, %v4819
        %v4822 = vshrl.u32 %v4709, 16
        %v4824 = vshll.u32 %v4709, 16
        %v4826 = vrot.slane %v4824, 1
        %v4827 = vor.u32 %v4822, %v4826
        %v4829 = vshll.u32 %v4710, 16
        %v4831 = vrot.slane %v4829, 1
        %v4832 = vsel %vm1224, %v4827, %v4831
        %v4834 = vshrl.u32 %v4711, 16
        %v4836 = vshll.u32 %v4711, 16
        %v4838 = vrot.slane %v4836, 1
        %v4839 = vor.u32 %v4834, %v4838
        %v4841 = vshll.u32 %v4712, 16
        %v4843 = vrot.slane %v4841, 1
        %v4844 = vsel %vm1224, %v4839, %v4843
        %v4846 = vshrl.u32 %v4713, 16
        %v4848 = vshll.u32 %v4713, 16
        %v4850 = vrot.slane %v4848, 1
        %v4851 = vor.u32 %v4846, %v4850
        %v4853 = vshll.u32 %v4714, 16
        %v4855 = vrot.slane %v4853, 1
        %v4856 = vsel %vm1224, %v4851, %v4855
        %v4858 = vshrl.u32 %v4715, 16
        %v4860 = vshll.u32 %v4715, 16
        %v4862 = vrot.slane %v4860, 1
        %v4863 = vor.u32 %v4858, %v4862
        %v4865 = vshll.u32 %v4716, 16
        %v4867 = vrot.slane %v4865, 1
        %v4868 = vsel %vm1224, %v4863, %v4867
        %v4870 = vshrl.u32 %v4717, 16
        %v4872 = vshll.u32 %v4717, 16
        %v4874 = vrot.slane %v4872, 1
        %v4875 = vor.u32 %v4870, %v4874
        %v4877 = vshll.u32 %v4718, 16
        %v4879 = vrot.slane %v4877, 1
        %v4880 = vsel %vm1224, %v4875, %v4879
        %v4882 = vshrl.u32 %v4719, 16
        %v4884 = vshll.u32 %v4719, 16
        %v4886 = vrot.slane %v4884, 1
        %v4887 = vor.u32 %v4882, %v4886
        %v4889 = vshll.u32 %v4720, 16
        %v4891 = vrot.slane %v4889, 1
        %v4892 = vsel %vm1224, %v4887, %v4891
        %v4894 = vshrl.u32 %v4721, 16
        %v4896 = vshll.u32 %v4721, 16
        %v4898 = vrot.slane %v4896, 1
        %v4899 = vor.u32 %v4894, %v4898
        %v4901 = vshll.u32 %v4722, 16
        %v4903 = vrot.slane %v4901, 1
        %v4904 = vsel %vm1224, %v4899, %v4903
        %v4906 = vshrl.u32 %v4723, 16
        %v4908 = vshll.u32 %v4723, 16
        %v4910 = vrot.slane %v4908, 1
        %v4911 = vor.u32 %v4906, %v4910
        %v4913 = vshll.u32 %v4724, 16
        %v4915 = vrot.slane %v4913, 1
        %v4916 = vsel %vm1224, %v4911, %v4915
        %4917 = vrot.lane.b32.xlu0 %v4736, 8
        %v4918 = vpop.permute.xlu0 %4917
        %4919 = vrot.lane.b32.xlu0 %v4748, 8
        %v4920 = vpop.permute.xlu0 %4919
        %4921 = vrot.lane.b32.xlu0 %v4760, 8
        %v4922 = vpop.permute.xlu0 %4921
        %4923 = vrot.lane.b32.xlu0 %v4772, 8
        %v4924 = vpop.permute.xlu0 %4923
        %4925 = vrot.lane.b32.xlu0 %v4784, 8
        %v4926 = vpop.permute.xlu0 %4925
        %4927 = vrot.lane.b32.xlu0 %v4796, 8
        %v4928 = vpop.permute.xlu0 %4927
        %4929 = vrot.lane.b32.xlu0 %v4808, 8
        %v4930 = vpop.permute.xlu0 %4929
        %4931 = vrot.lane.b32.xlu0 %v4820, 8
        %v4932 = vpop.permute.xlu0 %4931
        %4933 = vrot.lane.b32.xlu0 %v4832, 8
        %v4934 = vpop.permute.xlu0 %4933
        %4935 = vrot.lane.b32.xlu0 %v4844, 8
        %v4936 = vpop.permute.xlu0 %4935
        %4937 = vrot.lane.b32.xlu0 %v4856, 8
        %v4938 = vpop.permute.xlu0 %4937
        %4939 = vrot.lane.b32.xlu0 %v4868, 8
        %v4940 = vpop.permute.xlu0 %4939
        %4941 = vrot.lane.b32.xlu0 %v4880, 8
        %v4942 = vpop.permute.xlu0 %4941
        %4943 = vrot.lane.b32.xlu0 %v4892, 8
        %v4944 = vpop.permute.xlu0 %4943
        %4945 = vrot.lane.b32.xlu0 %v4904, 8
        %v4946 = vpop.permute.xlu0 %4945
        %4947 = vrot.lane.b32.xlu0 %v4916, 8
        %v4948 = vpop.permute.xlu0 %4947
        %4965 = vst.msk [vmem:[#allocation4] sm:$0xff] %vm1465, %v4918
        %4966 = vst.msk [vmem:[#allocation4 + $0x8] sm:$0xff] %vm1465, %v4920
        %4967 = vst.msk [vmem:[#allocation4 + $0x10] sm:$0xff] %vm1465, %v4922
        %4968 = vst.msk [vmem:[#allocation4 + $0x18] sm:$0xff] %vm1465, %v4924
        %4969 = vst.msk [vmem:[#allocation4 + $0x20] sm:$0xff] %vm1465, %v4926
        %4970 = vst.msk [vmem:[#allocation4 + $0x28] sm:$0xff] %vm1465, %v4928
        %4971 = vst.msk [vmem:[#allocation4 + $0x30] sm:$0xff] %vm1465, %v4930
        %4972 = vst.msk [vmem:[#allocation4 + $0x38] sm:$0xff] %vm1465, %v4932
        %4973 = vst.msk [vmem:[#allocation4 + $0x40] sm:$0xff] %vm1465, %v4934
        %4974 = vst.msk [vmem:[#allocation4 + $0x48] sm:$0xff] %vm1465, %v4936
        %4975 = vst.msk [vmem:[#allocation4 + $0x50] sm:$0xff] %vm1465, %v4938
        %4976 = vst.msk [vmem:[#allocation4 + $0x58] sm:$0xff] %vm1465, %v4940
        %4977 = vst.msk [vmem:[#allocation4 + $0x60] sm:$0xff] %vm1465, %v4942
        %4978 = vst.msk [vmem:[#allocation4 + $0x68] sm:$0xff] %vm1465, %v4944
        %4979 = vst.msk [vmem:[#allocation4 + $0x70] sm:$0xff] %vm1465, %v4946
        %4980 = vst.msk [vmem:[#allocation4 + $0x78] sm:$0xff] %vm1465, %v4948
        %v4981 = vld [vmem:[#allocation3] sm:$0xe]
        %v4982 = vld [vmem:[#allocation3 + $0x4] sm:$0xf]
        %v4983 = vld [vmem:[#allocation3 + $0x8] sm:$0x1]
        %v4984 = vld [vmem:[#allocation3 + $0xc] sm:$0xe]
        %v4985 = vld [vmem:[#allocation3 + $0x10] sm:$0xf]
        %v4986 = vld [vmem:[#allocation3 + $0x14] sm:$0x1]
        %v4987 = vld [vmem:[#allocation3 + $0x18] sm:$0xe]
        %v4988 = vld [vmem:[#allocation3 + $0x1c] sm:$0xf]
        %v4989 = vld [vmem:[#allocation3 + $0x20] sm:$0x1]
        %v4990 = vld [vmem:[#allocation3 + $0x24] sm:$0xe]
        %v4991 = vld [vmem:[#allocation3 + $0x28] sm:$0xf]
        %v4992 = vld [vmem:[#allocation3 + $0x2c] sm:$0x1]
        %v4993 = vld [vmem:[#allocation3 + $0x30] sm:$0xe]
        %v4994 = vld [vmem:[#allocation3 + $0x34] sm:$0xf]
        %v4995 = vld [vmem:[#allocation3 + $0x38] sm:$0x1]
        %v4996 = vld [vmem:[#allocation3 + $0x3c] sm:$0xe]
        %v4997 = vld [vmem:[#allocation3 + $0x40] sm:$0xf]
        %v4998 = vld [vmem:[#allocation3 + $0x44] sm:$0x1]
        %v4999 = vld [vmem:[#allocation3 + $0x48] sm:$0xe]
        %v5000 = vld [vmem:[#allocation3 + $0x4c] sm:$0xf]
        %v5001 = vld [vmem:[#allocation3 + $0x50] sm:$0x1]
        %v5002 = vld [vmem:[#allocation3 + $0x54] sm:$0xe]
        %v5003 = vld [vmem:[#allocation3 + $0x58] sm:$0xf]
        %v5004 = vld [vmem:[#allocation3 + $0x5c] sm:$0x1]
        %v5005 = vld [vmem:[#allocation3 + $0x60] sm:$0xe]
        %v5006 = vld [vmem:[#allocation3 + $0x64] sm:$0xf]
        %v5007 = vld [vmem:[#allocation3 + $0x68] sm:$0x1]
        %v5008 = vld [vmem:[#allocation3 + $0x6c] sm:$0xe]
        %v5009 = vld [vmem:[#allocation3 + $0x70] sm:$0xf]
        %v5010 = vld [vmem:[#allocation3 + $0x74] sm:$0x1]
        %v5011 = vld [vmem:[#allocation3 + $0x78] sm:$0xe]
        %v5012 = vld [vmem:[#allocation3 + $0x7c] sm:$0xf]
        %v5013 = vld [vmem:[#allocation3 + $0x80] sm:$0x1]
        %v5014 = vld [vmem:[#allocation3 + $0x84] sm:$0xe]
        %v5015 = vld [vmem:[#allocation3 + $0x88] sm:$0xf]
        %v5016 = vld [vmem:[#allocation3 + $0x8c] sm:$0x1]
        %v5017 = vld [vmem:[#allocation3 + $0x90] sm:$0xe]
        %v5018 = vld [vmem:[#allocation3 + $0x94] sm:$0xf]
        %v5019 = vld [vmem:[#allocation3 + $0x98] sm:$0x1]
        %v5020 = vld [vmem:[#allocation3 + $0x9c] sm:$0xe]
        %v5021 = vld [vmem:[#allocation3 + $0xa0] sm:$0xf]
        %v5022 = vld [vmem:[#allocation3 + $0xa4] sm:$0x1]
        %v5023 = vld [vmem:[#allocation3 + $0xa8] sm:$0xe]
        %v5024 = vld [vmem:[#allocation3 + $0xac] sm:$0xf]
        %v5025 = vld [vmem:[#allocation3 + $0xb0] sm:$0x1]
        %v5026 = vld [vmem:[#allocation3 + $0xb4] sm:$0xe]
        %v5027 = vld [vmem:[#allocation3 + $0xb8] sm:$0xf]
        %v5028 = vld [vmem:[#allocation3 + $0xbc] sm:$0x1]
        %v5077 = vunpack.c.l.b16 %v4981
        %v5078 = vunpack.c.l.b16 %v4982
        %v5079 = vunpack.c.l.b16 %v4983
        %v5080 = vunpack.c.l.b16 %v4984
        %v5081 = vunpack.c.l.b16 %v4985
        %v5082 = vunpack.c.l.b16 %v4986
        %v5083 = vunpack.c.l.b16 %v4987
        %v5084 = vunpack.c.l.b16 %v4988
        %v5085 = vunpack.c.l.b16 %v4989
        %v5086 = vunpack.c.l.b16 %v4990
        %v5087 = vunpack.c.l.b16 %v4991
        %v5088 = vunpack.c.l.b16 %v4992
        %v5089 = vunpack.c.l.b16 %v4993
        %v5090 = vunpack.c.l.b16 %v4994
        %v5091 = vunpack.c.l.b16 %v4995
        %v5092 = vunpack.c.l.b16 %v4996
        %v5093 = vunpack.c.l.b16 %v4997
        %v5094 = vunpack.c.l.b16 %v4998
        %v5095 = vunpack.c.l.b16 %v4999
        %v5096 = vunpack.c.l.b16 %v5000
        %v5097 = vunpack.c.l.b16 %v5001
        %v5098 = vunpack.c.l.b16 %v5002
        %v5099 = vunpack.c.l.b16 %v5003
        %v5100 = vunpack.c.l.b16 %v5004
        %v5101 = vunpack.c.l.b16 %v5005
        %v5102 = vunpack.c.l.b16 %v5006
        %v5103 = vunpack.c.l.b16 %v5007
        %v5104 = vunpack.c.l.b16 %v5008
        %v5105 = vunpack.c.l.b16 %v5009
        %v5106 = vunpack.c.l.b16 %v5010
        %v5107 = vunpack.c.l.b16 %v5011
        %v5108 = vunpack.c.l.b16 %v5012
        %v5109 = vunpack.c.l.b16 %v5013
        %v5110 = vunpack.c.l.b16 %v5014
        %v5111 = vunpack.c.l.b16 %v5015
        %v5112 = vunpack.c.l.b16 %v5016
        %v5113 = vunpack.c.l.b16 %v5017
        %v5114 = vunpack.c.l.b16 %v5018
        %v5115 = vunpack.c.l.b16 %v5019
        %v5116 = vunpack.c.l.b16 %v5020
        %v5117 = vunpack.c.l.b16 %v5021
        %v5118 = vunpack.c.l.b16 %v5022
        %v5119 = vunpack.c.l.b16 %v5023
        %v5120 = vunpack.c.l.b16 %v5024
        %v5121 = vunpack.c.l.b16 %v5025
        %v5122 = vunpack.c.l.b16 %v5026
        %v5123 = vunpack.c.l.b16 %v5027
        %v5124 = vunpack.c.l.b16 %v5028
        %v5125 = vpack.c.b16 %v5078, %v5077
        %v5126 = vpack.c.b16 %v5079, %v5079
        %v5127 = vpack.c.b16 %v5081, %v5080
        %v5128 = vpack.c.b16 %v5082, %v5082
        %v5129 = vpack.c.b16 %v5084, %v5083
        %v5130 = vpack.c.b16 %v5085, %v5085
        %v5131 = vpack.c.b16 %v5087, %v5086
        %v5132 = vpack.c.b16 %v5088, %v5088
        %v5133 = vpack.c.b16 %v5090, %v5089
        %v5134 = vpack.c.b16 %v5091, %v5091
        %v5135 = vpack.c.b16 %v5093, %v5092
        %v5136 = vpack.c.b16 %v5094, %v5094
        %v5137 = vpack.c.b16 %v5096, %v5095
        %v5138 = vpack.c.b16 %v5097, %v5097
        %v5139 = vpack.c.b16 %v5099, %v5098
        %v5140 = vpack.c.b16 %v5100, %v5100
        %v5141 = vpack.c.b16 %v5102, %v5101
        %v5142 = vpack.c.b16 %v5103, %v5103
        %v5143 = vpack.c.b16 %v5105, %v5104
        %v5144 = vpack.c.b16 %v5106, %v5106
        %v5145 = vpack.c.b16 %v5108, %v5107
        %v5146 = vpack.c.b16 %v5109, %v5109
        %v5147 = vpack.c.b16 %v5111, %v5110
        %v5148 = vpack.c.b16 %v5112, %v5112
        %v5149 = vpack.c.b16 %v5114, %v5113
        %v5150 = vpack.c.b16 %v5115, %v5115
        %v5151 = vpack.c.b16 %v5117, %v5116
        %v5152 = vpack.c.b16 %v5118, %v5118
        %v5153 = vpack.c.b16 %v5120, %v5119
        %v5154 = vpack.c.b16 %v5121, %v5121
        %v5155 = vpack.c.b16 %v5123, %v5122
        %v5156 = vpack.c.b16 %v5124, %v5124
        %v5157 = vrot.slane %v5125, 1
        %v5158 = vrot.slane %v5126, 1
        %v5159 = vsel %vm1658, %v5157, %v5158
        %v5160 = vrot.slane %v5127, 1
        %v5161 = vrot.slane %v5128, 1
        %v5162 = vsel %vm1658, %v5160, %v5161
        %v5163 = vrot.slane %v5129, 1
        %v5164 = vrot.slane %v5130, 1
        %v5165 = vsel %vm1658, %v5163, %v5164
        %v5166 = vrot.slane %v5131, 1
        %v5167 = vrot.slane %v5132, 1
        %v5168 = vsel %vm1658, %v5166, %v5167
        %v5169 = vrot.slane %v5133, 1
        %v5170 = vrot.slane %v5134, 1
        %v5171 = vsel %vm1658, %v5169, %v5170
        %v5172 = vrot.slane %v5135, 1
        %v5173 = vrot.slane %v5136, 1
        %v5174 = vsel %vm1658, %v5172, %v5173
        %v5175 = vrot.slane %v5137, 1
        %v5176 = vrot.slane %v5138, 1
        %v5177 = vsel %vm1658, %v5175, %v5176
        %v5178 = vrot.slane %v5139, 1
        %v5179 = vrot.slane %v5140, 1
        %v5180 = vsel %vm1658, %v5178, %v5179
        %v5181 = vrot.slane %v5141, 1
        %v5182 = vrot.slane %v5142, 1
        %v5183 = vsel %vm1658, %v5181, %v5182
        %v5184 = vrot.slane %v5143, 1
        %v5185 = vrot.slane %v5144, 1
        %v5186 = vsel %vm1658, %v5184, %v5185
        %v5187 = vrot.slane %v5145, 1
        %v5188 = vrot.slane %v5146, 1
        %v5189 = vsel %vm1658, %v5187, %v5188
        %v5190 = vrot.slane %v5147, 1
        %v5191 = vrot.slane %v5148, 1
        %v5192 = vsel %vm1658, %v5190, %v5191
        %v5193 = vrot.slane %v5149, 1
        %v5194 = vrot.slane %v5150, 1
        %v5195 = vsel %vm1658, %v5193, %v5194
        %v5196 = vrot.slane %v5151, 1
        %v5197 = vrot.slane %v5152, 1
        %v5198 = vsel %vm1658, %v5196, %v5197
        %v5199 = vrot.slane %v5153, 1
        %v5200 = vrot.slane %v5154, 1
        %v5201 = vsel %vm1658, %v5199, %v5200
        %v5202 = vrot.slane %v5155, 1
        %v5203 = vrot.slane %v5156, 1
        %v5204 = vsel %vm1658, %v5202, %v5203
        %5205 = vrot.lane.b32.xlu0 %v5159, 16
        %v5206 = vpop.permute.xlu0 %5205
        %5207 = vrot.lane.b32.xlu0 %v5162, 16
        %v5208 = vpop.permute.xlu0 %5207
        %5209 = vrot.lane.b32.xlu0 %v5165, 16
        %v5210 = vpop.permute.xlu0 %5209
        %5211 = vrot.lane.b32.xlu0 %v5168, 16
        %v5212 = vpop.permute.xlu0 %5211
        %5213 = vrot.lane.b32.xlu0 %v5171, 16
        %v5214 = vpop.permute.xlu0 %5213
        %5215 = vrot.lane.b32.xlu0 %v5174, 16
        %v5216 = vpop.permute.xlu0 %5215
        %5217 = vrot.lane.b32.xlu0 %v5177, 16
        %v5218 = vpop.permute.xlu0 %5217
        %5219 = vrot.lane.b32.xlu0 %v5180, 16
        %v5220 = vpop.permute.xlu0 %5219
        %5221 = vrot.lane.b32.xlu0 %v5183, 16
        %v5222 = vpop.permute.xlu0 %5221
        %5223 = vrot.lane.b32.xlu0 %v5186, 16
        %v5224 = vpop.permute.xlu0 %5223
        %5225 = vrot.lane.b32.xlu0 %v5189, 16
        %v5226 = vpop.permute.xlu0 %5225
        %5227 = vrot.lane.b32.xlu0 %v5192, 16
        %v5228 = vpop.permute.xlu0 %5227
        %5229 = vrot.lane.b32.xlu0 %v5195, 16
        %v5230 = vpop.permute.xlu0 %5229
        %5231 = vrot.lane.b32.xlu0 %v5198, 16
        %v5232 = vpop.permute.xlu0 %5231
        %5233 = vrot.lane.b32.xlu0 %v5201, 16
        %v5234 = vpop.permute.xlu0 %5233
        %5235 = vrot.lane.b32.xlu0 %v5204, 16
        %v5236 = vpop.permute.xlu0 %5235
        %5253 = vst.msk [vmem:[#allocation4] sm:$0xff] %vm1755, %v5206
        %5254 = vst.msk [vmem:[#allocation4 + $0x8] sm:$0xff] %vm1755, %v5208
        %5255 = vst.msk [vmem:[#allocation4 + $0x10] sm:$0xff] %vm1755, %v5210
        %5256 = vst.msk [vmem:[#allocation4 + $0x18] sm:$0xff] %vm1755, %v5212
        %5257 = vst.msk [vmem:[#allocation4 + $0x20] sm:$0xff] %vm1755, %v5214
        %5258 = vst.msk [vmem:[#allocation4 + $0x28] sm:$0xff] %vm1755, %v5216
        %5259 = vst.msk [vmem:[#allocation4 + $0x30] sm:$0xff] %vm1755, %v5218
        %5260 = vst.msk [vmem:[#allocation4 + $0x38] sm:$0xff] %vm1755, %v5220
        %5261 = vst.msk [vmem:[#allocation4 + $0x40] sm:$0xff] %vm1755, %v5222
        %5262 = vst.msk [vmem:[#allocation4 + $0x48] sm:$0xff] %vm1755, %v5224
        %5263 = vst.msk [vmem:[#allocation4 + $0x50] sm:$0xff] %vm1755, %v5226
        %5264 = vst.msk [vmem:[#allocation4 + $0x58] sm:$0xff] %vm1755, %v5228
        %5265 = vst.msk [vmem:[#allocation4 + $0x60] sm:$0xff] %vm1755, %v5230
        %5266 = vst.msk [vmem:[#allocation4 + $0x68] sm:$0xff] %vm1755, %v5232
        %5267 = vst.msk [vmem:[#allocation4 + $0x70] sm:$0xff] %vm1755, %v5234
        %5268 = vst.msk [vmem:[#allocation4 + $0x78] sm:$0xff] %vm1755, %v5236
        %v5269 = vld [vmem:[%s4292] sm:$0xf]
        %v5270 = vld [vmem:[%s4292 + $0x4] sm:$0xf]
        %v5271 = vld [vmem:[%s4292 + $0xc] sm:$0xf]
        %v5272 = vld [vmem:[%s4292 + $0x10] sm:$0xf]
        %v5273 = vld [vmem:[%s4292 + $0x18] sm:$0xf]
        %v5274 = vld [vmem:[%s4292 + $0x1c] sm:$0xf]
        %v5275 = vld [vmem:[%s4292 + $0x24] sm:$0xf]
        %v5276 = vld [vmem:[%s4292 + $0x28] sm:$0xf]
        %v5277 = vld [vmem:[%s4292 + $0x30] sm:$0xf]
        %v5278 = vld [vmem:[%s4292 + $0x34] sm:$0xf]
        %v5279 = vld [vmem:[%s4292 + $0x3c] sm:$0xf]
        %v5280 = vld [vmem:[%s4292 + $0x40] sm:$0xf]
        %v5281 = vld [vmem:[%s4292 + $0x48] sm:$0xf]
        %v5282 = vld [vmem:[%s4292 + $0x4c] sm:$0xf]
        %v5283 = vld [vmem:[%s4292 + $0x54] sm:$0xf]
        %v5284 = vld [vmem:[%s4292 + $0x58] sm:$0xf]
        %v5285 = vld [vmem:[%s4292 + $0x60] sm:$0xf]
        %v5286 = vld [vmem:[%s4292 + $0x64] sm:$0xf]
        %v5287 = vld [vmem:[%s4292 + $0x6c] sm:$0xf]
        %v5288 = vld [vmem:[%s4292 + $0x70] sm:$0xf]
        %v5289 = vld [vmem:[%s4292 + $0x78] sm:$0xf]
        %v5290 = vld [vmem:[%s4292 + $0x7c] sm:$0xf]
        %v5291 = vld [vmem:[%s4292 + $0x84] sm:$0xf]
        %v5292 = vld [vmem:[%s4292 + $0x88] sm:$0xf]
        %v5293 = vld [vmem:[%s4292 + $0x90] sm:$0xf]
        %v5294 = vld [vmem:[%s4292 + $0x94] sm:$0xf]
        %v5295 = vld [vmem:[%s4292 + $0x9c] sm:$0xf]
        %v5296 = vld [vmem:[%s4292 + $0xa0] sm:$0xf]
        %v5297 = vld [vmem:[%s4292 + $0xa8] sm:$0xf]
        %v5298 = vld [vmem:[%s4292 + $0xac] sm:$0xf]
        %v5299 = vld [vmem:[%s4292 + $0xb4] sm:$0xf]
        %v5300 = vld [vmem:[%s4292 + $0xb8] sm:$0xf]
        %v5333 = vunpack.c.l.b16 %v5269
        %v5334 = vunpack.c.l.b16 %v5270
        %v5335 = vunpack.c.l.b16 %v5271
        %v5336 = vunpack.c.l.b16 %v5272
        %v5337 = vunpack.c.l.b16 %v5273
        %v5338 = vunpack.c.l.b16 %v5274
        %v5339 = vunpack.c.l.b16 %v5275
        %v5340 = vunpack.c.l.b16 %v5276
        %v5341 = vunpack.c.l.b16 %v5277
        %v5342 = vunpack.c.l.b16 %v5278
        %v5343 = vunpack.c.l.b16 %v5279
        %v5344 = vunpack.c.l.b16 %v5280
        %v5345 = vunpack.c.l.b16 %v5281
        %v5346 = vunpack.c.l.b16 %v5282
        %v5347 = vunpack.c.l.b16 %v5283
        %v5348 = vunpack.c.l.b16 %v5284
        %v5349 = vunpack.c.l.b16 %v5285
        %v5350 = vunpack.c.l.b16 %v5286
        %v5351 = vunpack.c.l.b16 %v5287
        %v5352 = vunpack.c.l.b16 %v5288
        %v5353 = vunpack.c.l.b16 %v5289
        %v5354 = vunpack.c.l.b16 %v5290
        %v5355 = vunpack.c.l.b16 %v5291
        %v5356 = vunpack.c.l.b16 %v5292
        %v5357 = vunpack.c.l.b16 %v5293
        %v5358 = vunpack.c.l.b16 %v5294
        %v5359 = vunpack.c.l.b16 %v5295
        %v5360 = vunpack.c.l.b16 %v5296
        %v5361 = vunpack.c.l.b16 %v5297
        %v5362 = vunpack.c.l.b16 %v5298
        %v5363 = vunpack.c.l.b16 %v5299
        %v5364 = vunpack.c.l.b16 %v5300
        %v5365 = vpack.c.b16 %v5334, %v5333
        %v5366 = vpack.c.b16 %v5336, %v5335
        %v5367 = vpack.c.b16 %v5338, %v5337
        %v5368 = vpack.c.b16 %v5340, %v5339
        %v5369 = vpack.c.b16 %v5342, %v5341
        %v5370 = vpack.c.b16 %v5344, %v5343
        %v5371 = vpack.c.b16 %v5346, %v5345
        %v5372 = vpack.c.b16 %v5348, %v5347
        %v5373 = vpack.c.b16 %v5350, %v5349
        %v5374 = vpack.c.b16 %v5352, %v5351
        %v5375 = vpack.c.b16 %v5354, %v5353
        %v5376 = vpack.c.b16 %v5356, %v5355
        %v5377 = vpack.c.b16 %v5358, %v5357
        %v5378 = vpack.c.b16 %v5360, %v5359
        %v5379 = vpack.c.b16 %v5362, %v5361
        %v5380 = vpack.c.b16 %v5364, %v5363
        %5381 = vrot.lane.b32.xlu0 %v5365, 24
        %v5382 = vpop.permute.xlu0 %5381
        %5383 = vrot.lane.b32.xlu0 %v5366, 24
        %v5384 = vpop.permute.xlu0 %5383
        %5385 = vrot.lane.b32.xlu0 %v5367, 24
        %v5386 = vpop.permute.xlu0 %5385
        %5387 = vrot.lane.b32.xlu0 %v5368, 24
        %v5388 = vpop.permute.xlu0 %5387
        %5389 = vrot.lane.b32.xlu0 %v5369, 24
        %v5390 = vpop.permute.xlu0 %5389
        %5391 = vrot.lane.b32.xlu0 %v5370, 24
        %v5392 = vpop.permute.xlu0 %5391
        %5393 = vrot.lane.b32.xlu0 %v5371, 24
        %v5394 = vpop.permute.xlu0 %5393
        %5395 = vrot.lane.b32.xlu0 %v5372, 24
        %v5396 = vpop.permute.xlu0 %5395
        %5397 = vrot.lane.b32.xlu0 %v5373, 24
        %v5398 = vpop.permute.xlu0 %5397
        %5399 = vrot.lane.b32.xlu0 %v5374, 24
        %v5400 = vpop.permute.xlu0 %5399
        %5401 = vrot.lane.b32.xlu0 %v5375, 24
        %v5402 = vpop.permute.xlu0 %5401
        %5403 = vrot.lane.b32.xlu0 %v5376, 24
        %v5404 = vpop.permute.xlu0 %5403
        %5405 = vrot.lane.b32.xlu0 %v5377, 24
        %v5406 = vpop.permute.xlu0 %5405
        %5407 = vrot.lane.b32.xlu0 %v5378, 24
        %v5408 = vpop.permute.xlu0 %5407
        %5409 = vrot.lane.b32.xlu0 %v5379, 24
        %v5410 = vpop.permute.xlu0 %5409
        %5411 = vrot.lane.b32.xlu0 %v5380, 24
        %v5412 = vpop.permute.xlu0 %5411
        %5429 = vst.msk [vmem:[#allocation4] sm:$0xff] %vm1932, %v5382
        %5430 = vst.msk [vmem:[#allocation4 + $0x8] sm:$0xff] %vm1932, %v5384
        %5431 = vst.msk [vmem:[#allocation4 + $0x10] sm:$0xff] %vm1932, %v5386
        %5432 = vst.msk [vmem:[#allocation4 + $0x18] sm:$0xff] %vm1932, %v5388
        %5433 = vst.msk [vmem:[#allocation4 + $0x20] sm:$0xff] %vm1932, %v5390
        %5434 = vst.msk [vmem:[#allocation4 + $0x28] sm:$0xff] %vm1932, %v5392
        %5435 = vst.msk [vmem:[#allocation4 + $0x30] sm:$0xff] %vm1932, %v5394
        %5436 = vst.msk [vmem:[#allocation4 + $0x38] sm:$0xff] %vm1932, %v5396
        %5437 = vst.msk [vmem:[#allocation4 + $0x40] sm:$0xff] %vm1932, %v5398
        %5438 = vst.msk [vmem:[#allocation4 + $0x48] sm:$0xff] %vm1932, %v5400
        %5439 = vst.msk [vmem:[#allocation4 + $0x50] sm:$0xff] %vm1932, %v5402
        %5440 = vst.msk [vmem:[#allocation4 + $0x58] sm:$0xff] %vm1932, %v5404
        %5441 = vst.msk [vmem:[#allocation4 + $0x60] sm:$0xff] %vm1932, %v5406
        %5442 = vst.msk [vmem:[#allocation4 + $0x68] sm:$0xff] %vm1932, %v5408
        %5443 = vst.msk [vmem:[#allocation4 + $0x70] sm:$0xff] %vm1932, %v5410
        %5444 = vst.msk [vmem:[#allocation4 + $0x78] sm:$0xff] %vm1932, %v5412
        %v5445 = vld [vmem:[%s4292] sm:$0xf]
        %v5446 = vld [vmem:[%s4292 + $0x4] sm:$0xf]
        %v5447 = vld [vmem:[%s4292 + $0x8] sm:$0x1]
        %v5448 = vld [vmem:[%s4292 + $0xc] sm:$0xf]
        %v5449 = vld [vmem:[%s4292 + $0x10] sm:$0xf]
        %v5450 = vld [vmem:[%s4292 + $0x14] sm:$0x1]
        %v5451 = vld [vmem:[%s4292 + $0x18] sm:$0xf]
        %v5452 = vld [vmem:[%s4292 + $0x1c] sm:$0xf]
        %v5453 = vld [vmem:[%s4292 + $0x20] sm:$0x1]
        %v5454 = vld [vmem:[%s4292 + $0x24] sm:$0xf]
        %v5455 = vld [vmem:[%s4292 + $0x28] sm:$0xf]
        %v5456 = vld [vmem:[%s4292 + $0x2c] sm:$0x1]
        %v5457 = vld [vmem:[%s4292 + $0x30] sm:$0xf]
        %v5458 = vld [vmem:[%s4292 + $0x34] sm:$0xf]
        %v5459 = vld [vmem:[%s4292 + $0x38] sm:$0x1]
        %v5460 = vld [vmem:[%s4292 + $0x3c] sm:$0xf]
        %v5461 = vld [vmem:[%s4292 + $0x40] sm:$0xf]
        %v5462 = vld [vmem:[%s4292 + $0x44] sm:$0x1]
        %v5463 = vld [vmem:[%s4292 + $0x48] sm:$0xf]
        %v5464 = vld [vmem:[%s4292 + $0x4c] sm:$0xf]
        %v5465 = vld [vmem:[%s4292 + $0x50] sm:$0x1]
        %v5466 = vld [vmem:[%s4292 + $0x54] sm:$0xf]
        %v5467 = vld [vmem:[%s4292 + $0x58] sm:$0xf]
        %v5468 = vld [vmem:[%s4292 + $0x5c] sm:$0x1]
        %v5469 = vld [vmem:[%s4292 + $0x60] sm:$0xf]
        %v5470 = vld [vmem:[%s4292 + $0x64] sm:$0xf]
        %v5471 = vld [vmem:[%s4292 + $0x68] sm:$0x1]
        %v5472 = vld [vmem:[%s4292 + $0x6c] sm:$0xf]
        %v5473 = vld [vmem:[%s4292 + $0x70] sm:$0xf]
        %v5474 = vld [vmem:[%s4292 + $0x74] sm:$0x1]
        %v5475 = vld [vmem:[%s4292 + $0x78] sm:$0xf]
        %v5476 = vld [vmem:[%s4292 + $0x7c] sm:$0xf]
        %v5477 = vld [vmem:[%s4292 + $0x80] sm:$0x1]
        %v5478 = vld [vmem:[%s4292 + $0x84] sm:$0xf]
        %v5479 = vld [vmem:[%s4292 + $0x88] sm:$0xf]
        %v5480 = vld [vmem:[%s4292 + $0x8c] sm:$0x1]
        %v5481 = vld [vmem:[%s4292 + $0x90] sm:$0xf]
        %v5482 = vld [vmem:[%s4292 + $0x94] sm:$0xf]
        %v5483 = vld [vmem:[%s4292 + $0x98] sm:$0x1]
        %v5484 = vld [vmem:[%s4292 + $0x9c] sm:$0xf]
        %v5485 = vld [vmem:[%s4292 + $0xa0] sm:$0xf]
        %v5486 = vld [vmem:[%s4292 + $0xa4] sm:$0x1]
        %v5487 = vld [vmem:[%s4292 + $0xa8] sm:$0xf]
        %v5488 = vld [vmem:[%s4292 + $0xac] sm:$0xf]
        %v5489 = vld [vmem:[%s4292 + $0xb0] sm:$0x1]
        %v5490 = vld [vmem:[%s4292 + $0xb4] sm:$0xf]
        %v5491 = vld [vmem:[%s4292 + $0xb8] sm:$0xf]
        %v5492 = vld [vmem:[%s4292 + $0xbc] sm:$0x1]
        %v5541 = vunpack.c.l.b16 %v5445
        %v5542 = vunpack.c.l.b16 %v5446
        %v5543 = vunpack.c.l.b16 %v5447
        %v5544 = vunpack.c.l.b16 %v5448
        %v5545 = vunpack.c.l.b16 %v5449
        %v5546 = vunpack.c.l.b16 %v5450
        %v5547 = vunpack.c.l.b16 %v5451
        %v5548 = vunpack.c.l.b16 %v5452
        %v5549 = vunpack.c.l.b16 %v5453
        %v5550 = vunpack.c.l.b16 %v5454
        %v5551 = vunpack.c.l.b16 %v5455
        %v5552 = vunpack.c.l.b16 %v5456
        %v5553 = vunpack.c.l.b16 %v5457
        %v5554 = vunpack.c.l.b16 %v5458
        %v5555 = vunpack.c.l.b16 %v5459
        %v5556 = vunpack.c.l.b16 %v5460
        %v5557 = vunpack.c.l.b16 %v5461
        %v5558 = vunpack.c.l.b16 %v5462
        %v5559 = vunpack.c.l.b16 %v5463
        %v5560 = vunpack.c.l.b16 %v5464
        %v5561 = vunpack.c.l.b16 %v5465
        %v5562 = vunpack.c.l.b16 %v5466
        %v5563 = vunpack.c.l.b16 %v5467
        %v5564 = vunpack.c.l.b16 %v5468
        %v5565 = vunpack.c.l.b16 %v5469
        %v5566 = vunpack.c.l.b16 %v5470
        %v5567 = vunpack.c.l.b16 %v5471
        %v5568 = vunpack.c.l.b16 %v5472
        %v5569 = vunpack.c.l.b16 %v5473
        %v5570 = vunpack.c.l.b16 %v5474
        %v5571 = vunpack.c.l.b16 %v5475
        %v5572 = vunpack.c.l.b16 %v5476
        %v5573 = vunpack.c.l.b16 %v5477
        %v5574 = vunpack.c.l.b16 %v5478
        %v5575 = vunpack.c.l.b16 %v5479
        %v5576 = vunpack.c.l.b16 %v5480
        %v5577 = vunpack.c.l.b16 %v5481
        %v5578 = vunpack.c.l.b16 %v5482
        %v5579 = vunpack.c.l.b16 %v5483
        %v5580 = vunpack.c.l.b16 %v5484
        %v5581 = vunpack.c.l.b16 %v5485
        %v5582 = vunpack.c.l.b16 %v5486
        %v5583 = vunpack.c.l.b16 %v5487
        %v5584 = vunpack.c.l.b16 %v5488
        %v5585 = vunpack.c.l.b16 %v5489
        %v5586 = vunpack.c.l.b16 %v5490
        %v5587 = vunpack.c.l.b16 %v5491
        %v5588 = vunpack.c.l.b16 %v5492
        %v5589 = vpack.c.b16 %v5542, %v5541
        %v5590 = vpack.c.b16 %v5543, %v5543
        %v5591 = vpack.c.b16 %v5545, %v5544
        %v5592 = vpack.c.b16 %v5546, %v5546
        %v5593 = vpack.c.b16 %v5548, %v5547
        %v5594 = vpack.c.b16 %v5549, %v5549
        %v5595 = vpack.c.b16 %v5551, %v5550
        %v5596 = vpack.c.b16 %v5552, %v5552
        %v5597 = vpack.c.b16 %v5554, %v5553
        %v5598 = vpack.c.b16 %v5555, %v5555
        %v5599 = vpack.c.b16 %v5557, %v5556
        %v5600 = vpack.c.b16 %v5558, %v5558
        %v5601 = vpack.c.b16 %v5560, %v5559
        %v5602 = vpack.c.b16 %v5561, %v5561
        %v5603 = vpack.c.b16 %v5563, %v5562
        %v5604 = vpack.c.b16 %v5564, %v5564
        %v5605 = vpack.c.b16 %v5566, %v5565
        %v5606 = vpack.c.b16 %v5567, %v5567
        %v5607 = vpack.c.b16 %v5569, %v5568
        %v5608 = vpack.c.b16 %v5570, %v5570
        %v5609 = vpack.c.b16 %v5572, %v5571
        %v5610 = vpack.c.b16 %v5573, %v5573
        %v5611 = vpack.c.b16 %v5575, %v5574
        %v5612 = vpack.c.b16 %v5576, %v5576
        %v5613 = vpack.c.b16 %v5578, %v5577
        %v5614 = vpack.c.b16 %v5579, %v5579
        %v5615 = vpack.c.b16 %v5581, %v5580
        %v5616 = vpack.c.b16 %v5582, %v5582
        %v5617 = vpack.c.b16 %v5584, %v5583
        %v5618 = vpack.c.b16 %v5585, %v5585
        %v5619 = vpack.c.b16 %v5587, %v5586
        %v5620 = vpack.c.b16 %v5588, %v5588
        %v5622 = vshrl.u32 %v5589, 16
        %v5624 = vshll.u32 %v5589, 16
        %v5626 = vrot.slane %v5624, 1
        %v5627 = vor.u32 %v5622, %v5626
        %v5629 = vshll.u32 %v5590, 16
        %v5631 = vrot.slane %v5629, 1
        %v5632 = vsel %vm1224, %v5627, %v5631
        %v5634 = vshrl.u32 %v5591, 16
        %v5636 = vshll.u32 %v5591, 16
        %v5638 = vrot.slane %v5636, 1
        %v5639 = vor.u32 %v5634, %v5638
        %v5641 = vshll.u32 %v5592, 16
        %v5643 = vrot.slane %v5641, 1
        %v5644 = vsel %vm1224, %v5639, %v5643
        %v5646 = vshrl.u32 %v5593, 16
        %v5648 = vshll.u32 %v5593, 16
        %v5650 = vrot.slane %v5648, 1
        %v5651 = vor.u32 %v5646, %v5650
        %v5653 = vshll.u32 %v5594, 16
        %v5655 = vrot.slane %v5653, 1
        %v5656 = vsel %vm1224, %v5651, %v5655
        %v5658 = vshrl.u32 %v5595, 16
        %v5660 = vshll.u32 %v5595, 16
        %v5662 = vrot.slane %v5660, 1
        %v5663 = vor.u32 %v5658, %v5662
        %v5665 = vshll.u32 %v5596, 16
        %v5667 = vrot.slane %v5665, 1
        %v5668 = vsel %vm1224, %v5663, %v5667
        %v5670 = vshrl.u32 %v5597, 16
        %v5672 = vshll.u32 %v5597, 16
        %v5674 = vrot.slane %v5672, 1
        %v5675 = vor.u32 %v5670, %v5674
        %v5677 = vshll.u32 %v5598, 16
        %v5679 = vrot.slane %v5677, 1
        %v5680 = vsel %vm1224, %v5675, %v5679
        %v5682 = vshrl.u32 %v5599, 16
        %v5684 = vshll.u32 %v5599, 16
        %v5686 = vrot.slane %v5684, 1
        %v5687 = vor.u32 %v5682, %v5686
        %v5689 = vshll.u32 %v5600, 16
        %v5691 = vrot.slane %v5689, 1
        %v5692 = vsel %vm1224, %v5687, %v5691
        %v5694 = vshrl.u32 %v5601, 16
        %v5696 = vshll.u32 %v5601, 16
        %v5698 = vrot.slane %v5696, 1
        %v5699 = vor.u32 %v5694, %v5698
        %v5701 = vshll.u32 %v5602, 16
        %v5703 = vrot.slane %v5701, 1
        %v5704 = vsel %vm1224, %v5699, %v5703
        %v5706 = vshrl.u32 %v5603, 16
        %v5708 = vshll.u32 %v5603, 16
        %v5710 = vrot.slane %v5708, 1
        %v5711 = vor.u32 %v5706, %v5710
        %v5713 = vshll.u32 %v5604, 16
        %v5715 = vrot.slane %v5713, 1
        %v5716 = vsel %vm1224, %v5711, %v5715
        %v5718 = vshrl.u32 %v5605, 16
        %v5720 = vshll.u32 %v5605, 16
        %v5722 = vrot.slane %v5720, 1
        %v5723 = vor.u32 %v5718, %v5722
        %v5725 = vshll.u32 %v5606, 16
        %v5727 = vrot.slane %v5725, 1
        %v5728 = vsel %vm1224, %v5723, %v5727
        %v5730 = vshrl.u32 %v5607, 16
        %v5732 = vshll.u32 %v5607, 16
        %v5734 = vrot.slane %v5732, 1
        %v5735 = vor.u32 %v5730, %v5734
        %v5737 = vshll.u32 %v5608, 16
        %v5739 = vrot.slane %v5737, 1
        %v5740 = vsel %vm1224, %v5735, %v5739
        %v5742 = vshrl.u32 %v5609, 16
        %v5744 = vshll.u32 %v5609, 16
        %v5746 = vrot.slane %v5744, 1
        %v5747 = vor.u32 %v5742, %v5746
        %v5749 = vshll.u32 %v5610, 16
        %v5751 = vrot.slane %v5749, 1
        %v5752 = vsel %vm1224, %v5747, %v5751
        %v5754 = vshrl.u32 %v5611, 16
        %v5756 = vshll.u32 %v5611, 16
        %v5758 = vrot.slane %v5756, 1
        %v5759 = vor.u32 %v5754, %v5758
        %v5761 = vshll.u32 %v5612, 16
        %v5763 = vrot.slane %v5761, 1
        %v5764 = vsel %vm1224, %v5759, %v5763
        %v5766 = vshrl.u32 %v5613, 16
        %v5768 = vshll.u32 %v5613, 16
        %v5770 = vrot.slane %v5768, 1
        %v5771 = vor.u32 %v5766, %v5770
        %v5773 = vshll.u32 %v5614, 16
        %v5775 = vrot.slane %v5773, 1
        %v5776 = vsel %vm1224, %v5771, %v5775
        %v5778 = vshrl.u32 %v5615, 16
        %v5780 = vshll.u32 %v5615, 16
        %v5782 = vrot.slane %v5780, 1
        %v5783 = vor.u32 %v5778, %v5782
        %v5785 = vshll.u32 %v5616, 16
        %v5787 = vrot.slane %v5785, 1
        %v5788 = vsel %vm1224, %v5783, %v5787
        %v5790 = vshrl.u32 %v5617, 16
        %v5792 = vshll.u32 %v5617, 16
        %v5794 = vrot.slane %v5792, 1
        %v5795 = vor.u32 %v5790, %v5794
        %v5797 = vshll.u32 %v5618, 16
        %v5799 = vrot.slane %v5797, 1
        %v5800 = vsel %vm1224, %v5795, %v5799
        %v5802 = vshrl.u32 %v5619, 16
        %v5804 = vshll.u32 %v5619, 16
        %v5806 = vrot.slane %v5804, 1
        %v5807 = vor.u32 %v5802, %v5806
        %v5809 = vshll.u32 %v5620, 16
        %v5811 = vrot.slane %v5809, 1
        %v5812 = vsel %vm1224, %v5807, %v5811
        %5813 = vrot.lane.b32.xlu0 %v5632, 32
        %v5814 = vpop.permute.xlu0 %5813
        %5815 = vrot.lane.b32.xlu0 %v5644, 32
        %v5816 = vpop.permute.xlu0 %5815
        %5817 = vrot.lane.b32.xlu0 %v5656, 32
        %v5818 = vpop.permute.xlu0 %5817
        %5819 = vrot.lane.b32.xlu0 %v5668, 32
        %v5820 = vpop.permute.xlu0 %5819
        %5821 = vrot.lane.b32.xlu0 %v5680, 32
        %v5822 = vpop.permute.xlu0 %5821
        %5823 = vrot.lane.b32.xlu0 %v5692, 32
        %v5824 = vpop.permute.xlu0 %5823
        %5825 = vrot.lane.b32.xlu0 %v5704, 32
        %v5826 = vpop.permute.xlu0 %5825
        %5827 = vrot.lane.b32.xlu0 %v5716, 32
        %v5828 = vpop.permute.xlu0 %5827
        %5829 = vrot.lane.b32.xlu0 %v5728, 32
        %v5830 = vpop.permute.xlu0 %5829
        %5831 = vrot.lane.b32.xlu0 %v5740, 32
        %v5832 = vpop.permute.xlu0 %5831
        %5833 = vrot.lane.b32.xlu0 %v5752, 32
        %v5834 = vpop.permute.xlu0 %5833
        %5835 = vrot.lane.b32.xlu0 %v5764, 32
        %v5836 = vpop.permute.xlu0 %5835
        %5837 = vrot.lane.b32.xlu0 %v5776, 32
        %v5838 = vpop.permute.xlu0 %5837
        %5839 = vrot.lane.b32.xlu0 %v5788, 32
        %v5840 = vpop.permute.xlu0 %5839
        %5841 = vrot.lane.b32.xlu0 %v5800, 32
        %v5842 = vpop.permute.xlu0 %5841
        %5843 = vrot.lane.b32.xlu0 %v5812, 32
        %v5844 = vpop.permute.xlu0 %5843
        %5861 = vst.msk [vmem:[#allocation4] sm:$0xff] %vm2365, %v5814
        %5862 = vst.msk [vmem:[#allocation4 + $0x8] sm:$0xff] %vm2365, %v5816
        %5863 = vst.msk [vmem:[#allocation4 + $0x10] sm:$0xff] %vm2365, %v5818
        %5864 = vst.msk [vmem:[#allocation4 + $0x18] sm:$0xff] %vm2365, %v5820
        %5865 = vst.msk [vmem:[#allocation4 + $0x20] sm:$0xff] %vm2365, %v5822
        %5866 = vst.msk [vmem:[#allocation4 + $0x28] sm:$0xff] %vm2365, %v5824
        %5867 = vst.msk [vmem:[#allocation4 + $0x30] sm:$0xff] %vm2365, %v5826
        %5868 = vst.msk [vmem:[#allocation4 + $0x38] sm:$0xff] %vm2365, %v5828
        %5869 = vst.msk [vmem:[#allocation4 + $0x40] sm:$0xff] %vm2365, %v5830
        %5870 = vst.msk [vmem:[#allocation4 + $0x48] sm:$0xff] %vm2365, %v5832
        %5871 = vst.msk [vmem:[#allocation4 + $0x50] sm:$0xff] %vm2365, %v5834
        %5872 = vst.msk [vmem:[#allocation4 + $0x58] sm:$0xff] %vm2365, %v5836
        %5873 = vst.msk [vmem:[#allocation4 + $0x60] sm:$0xff] %vm2365, %v5838
        %5874 = vst.msk [vmem:[#allocation4 + $0x68] sm:$0xff] %vm2365, %v5840
        %5875 = vst.msk [vmem:[#allocation4 + $0x70] sm:$0xff] %vm2365, %v5842
        %5876 = vst.msk [vmem:[#allocation4 + $0x78] sm:$0xff] %vm2365, %v5844
        %v5877 = vld [vmem:[%s4292] sm:$0xe]
        %v5878 = vld [vmem:[%s4292 + $0x4] sm:$0xf]
        %v5879 = vld [vmem:[%s4292 + $0x8] sm:$0x1]
        %v5880 = vld [vmem:[%s4292 + $0xc] sm:$0xe]
        %v5881 = vld [vmem:[%s4292 + $0x10] sm:$0xf]
        %v5882 = vld [vmem:[%s4292 + $0x14] sm:$0x1]
        %v5883 = vld [vmem:[%s4292 + $0x18] sm:$0xe]
        %v5884 = vld [vmem:[%s4292 + $0x1c] sm:$0xf]
        %v5885 = vld [vmem:[%s4292 + $0x20] sm:$0x1]
        %v5886 = vld [vmem:[%s4292 + $0x24] sm:$0xe]
        %v5887 = vld [vmem:[%s4292 + $0x28] sm:$0xf]
        %v5888 = vld [vmem:[%s4292 + $0x2c] sm:$0x1]
        %v5889 = vld [vmem:[%s4292 + $0x30] sm:$0xe]
        %v5890 = vld [vmem:[%s4292 + $0x34] sm:$0xf]
        %v5891 = vld [vmem:[%s4292 + $0x38] sm:$0x1]
        %v5892 = vld [vmem:[%s4292 + $0x3c] sm:$0xe]
        %v5893 = vld [vmem:[%s4292 + $0x40] sm:$0xf]
        %v5894 = vld [vmem:[%s4292 + $0x44] sm:$0x1]
        %v5895 = vld [vmem:[%s4292 + $0x48] sm:$0xe]
        %v5896 = vld [vmem:[%s4292 + $0x4c] sm:$0xf]
        %v5897 = vld [vmem:[%s4292 + $0x50] sm:$0x1]
        %v5898 = vld [vmem:[%s4292 + $0x54] sm:$0xe]
        %v5899 = vld [vmem:[%s4292 + $0x58] sm:$0xf]
        %v5900 = vld [vmem:[%s4292 + $0x5c] sm:$0x1]
        %v5901 = vld [vmem:[%s4292 + $0x60] sm:$0xe]
        %v5902 = vld [vmem:[%s4292 + $0x64] sm:$0xf]
        %v5903 = vld [vmem:[%s4292 + $0x68] sm:$0x1]
        %v5904 = vld [vmem:[%s4292 + $0x6c] sm:$0xe]
        %v5905 = vld [vmem:[%s4292 + $0x70] sm:$0xf]
        %v5906 = vld [vmem:[%s4292 + $0x74] sm:$0x1]
        %v5907 = vld [vmem:[%s4292 + $0x78] sm:$0xe]
        %v5908 = vld [vmem:[%s4292 + $0x7c] sm:$0xf]
        %v5909 = vld [vmem:[%s4292 + $0x80] sm:$0x1]
        %v5910 = vld [vmem:[%s4292 + $0x84] sm:$0xe]
        %v5911 = vld [vmem:[%s4292 + $0x88] sm:$0xf]
        %v5912 = vld [vmem:[%s4292 + $0x8c] sm:$0x1]
        %v5913 = vld [vmem:[%s4292 + $0x90] sm:$0xe]
        %v5914 = vld [vmem:[%s4292 + $0x94] sm:$0xf]
        %v5915 = vld [vmem:[%s4292 + $0x98] sm:$0x1]
        %v5916 = vld [vmem:[%s4292 + $0x9c] sm:$0xe]
        %v5917 = vld [vmem:[%s4292 + $0xa0] sm:$0xf]
        %v5918 = vld [vmem:[%s4292 + $0xa4] sm:$0x1]
        %v5919 = vld [vmem:[%s4292 + $0xa8] sm:$0xe]
        %v5920 = vld [vmem:[%s4292 + $0xac] sm:$0xf]
        %v5921 = vld [vmem:[%s4292 + $0xb0] sm:$0x1]
        %v5922 = vld [vmem:[%s4292 + $0xb4] sm:$0xe]
        %v5923 = vld [vmem:[%s4292 + $0xb8] sm:$0xf]
        %v5924 = vld [vmem:[%s4292 + $0xbc] sm:$0x1]
        %v5973 = vunpack.c.l.b16 %v5877
        %v5974 = vunpack.c.l.b16 %v5878
        %v5975 = vunpack.c.l.b16 %v5879
        %v5976 = vunpack.c.l.b16 %v5880
        %v5977 = vunpack.c.l.b16 %v5881
        %v5978 = vunpack.c.l.b16 %v5882
        %v5979 = vunpack.c.l.b16 %v5883
        %v5980 = vunpack.c.l.b16 %v5884
        %v5981 = vunpack.c.l.b16 %v5885
        %v5982 = vunpack.c.l.b16 %v5886
        %v5983 = vunpack.c.l.b16 %v5887
        %v5984 = vunpack.c.l.b16 %v5888
        %v5985 = vunpack.c.l.b16 %v5889
        %v5986 = vunpack.c.l.b16 %v5890
        %v5987 = vunpack.c.l.b16 %v5891
        %v5988 = vunpack.c.l.b16 %v5892
        %v5989 = vunpack.c.l.b16 %v5893
        %v5990 = vunpack.c.l.b16 %v5894
        %v5991 = vunpack.c.l.b16 %v5895
        %v5992 = vunpack.c.l.b16 %v5896
        %v5993 = vunpack.c.l.b16 %v5897
        %v5994 = vunpack.c.l.b16 %v5898
        %v5995 = vunpack.c.l.b16 %v5899
        %v5996 = vunpack.c.l.b16 %v5900
        %v5997 = vunpack.c.l.b16 %v5901
        %v5998 = vunpack.c.l.b16 %v5902
        %v5999 = vunpack.c.l.b16 %v5903
        %v6000 = vunpack.c.l.b16 %v5904
        %v6001 = vunpack.c.l.b16 %v5905
        %v6002 = vunpack.c.l.b16 %v5906
        %v6003 = vunpack.c.l.b16 %v5907
        %v6004 = vunpack.c.l.b16 %v5908
        %v6005 = vunpack.c.l.b16 %v5909
        %v6006 = vunpack.c.l.b16 %v5910
        %v6007 = vunpack.c.l.b16 %v5911
        %v6008 = vunpack.c.l.b16 %v5912
        %v6009 = vunpack.c.l.b16 %v5913
        %v6010 = vunpack.c.l.b16 %v5914
        %v6011 = vunpack.c.l.b16 %v5915
        %v6012 = vunpack.c.l.b16 %v5916
        %v6013 = vunpack.c.l.b16 %v5917
        %v6014 = vunpack.c.l.b16 %v5918
        %v6015 = vunpack.c.l.b16 %v5919
        %v6016 = vunpack.c.l.b16 %v5920
        %v6017 = vunpack.c.l.b16 %v5921
        %v6018 = vunpack.c.l.b16 %v5922
        %v6019 = vunpack.c.l.b16 %v5923
        %v6020 = vunpack.c.l.b16 %v5924
        %v6021 = vpack.c.b16 %v5974, %v5973
        %v6022 = vpack.c.b16 %v5975, %v5975
        %v6023 = vpack.c.b16 %v5977, %v5976
        %v6024 = vpack.c.b16 %v5978, %v5978
        %v6025 = vpack.c.b16 %v5980, %v5979
        %v6026 = vpack.c.b16 %v5981, %v5981
        %v6027 = vpack.c.b16 %v5983, %v5982
        %v6028 = vpack.c.b16 %v5984, %v5984
        %v6029 = vpack.c.b16 %v5986, %v5985
        %v6030 = vpack.c.b16 %v5987, %v5987
        %v6031 = vpack.c.b16 %v5989, %v5988
        %v6032 = vpack.c.b16 %v5990, %v5990
        %v6033 = vpack.c.b16 %v5992, %v5991
        %v6034 = vpack.c.b16 %v5993, %v5993
        %v6035 = vpack.c.b16 %v5995, %v5994
        %v6036 = vpack.c.b16 %v5996, %v5996
        %v6037 = vpack.c.b16 %v5998, %v5997
        %v6038 = vpack.c.b16 %v5999, %v5999
        %v6039 = vpack.c.b16 %v6001, %v6000
        %v6040 = vpack.c.b16 %v6002, %v6002
        %v6041 = vpack.c.b16 %v6004, %v6003
        %v6042 = vpack.c.b16 %v6005, %v6005
        %v6043 = vpack.c.b16 %v6007, %v6006
        %v6044 = vpack.c.b16 %v6008, %v6008
        %v6045 = vpack.c.b16 %v6010, %v6009
        %v6046 = vpack.c.b16 %v6011, %v6011
        %v6047 = vpack.c.b16 %v6013, %v6012
        %v6048 = vpack.c.b16 %v6014, %v6014
        %v6049 = vpack.c.b16 %v6016, %v6015
        %v6050 = vpack.c.b16 %v6017, %v6017
        %v6051 = vpack.c.b16 %v6019, %v6018
        %v6052 = vpack.c.b16 %v6020, %v6020
        %v6053 = vrot.slane %v6021, 1
        %v6054 = vrot.slane %v6022, 1
        %v6055 = vsel %vm1658, %v6053, %v6054
        %v6056 = vrot.slane %v6023, 1
        %v6057 = vrot.slane %v6024, 1
        %v6058 = vsel %vm1658, %v6056, %v6057
        %v6059 = vrot.slane %v6025, 1
        %v6060 = vrot.slane %v6026, 1
        %v6061 = vsel %vm1658, %v6059, %v6060
        %v6062 = vrot.slane %v6027, 1
        %v6063 = vrot.slane %v6028, 1
        %v6064 = vsel %vm1658, %v6062, %v6063
        %v6065 = vrot.slane %v6029, 1
        %v6066 = vrot.slane %v6030, 1
        %v6067 = vsel %vm1658, %v6065, %v6066
        %v6068 = vrot.slane %v6031, 1
        %v6069 = vrot.slane %v6032, 1
        %v6070 = vsel %vm1658, %v6068, %v6069
        %v6071 = vrot.slane %v6033, 1
        %v6072 = vrot.slane %v6034, 1
        %v6073 = vsel %vm1658, %v6071, %v6072
        %v6074 = vrot.slane %v6035, 1
        %v6075 = vrot.slane %v6036, 1
        %v6076 = vsel %vm1658, %v6074, %v6075
        %v6077 = vrot.slane %v6037, 1
        %v6078 = vrot.slane %v6038, 1
        %v6079 = vsel %vm1658, %v6077, %v6078
        %v6080 = vrot.slane %v6039, 1
        %v6081 = vrot.slane %v6040, 1
        %v6082 = vsel %vm1658, %v6080, %v6081
        %v6083 = vrot.slane %v6041, 1
        %v6084 = vrot.slane %v6042, 1
        %v6085 = vsel %vm1658, %v6083, %v6084
        %v6086 = vrot.slane %v6043, 1
        %v6087 = vrot.slane %v6044, 1
        %v6088 = vsel %vm1658, %v6086, %v6087
        %v6089 = vrot.slane %v6045, 1
        %v6090 = vrot.slane %v6046, 1
        %v6091 = vsel %vm1658, %v6089, %v6090
        %v6092 = vrot.slane %v6047, 1
        %v6093 = vrot.slane %v6048, 1
        %v6094 = vsel %vm1658, %v6092, %v6093
        %v6095 = vrot.slane %v6049, 1
        %v6096 = vrot.slane %v6050, 1
        %v6097 = vsel %vm1658, %v6095, %v6096
        %v6098 = vrot.slane %v6051, 1
        %v6099 = vrot.slane %v6052, 1
        %v6100 = vsel %vm1658, %v6098, %v6099
        %6101 = vrot.lane.b32.xlu0 %v6055, 40
        %v6102 = vpop.permute.xlu0 %6101
        %6103 = vrot.lane.b32.xlu0 %v6058, 40
        %v6104 = vpop.permute.xlu0 %6103
        %6105 = vrot.lane.b32.xlu0 %v6061, 40
        %v6106 = vpop.permute.xlu0 %6105
        %6107 = vrot.lane.b32.xlu0 %v6064, 40
        %v6108 = vpop.permute.xlu0 %6107
        %6109 = vrot.lane.b32.xlu0 %v6067, 40
        %v6110 = vpop.permute.xlu0 %6109
        %6111 = vrot.lane.b32.xlu0 %v6070, 40
        %v6112 = vpop.permute.xlu0 %6111
        %6113 = vrot.lane.b32.xlu0 %v6073, 40
        %v6114 = vpop.permute.xlu0 %6113
        %6115 = vrot.lane.b32.xlu0 %v6076, 40
        %v6116 = vpop.permute.xlu0 %6115
        %6117 = vrot.lane.b32.xlu0 %v6079, 40
        %v6118 = vpop.permute.xlu0 %6117
        %6119 = vrot.lane.b32.xlu0 %v6082, 40
        %v6120 = vpop.permute.xlu0 %6119
        %6121 = vrot.lane.b32.xlu0 %v6085, 40
        %v6122 = vpop.permute.xlu0 %6121
        %6123 = vrot.lane.b32.xlu0 %v6088, 40
        %v6124 = vpop.permute.xlu0 %6123
        %6125 = vrot.lane.b32.xlu0 %v6091, 40
        %v6126 = vpop.permute.xlu0 %6125
        %6127 = vrot.lane.b32.xlu0 %v6094, 40
        %v6128 = vpop.permute.xlu0 %6127
        %6129 = vrot.lane.b32.xlu0 %v6097, 40
        %v6130 = vpop.permute.xlu0 %6129
        %6131 = vrot.lane.b32.xlu0 %v6100, 40
        %v6132 = vpop.permute.xlu0 %6131
        %6149 = vst.msk [vmem:[#allocation4] sm:$0xff] %vm2654, %v6102
        %6150 = vst.msk [vmem:[#allocation4 + $0x8] sm:$0xff] %vm2654, %v6104
        %6151 = vst.msk [vmem:[#allocation4 + $0x10] sm:$0xff] %vm2654, %v6106
        %6152 = vst.msk [vmem:[#allocation4 + $0x18] sm:$0xff] %vm2654, %v6108
        %6153 = vst.msk [vmem:[#allocation4 + $0x20] sm:$0xff] %vm2654, %v6110
        %6154 = vst.msk [vmem:[#allocation4 + $0x28] sm:$0xff] %vm2654, %v6112
        %6155 = vst.msk [vmem:[#allocation4 + $0x30] sm:$0xff] %vm2654, %v6114
        %6156 = vst.msk [vmem:[#allocation4 + $0x38] sm:$0xff] %vm2654, %v6116
        %6157 = vst.msk [vmem:[#allocation4 + $0x40] sm:$0xff] %vm2654, %v6118
        %6158 = vst.msk [vmem:[#allocation4 + $0x48] sm:$0xff] %vm2654, %v6120
        %6159 = vst.msk [vmem:[#allocation4 + $0x50] sm:$0xff] %vm2654, %v6122
        %6160 = vst.msk [vmem:[#allocation4 + $0x58] sm:$0xff] %vm2654, %v6124
        %6161 = vst.msk [vmem:[#allocation4 + $0x60] sm:$0xff] %vm2654, %v6126
        %6162 = vst.msk [vmem:[#allocation4 + $0x68] sm:$0xff] %vm2654, %v6128
        %6163 = vst.msk [vmem:[#allocation4 + $0x70] sm:$0xff] %vm2654, %v6130
        %6164 = vst.msk [vmem:[#allocation4 + $0x78] sm:$0xff] %vm2654, %v6132
        %s6165 = scalar_lea.vmem [#allocation3], 24
        %v6166 = vld [vmem:[%s6165] sm:$0xf]
        %v6167 = vld [vmem:[%s6165 + $0x4] sm:$0xf]
        %v6168 = vld [vmem:[%s6165 + $0xc] sm:$0xf]
        %v6169 = vld [vmem:[%s6165 + $0x10] sm:$0xf]
        %v6170 = vld [vmem:[%s6165 + $0x18] sm:$0xf]
        %v6171 = vld [vmem:[%s6165 + $0x1c] sm:$0xf]
        %v6172 = vld [vmem:[%s6165 + $0x24] sm:$0xf]
        %v6173 = vld [vmem:[%s6165 + $0x28] sm:$0xf]
        %v6174 = vld [vmem:[%s6165 + $0x30] sm:$0xf]
        %v6175 = vld [vmem:[%s6165 + $0x34] sm:$0xf]
        %v6176 = vld [vmem:[%s6165 + $0x3c] sm:$0xf]
        %v6177 = vld [vmem:[%s6165 + $0x40] sm:$0xf]
        %v6178 = vld [vmem:[%s6165 + $0x48] sm:$0xf]
        %v6179 = vld [vmem:[%s6165 + $0x4c] sm:$0xf]
        %v6180 = vld [vmem:[%s6165 + $0x54] sm:$0xf]
        %v6181 = vld [vmem:[%s6165 + $0x58] sm:$0xf]
        %v6182 = vld [vmem:[%s6165 + $0x60] sm:$0xf]
        %v6183 = vld [vmem:[%s6165 + $0x64] sm:$0xf]
        %v6184 = vld [vmem:[%s6165 + $0x6c] sm:$0xf]
        %v6185 = vld [vmem:[%s6165 + $0x70] sm:$0xf]
        %v6186 = vld [vmem:[%s6165 + $0x78] sm:$0xf]
        %v6187 = vld [vmem:[%s6165 + $0x7c] sm:$0xf]
        %v6188 = vld [vmem:[%s6165 + $0x84] sm:$0xf]
        %v6189 = vld [vmem:[%s6165 + $0x88] sm:$0xf]
        %v6190 = vld [vmem:[%s6165 + $0x90] sm:$0xf]
        %v6191 = vld [vmem:[%s6165 + $0x94] sm:$0xf]
        %v6192 = vld [vmem:[%s6165 + $0x9c] sm:$0xf]
        %v6193 = vld [vmem:[%s6165 + $0xa0] sm:$0xf]
        %v6194 = vld [vmem:[%s6165 + $0xa8] sm:$0xf]
        %v6195 = vld [vmem:[%s6165 + $0xac] sm:$0xf]
        %v6196 = vld [vmem:[%s6165 + $0xb4] sm:$0xf]
        %v6197 = vld [vmem:[%s6165 + $0xb8] sm:$0xf]
        %v6230 = vunpack.c.l.b16 %v6166
        %v6231 = vunpack.c.l.b16 %v6167
        %v6232 = vunpack.c.l.b16 %v6168
        %v6233 = vunpack.c.l.b16 %v6169
        %v6234 = vunpack.c.l.b16 %v6170
        %v6235 = vunpack.c.l.b16 %v6171
        %v6236 = vunpack.c.l.b16 %v6172
        %v6237 = vunpack.c.l.b16 %v6173
        %v6238 = vunpack.c.l.b16 %v6174
        %v6239 = vunpack.c.l.b16 %v6175
        %v6240 = vunpack.c.l.b16 %v6176
        %v6241 = vunpack.c.l.b16 %v6177
        %v6242 = vunpack.c.l.b16 %v6178
        %v6243 = vunpack.c.l.b16 %v6179
        %v6244 = vunpack.c.l.b16 %v6180
        %v6245 = vunpack.c.l.b16 %v6181
        %v6246 = vunpack.c.l.b16 %v6182
        %v6247 = vunpack.c.l.b16 %v6183
        %v6248 = vunpack.c.l.b16 %v6184
        %v6249 = vunpack.c.l.b16 %v6185
        %v6250 = vunpack.c.l.b16 %v6186
        %v6251 = vunpack.c.l.b16 %v6187
        %v6252 = vunpack.c.l.b16 %v6188
        %v6253 = vunpack.c.l.b16 %v6189
        %v6254 = vunpack.c.l.b16 %v6190
        %v6255 = vunpack.c.l.b16 %v6191
        %v6256 = vunpack.c.l.b16 %v6192
        %v6257 = vunpack.c.l.b16 %v6193
        %v6258 = vunpack.c.l.b16 %v6194
        %v6259 = vunpack.c.l.b16 %v6195
        %v6260 = vunpack.c.l.b16 %v6196
        %v6261 = vunpack.c.l.b16 %v6197
        %v6262 = vpack.c.b16 %v6231, %v6230
        %v6263 = vpack.c.b16 %v6233, %v6232
        %v6264 = vpack.c.b16 %v6235, %v6234
        %v6265 = vpack.c.b16 %v6237, %v6236
        %v6266 = vpack.c.b16 %v6239, %v6238
        %v6267 = vpack.c.b16 %v6241, %v6240
        %v6268 = vpack.c.b16 %v6243, %v6242
        %v6269 = vpack.c.b16 %v6245, %v6244
        %v6270 = vpack.c.b16 %v6247, %v6246
        %v6271 = vpack.c.b16 %v6249, %v6248
        %v6272 = vpack.c.b16 %v6251, %v6250
        %v6273 = vpack.c.b16 %v6253, %v6252
        %v6274 = vpack.c.b16 %v6255, %v6254
        %v6275 = vpack.c.b16 %v6257, %v6256
        %v6276 = vpack.c.b16 %v6259, %v6258
        %v6277 = vpack.c.b16 %v6261, %v6260
        %6278 = vrot.lane.b32.xlu0 %v6262, 48
        %v6279 = vpop.permute.xlu0 %6278
        %6280 = vrot.lane.b32.xlu0 %v6263, 48
        %v6281 = vpop.permute.xlu0 %6280
        %6282 = vrot.lane.b32.xlu0 %v6264, 48
        %v6283 = vpop.permute.xlu0 %6282
        %6284 = vrot.lane.b32.xlu0 %v6265, 48
        %v6285 = vpop.permute.xlu0 %6284
        %6286 = vrot.lane.b32.xlu0 %v6266, 48
        %v6287 = vpop.permute.xlu0 %6286
        %6288 = vrot.lane.b32.xlu0 %v6267, 48
        %v6289 = vpop.permute.xlu0 %6288
        %6290 = vrot.lane.b32.xlu0 %v6268, 48
        %v6291 = vpop.permute.xlu0 %6290
        %6292 = vrot.lane.b32.xlu0 %v6269, 48
        %v6293 = vpop.permute.xlu0 %6292
        %6294 = vrot.lane.b32.xlu0 %v6270, 48
        %v6295 = vpop.permute.xlu0 %6294
        %6296 = vrot.lane.b32.xlu0 %v6271, 48
        %v6297 = vpop.permute.xlu0 %6296
        %6298 = vrot.lane.b32.xlu0 %v6272, 48
        %v6299 = vpop.permute.xlu0 %6298
        %6300 = vrot.lane.b32.xlu0 %v6273, 48
        %v6301 = vpop.permute.xlu0 %6300
        %6302 = vrot.lane.b32.xlu0 %v6274, 48
        %v6303 = vpop.permute.xlu0 %6302
        %6304 = vrot.lane.b32.xlu0 %v6275, 48
        %v6305 = vpop.permute.xlu0 %6304
        %6306 = vrot.lane.b32.xlu0 %v6276, 48
        %v6307 = vpop.permute.xlu0 %6306
        %6308 = vrot.lane.b32.xlu0 %v6277, 48
        %v6309 = vpop.permute.xlu0 %6308
        %6326 = vst.msk [vmem:[#allocation4] sm:$0xff] %vm2832, %v6279
        %6327 = vst.msk [vmem:[#allocation4 + $0x8] sm:$0xff] %vm2832, %v6281
        %6328 = vst.msk [vmem:[#allocation4 + $0x10] sm:$0xff] %vm2832, %v6283
        %6329 = vst.msk [vmem:[#allocation4 + $0x18] sm:$0xff] %vm2832, %v6285
        %6330 = vst.msk [vmem:[#allocation4 + $0x20] sm:$0xff] %vm2832, %v6287
        %6331 = vst.msk [vmem:[#allocation4 + $0x28] sm:$0xff] %vm2832, %v6289
        %6332 = vst.msk [vmem:[#allocation4 + $0x30] sm:$0xff] %vm2832, %v6291
        %6333 = vst.msk [vmem:[#allocation4 + $0x38] sm:$0xff] %vm2832, %v6293
        %6334 = vst.msk [vmem:[#allocation4 + $0x40] sm:$0xff] %vm2832, %v6295
        %6335 = vst.msk [vmem:[#allocation4 + $0x48] sm:$0xff] %vm2832, %v6297
        %6336 = vst.msk [vmem:[#allocation4 + $0x50] sm:$0xff] %vm2832, %v6299
        %6337 = vst.msk [vmem:[#allocation4 + $0x58] sm:$0xff] %vm2832, %v6301
        %6338 = vst.msk [vmem:[#allocation4 + $0x60] sm:$0xff] %vm2832, %v6303
        %6339 = vst.msk [vmem:[#allocation4 + $0x68] sm:$0xff] %vm2832, %v6305
        %6340 = vst.msk [vmem:[#allocation4 + $0x70] sm:$0xff] %vm2832, %v6307
        %6341 = vst.msk [vmem:[#allocation4 + $0x78] sm:$0xff] %vm2832, %v6309
        %v6342 = vld [vmem:[%s6165] sm:$0xf]
        %v6343 = vld [vmem:[%s6165 + $0x4] sm:$0xf]
        %v6344 = vld [vmem:[%s6165 + $0x8] sm:$0x1]
        %v6345 = vld [vmem:[%s6165 + $0xc] sm:$0xf]
        %v6346 = vld [vmem:[%s6165 + $0x10] sm:$0xf]
        %v6347 = vld [vmem:[%s6165 + $0x14] sm:$0x1]
        %v6348 = vld [vmem:[%s6165 + $0x18] sm:$0xf]
        %v6349 = vld [vmem:[%s6165 + $0x1c] sm:$0xf]
        %v6350 = vld [vmem:[%s6165 + $0x20] sm:$0x1]
        %v6351 = vld [vmem:[%s6165 + $0x24] sm:$0xf]
        %v6352 = vld [vmem:[%s6165 + $0x28] sm:$0xf]
        %v6353 = vld [vmem:[%s6165 + $0x2c] sm:$0x1]
        %v6354 = vld [vmem:[%s6165 + $0x30] sm:$0xf]
        %v6355 = vld [vmem:[%s6165 + $0x34] sm:$0xf]
        %v6356 = vld [vmem:[%s6165 + $0x38] sm:$0x1]
        %v6357 = vld [vmem:[%s6165 + $0x3c] sm:$0xf]
        %v6358 = vld [vmem:[%s6165 + $0x40] sm:$0xf]
        %v6359 = vld [vmem:[%s6165 + $0x44] sm:$0x1]
        %v6360 = vld [vmem:[%s6165 + $0x48] sm:$0xf]
        %v6361 = vld [vmem:[%s6165 + $0x4c] sm:$0xf]
        %v6362 = vld [vmem:[%s6165 + $0x50] sm:$0x1]
        %v6363 = vld [vmem:[%s6165 + $0x54] sm:$0xf]
        %v6364 = vld [vmem:[%s6165 + $0x58] sm:$0xf]
        %v6365 = vld [vmem:[%s6165 + $0x5c] sm:$0x1]
        %v6366 = vld [vmem:[%s6165 + $0x60] sm:$0xf]
        %v6367 = vld [vmem:[%s6165 + $0x64] sm:$0xf]
        %v6368 = vld [vmem:[%s6165 + $0x68] sm:$0x1]
        %v6369 = vld [vmem:[%s6165 + $0x6c] sm:$0xf]
        %v6370 = vld [vmem:[%s6165 + $0x70] sm:$0xf]
        %v6371 = vld [vmem:[%s6165 + $0x74] sm:$0x1]
        %v6372 = vld [vmem:[%s6165 + $0x78] sm:$0xf]
        %v6373 = vld [vmem:[%s6165 + $0x7c] sm:$0xf]
        %v6374 = vld [vmem:[%s6165 + $0x80] sm:$0x1]
        %v6375 = vld [vmem:[%s6165 + $0x84] sm:$0xf]
        %v6376 = vld [vmem:[%s6165 + $0x88] sm:$0xf]
        %v6377 = vld [vmem:[%s6165 + $0x8c] sm:$0x1]
        %v6378 = vld [vmem:[%s6165 + $0x90] sm:$0xf]
        %v6379 = vld [vmem:[%s6165 + $0x94] sm:$0xf]
        %v6380 = vld [vmem:[%s6165 + $0x98] sm:$0x1]
        %v6381 = vld [vmem:[%s6165 + $0x9c] sm:$0xf]
        %v6382 = vld [vmem:[%s6165 + $0xa0] sm:$0xf]
        %v6383 = vld [vmem:[%s6165 + $0xa4] sm:$0x1]
        %v6384 = vld [vmem:[%s6165 + $0xa8] sm:$0xf]
        %v6385 = vld [vmem:[%s6165 + $0xac] sm:$0xf]
        %v6386 = vld [vmem:[%s6165 + $0xb0] sm:$0x1]
        %v6387 = vld [vmem:[%s6165 + $0xb4] sm:$0xf]
        %v6388 = vld [vmem:[%s6165 + $0xb8] sm:$0xf]
        %v6389 = vld [vmem:[%s6165 + $0xbc] sm:$0x1]
        %v6438 = vunpack.c.l.b16 %v6342
        %v6439 = vunpack.c.l.b16 %v6343
        %v6440 = vunpack.c.l.b16 %v6344
        %v6441 = vunpack.c.l.b16 %v6345
        %v6442 = vunpack.c.l.b16 %v6346
        %v6443 = vunpack.c.l.b16 %v6347
        %v6444 = vunpack.c.l.b16 %v6348
        %v6445 = vunpack.c.l.b16 %v6349
        %v6446 = vunpack.c.l.b16 %v6350
        %v6447 = vunpack.c.l.b16 %v6351
        %v6448 = vunpack.c.l.b16 %v6352
        %v6449 = vunpack.c.l.b16 %v6353
        %v6450 = vunpack.c.l.b16 %v6354
        %v6451 = vunpack.c.l.b16 %v6355
        %v6452 = vunpack.c.l.b16 %v6356
        %v6453 = vunpack.c.l.b16 %v6357
        %v6454 = vunpack.c.l.b16 %v6358
        %v6455 = vunpack.c.l.b16 %v6359
        %v6456 = vunpack.c.l.b16 %v6360
        %v6457 = vunpack.c.l.b16 %v6361
        %v6458 = vunpack.c.l.b16 %v6362
        %v6459 = vunpack.c.l.b16 %v6363
        %v6460 = vunpack.c.l.b16 %v6364
        %v6461 = vunpack.c.l.b16 %v6365
        %v6462 = vunpack.c.l.b16 %v6366
        %v6463 = vunpack.c.l.b16 %v6367
        %v6464 = vunpack.c.l.b16 %v6368
        %v6465 = vunpack.c.l.b16 %v6369
        %v6466 = vunpack.c.l.b16 %v6370
        %v6467 = vunpack.c.l.b16 %v6371
        %v6468 = vunpack.c.l.b16 %v6372
        %v6469 = vunpack.c.l.b16 %v6373
        %v6470 = vunpack.c.l.b16 %v6374
        %v6471 = vunpack.c.l.b16 %v6375
        %v6472 = vunpack.c.l.b16 %v6376
        %v6473 = vunpack.c.l.b16 %v6377
        %v6474 = vunpack.c.l.b16 %v6378
        %v6475 = vunpack.c.l.b16 %v6379
        %v6476 = vunpack.c.l.b16 %v6380
        %v6477 = vunpack.c.l.b16 %v6381
        %v6478 = vunpack.c.l.b16 %v6382
        %v6479 = vunpack.c.l.b16 %v6383
        %v6480 = vunpack.c.l.b16 %v6384
        %v6481 = vunpack.c.l.b16 %v6385
        %v6482 = vunpack.c.l.b16 %v6386
        %v6483 = vunpack.c.l.b16 %v6387
        %v6484 = vunpack.c.l.b16 %v6388
        %v6485 = vunpack.c.l.b16 %v6389
        %v6486 = vpack.c.b16 %v6439, %v6438
        %v6487 = vpack.c.b16 %v6440, %v6440
        %v6488 = vpack.c.b16 %v6442, %v6441
        %v6489 = vpack.c.b16 %v6443, %v6443
        %v6490 = vpack.c.b16 %v6445, %v6444
        %v6491 = vpack.c.b16 %v6446, %v6446
        %v6492 = vpack.c.b16 %v6448, %v6447
        %v6493 = vpack.c.b16 %v6449, %v6449
        %v6494 = vpack.c.b16 %v6451, %v6450
        %v6495 = vpack.c.b16 %v6452, %v6452
        %v6496 = vpack.c.b16 %v6454, %v6453
        %v6497 = vpack.c.b16 %v6455, %v6455
        %v6498 = vpack.c.b16 %v6457, %v6456
        %v6499 = vpack.c.b16 %v6458, %v6458
        %v6500 = vpack.c.b16 %v6460, %v6459
        %v6501 = vpack.c.b16 %v6461, %v6461
        %v6502 = vpack.c.b16 %v6463, %v6462
        %v6503 = vpack.c.b16 %v6464, %v6464
        %v6504 = vpack.c.b16 %v6466, %v6465
        %v6505 = vpack.c.b16 %v6467, %v6467
        %v6506 = vpack.c.b16 %v6469, %v6468
        %v6507 = vpack.c.b16 %v6470, %v6470
        %v6508 = vpack.c.b16 %v6472, %v6471
        %v6509 = vpack.c.b16 %v6473, %v6473
        %v6510 = vpack.c.b16 %v6475, %v6474
        %v6511 = vpack.c.b16 %v6476, %v6476
        %v6512 = vpack.c.b16 %v6478, %v6477
        %v6513 = vpack.c.b16 %v6479, %v6479
        %v6514 = vpack.c.b16 %v6481, %v6480
        %v6515 = vpack.c.b16 %v6482, %v6482
        %v6516 = vpack.c.b16 %v6484, %v6483
        %v6517 = vpack.c.b16 %v6485, %v6485
        %v6519 = vshrl.u32 %v6486, 16
        %v6521 = vshll.u32 %v6486, 16
        %v6523 = vrot.slane %v6521, 1
        %v6524 = vor.u32 %v6519, %v6523
        %v6526 = vshll.u32 %v6487, 16
        %v6528 = vrot.slane %v6526, 1
        %v6529 = vsel %vm1224, %v6524, %v6528
        %v6531 = vshrl.u32 %v6488, 16
        %v6533 = vshll.u32 %v6488, 16
        %v6535 = vrot.slane %v6533, 1
        %v6536 = vor.u32 %v6531, %v6535
        %v6538 = vshll.u32 %v6489, 16
        %v6540 = vrot.slane %v6538, 1
        %v6541 = vsel %vm1224, %v6536, %v6540
        %v6543 = vshrl.u32 %v6490, 16
        %v6545 = vshll.u32 %v6490, 16
        %v6547 = vrot.slane %v6545, 1
        %v6548 = vor.u32 %v6543, %v6547
        %v6550 = vshll.u32 %v6491, 16
        %v6552 = vrot.slane %v6550, 1
        %v6553 = vsel %vm1224, %v6548, %v6552
        %v6555 = vshrl.u32 %v6492, 16
        %v6557 = vshll.u32 %v6492, 16
        %v6559 = vrot.slane %v6557, 1
        %v6560 = vor.u32 %v6555, %v6559
        %v6562 = vshll.u32 %v6493, 16
        %v6564 = vrot.slane %v6562, 1
        %v6565 = vsel %vm1224, %v6560, %v6564
        %v6567 = vshrl.u32 %v6494, 16
        %v6569 = vshll.u32 %v6494, 16
        %v6571 = vrot.slane %v6569, 1
        %v6572 = vor.u32 %v6567, %v6571
        %v6574 = vshll.u32 %v6495, 16
        %v6576 = vrot.slane %v6574, 1
        %v6577 = vsel %vm1224, %v6572, %v6576
        %v6579 = vshrl.u32 %v6496, 16
        %v6581 = vshll.u32 %v6496, 16
        %v6583 = vrot.slane %v6581, 1
        %v6584 = vor.u32 %v6579, %v6583
        %v6586 = vshll.u32 %v6497, 16
        %v6588 = vrot.slane %v6586, 1
        %v6589 = vsel %vm1224, %v6584, %v6588
        %v6591 = vshrl.u32 %v6498, 16
        %v6593 = vshll.u32 %v6498, 16
        %v6595 = vrot.slane %v6593, 1
        %v6596 = vor.u32 %v6591, %v6595
        %v6598 = vshll.u32 %v6499, 16
        %v6600 = vrot.slane %v6598, 1
        %v6601 = vsel %vm1224, %v6596, %v6600
        %v6603 = vshrl.u32 %v6500, 16
        %v6605 = vshll.u32 %v6500, 16
        %v6607 = vrot.slane %v6605, 1
        %v6608 = vor.u32 %v6603, %v6607
        %v6610 = vshll.u32 %v6501, 16
        %v6612 = vrot.slane %v6610, 1
        %v6613 = vsel %vm1224, %v6608, %v6612
        %v6615 = vshrl.u32 %v6502, 16
        %v6617 = vshll.u32 %v6502, 16
        %v6619 = vrot.slane %v6617, 1
        %v6620 = vor.u32 %v6615, %v6619
        %v6622 = vshll.u32 %v6503, 16
        %v6624 = vrot.slane %v6622, 1
        %v6625 = vsel %vm1224, %v6620, %v6624
        %v6627 = vshrl.u32 %v6504, 16
        %v6629 = vshll.u32 %v6504, 16
        %v6631 = vrot.slane %v6629, 1
        %v6632 = vor.u32 %v6627, %v6631
        %v6634 = vshll.u32 %v6505, 16
        %v6636 = vrot.slane %v6634, 1
        %v6637 = vsel %vm1224, %v6632, %v6636
        %v6639 = vshrl.u32 %v6506, 16
        %v6641 = vshll.u32 %v6506, 16
        %v6643 = vrot.slane %v6641, 1
        %v6644 = vor.u32 %v6639, %v6643
        %v6646 = vshll.u32 %v6507, 16
        %v6648 = vrot.slane %v6646, 1
        %v6649 = vsel %vm1224, %v6644, %v6648
        %v6651 = vshrl.u32 %v6508, 16
        %v6653 = vshll.u32 %v6508, 16
        %v6655 = vrot.slane %v6653, 1
        %v6656 = vor.u32 %v6651, %v6655
        %v6658 = vshll.u32 %v6509, 16
        %v6660 = vrot.slane %v6658, 1
        %v6661 = vsel %vm1224, %v6656, %v6660
        %v6663 = vshrl.u32 %v6510, 16
        %v6665 = vshll.u32 %v6510, 16
        %v6667 = vrot.slane %v6665, 1
        %v6668 = vor.u32 %v6663, %v6667
        %v6670 = vshll.u32 %v6511, 16
        %v6672 = vrot.slane %v6670, 1
        %v6673 = vsel %vm1224, %v6668, %v6672
        %v6675 = vshrl.u32 %v6512, 16
        %v6677 = vshll.u32 %v6512, 16
        %v6679 = vrot.slane %v6677, 1
        %v6680 = vor.u32 %v6675, %v6679
        %v6682 = vshll.u32 %v6513, 16
        %v6684 = vrot.slane %v6682, 1
        %v6685 = vsel %vm1224, %v6680, %v6684
        %v6687 = vshrl.u32 %v6514, 16
        %v6689 = vshll.u32 %v6514, 16
        %v6691 = vrot.slane %v6689, 1
        %v6692 = vor.u32 %v6687, %v6691
        %v6694 = vshll.u32 %v6515, 16
        %v6696 = vrot.slane %v6694, 1
        %v6697 = vsel %vm1224, %v6692, %v6696
        %v6699 = vshrl.u32 %v6516, 16
        %v6701 = vshll.u32 %v6516, 16
        %v6703 = vrot.slane %v6701, 1
        %v6704 = vor.u32 %v6699, %v6703
        %v6706 = vshll.u32 %v6517, 16
        %v6708 = vrot.slane %v6706, 1
        %v6709 = vsel %vm1224, %v6704, %v6708
        %6710 = vrot.lane.b32.xlu0 %v6529, 56
        %v6711 = vpop.permute.xlu0 %6710
        %6712 = vrot.lane.b32.xlu0 %v6541, 56
        %v6713 = vpop.permute.xlu0 %6712
        %6714 = vrot.lane.b32.xlu0 %v6553, 56
        %v6715 = vpop.permute.xlu0 %6714
        %6716 = vrot.lane.b32.xlu0 %v6565, 56
        %v6717 = vpop.permute.xlu0 %6716
        %6718 = vrot.lane.b32.xlu0 %v6577, 56
        %v6719 = vpop.permute.xlu0 %6718
        %6720 = vrot.lane.b32.xlu0 %v6589, 56
        %v6721 = vpop.permute.xlu0 %6720
        %6722 = vrot.lane.b32.xlu0 %v6601, 56
        %v6723 = vpop.permute.xlu0 %6722
        %6724 = vrot.lane.b32.xlu0 %v6613, 56
        %v6725 = vpop.permute.xlu0 %6724
        %6726 = vrot.lane.b32.xlu0 %v6625, 56
        %v6727 = vpop.permute.xlu0 %6726
        %6728 = vrot.lane.b32.xlu0 %v6637, 56
        %v6729 = vpop.permute.xlu0 %6728
        %6730 = vrot.lane.b32.xlu0 %v6649, 56
        %v6731 = vpop.permute.xlu0 %6730
        %6732 = vrot.lane.b32.xlu0 %v6661, 56
        %v6733 = vpop.permute.xlu0 %6732
        %6734 = vrot.lane.b32.xlu0 %v6673, 56
        %v6735 = vpop.permute.xlu0 %6734
        %6736 = vrot.lane.b32.xlu0 %v6685, 56
        %v6737 = vpop.permute.xlu0 %6736
        %6738 = vrot.lane.b32.xlu0 %v6697, 56
        %v6739 = vpop.permute.xlu0 %6738
        %6740 = vrot.lane.b32.xlu0 %v6709, 56
        %v6741 = vpop.permute.xlu0 %6740
        %6758 = vst.msk [vmem:[#allocation4] sm:$0xff] %vm3265, %v6711
        %6759 = vst.msk [vmem:[#allocation4 + $0x8] sm:$0xff] %vm3265, %v6713
        %6760 = vst.msk [vmem:[#allocation4 + $0x10] sm:$0xff] %vm3265, %v6715
        %6761 = vst.msk [vmem:[#allocation4 + $0x18] sm:$0xff] %vm3265, %v6717
        %6762 = vst.msk [vmem:[#allocation4 + $0x20] sm:$0xff] %vm3265, %v6719
        %6763 = vst.msk [vmem:[#allocation4 + $0x28] sm:$0xff] %vm3265, %v6721
        %6764 = vst.msk [vmem:[#allocation4 + $0x30] sm:$0xff] %vm3265, %v6723
        %6765 = vst.msk [vmem:[#allocation4 + $0x38] sm:$0xff] %vm3265, %v6725
        %6766 = vst.msk [vmem:[#allocation4 + $0x40] sm:$0xff] %vm3265, %v6727
        %6767 = vst.msk [vmem:[#allocation4 + $0x48] sm:$0xff] %vm3265, %v6729
        %6768 = vst.msk [vmem:[#allocation4 + $0x50] sm:$0xff] %vm3265, %v6731
        %6769 = vst.msk [vmem:[#allocation4 + $0x58] sm:$0xff] %vm3265, %v6733
        %6770 = vst.msk [vmem:[#allocation4 + $0x60] sm:$0xff] %vm3265, %v6735
        %6771 = vst.msk [vmem:[#allocation4 + $0x68] sm:$0xff] %vm3265, %v6737
        %6772 = vst.msk [vmem:[#allocation4 + $0x70] sm:$0xff] %vm3265, %v6739
        %6773 = vst.msk [vmem:[#allocation4 + $0x78] sm:$0xff] %vm3265, %v6741
        %v6774 = vld [vmem:[%s6165] sm:$0xe]
        %v6775 = vld [vmem:[%s6165 + $0x4] sm:$0xf]
        %v6776 = vld [vmem:[%s6165 + $0x8] sm:$0x1]
        %v6777 = vld [vmem:[%s6165 + $0xc] sm:$0xe]
        %v6778 = vld [vmem:[%s6165 + $0x10] sm:$0xf]
        %v6779 = vld [vmem:[%s6165 + $0x14] sm:$0x1]
        %v6780 = vld [vmem:[%s6165 + $0x18] sm:$0xe]
        %v6781 = vld [vmem:[%s6165 + $0x1c] sm:$0xf]
        %v6782 = vld [vmem:[%s6165 + $0x20] sm:$0x1]
        %v6783 = vld [vmem:[%s6165 + $0x24] sm:$0xe]
        %v6784 = vld [vmem:[%s6165 + $0x28] sm:$0xf]
        %v6785 = vld [vmem:[%s6165 + $0x2c] sm:$0x1]
        %v6786 = vld [vmem:[%s6165 + $0x30] sm:$0xe]
        %v6787 = vld [vmem:[%s6165 + $0x34] sm:$0xf]
        %v6788 = vld [vmem:[%s6165 + $0x38] sm:$0x1]
        %v6789 = vld [vmem:[%s6165 + $0x3c] sm:$0xe]
        %v6790 = vld [vmem:[%s6165 + $0x40] sm:$0xf]
        %v6791 = vld [vmem:[%s6165 + $0x44] sm:$0x1]
        %v6792 = vld [vmem:[%s6165 + $0x48] sm:$0xe]
        %v6793 = vld [vmem:[%s6165 + $0x4c] sm:$0xf]
        %v6794 = vld [vmem:[%s6165 + $0x50] sm:$0x1]
        %v6795 = vld [vmem:[%s6165 + $0x54] sm:$0xe]
        %v6796 = vld [vmem:[%s6165 + $0x58] sm:$0xf]
        %v6797 = vld [vmem:[%s6165 + $0x5c] sm:$0x1]
        %v6798 = vld [vmem:[%s6165 + $0x60] sm:$0xe]
        %v6799 = vld [vmem:[%s6165 + $0x64] sm:$0xf]
        %v6800 = vld [vmem:[%s6165 + $0x68] sm:$0x1]
        %v6801 = vld [vmem:[%s6165 + $0x6c] sm:$0xe]
        %v6802 = vld [vmem:[%s6165 + $0x70] sm:$0xf]
        %v6803 = vld [vmem:[%s6165 + $0x74] sm:$0x1]
        %v6804 = vld [vmem:[%s6165 + $0x78] sm:$0xe]
        %v6805 = vld [vmem:[%s6165 + $0x7c] sm:$0xf]
        %v6806 = vld [vmem:[%s6165 + $0x80] sm:$0x1]
        %v6807 = vld [vmem:[%s6165 + $0x84] sm:$0xe]
        %v6808 = vld [vmem:[%s6165 + $0x88] sm:$0xf]
        %v6809 = vld [vmem:[%s6165 + $0x8c] sm:$0x1]
        %v6810 = vld [vmem:[%s6165 + $0x90] sm:$0xe]
        %v6811 = vld [vmem:[%s6165 + $0x94] sm:$0xf]
        %v6812 = vld [vmem:[%s6165 + $0x98] sm:$0x1]
        %v6813 = vld [vmem:[%s6165 + $0x9c] sm:$0xe]
        %v6814 = vld [vmem:[%s6165 + $0xa0] sm:$0xf]
        %v6815 = vld [vmem:[%s6165 + $0xa4] sm:$0x1]
        %v6816 = vld [vmem:[%s6165 + $0xa8] sm:$0xe]
        %v6817 = vld [vmem:[%s6165 + $0xac] sm:$0xf]
        %v6818 = vld [vmem:[%s6165 + $0xb0] sm:$0x1]
        %v6819 = vld [vmem:[%s6165 + $0xb4] sm:$0xe]
        %v6820 = vld [vmem:[%s6165 + $0xb8] sm:$0xf]
        %v6821 = vld [vmem:[%s6165 + $0xbc] sm:$0x1]
        %v6870 = vunpack.c.l.b16 %v6774
        %v6871 = vunpack.c.l.b16 %v6775
        %v6872 = vunpack.c.l.b16 %v6776
        %v6873 = vunpack.c.l.b16 %v6777
        %v6874 = vunpack.c.l.b16 %v6778
        %v6875 = vunpack.c.l.b16 %v6779
        %v6876 = vunpack.c.l.b16 %v6780
        %v6877 = vunpack.c.l.b16 %v6781
        %v6878 = vunpack.c.l.b16 %v6782
        %v6879 = vunpack.c.l.b16 %v6783
        %v6880 = vunpack.c.l.b16 %v6784
        %v6881 = vunpack.c.l.b16 %v6785
        %v6882 = vunpack.c.l.b16 %v6786
        %v6883 = vunpack.c.l.b16 %v6787
        %v6884 = vunpack.c.l.b16 %v6788
        %v6885 = vunpack.c.l.b16 %v6789
        %v6886 = vunpack.c.l.b16 %v6790
        %v6887 = vunpack.c.l.b16 %v6791
        %v6888 = vunpack.c.l.b16 %v6792
        %v6889 = vunpack.c.l.b16 %v6793
        %v6890 = vunpack.c.l.b16 %v6794
        %v6891 = vunpack.c.l.b16 %v6795
        %v6892 = vunpack.c.l.b16 %v6796
        %v6893 = vunpack.c.l.b16 %v6797
        %v6894 = vunpack.c.l.b16 %v6798
        %v6895 = vunpack.c.l.b16 %v6799
        %v6896 = vunpack.c.l.b16 %v6800
        %v6897 = vunpack.c.l.b16 %v6801
        %v6898 = vunpack.c.l.b16 %v6802
        %v6899 = vunpack.c.l.b16 %v6803
        %v6900 = vunpack.c.l.b16 %v6804
        %v6901 = vunpack.c.l.b16 %v6805
        %v6902 = vunpack.c.l.b16 %v6806
        %v6903 = vunpack.c.l.b16 %v6807
        %v6904 = vunpack.c.l.b16 %v6808
        %v6905 = vunpack.c.l.b16 %v6809
        %v6906 = vunpack.c.l.b16 %v6810
        %v6907 = vunpack.c.l.b16 %v6811
        %v6908 = vunpack.c.l.b16 %v6812
        %v6909 = vunpack.c.l.b16 %v6813
        %v6910 = vunpack.c.l.b16 %v6814
        %v6911 = vunpack.c.l.b16 %v6815
        %v6912 = vunpack.c.l.b16 %v6816
        %v6913 = vunpack.c.l.b16 %v6817
        %v6914 = vunpack.c.l.b16 %v6818
        %v6915 = vunpack.c.l.b16 %v6819
        %v6916 = vunpack.c.l.b16 %v6820
        %v6917 = vunpack.c.l.b16 %v6821
        %v6918 = vpack.c.b16 %v6871, %v6870
        %v6919 = vpack.c.b16 %v6872, %v6872
        %v6920 = vpack.c.b16 %v6874, %v6873
        %v6921 = vpack.c.b16 %v6875, %v6875
        %v6922 = vpack.c.b16 %v6877, %v6876
        %v6923 = vpack.c.b16 %v6878, %v6878
        %v6924 = vpack.c.b16 %v6880, %v6879
        %v6925 = vpack.c.b16 %v6881, %v6881
        %v6926 = vpack.c.b16 %v6883, %v6882
        %v6927 = vpack.c.b16 %v6884, %v6884
        %v6928 = vpack.c.b16 %v6886, %v6885
        %v6929 = vpack.c.b16 %v6887, %v6887
        %v6930 = vpack.c.b16 %v6889, %v6888
        %v6931 = vpack.c.b16 %v6890, %v6890
        %v6932 = vpack.c.b16 %v6892, %v6891
        %v6933 = vpack.c.b16 %v6893, %v6893
        %v6934 = vpack.c.b16 %v6895, %v6894
        %v6935 = vpack.c.b16 %v6896, %v6896
        %v6936 = vpack.c.b16 %v6898, %v6897
        %v6937 = vpack.c.b16 %v6899, %v6899
        %v6938 = vpack.c.b16 %v6901, %v6900
        %v6939 = vpack.c.b16 %v6902, %v6902
        %v6940 = vpack.c.b16 %v6904, %v6903
        %v6941 = vpack.c.b16 %v6905, %v6905
        %v6942 = vpack.c.b16 %v6907, %v6906
        %v6943 = vpack.c.b16 %v6908, %v6908
        %v6944 = vpack.c.b16 %v6910, %v6909
        %v6945 = vpack.c.b16 %v6911, %v6911
        %v6946 = vpack.c.b16 %v6913, %v6912
        %v6947 = vpack.c.b16 %v6914, %v6914
        %v6948 = vpack.c.b16 %v6916, %v6915
        %v6949 = vpack.c.b16 %v6917, %v6917
        %v6950 = vrot.slane %v6918, 1
        %v6951 = vrot.slane %v6919, 1
        %v6952 = vsel %vm1658, %v6950, %v6951
        %v6953 = vrot.slane %v6920, 1
        %v6954 = vrot.slane %v6921, 1
        %v6955 = vsel %vm1658, %v6953, %v6954
        %v6956 = vrot.slane %v6922, 1
        %v6957 = vrot.slane %v6923, 1
        %v6958 = vsel %vm1658, %v6956, %v6957
        %v6959 = vrot.slane %v6924, 1
        %v6960 = vrot.slane %v6925, 1
        %v6961 = vsel %vm1658, %v6959, %v6960
        %v6962 = vrot.slane %v6926, 1
        %v6963 = vrot.slane %v6927, 1
        %v6964 = vsel %vm1658, %v6962, %v6963
        %v6965 = vrot.slane %v6928, 1
        %v6966 = vrot.slane %v6929, 1
        %v6967 = vsel %vm1658, %v6965, %v6966
        %v6968 = vrot.slane %v6930, 1
        %v6969 = vrot.slane %v6931, 1
        %v6970 = vsel %vm1658, %v6968, %v6969
        %v6971 = vrot.slane %v6932, 1
        %v6972 = vrot.slane %v6933, 1
        %v6973 = vsel %vm1658, %v6971, %v6972
        %v6974 = vrot.slane %v6934, 1
        %v6975 = vrot.slane %v6935, 1
        %v6976 = vsel %vm1658, %v6974, %v6975
        %v6977 = vrot.slane %v6936, 1
        %v6978 = vrot.slane %v6937, 1
        %v6979 = vsel %vm1658, %v6977, %v6978
        %v6980 = vrot.slane %v6938, 1
        %v6981 = vrot.slane %v6939, 1
        %v6982 = vsel %vm1658, %v6980, %v6981
        %v6983 = vrot.slane %v6940, 1
        %v6984 = vrot.slane %v6941, 1
        %v6985 = vsel %vm1658, %v6983, %v6984
        %v6986 = vrot.slane %v6942, 1
        %v6987 = vrot.slane %v6943, 1
        %v6988 = vsel %vm1658, %v6986, %v6987
        %v6989 = vrot.slane %v6944, 1
        %v6990 = vrot.slane %v6945, 1
        %v6991 = vsel %vm1658, %v6989, %v6990
        %v6992 = vrot.slane %v6946, 1
        %v6993 = vrot.slane %v6947, 1
        %v6994 = vsel %vm1658, %v6992, %v6993
        %v6995 = vrot.slane %v6948, 1
        %v6996 = vrot.slane %v6949, 1
        %v6997 = vsel %vm1658, %v6995, %v6996
        %6998 = vrot.lane.b32.xlu0 %v6952, 64
        %v6999 = vpop.permute.xlu0 %6998
        %7000 = vrot.lane.b32.xlu0 %v6955, 64
        %v7001 = vpop.permute.xlu0 %7000
        %7002 = vrot.lane.b32.xlu0 %v6958, 64
        %v7003 = vpop.permute.xlu0 %7002
        %7004 = vrot.lane.b32.xlu0 %v6961, 64
        %v7005 = vpop.permute.xlu0 %7004
        %7006 = vrot.lane.b32.xlu0 %v6964, 64
        %v7007 = vpop.permute.xlu0 %7006
        %7008 = vrot.lane.b32.xlu0 %v6967, 64
        %v7009 = vpop.permute.xlu0 %7008
        %7010 = vrot.lane.b32.xlu0 %v6970, 64
        %v7011 = vpop.permute.xlu0 %7010
        %7012 = vrot.lane.b32.xlu0 %v6973, 64
        %v7013 = vpop.permute.xlu0 %7012
        %7014 = vrot.lane.b32.xlu0 %v6976, 64
        %v7015 = vpop.permute.xlu0 %7014
        %7016 = vrot.lane.b32.xlu0 %v6979, 64
        %v7017 = vpop.permute.xlu0 %7016
        %7018 = vrot.lane.b32.xlu0 %v6982, 64
        %v7019 = vpop.permute.xlu0 %7018
        %7020 = vrot.lane.b32.xlu0 %v6985, 64
        %v7021 = vpop.permute.xlu0 %7020
        %7022 = vrot.lane.b32.xlu0 %v6988, 64
        %v7023 = vpop.permute.xlu0 %7022
        %7024 = vrot.lane.b32.xlu0 %v6991, 64
        %v7025 = vpop.permute.xlu0 %7024
        %7026 = vrot.lane.b32.xlu0 %v6994, 64
        %v7027 = vpop.permute.xlu0 %7026
        %7028 = vrot.lane.b32.xlu0 %v6997, 64
        %v7029 = vpop.permute.xlu0 %7028
        %7046 = vst.msk [vmem:[#allocation4] sm:$0xff] %vm3554, %v6999
        %7047 = vst.msk [vmem:[#allocation4 + $0x8] sm:$0xff] %vm3554, %v7001
        %7048 = vst.msk [vmem:[#allocation4 + $0x10] sm:$0xff] %vm3554, %v7003
        %7049 = vst.msk [vmem:[#allocation4 + $0x18] sm:$0xff] %vm3554, %v7005
        %7050 = vst.msk [vmem:[#allocation4 + $0x20] sm:$0xff] %vm3554, %v7007
        %7051 = vst.msk [vmem:[#allocation4 + $0x28] sm:$0xff] %vm3554, %v7009
        %7052 = vst.msk [vmem:[#allocation4 + $0x30] sm:$0xff] %vm3554, %v7011
        %7053 = vst.msk [vmem:[#allocation4 + $0x38] sm:$0xff] %vm3554, %v7013
        %7054 = vst.msk [vmem:[#allocation4 + $0x40] sm:$0xff] %vm3554, %v7015
        %7055 = vst.msk [vmem:[#allocation4 + $0x48] sm:$0xff] %vm3554, %v7017
        %7056 = vst.msk [vmem:[#allocation4 + $0x50] sm:$0xff] %vm3554, %v7019
        %7057 = vst.msk [vmem:[#allocation4 + $0x58] sm:$0xff] %vm3554, %v7021
        %7058 = vst.msk [vmem:[#allocation4 + $0x60] sm:$0xff] %vm3554, %v7023
        %7059 = vst.msk [vmem:[#allocation4 + $0x68] sm:$0xff] %vm3554, %v7025
        %7060 = vst.msk [vmem:[#allocation4 + $0x70] sm:$0xff] %vm3554, %v7027
        %7061 = vst.msk [vmem:[#allocation4 + $0x78] sm:$0xff] %vm3554, %v7029
        %v7062 = vld [vmem:[#allocation4] sm:$0xff]
        %v7063 = vld [vmem:[#allocation4 + $0x8] sm:$0xff]
        %v7064 = vld [vmem:[#allocation4 + $0x10] sm:$0xff]
        %v7065 = vld [vmem:[#allocation4 + $0x18] sm:$0xff]
        %v7066 = vld [vmem:[#allocation4 + $0x20] sm:$0xff]
        %v7067 = vld [vmem:[#allocation4 + $0x28] sm:$0xff]
        %v7068 = vld [vmem:[#allocation4 + $0x30] sm:$0xff]
        %v7069 = vld [vmem:[#allocation4 + $0x38] sm:$0xff]
        %v7070 = vld [vmem:[#allocation4 + $0x40] sm:$0xff]
        %v7071 = vld [vmem:[#allocation4 + $0x48] sm:$0xff]
        %v7072 = vld [vmem:[#allocation4 + $0x50] sm:$0xff]
        %v7073 = vld [vmem:[#allocation4 + $0x58] sm:$0xff]
        %v7074 = vld [vmem:[#allocation4 + $0x60] sm:$0xff]
        %v7075 = vld [vmem:[#allocation4 + $0x68] sm:$0xff]
        %v7076 = vld [vmem:[#allocation4 + $0x70] sm:$0xff]
        %v7077 = vld [vmem:[#allocation4 + $0x78] sm:$0xff]
        %v7078 = vld [vmem:[%s3] sm:$0xf]
        %v7079 = vld [vmem:[%s3 + $0x4] sm:$0xf]
        %v7080 = vld [vmem:[%s3 + $0x8] sm:$0xf]
        %v7081 = vld [vmem:[%s3 + $0xc] sm:$0xf]
        %v7082 = vld [vmem:[%s3 + $0x10] sm:$0xf]
        %v7083 = vld [vmem:[%s3 + $0x14] sm:$0xf]
        %v7084 = vld [vmem:[%s3 + $0x18] sm:$0xf]
        %v7085 = vld [vmem:[%s3 + $0x1c] sm:$0xf]
        %v7086 = vld [vmem:[%s3 + $0x20] sm:$0xf]
        %v7096 = vunpack.c.l.b16 %v7078
        %v7097 = vunpack.c.l.b16 %v7079
        %v7098 = vunpack.c.l.b16 %v7080
        %v7099 = vunpack.c.l.b16 %v7081
        %v7100 = vunpack.c.l.b16 %v7082
        %v7101 = vunpack.c.l.b16 %v7083
        %v7102 = vunpack.c.l.b16 %v7084
        %v7103 = vunpack.c.l.b16 %v7085
        %v7104 = vunpack.c.l.b16 %v7086
        %v7105 = vpack.c.b16 %v7097, %v7096
        %v7106 = vpack.c.b16 %v7099, %v7098
        %v7107 = vpack.c.b16 %v7101, %v7100
        %v7108 = vpack.c.b16 %v7103, %v7102
        %v7109 = vpack.c.b16 %v7104, %v7104
        %v7115 = vsel %vm3630, %v7062, 0
        %v7118 = vsel %vm3630, %v7063, 0
        %v7121 = vsel %vm3630, %v7064, 0
        %v7124 = vsel %vm3630, %v7065, 0
        %v7127 = vsel %vm3630, %v7066, 0
        %v7130 = vsel %vm3630, %v7067, 0
        %v7133 = vsel %vm3630, %v7068, 0
        %v7136 = vsel %vm3630, %v7069, 0
        %v7139 = vsel %vm3630, %v7070, 0
        %v7142 = vsel %vm3630, %v7071, 0
        %v7145 = vsel %vm3630, %v7072, 0
        %v7148 = vsel %vm3630, %v7073, 0
        %v7151 = vsel %vm3630, %v7074, 0
        %v7154 = vsel %vm3630, %v7075, 0
        %v7157 = vsel %vm3630, %v7076, 0
        %v7160 = vsel %vm3630, %v7077, 0
        %v7163 = vsel %vm3679, %v7109, 0
        %7165 = vmatprep.subr.bf16.mxu0 0
        %7166 = vmatpush1.bf16.msra.mxu0 %v7105
        %7167 = vmatprep.subr.bf16.mxu0 0
        %7168 = vmatpush1.bf16.msra.mxu0 %v7106
        %7169 = vmatprep.subr.bf16.mxu0 0
        %7170 = vmatpush1.bf16.msra.mxu0 %v7107
        %7171 = vmatprep.subr.bf16.mxu0 0
        %7172 = vmatpush1.bf16.msra.mxu0 %v7108
        %7173 = vmatprep.subr.bf16.mxu0 0
        %7174 = vmatpush1.bf16.msra.mxu0 %v7163
        %7175 = vmatprep.subr.bf16.mxu0 0
        %7176 = vmatpush1.bf16.msra.mxu0 0
        %7177 = vmatprep.subr.bf16.mxu0 0
        %7178 = vmatpush1.bf16.msra.mxu0 0
        %7179 = vmatprep.subr.bf16.mxu0 0
        %7180 = vmatpush1.bf16.msra.mxu0 0
        %7181 = vmatprep.subr.bf16.mxu0 0
        %7182 = vmatpush1.bf16.msra.mxu0 0
        %7183 = vmatprep.subr.bf16.mxu0 0
        %7184 = vmatpush1.bf16.msra.mxu0 0
        %7185 = vmatprep.subr.bf16.mxu0 0
        %7186 = vmatpush1.bf16.msra.mxu0 0
        %7187 = vmatprep.subr.bf16.mxu0 0
        %7188 = vmatpush1.bf16.msra.mxu0 0
        %7189 = vmatprep.subr.bf16.mxu0 0
        %7190 = vmatpush1.bf16.msra.mxu0 0
        %7191 = vmatprep.subr.bf16.mxu0 0
        %7192 = vmatpush1.bf16.msra.mxu0 0
        %7193 = vmatprep.subr.bf16.mxu0 0
        %7194 = vmatpush1.bf16.msra.mxu0 0
        %7195 = vmatprep.subr.bf16.mxu0 0
        %7196 = vmatpush1.bf16.msra.mxu0 0
        %7197 = vmatprep.mubr.bf16.mxu0 0
        %7198 = vmatmul.mubr.bf16.gmra.mrb[0].mxu0 %v7115
        %v7199 = vpop.f32.mrb[0].mxu0
        %v7200 = vadd.f32 0.0, %v7199
        %v7201 = vpop.f32.mrb[0].mxu0
        %v7202 = vpop.f32.mrb[0].mxu0
        %v7203 = vadd.f32 0.0, %v7202
        %v7204 = vpop.f32.mrb[0].mxu0
        %7205 = vmatprep.mubr.bf16.mxu0 0
        %7206 = vmatmul.mubr.bf16.gmra.mrb[0].mxu0 %v7118
        %v7207 = vpop.f32.mrb[0].mxu0
        %v7208 = vadd.f32 0.0, %v7207
        %v7209 = vpop.f32.mrb[0].mxu0
        %v7210 = vpop.f32.mrb[0].mxu0
        %v7211 = vadd.f32 0.0, %v7210
        %v7212 = vpop.f32.mrb[0].mxu0
        %7213 = vmatprep.mubr.bf16.mxu0 0
        %7214 = vmatmul.mubr.bf16.gmra.mrb[0].mxu0 %v7121
        %v7215 = vpop.f32.mrb[0].mxu0
        %v7216 = vadd.f32 0.0, %v7215
        %v7217 = vpop.f32.mrb[0].mxu0
        %v7218 = vpop.f32.mrb[0].mxu0
        %v7219 = vadd.f32 0.0, %v7218
        %v7220 = vpop.f32.mrb[0].mxu0
        %7221 = vmatprep.mubr.bf16.mxu0 0
        %7222 = vmatmul.mubr.bf16.gmra.mrb[0].mxu0 %v7124
        %v7223 = vpop.f32.mrb[0].mxu0
        %v7224 = vadd.f32 0.0, %v7223
        %v7225 = vpop.f32.mrb[0].mxu0
        %v7226 = vpop.f32.mrb[0].mxu0
        %v7227 = vadd.f32 0.0, %v7226
        %v7228 = vpop.f32.mrb[0].mxu0
        %7229 = vmatprep.mubr.bf16.mxu0 0
        %7230 = vmatmul.mubr.bf16.gmra.mrb[0].mxu0 %v7127
        %v7231 = vpop.f32.mrb[0].mxu0
        %v7232 = vadd.f32 0.0, %v7231
        %v7233 = vpop.f32.mrb[0].mxu0
        %v7234 = vpop.f32.mrb[0].mxu0
        %v7235 = vadd.f32 0.0, %v7234
        %v7236 = vpop.f32.mrb[0].mxu0
        %7237 = vmatprep.mubr.bf16.mxu0 0
        %7238 = vmatmul.mubr.bf16.gmra.mrb[0].mxu0 %v7130
        %v7239 = vpop.f32.mrb[0].mxu0
        %v7240 = vadd.f32 0.0, %v7239
        %v7241 = vpop.f32.mrb[0].mxu0
        %v7242 = vpop.f32.mrb[0].mxu0
        %v7243 = vadd.f32 0.0, %v7242
        %v7244 = vpop.f32.mrb[0].mxu0
        %7245 = vmatprep.mubr.bf16.mxu0 0
        %7246 = vmatmul.mubr.bf16.gmra.mrb[0].mxu0 %v7133
        %v7247 = vpop.f32.mrb[0].mxu0
        %v7248 = vadd.f32 0.0, %v7247
        %v7249 = vpop.f32.mrb[0].mxu0
        %v7250 = vpop.f32.mrb[0].mxu0
        %v7251 = vadd.f32 0.0, %v7250
        %v7252 = vpop.f32.mrb[0].mxu0
        %7253 = vmatprep.mubr.bf16.mxu0 0
        %7254 = vmatmul.mubr.bf16.gmra.mrb[0].mxu0 %v7136
        %v7255 = vpop.f32.mrb[0].mxu0
        %v7256 = vadd.f32 0.0, %v7255
        %v7257 = vpop.f32.mrb[0].mxu0
        %v7258 = vpop.f32.mrb[0].mxu0
        %v7259 = vadd.f32 0.0, %v7258
        %v7260 = vpop.f32.mrb[0].mxu0
        %7261 = vmatprep.mubr.bf16.mxu0 0
        %7262 = vmatmul.mubr.bf16.gmra.mrb[0].mxu0 %v7139
        %v7263 = vpop.f32.mrb[0].mxu0
        %v7264 = vadd.f32 0.0, %v7263
        %v7265 = vpop.f32.mrb[0].mxu0
        %v7266 = vpop.f32.mrb[0].mxu0
        %v7267 = vadd.f32 0.0, %v7266
        %v7268 = vpop.f32.mrb[0].mxu0
        %7269 = vmatprep.mubr.bf16.mxu0 0
        %7270 = vmatmul.mubr.bf16.gmra.mrb[0].mxu0 %v7142
        %v7271 = vpop.f32.mrb[0].mxu0
        %v7272 = vadd.f32 0.0, %v7271
        %v7273 = vpop.f32.mrb[0].mxu0
        %v7274 = vpop.f32.mrb[0].mxu0
        %v7275 = vadd.f32 0.0, %v7274
        %v7276 = vpop.f32.mrb[0].mxu0
        %7277 = vmatprep.mubr.bf16.mxu0 0
        %7278 = vmatmul.mubr.bf16.gmra.mrb[0].mxu0 %v7145
        %v7279 = vpop.f32.mrb[0].mxu0
        %v7280 = vadd.f32 0.0, %v7279
        %v7281 = vpop.f32.mrb[0].mxu0
        %v7282 = vpop.f32.mrb[0].mxu0
        %v7283 = vadd.f32 0.0, %v7282
        %v7284 = vpop.f32.mrb[0].mxu0
        %7285 = vmatprep.mubr.bf16.mxu0 0
        %7286 = vmatmul.mubr.bf16.gmra.mrb[0].mxu0 %v7148
        %v7287 = vpop.f32.mrb[0].mxu0
        %v7288 = vadd.f32 0.0, %v7287
        %v7289 = vpop.f32.mrb[0].mxu0
        %v7290 = vpop.f32.mrb[0].mxu0
        %v7291 = vadd.f32 0.0, %v7290
        %v7292 = vpop.f32.mrb[0].mxu0
        %7293 = vmatprep.mubr.bf16.mxu0 0
        %7294 = vmatmul.mubr.bf16.gmra.mrb[0].mxu0 %v7151
        %v7295 = vpop.f32.mrb[0].mxu0
        %v7296 = vadd.f32 0.0, %v7295
        %v7297 = vpop.f32.mrb[0].mxu0
        %v7298 = vpop.f32.mrb[0].mxu0
        %v7299 = vadd.f32 0.0, %v7298
        %v7300 = vpop.f32.mrb[0].mxu0
        %7301 = vmatprep.mubr.bf16.mxu0 0
        %7302 = vmatmul.mubr.bf16.gmra.mrb[0].mxu0 %v7154
        %v7303 = vpop.f32.mrb[0].mxu0
        %v7304 = vadd.f32 0.0, %v7303
        %v7305 = vpop.f32.mrb[0].mxu0
        %v7306 = vpop.f32.mrb[0].mxu0
        %v7307 = vadd.f32 0.0, %v7306
        %v7308 = vpop.f32.mrb[0].mxu0
        %7309 = vmatprep.mubr.bf16.mxu0 0
        %7310 = vmatmul.mubr.bf16.gmra.mrb[0].mxu0 %v7157
        %v7311 = vpop.f32.mrb[0].mxu0
        %v7312 = vadd.f32 0.0, %v7311
        %v7313 = vpop.f32.mrb[0].mxu0
        %v7314 = vpop.f32.mrb[0].mxu0
        %v7315 = vadd.f32 0.0, %v7314
        %v7316 = vpop.f32.mrb[0].mxu0
        %7317 = vmatprep.mubr.bf16.mxu0 0
        %7318 = vmatmul.mubr.bf16.gmra.mrb[0].mxu0 %v7160
        %v7319 = vpop.f32.mrb[0].mxu0
        %v7320 = vadd.f32 0.0, %v7319
        %v7321 = vpop.f32.mrb[0].mxu0
        %v7322 = vpop.f32.mrb[0].mxu0
        %v7323 = vadd.f32 0.0, %v7322
        %v7324 = vpop.f32.mrb[0].mxu0
        %7325 = vdwg.mxu0
        %v7342 = vrot.slane %v7208, 7
        %vm7343 = vcmask 1041409
        %v7344 = vsel %vm7343, %v7342, %v7200
        %v7345 = vrot.slane %v7216, 6
        %vm7346 = vcmask 1042434
        %v7347 = vsel %vm7346, %v7345, %v7344
        %v7348 = vrot.slane %v7224, 5
        %vm7349 = vcmask 1043459
        %v7350 = vsel %vm7349, %v7348, %v7347
        %v7351 = vrot.slane %v7232, 4
        %vm7352 = vcmask 1044484
        %v7353 = vsel %vm7352, %v7351, %v7350
        %v7354 = vrot.slane %v7240, 3
        %vm7355 = vcmask 1045509
        %v7356 = vsel %vm7355, %v7354, %v7353
        %v7357 = vrot.slane %v7248, 2
        %vm7358 = vcmask 1046534
        %v7359 = vsel %vm7358, %v7357, %v7356
        %v7360 = vrot.slane %v7256, 1
        %vm7361 = vcmask 1047559
        %v7362 = vsel %vm7361, %v7360, %v7359
        %v7363 = vrot.slane %v7272, 7
        %v7364 = vsel %vm7343, %v7363, %v7264
        %v7365 = vrot.slane %v7280, 6
        %v7366 = vsel %vm7346, %v7365, %v7364
        %v7367 = vrot.slane %v7288, 5
        %v7368 = vsel %vm7349, %v7367, %v7366
        %v7369 = vrot.slane %v7296, 4
        %v7370 = vsel %vm7352, %v7369, %v7368
        %v7371 = vrot.slane %v7304, 3
        %v7372 = vsel %vm7355, %v7371, %v7370
        %v7373 = vrot.slane %v7312, 2
        %v7374 = vsel %vm7358, %v7373, %v7372
        %v7375 = vrot.slane %v7320, 1
        %v7376 = vsel %vm7361, %v7375, %v7374
        %vm7379 = vcmask 130048
        %7380 = vst.msk [vmem:[%s190] sm:$0xff] %vm7379, %v7362
        %7381 = vst.msk [vmem:[%s190 + $0x10] sm:$0xff] %vm7379, %v7376
        %v7382 = vrot.slane %v7200, 1
        %v7383 = vsel %vm7343, %v7208, %v7382
        %v7384 = vrot.slane %v7216, 7
        %v7385 = vsel %vm7346, %v7384, %v7383
        %v7386 = vrot.slane %v7224, 6
        %v7387 = vsel %vm7349, %v7386, %v7385
        %v7388 = vrot.slane %v7232, 5
        %v7389 = vsel %vm7352, %v7388, %v7387
        %v7390 = vrot.slane %v7240, 4
        %v7391 = vsel %vm7355, %v7390, %v7389
        %v7392 = vrot.slane %v7248, 3
        %v7393 = vsel %vm7358, %v7392, %v7391
        %v7394 = vrot.slane %v7256, 2
        %v7395 = vsel %vm7361, %v7394, %v7393
        %v7396 = vrot.slane %v7264, 1
        %v7397 = vsel %vm7343, %v7272, %v7396
        %v7398 = vrot.slane %v7280, 7
        %v7399 = vsel %vm7346, %v7398, %v7397
        %v7400 = vrot.slane %v7288, 6
        %v7401 = vsel %vm7349, %v7400, %v7399
        %v7402 = vrot.slane %v7296, 5
        %v7403 = vsel %vm7352, %v7402, %v7401
        %v7404 = vrot.slane %v7304, 4
        %v7405 = vsel %vm7355, %v7404, %v7403
        %v7406 = vrot.slane %v7312, 3
        %v7407 = vsel %vm7358, %v7406, %v7405
        %v7408 = vrot.slane %v7320, 2
        %v7409 = vsel %vm7361, %v7408, %v7407
        %7410 = vrot.lane.b32.xlu0 %v7395, 16
        %v7411 = vpop.permute.xlu0 %7410
        %7412 = vrot.lane.b32.xlu0 %v7409, 16
        %v7413 = vpop.permute.xlu0 %7412
        %vm7416 = vcmask 261248
        %7417 = vst.msk [vmem:[%s190] sm:$0xff] %vm7416, %v7411
        %7418 = vst.msk [vmem:[%s190 + $0x10] sm:$0xff] %vm7416, %v7413
        %v7419 = vrot.slane %v7200, 2
        %v7420 = vrot.slane %v7208, 1
        %v7421 = vsel %vm7343, %v7420, %v7419
        %v7422 = vsel %vm7346, %v7216, %v7421
        %v7423 = vrot.slane %v7224, 7
        %v7424 = vsel %vm7349, %v7423, %v7422
        %v7425 = vrot.slane %v7232, 6
        %v7426 = vsel %vm7352, %v7425, %v7424
        %v7427 = vrot.slane %v7240, 5
        %v7428 = vsel %vm7355, %v7427, %v7426
        %v7429 = vrot.slane %v7248, 4
        %v7430 = vsel %vm7358, %v7429, %v7428
        %v7431 = vrot.slane %v7256, 3
        %v7432 = vsel %vm7361, %v7431, %v7430
        %v7433 = vrot.slane %v7264, 2
        %v7434 = vrot.slane %v7272, 1
        %v7435 = vsel %vm7343, %v7434, %v7433
        %v7436 = vsel %vm7346, %v7280, %v7435
        %v7437 = vrot.slane %v7288, 7
        %v7438 = vsel %vm7349, %v7437, %v7436
        %v7439 = vrot.slane %v7296, 6
        %v7440 = vsel %vm7352, %v7439, %v7438
        %v7441 = vrot.slane %v7304, 5
        %v7442 = vsel %vm7355, %v7441, %v7440
        %v7443 = vrot.slane %v7312, 4
        %v7444 = vsel %vm7358, %v7443, %v7442
        %v7445 = vrot.slane %v7320, 3
        %v7446 = vsel %vm7361, %v7445, %v7444
        %7447 = vrot.lane.b32.xlu0 %v7432, 32
        %v7448 = vpop.permute.xlu0 %7447
        %7449 = vrot.lane.b32.xlu0 %v7446, 32
        %v7450 = vpop.permute.xlu0 %7449
        %vm7453 = vcmask 392448
        %7454 = vst.msk [vmem:[%s190] sm:$0xff] %vm7453, %v7448
        %7455 = vst.msk [vmem:[%s190 + $0x10] sm:$0xff] %vm7453, %v7450
        %v7456 = vrot.slane %v7200, 3
        %v7457 = vrot.slane %v7208, 2
        %v7458 = vsel %vm7343, %v7457, %v7456
        %v7459 = vrot.slane %v7216, 1
        %v7460 = vsel %vm7346, %v7459, %v7458
        %v7461 = vsel %vm7349, %v7224, %v7460
        %v7462 = vrot.slane %v7232, 7
        %v7463 = vsel %vm7352, %v7462, %v7461
        %v7464 = vrot.slane %v7240, 6
        %v7465 = vsel %vm7355, %v7464, %v7463
        %v7466 = vrot.slane %v7248, 5
        %v7467 = vsel %vm7358, %v7466, %v7465
        %v7468 = vrot.slane %v7256, 4
        %v7469 = vsel %vm7361, %v7468, %v7467
        %v7470 = vrot.slane %v7264, 3
        %v7471 = vrot.slane %v7272, 2
        %v7472 = vsel %vm7343, %v7471, %v7470
        %v7473 = vrot.slane %v7280, 1
        %v7474 = vsel %vm7346, %v7473, %v7472
        %v7475 = vsel %vm7349, %v7288, %v7474
        %v7476 = vrot.slane %v7296, 7
        %v7477 = vsel %vm7352, %v7476, %v7475
        %v7478 = vrot.slane %v7304, 6
        %v7479 = vsel %vm7355, %v7478, %v7477
        %v7480 = vrot.slane %v7312, 5
        %v7481 = vsel %vm7358, %v7480, %v7479
        %v7482 = vrot.slane %v7320, 4
        %v7483 = vsel %vm7361, %v7482, %v7481
        %7484 = vrot.lane.b32.xlu0 %v7469, 48
        %v7485 = vpop.permute.xlu0 %7484
        %7486 = vrot.lane.b32.xlu0 %v7483, 48
        %v7487 = vpop.permute.xlu0 %7486
        %vm7490 = vcmask 523648
        %7491 = vst.msk [vmem:[%s190] sm:$0xff] %vm7490, %v7485
        %7492 = vst.msk [vmem:[%s190 + $0x10] sm:$0xff] %vm7490, %v7487
        %v7493 = vrot.slane %v7200, 4
        %v7494 = vrot.slane %v7208, 3
        %v7495 = vsel %vm7343, %v7494, %v7493
        %v7496 = vrot.slane %v7216, 2
        %v7497 = vsel %vm7346, %v7496, %v7495
        %v7498 = vrot.slane %v7224, 1
        %v7499 = vsel %vm7349, %v7498, %v7497
        %v7500 = vsel %vm7352, %v7232, %v7499
        %v7501 = vrot.slane %v7240, 7
        %v7502 = vsel %vm7355, %v7501, %v7500
        %v7503 = vrot.slane %v7248, 6
        %v7504 = vsel %vm7358, %v7503, %v7502
        %v7505 = vrot.slane %v7256, 5
        %v7506 = vsel %vm7361, %v7505, %v7504
        %v7507 = vrot.slane %v7264, 4
        %v7508 = vrot.slane %v7272, 3
        %v7509 = vsel %vm7343, %v7508, %v7507
        %v7510 = vrot.slane %v7280, 2
        %v7511 = vsel %vm7346, %v7510, %v7509
        %v7512 = vrot.slane %v7288, 1
        %v7513 = vsel %vm7349, %v7512, %v7511
        %v7514 = vsel %vm7352, %v7296, %v7513
        %v7515 = vrot.slane %v7304, 7
        %v7516 = vsel %vm7355, %v7515, %v7514
        %v7517 = vrot.slane %v7312, 6
        %v7518 = vsel %vm7358, %v7517, %v7516
        %v7519 = vrot.slane %v7320, 5
        %v7520 = vsel %vm7361, %v7519, %v7518
        %7521 = vrot.lane.b32.xlu0 %v7506, 64
        %v7522 = vpop.permute.xlu0 %7521
        %7523 = vrot.lane.b32.xlu0 %v7520, 64
        %v7524 = vpop.permute.xlu0 %7523
        %vm7527 = vcmask 654848
        %7528 = vst.msk [vmem:[%s190] sm:$0xff] %vm7527, %v7522
        %7529 = vst.msk [vmem:[%s190 + $0x10] sm:$0xff] %vm7527, %v7524
        %v7530 = vrot.slane %v7200, 5
        %v7531 = vrot.slane %v7208, 4
        %v7532 = vsel %vm7343, %v7531, %v7530
        %v7533 = vrot.slane %v7216, 3
        %v7534 = vsel %vm7346, %v7533, %v7532
        %v7535 = vrot.slane %v7224, 2
        %v7536 = vsel %vm7349, %v7535, %v7534
        %v7537 = vrot.slane %v7232, 1
        %v7538 = vsel %vm7352, %v7537, %v7536
        %v7539 = vsel %vm7355, %v7240, %v7538
        %v7540 = vrot.slane %v7248, 7
        %v7541 = vsel %vm7358, %v7540, %v7539
        %v7542 = vrot.slane %v7256, 6
        %v7543 = vsel %vm7361, %v7542, %v7541
        %v7544 = vrot.slane %v7264, 5
        %v7545 = vrot.slane %v7272, 4
        %v7546 = vsel %vm7343, %v7545, %v7544
        %v7547 = vrot.slane %v7280, 3
        %v7548 = vsel %vm7346, %v7547, %v7546
        %v7549 = vrot.slane %v7288, 2
        %v7550 = vsel %vm7349, %v7549, %v7548
        %v7551 = vrot.slane %v7296, 1
        %v7552 = vsel %vm7352, %v7551, %v7550
        %v7553 = vsel %vm7355, %v7304, %v7552
        %v7554 = vrot.slane %v7312, 7
        %v7555 = vsel %vm7358, %v7554, %v7553
        %v7556 = vrot.slane %v7320, 6
        %v7557 = vsel %vm7361, %v7556, %v7555
        %7558 = vrot.lane.b32.xlu0 %v7543, 80
        %v7559 = vpop.permute.xlu0 %7558
        %7560 = vrot.lane.b32.xlu0 %v7557, 80
        %v7561 = vpop.permute.xlu0 %7560
        %vm7564 = vcmask 786048
        %7565 = vst.msk [vmem:[%s190] sm:$0xff] %vm7564, %v7559
        %7566 = vst.msk [vmem:[%s190 + $0x10] sm:$0xff] %vm7564, %v7561
        %v7567 = vrot.slane %v7200, 6
        %v7568 = vrot.slane %v7208, 5
        %v7569 = vsel %vm7343, %v7568, %v7567
        %v7570 = vrot.slane %v7216, 4
        %v7571 = vsel %vm7346, %v7570, %v7569
        %v7572 = vrot.slane %v7224, 3
        %v7573 = vsel %vm7349, %v7572, %v7571
        %v7574 = vrot.slane %v7232, 2
        %v7575 = vsel %vm7352, %v7574, %v7573
        %v7576 = vrot.slane %v7240, 1
        %v7577 = vsel %vm7355, %v7576, %v7575
        %v7578 = vsel %vm7358, %v7248, %v7577
        %v7579 = vrot.slane %v7256, 7
        %v7580 = vsel %vm7361, %v7579, %v7578
        %v7581 = vrot.slane %v7264, 6
        %v7582 = vrot.slane %v7272, 5
        %v7583 = vsel %vm7343, %v7582, %v7581
        %v7584 = vrot.slane %v7280, 4
        %v7585 = vsel %vm7346, %v7584, %v7583
        %v7586 = vrot.slane %v7288, 3
        %v7587 = vsel %vm7349, %v7586, %v7585
        %v7588 = vrot.slane %v7296, 2
        %v7589 = vsel %vm7352, %v7588, %v7587
        %v7590 = vrot.slane %v7304, 1
        %v7591 = vsel %vm7355, %v7590, %v7589
        %v7592 = vsel %vm7358, %v7312, %v7591
        %v7593 = vrot.slane %v7320, 7
        %v7594 = vsel %vm7361, %v7593, %v7592
        %7595 = vrot.lane.b32.xlu0 %v7580, 96
        %v7596 = vpop.permute.xlu0 %7595
        %7597 = vrot.lane.b32.xlu0 %v7594, 96
        %v7598 = vpop.permute.xlu0 %7597
        %vm7601 = vcmask 917248
        %7602 = vst.msk [vmem:[%s190] sm:$0xff] %vm7601, %v7596
        %7603 = vst.msk [vmem:[%s190 + $0x10] sm:$0xff] %vm7601, %v7598
        %v7604 = vrot.slane %v7200, 7
        %v7605 = vrot.slane %v7208, 6
        %v7606 = vsel %vm7343, %v7605, %v7604
        %v7607 = vrot.slane %v7216, 5
        %v7608 = vsel %vm7346, %v7607, %v7606
        %v7609 = vrot.slane %v7224, 4
        %v7610 = vsel %vm7349, %v7609, %v7608
        %v7611 = vrot.slane %v7232, 3
        %v7612 = vsel %vm7352, %v7611, %v7610
        %v7613 = vrot.slane %v7240, 2
        %v7614 = vsel %vm7355, %v7613, %v7612
        %v7615 = vrot.slane %v7248, 1
        %v7616 = vsel %vm7358, %v7615, %v7614
        %v7617 = vsel %vm7361, %v7256, %v7616
        %v7618 = vrot.slane %v7264, 7
        %v7619 = vrot.slane %v7272, 6
        %v7620 = vsel %vm7343, %v7619, %v7618
        %v7621 = vrot.slane %v7280, 5
        %v7622 = vsel %vm7346, %v7621, %v7620
        %v7623 = vrot.slane %v7288, 4
        %v7624 = vsel %vm7349, %v7623, %v7622
        %v7625 = vrot.slane %v7296, 3
        %v7626 = vsel %vm7352, %v7625, %v7624
        %v7627 = vrot.slane %v7304, 2
        %v7628 = vsel %vm7355, %v7627, %v7626
        %v7629 = vrot.slane %v7312, 1
        %v7630 = vsel %vm7358, %v7629, %v7628
        %v7631 = vsel %vm7361, %v7320, %v7630
        %7632 = vrot.lane.b32.xlu0 %v7617, 112
        %v7633 = vpop.permute.xlu0 %7632
        %7634 = vrot.lane.b32.xlu0 %v7631, 112
        %v7635 = vpop.permute.xlu0 %7634
        %vm7638 = vcmask 1048448
        %7639 = vst.msk [vmem:[%s190] sm:$0xff] %vm7638, %v7633
        %7640 = vst.msk [vmem:[%s190 + $0x10] sm:$0xff] %vm7638, %v7635
        %v7657 = vrot.slane %v7211, 7
        %v7658 = vsel %vm7343, %v7657, %v7203
        %v7659 = vrot.slane %v7219, 6
        %v7660 = vsel %vm7346, %v7659, %v7658
        %v7661 = vrot.slane %v7227, 5
        %v7662 = vsel %vm7349, %v7661, %v7660
        %v7663 = vrot.slane %v7235, 4
        %v7664 = vsel %vm7352, %v7663, %v7662
        %v7665 = vrot.slane %v7243, 3
        %v7666 = vsel %vm7355, %v7665, %v7664
        %v7667 = vrot.slane %v7251, 2
        %v7668 = vsel %vm7358, %v7667, %v7666
        %v7669 = vrot.slane %v7259, 1
        %v7670 = vsel %vm7361, %v7669, %v7668
        %v7671 = vrot.slane %v7275, 7
        %v7672 = vsel %vm7343, %v7671, %v7267
        %v7673 = vrot.slane %v7283, 6
        %v7674 = vsel %vm7346, %v7673, %v7672
        %v7675 = vrot.slane %v7291, 5
        %v7676 = vsel %vm7349, %v7675, %v7674
        %v7677 = vrot.slane %v7299, 4
        %v7678 = vsel %vm7352, %v7677, %v7676
        %v7679 = vrot.slane %v7307, 3
        %v7680 = vsel %vm7355, %v7679, %v7678
        %v7681 = vrot.slane %v7315, 2
        %v7682 = vsel %vm7358, %v7681, %v7680
        %v7683 = vrot.slane %v7323, 1
        %v7684 = vsel %vm7361, %v7683, %v7682
        %7687 = vst.msk [vmem:[%s190 + $0x8] sm:$0xff] %vm7379, %v7670
        %7688 = vst.msk [vmem:[%s190 + $0x18] sm:$0xff] %vm7379, %v7684
        %v7689 = vrot.slane %v7203, 1
        %v7690 = vsel %vm7343, %v7211, %v7689
        %v7691 = vrot.slane %v7219, 7
        %v7692 = vsel %vm7346, %v7691, %v7690
        %v7693 = vrot.slane %v7227, 6
        %v7694 = vsel %vm7349, %v7693, %v7692
        %v7695 = vrot.slane %v7235, 5
        %v7696 = vsel %vm7352, %v7695, %v7694
        %v7697 = vrot.slane %v7243, 4
        %v7698 = vsel %vm7355, %v7697, %v7696
        %v7699 = vrot.slane %v7251, 3
        %v7700 = vsel %vm7358, %v7699, %v7698
        %v7701 = vrot.slane %v7259, 2
        %v7702 = vsel %vm7361, %v7701, %v7700
        %v7703 = vrot.slane %v7267, 1
        %v7704 = vsel %vm7343, %v7275, %v7703
        %v7705 = vrot.slane %v7283, 7
        %v7706 = vsel %vm7346, %v7705, %v7704
        %v7707 = vrot.slane %v7291, 6
        %v7708 = vsel %vm7349, %v7707, %v7706
        %v7709 = vrot.slane %v7299, 5
        %v7710 = vsel %vm7352, %v7709, %v7708
        %v7711 = vrot.slane %v7307, 4
        %v7712 = vsel %vm7355, %v7711, %v7710
        %v7713 = vrot.slane %v7315, 3
        %v7714 = vsel %vm7358, %v7713, %v7712
        %v7715 = vrot.slane %v7323, 2
        %v7716 = vsel %vm7361, %v7715, %v7714
        %7717 = vrot.lane.b32.xlu0 %v7702, 16
        %v7718 = vpop.permute.xlu0 %7717
        %7719 = vrot.lane.b32.xlu0 %v7716, 16
        %v7720 = vpop.permute.xlu0 %7719
        %7723 = vst.msk [vmem:[%s190 + $0x8] sm:$0xff] %vm7416, %v7718
        %7724 = vst.msk [vmem:[%s190 + $0x18] sm:$0xff] %vm7416, %v7720
        %v7725 = vrot.slane %v7203, 2
        %v7726 = vrot.slane %v7211, 1
        %v7727 = vsel %vm7343, %v7726, %v7725
        %v7728 = vsel %vm7346, %v7219, %v7727
        %v7729 = vrot.slane %v7227, 7
        %v7730 = vsel %vm7349, %v7729, %v7728
        %v7731 = vrot.slane %v7235, 6
        %v7732 = vsel %vm7352, %v7731, %v7730
        %v7733 = vrot.slane %v7243, 5
        %v7734 = vsel %vm7355, %v7733, %v7732
        %v7735 = vrot.slane %v7251, 4
        %v7736 = vsel %vm7358, %v7735, %v7734
        %v7737 = vrot.slane %v7259, 3
        %v7738 = vsel %vm7361, %v7737, %v7736
        %v7739 = vrot.slane %v7267, 2
        %v7740 = vrot.slane %v7275, 1
        %v7741 = vsel %vm7343, %v7740, %v7739
        %v7742 = vsel %vm7346, %v7283, %v7741
        %v7743 = vrot.slane %v7291, 7
        %v7744 = vsel %vm7349, %v7743, %v7742
        %v7745 = vrot.slane %v7299, 6
        %v7746 = vsel %vm7352, %v7745, %v7744
        %v7747 = vrot.slane %v7307, 5
        %v7748 = vsel %vm7355, %v7747, %v7746
        %v7749 = vrot.slane %v7315, 4
        %v7750 = vsel %vm7358, %v7749, %v7748
        %v7751 = vrot.slane %v7323, 3
        %v7752 = vsel %vm7361, %v7751, %v7750
        %7753 = vrot.lane.b32.xlu0 %v7738, 32
        %v7754 = vpop.permute.xlu0 %7753
        %7755 = vrot.lane.b32.xlu0 %v7752, 32
        %v7756 = vpop.permute.xlu0 %7755
        %7759 = vst.msk [vmem:[%s190 + $0x8] sm:$0xff] %vm7453, %v7754
        %7760 = vst.msk [vmem:[%s190 + $0x18] sm:$0xff] %vm7453, %v7756
        %v7761 = vrot.slane %v7203, 3
        %v7762 = vrot.slane %v7211, 2
        %v7763 = vsel %vm7343, %v7762, %v7761
        %v7764 = vrot.slane %v7219, 1
        %v7765 = vsel %vm7346, %v7764, %v7763
        %v7766 = vsel %vm7349, %v7227, %v7765
        %v7767 = vrot.slane %v7235, 7
        %v7768 = vsel %vm7352, %v7767, %v7766
        %v7769 = vrot.slane %v7243, 6
        %v7770 = vsel %vm7355, %v7769, %v7768
        %v7771 = vrot.slane %v7251, 5
        %v7772 = vsel %vm7358, %v7771, %v7770
        %v7773 = vrot.slane %v7259, 4
        %v7774 = vsel %vm7361, %v7773, %v7772
        %v7775 = vrot.slane %v7267, 3
        %v7776 = vrot.slane %v7275, 2
        %v7777 = vsel %vm7343, %v7776, %v7775
        %v7778 = vrot.slane %v7283, 1
        %v7779 = vsel %vm7346, %v7778, %v7777
        %v7780 = vsel %vm7349, %v7291, %v7779
        %v7781 = vrot.slane %v7299, 7
        %v7782 = vsel %vm7352, %v7781, %v7780
        %v7783 = vrot.slane %v7307, 6
        %v7784 = vsel %vm7355, %v7783, %v7782
        %v7785 = vrot.slane %v7315, 5
        %v7786 = vsel %vm7358, %v7785, %v7784
        %v7787 = vrot.slane %v7323, 4
        %v7788 = vsel %vm7361, %v7787, %v7786
        %7789 = vrot.lane.b32.xlu0 %v7774, 48
        %v7790 = vpop.permute.xlu0 %7789
        %7791 = vrot.lane.b32.xlu0 %v7788, 48
        %v7792 = vpop.permute.xlu0 %7791
        %7795 = vst.msk [vmem:[%s190 + $0x8] sm:$0xff] %vm7490, %v7790
        %7796 = vst.msk [vmem:[%s190 + $0x18] sm:$0xff] %vm7490, %v7792
        %v7797 = vrot.slane %v7203, 4
        %v7798 = vrot.slane %v7211, 3
        %v7799 = vsel %vm7343, %v7798, %v7797
        %v7800 = vrot.slane %v7219, 2
        %v7801 = vsel %vm7346, %v7800, %v7799
        %v7802 = vrot.slane %v7227, 1
        %v7803 = vsel %vm7349, %v7802, %v7801
        %v7804 = vsel %vm7352, %v7235, %v7803
        %v7805 = vrot.slane %v7243, 7
        %v7806 = vsel %vm7355, %v7805, %v7804
        %v7807 = vrot.slane %v7251, 6
        %v7808 = vsel %vm7358, %v7807, %v7806
        %v7809 = vrot.slane %v7259, 5
        %v7810 = vsel %vm7361, %v7809, %v7808
        %v7811 = vrot.slane %v7267, 4
        %v7812 = vrot.slane %v7275, 3
        %v7813 = vsel %vm7343, %v7812, %v7811
        %v7814 = vrot.slane %v7283, 2
        %v7815 = vsel %vm7346, %v7814, %v7813
        %v7816 = vrot.slane %v7291, 1
        %v7817 = vsel %vm7349, %v7816, %v7815
        %v7818 = vsel %vm7352, %v7299, %v7817
        %v7819 = vrot.slane %v7307, 7
        %v7820 = vsel %vm7355, %v7819, %v7818
        %v7821 = vrot.slane %v7315, 6
        %v7822 = vsel %vm7358, %v7821, %v7820
        %v7823 = vrot.slane %v7323, 5
        %v7824 = vsel %vm7361, %v7823, %v7822
        %7825 = vrot.lane.b32.xlu0 %v7810, 64
        %v7826 = vpop.permute.xlu0 %7825
        %7827 = vrot.lane.b32.xlu0 %v7824, 64
        %v7828 = vpop.permute.xlu0 %7827
        %7831 = vst.msk [vmem:[%s190 + $0x8] sm:$0xff] %vm7527, %v7826
        %7832 = vst.msk [vmem:[%s190 + $0x18] sm:$0xff] %vm7527, %v7828
        %v7833 = vrot.slane %v7203, 5
        %v7834 = vrot.slane %v7211, 4
        %v7835 = vsel %vm7343, %v7834, %v7833
        %v7836 = vrot.slane %v7219, 3
        %v7837 = vsel %vm7346, %v7836, %v7835
        %v7838 = vrot.slane %v7227, 2
        %v7839 = vsel %vm7349, %v7838, %v7837
        %v7840 = vrot.slane %v7235, 1
        %v7841 = vsel %vm7352, %v7840, %v7839
        %v7842 = vsel %vm7355, %v7243, %v7841
        %v7843 = vrot.slane %v7251, 7
        %v7844 = vsel %vm7358, %v7843, %v7842
        %v7845 = vrot.slane %v7259, 6
        %v7846 = vsel %vm7361, %v7845, %v7844
        %v7847 = vrot.slane %v7267, 5
        %v7848 = vrot.slane %v7275, 4
        %v7849 = vsel %vm7343, %v7848, %v7847
        %v7850 = vrot.slane %v7283, 3
        %v7851 = vsel %vm7346, %v7850, %v7849
        %v7852 = vrot.slane %v7291, 2
        %v7853 = vsel %vm7349, %v7852, %v7851
        %v7854 = vrot.slane %v7299, 1
        %v7855 = vsel %vm7352, %v7854, %v7853
        %v7856 = vsel %vm7355, %v7307, %v7855
        %v7857 = vrot.slane %v7315, 7
        %v7858 = vsel %vm7358, %v7857, %v7856
        %v7859 = vrot.slane %v7323, 6
        %v7860 = vsel %vm7361, %v7859, %v7858
        %7861 = vrot.lane.b32.xlu0 %v7846, 80
        %v7862 = vpop.permute.xlu0 %7861
        %7863 = vrot.lane.b32.xlu0 %v7860, 80
        %v7864 = vpop.permute.xlu0 %7863
        %7867 = vst.msk [vmem:[%s190 + $0x8] sm:$0xff] %vm7564, %v7862
        %7868 = vst.msk [vmem:[%s190 + $0x18] sm:$0xff] %vm7564, %v7864
        %v7869 = vrot.slane %v7203, 6
        %v7870 = vrot.slane %v7211, 5
        %v7871 = vsel %vm7343, %v7870, %v7869
        %v7872 = vrot.slane %v7219, 4
        %v7873 = vsel %vm7346, %v7872, %v7871
        %v7874 = vrot.slane %v7227, 3
        %v7875 = vsel %vm7349, %v7874, %v7873
        %v7876 = vrot.slane %v7235, 2
        %v7877 = vsel %vm7352, %v7876, %v7875
        %v7878 = vrot.slane %v7243, 1
        %v7879 = vsel %vm7355, %v7878, %v7877
        %v7880 = vsel %vm7358, %v7251, %v7879
        %v7881 = vrot.slane %v7259, 7
        %v7882 = vsel %vm7361, %v7881, %v7880
        %v7883 = vrot.slane %v7267, 6
        %v7884 = vrot.slane %v7275, 5
        %v7885 = vsel %vm7343, %v7884, %v7883
        %v7886 = vrot.slane %v7283, 4
        %v7887 = vsel %vm7346, %v7886, %v7885
        %v7888 = vrot.slane %v7291, 3
        %v7889 = vsel %vm7349, %v7888, %v7887
        %v7890 = vrot.slane %v7299, 2
        %v7891 = vsel %vm7352, %v7890, %v7889
        %v7892 = vrot.slane %v7307, 1
        %v7893 = vsel %vm7355, %v7892, %v7891
        %v7894 = vsel %vm7358, %v7315, %v7893
        %v7895 = vrot.slane %v7323, 7
        %v7896 = vsel %vm7361, %v7895, %v7894
        %7897 = vrot.lane.b32.xlu0 %v7882, 96
        %v7898 = vpop.permute.xlu0 %7897
        %7899 = vrot.lane.b32.xlu0 %v7896, 96
        %v7900 = vpop.permute.xlu0 %7899
        %7903 = vst.msk [vmem:[%s190 + $0x8] sm:$0xff] %vm7601, %v7898
        %7904 = vst.msk [vmem:[%s190 + $0x18] sm:$0xff] %vm7601, %v7900
        %v7905 = vrot.slane %v7203, 7
        %v7906 = vrot.slane %v7211, 6
        %v7907 = vsel %vm7343, %v7906, %v7905
        %v7908 = vrot.slane %v7219, 5
        %v7909 = vsel %vm7346, %v7908, %v7907
        %v7910 = vrot.slane %v7227, 4
        %v7911 = vsel %vm7349, %v7910, %v7909
        %v7912 = vrot.slane %v7235, 3
        %v7913 = vsel %vm7352, %v7912, %v7911
        %v7914 = vrot.slane %v7243, 2
        %v7915 = vsel %vm7355, %v7914, %v7913
        %v7916 = vrot.slane %v7251, 1
        %v7917 = vsel %vm7358, %v7916, %v7915
        %v7918 = vsel %vm7361, %v7259, %v7917
        %v7919 = vrot.slane %v7267, 7
        %v7920 = vrot.slane %v7275, 6
        %v7921 = vsel %vm7343, %v7920, %v7919
        %v7922 = vrot.slane %v7283, 5
        %v7923 = vsel %vm7346, %v7922, %v7921
        %v7924 = vrot.slane %v7291, 4
        %v7925 = vsel %vm7349, %v7924, %v7923
        %v7926 = vrot.slane %v7299, 3
        %v7927 = vsel %vm7352, %v7926, %v7925
        %v7928 = vrot.slane %v7307, 2
        %v7929 = vsel %vm7355, %v7928, %v7927
        %v7930 = vrot.slane %v7315, 1
        %v7931 = vsel %vm7358, %v7930, %v7929
        %v7932 = vsel %vm7361, %v7323, %v7931
        %7933 = vrot.lane.b32.xlu0 %v7918, 112
        %v7934 = vpop.permute.xlu0 %7933
        %7935 = vrot.lane.b32.xlu0 %v7932, 112
        %v7936 = vpop.permute.xlu0 %7935
        %7939 = vst.msk [vmem:[%s190 + $0x8] sm:$0xff] %vm7638, %v7934
        %7940 = vst.msk [vmem:[%s190 + $0x18] sm:$0xff] %vm7638, %v7936
        %s7941 = sand.u32 %s115, 1
        %s7942 = scalar_lea.sflag [#allocation6], %s7941
        %s7943 = sand.u32 %s115, 1
        %s7944 = smul.addr %s7943, 32
        %s7945 = scalar_lea.vmem [#allocation5], %s7944
        // Predicated region
        $region37: #{tpu_custom_call.1} parent=35 // pred_check
          %p7946 = pneg %p125
        $region38: #{tpu_custom_call.1} parent=35 // pred_check_branch
          %7948 = sbr.rel (%p7946) target = $region40
        $region39: #{tpu_custom_call.1} parent=35 // pred_region
          %s7950 = ssub.s32 512, 512
          %7951 = vsyncadd %s7942, %s7950
          %s7952 = smul.addr %s18, 4
          %s7953 = smul.addr %s7952, 128
          %s7954 = scalar_lea.hbm %s4, %s7953
          %s7955 = sshll.u32 %s7945, 4
          %s7956 = int_to_ptr.vmem [resolvable:$true] %s7955
          %7961 = dma.vmem_to_hbm [thread:$0]  %s7956, 512, %s7954, %s7942, 256, 256, 16
        $region40: #{tpu_custom_call.1} parent=35 // pred_fallthru
          _
      $region36: #{tpu_custom_call.1} parent=5 // pred_fallthru
        _
      %p7962 = scmp.le.s32.totalorder 2, %s13
      // Predicated region
      $region41: #{tpu_custom_call.1} parent=5 // pred_check
        %p7963 = pneg %p7962
      $region42: #{tpu_custom_call.1} parent=5 // pred_check_branch
        %7965 = sbr.rel (%p7963) target = $region44
      $region43: #{tpu_custom_call.1} parent=5 // pred_region
        %s7966 = ssub.s32 %s13, 2
        // Predicated region
        $region45: #{tpu_custom_call.1} parent=43 // pred_check
          %p7967 = pneg %p131
        $region46: #{tpu_custom_call.1} parent=43 // pred_check_branch
          %7969 = sbr.rel (%p7967) target = $region48
        $region47: #{tpu_custom_call.1} parent=43 // pred_region
          %s7970 = sand.u32 %s116, 1
          %s7971 = scalar_lea.sflag [#allocation6], %s7970
          %s7972 = sand.u32 %s116, 1
          %s7973 = smul.addr %s7972, 32
          %s7974 = scalar_lea.vmem [#allocation5], %s7973
          %7975 = dma.done %s7971, 512
        $region48: #{tpu_custom_call.1} parent=43 // pred_fallthru
          _
      $region44: #{tpu_custom_call.1} parent=5 // pred_fallthru
        _
    $region6: #{tpu_custom_call.1} parent=1 // loop_footer
      %s17 = sadd.s32 1, %s13
    $region7: #{tpu_custom_call.1} parent=1 // loop_footer_branch
      %12 = sbr.rel target = $region3
    $region8: #{tpu_custom_call.1} parent=1 // loop_exit
      _
    %7976 = vsyncpa [#allocation6], 1
    %s7977 = scalar_lea.sflag [#allocation6], 1
    %7978 = vsyncpa %s7977, 1

</llo_original>
